<compile_context>
chip_gen: v7x
topology: tpu7x:2x2x1
jax: 0.10.0
libtpu: 0.0.40
codegen_flags: <defaults>
</compile_context>

<pallas_src>
import jax
import jax.numpy as jnp
from jax.experimental import pallas as pl
from jax.experimental.pallas import tpu as pltpu

H = W = 16
OUT_CH = 32
POOL = 14
AW = W * OUT_CH          # 512: activation lane width  (width, channel)
PW = POOL * OUT_CH       # 448: valid pooled lane width (pooled width, channel)
WPAD = W + 6             # 22 : image padded by 3 on each side (shared halo)
KIM = 7 * WPAD           # 154: im2col contraction depth (7 rows x 22 cols)
KPAD = 160               # padded K for the fused front-conv matmul


def _pool_bins(in_size, out_size):
    """PyTorch AdaptiveAvgPool bins: [floor(i*I/O), ceil((i+1)*I/O))."""
    bins = []
    for i in range(out_size):
        s = (i * in_size) // out_size
        e = ((i + 1) * in_size + out_size - 1) // out_size
        bins.append((s, e - s))
    return bins


# --------------------------------------------------------------------------- #
# Weight preprocessing (pure layout packing, done once in the wrapper).
# --------------------------------------------------------------------------- #
def _front_band_matrices(w3t, w7t):
    """(7, 22, 512) band matrices M_kh with M_kh[j, c*32+o] such that
       front[(b,r), (c,o)] = sum_kh  x_pad[b, r+kh, :] @ M_kh[:, (c,o)]
    reproduces the 3x3 (channels 0..15) and 7x7 (channels 16..31) convs."""
    kh = jnp.arange(7)[:, None, None, None]
    j = jnp.arange(WPAD)[None, :, None, None]
    c = jnp.arange(W)[None, None, :, None]
    o = jnp.arange(OUT_CH)[None, None, None, :]

    i3, jj3 = kh - 2, j - c - 2
    v3 = (i3 >= 0) & (i3 < 3) & (jj3 >= 0) & (jj3 < 3) & (o < 16)
    m3 = jnp.where(
        v3, w3t[jnp.clip(i3, 0, 2), jnp.clip(jj3, 0, 2), jnp.clip(o, 0, 15)], 0.0)

    jj7 = j - c
    v7 = (jj7 >= 0) & (jj7 < 7) & (o >= 16)
    m7 = jnp.where(
        v7, w7t[jnp.clip(kh, 0, 6), jnp.clip(jj7, 0, 6), jnp.clip(o - 16, 0, 15)], 0.0)

    return (m3 + m7).reshape(7, WPAD, AW).astype(jnp.float32)


# --------------------------------------------------------------------------- #
# Fused kernel
# --------------------------------------------------------------------------- #
def _make_kernel(h_bins):
    def kernel(x_ref, mfront_ref, bfront_ref, wcomb_ref, bcomb_ref,
               wlat_ref, blat_ref, gain_ref, out_ref):
        bb = x_ref.shape[0]
        rows = bb * H

        # --- front 3x3 / 7x7 convs (+ negated OFF paths): one K=160 matmul --
        x = x_ref[...].reshape(rows, KPAD).astype(jnp.bfloat16)
        front = jnp.dot(x, mfront_ref[...], preferred_element_type=jnp.float32)
        front = jnp.maximum(front + bfront_ref[...], 0.0)        # (rows, 512)

        # --- 1x1 combine conv: block-diagonal (512,512) matmul on the MXU ---
        comb = jnp.dot(front.astype(jnp.bfloat16), wcomb_ref[...],
                       preferred_element_type=jnp.float32) + bcomb_ref[...]

        # --- depthwise 3x3 lateral inhibition: 9 VPU FMAs on rolled slabs ---
        lane = jax.lax.broadcasted_iota(jnp.int32, (1, AW), 1)
        rmod = jax.lax.broadcasted_iota(jnp.int32, (rows, 1), 0) % H

        def wshift(v, d):            # value of width-neighbour (w+d) at width w
            if d == 0:
                return v
            r = pltpu.roll(v, shift=(AW - 32 * d) % AW, axis=1)
            if d > 0:                # w = 15 has no right neighbour
                return jnp.where(lane < AW - 32, r, 0.0)
            return jnp.where(lane >= 32, r, 0.0)   # w = 0 has no left neighbour

        def rshift(v, e):            # value of row-neighbour (r+e) at row r
            if e == 0:
                return v
            r = pltpu.roll(v, shift=(rows - e) % rows, axis=0)
            if e > 0:                # bottom row of each image
                return jnp.where(rmod < H - 1, r, 0.0)
            return jnp.where(rmod > 0, r, 0.0)     # top row of each image

        acc = None
        for e in (-1, 0, 1):
            ve = rshift(comb, e)
            for d in (-1, 0, 1):
                idx = (e + 1) * 3 + (d + 1)        # = i*3 + j of the 3x3 tap
                term = wlat_ref[idx:idx + 1, :] * wshift(ve, d)
                acc = term if acc is None else acc + term
        lat = acc + blat_ref[...]

        act = (comb - 0.1 * jnp.maximum(lat, 0.0)) * gain_ref[...]

        # --- adaptive avg-pool width: lane shift-adds (output padded to 512) -
        # all 16->14 bins have size 2; bin i starts at s_i = i (i<=6) / i+1 (i>=7)
        s1 = act + pltpu.roll(act, shift=AW - 32, axis=1)   # grp w: act_w + act_{w+1}
        s2 = pltpu.roll(s1, shift=AW - 32, axis=1)          # grp w: act_{w+1} + act_{w+2}
        wp = 0.5 * jnp.where(lane < 7 * 32, s1,
                             jnp.where(lane < 14 * 32, s2, 0.0))
        wp3 = wp.reshape(bb, H, AW)

        # --- adaptive avg-pool height: direct per-bin stores -----------------
        for i, (s, sz) in enumerate(h_bins):
            acc_h = wp3[:, s:s + 1, :]
            for dd in range(1, sz):
                acc_h = acc_h + wp3[:, s + dd:s + dd + 1, :]
            out_ref[:, i:i + 1, :] = acc_h * (1.0 / sz)

    return kernel


# --------------------------------------------------------------------------- #
# Parameters / wrapper
# --------------------------------------------------------------------------- #
def init_params(key):
    ks = jax.random.split(key, 12)
    n = lambda k, shape, s: s * jax.random.normal(k, shape, jnp.float32)
    q = OUT_CH // 4
    return dict(
        w_con=n(ks[0], (q, 1, 3, 3), 0.2),  b_con=n(ks[1], (q,), 0.1),
        w_coff=n(ks[2], (q, 1, 3, 3), 0.2), b_coff=n(ks[3], (q,), 0.1),
        w_son=n(ks[4], (q, 1, 7, 7), 0.1),  b_son=n(ks[5], (q,), 0.1),
        w_soff=n(ks[6], (q, 1, 7, 7), 0.1), b_soff=n(ks[7], (q,), 0.1),
        w_comb=n(ks[8], (OUT_CH, OUT_CH, 1, 1), 0.15),
        b_comb=n(ks[9], (OUT_CH,), 0.1),
        w_lat=n(ks[10], (OUT_CH, 1, 3, 3), 0.2),
        b_lat=n(ks[11], (OUT_CH,), 0.1),
        gain=jnp.ones((OUT_CH,), jnp.float32),
    )


def retinal_forward(x_nchw, p, *, batch_block=8):
    N, cin, h, w = x_nchw.shape
    assert cin == 1 and h == H and w == W
    bb = max(1, min(batch_block, N))
    n_blocks = (N + bb - 1) // bb
    Np = n_blocks * bb

    # Shared halo-pad (3 each side) + 7-row im2col -> (Np, 16, 160) f32.
    xpad = jnp.pad(x_nchw[:, 0].astype(jnp.float32),
                   ((0, Np - N), (3, 3), (3, 3)))                 # (Np, 22, 22)
    xcol = jnp.stack([xpad[:, kh:kh + H, :] for kh in range(7)], axis=2)
    xcol = xcol.reshape(Np, H, KIM)
    xcol = jnp.pad(xcol, ((0, 0), (0, 0), (0, KPAD - KIM)))       # (Np, 16, 160)

    # --- pack weights into the kernel's lane-dense layouts -------------------
    w3t = jnp.transpose(jnp.concatenate([p['w_con'], -p['w_coff']], 0)[:, 0],
                        (1, 2, 0))                                # (3, 3, 16)
    w7t = jnp.transpose(jnp.concatenate([p['w_son'], -p['w_soff']], 0)[:, 0],
                        (1, 2, 0))                                # (7, 7, 16)
    m_front = _front_band_matrices(w3t, w7t).reshape(KIM, AW)     # (154, 512)
    m_front = jnp.pad(m_front, ((0, KPAD - KIM), (0, 0))).astype(jnp.bfloat16)
    b_front = jnp.tile(jnp.concatenate([p['b_con'], -p['b_coff'],
                                        p['b_son'], -p['b_soff']]),
                       W).reshape(1, AW)

    eye16 = jnp.eye(W, dtype=jnp.float32)
    w_comb_bd = jnp.kron(eye16, p['w_comb'][:, :, 0, 0].T).astype(jnp.bfloat16)
    b_comb = jnp.tile(p['b_comb'], W).reshape(1, AW)

    wd = p['w_lat'][:, 0]                                         # (32, 3, 3)
    w_lat_taps = jnp.stack([jnp.tile(wd[:, i, j], W)              # (9, 512)
                            for i in range(3) for j in range(3)], axis=0)
    b_lat = jnp.tile(p['b_lat'], W).reshape(1, AW)
    gain_t = jnp.tile(jax.nn.sigmoid(p['gain']), W).reshape(1, AW)

    kernel = _make_kernel(_pool_bins(H, POOL))

    def _const_spec(shape):
        return pl.BlockSpec(shape, lambda n, _r=len(shape): (0,) * _r)

    out = pl.pallas_call(
        kernel,
        out_shape=jax.ShapeDtypeStruct((Np, POOL, AW), jnp.float32),
        grid=(n_blocks,),
        in_specs=[
            pl.BlockSpec((bb, H, KPAD), lambda n: (n, 0, 0)),
            _const_spec((KPAD, AW)),     # m_front (bf16)
            _const_spec((1, AW)),        # b_front
            _const_spec((AW, AW)),       # w_comb block-diag (bf16)
            _const_spec((1, AW)),        # b_comb
            _const_spec((9, AW)),        # lateral-inhibition taps
            _const_spec((1, AW)),        # b_lat
            _const_spec((1, AW)),        # sigmoid(gain)
        ],
        out_specs=pl.BlockSpec((bb, POOL, AW), lambda n: (n, 0, 0)),
        compiler_params=pltpu.CompilerParams(
            dimension_semantics=("parallel",),
            vmem_limit_bytes=32 * 1024 * 1024),
    )(xcol, m_front, b_front, w_comb_bd, b_comb, w_lat_taps, b_lat, gain_t)

    out = out[:N, :, :PW].reshape(N, POOL, POOL, OUT_CH)
    return jnp.transpose(out, (0, 3, 1, 2))                       # (N, 32, 14, 14)


# --------------------------------------------------------------------------- #
# Pure-JAX reference mirroring the PyTorch module (for validation).
# --------------------------------------------------------------------------- #
def reference_forward(x_nchw, p):
    dn = ('NCHW', 'OIHW', 'NCHW')
    relu = jax.nn.relu

    def conv(x, wgt, pad, groups=1):
        return jax.lax.conv_general_dilated(
            x, wgt, window_strides=(1, 1), padding=[(pad, pad), (pad, pad)],
            dimension_numbers=dn, feature_group_count=groups)

    b = lambda v: v[None, :, None, None]
    c_on = relu(conv(x_nchw, p['w_con'], 1) + b(p['b_con']))
    c_off = relu(-(conv(x_nchw, p['w_coff'], 1) + b(p['b_coff'])))
    s_on = relu(conv(x_nchw, p['w_son'], 3) + b(p['b_son']))
    s_off = relu(-(conv(x_nchw, p['w_soff'], 3) + b(p['b_soff'])))
    combined = jnp.concatenate([c_on, c_off, s_on, s_off], axis=1)
    combined = conv(combined, p['w_comb'], 0) + b(p['b_comb'])
    lat = conv(combined, p['w_lat'], 1, groups=OUT_CH) + b(p['b_lat'])
    inhibited = combined - 0.1 * relu(lat)
    out = inhibited * jax.nn.sigmoid(p['gain']).reshape(1, -1, 1, 1)

    hb, wb = _pool_bins(out.shape[2], POOL), _pool_bins(out.shape[3], POOL)
    rows = []
    for (hs, hsz) in hb:
        cols = []
        for (ws, wsz) in wb:
            cols.append(jnp.mean(out[:, :, hs:hs + hsz, ws:ws + wsz], axis=(2, 3)))
        rows.append(jnp.stack(cols, axis=-1))
    return jnp.stack(rows, axis=-2)                               # (N, 32, 14, 14)


if __name__ == "__main__":
    key = jax.random.PRNGKey(0)
    kp, kx = jax.random.split(key)
    params = init_params(kp)
    x = jax.random.normal(kx, (16, 1, H, W), jnp.float32)

    out = retinal_forward(x, params, batch_block=8)   # grid=(2,): both TCs busy on v7x
    out = jax.block_until_ready(out)

    ref = reference_forward(x, params)
    assert out.shape == (16, OUT_CH, POOL, POOL)
    # Front/combine matmuls run in bf16 (same rounding as default MXU precision);
    # lateral inhibition and pooling are now exact f32 VPU math.
    assert bool(jnp.allclose(out, ref, rtol=5e-2, atol=5e-2)), \
        float(jnp.max(jnp.abs(out - ref)))
    print("KERNEL_OK")
</pallas_src>

<mosaic_0001>
module attributes {stable_mosaic.version = 11 : i64} {
  func.func @kernel(%arg0: i32, %arg1: memref<8x16x160xf32, #tpu.memory_space<vmem>>, %arg2: memref<160x512xbf16, #tpu.memory_space<vmem>>, %arg3: memref<1x512xf32, #tpu.memory_space<vmem>>, %arg4: memref<512x512xbf16, #tpu.memory_space<vmem>>, %arg5: memref<1x512xf32, #tpu.memory_space<vmem>>, %arg6: memref<9x512xf32, #tpu.memory_space<vmem>>, %arg7: memref<1x512xf32, #tpu.memory_space<vmem>>, %arg8: memref<1x512xf32, #tpu.memory_space<vmem>>, %arg9: memref<8x14x512xf32, #tpu.memory_space<vmem>>) attributes {dimension_semantics = [#tpu.dimension_semantics<parallel>], iteration_bounds = array<i64: 2>, scalar_prefetch = 0 : i64, scratch_operands = 0 : i64, tpu.core_type = #tpu.core_type<tc>, window_params = [{transform_indices = @transform_0, window_bounds = array<i64: 8, 16, 160>}, {pipeline_mode = #tpu.pipeline_mode<synchronous>, transform_indices = @transform_1, window_bounds = array<i64: 160, 512>}, {pipeline_mode = #tpu.pipeline_mode<synchronous>, transform_indices = @transform_2, window_bounds = array<i64: 1, 512>}, {pipeline_mode = #tpu.pipeline_mode<synchronous>, transform_indices = @transform_3, window_bounds = array<i64: 512, 512>}, {pipeline_mode = #tpu.pipeline_mode<synchronous>, transform_indices = @transform_4, window_bounds = array<i64: 1, 512>}, {pipeline_mode = #tpu.pipeline_mode<synchronous>, transform_indices = @transform_5, window_bounds = array<i64: 9, 512>}, {pipeline_mode = #tpu.pipeline_mode<synchronous>, transform_indices = @transform_6, window_bounds = array<i64: 1, 512>}, {pipeline_mode = #tpu.pipeline_mode<synchronous>, transform_indices = @transform_7, window_bounds = array<i64: 1, 512>}, {transform_indices = @transform_8, window_bounds = array<i64: 8, 14, 512>}]} {
    %c0 = arith.constant 0 : index
    %c0_0 = arith.constant 0 : index
    %c0_1 = arith.constant 0 : index
    %0 = vector.load %arg1[%c0, %c0_0, %c0_1] : memref<8x16x160xf32, #tpu.memory_space<vmem>>, vector<8x16x160xf32>
    %1 = vector.shape_cast %0 : vector<8x16x160xf32> to vector<128x160xf32>
    %2 = arith.truncf %1 : vector<128x160xf32> to vector<128x160xbf16>
    %c0_2 = arith.constant 0 : index
    %c0_3 = arith.constant 0 : index
    %3 = vector.load %arg2[%c0_2, %c0_3] : memref<160x512xbf16, #tpu.memory_space<vmem>>, vector<160x512xbf16>
    %cst = arith.constant dense<0.000000e+00> : vector<128x512xf32>
    %4 = tpu.matmul %2, %3, %cst {dimension_numbers = #tpu.dot_dimension_numbers<[1], [0], [0], [1], [0, 0, 1, 1], [], []>} : vector<128x160xbf16>, vector<160x512xbf16>, vector<128x512xf32> -> vector<128x512xf32>
    %c0_4 = arith.constant 0 : index
    %c0_5 = arith.constant 0 : index
    %5 = vector.load %arg3[%c0_4, %c0_5] : memref<1x512xf32, #tpu.memory_space<vmem>>, vector<1x512xf32>
    %6 = vector.broadcast %5 : vector<1x512xf32> to vector<128x512xf32>
    %7 = arith.addf %4, %6 : vector<128x512xf32>
    %cst_6 = arith.constant 0.000000e+00 : f32
    %8 = vector.broadcast %cst_6 : f32 to vector<128x512xf32>
    %9 = arith.maximumf %7, %8 : vector<128x512xf32>
    %10 = arith.truncf %9 : vector<128x512xf32> to vector<128x512xbf16>
    %c0_7 = arith.constant 0 : index
    %c0_8 = arith.constant 0 : index
    %11 = vector.load %arg4[%c0_7, %c0_8] : memref<512x512xbf16, #tpu.memory_space<vmem>>, vector<512x512xbf16>
    %cst_9 = arith.constant dense<0.000000e+00> : vector<128x512xf32>
    %12 = tpu.matmul %10, %11, %cst_9 {dimension_numbers = #tpu.dot_dimension_numbers<[1], [0], [0], [1], [0, 0, 1, 1], [], []>} : vector<128x512xbf16>, vector<512x512xbf16>, vector<128x512xf32> -> vector<128x512xf32>
    %c0_10 = arith.constant 0 : index
    %c0_11 = arith.constant 0 : index
    %13 = vector.load %arg5[%c0_10, %c0_11] : memref<1x512xf32, #tpu.memory_space<vmem>>, vector<1x512xf32>
    %14 = vector.broadcast %13 : vector<1x512xf32> to vector<128x512xf32>
    %15 = arith.addf %12, %14 : vector<128x512xf32>
    %16 = tpu.iota {dimensions = array<i32: 1>} : vector<1x512xi32>
    %17 = tpu.iota {dimensions = array<i32: 0>} : vector<128x1xi32>
    %c16_i32 = arith.constant 16 : i32
    %c0_i32 = arith.constant 0 : i32
    %18 = arith.cmpi eq, %c16_i32, %c0_i32 : i32
    %c1_i32 = arith.constant 1 : i32
    %19 = arith.select %18, %c1_i32, %c16_i32 : i32
    %20 = vector.broadcast %19 : i32 to vector<128x1xi32>
    %21 = arith.remsi %17, %20 : vector<128x1xi32>
    %c0_i32_12 = arith.constant 0 : i32
    %22 = vector.broadcast %c0_i32_12 : i32 to vector<128x1xi32>
    %23 = arith.cmpi ne, %21, %22 : vector<128x1xi32>
    %c0_i32_13 = arith.constant 0 : i32
    %24 = vector.broadcast %c0_i32_13 : i32 to vector<128x1xi32>
    %25 = arith.cmpi slt, %21, %24 : vector<128x1xi32>
    %c0_i32_14 = arith.constant 0 : i32
    %26 = arith.cmpi slt, %19, %c0_i32_14 : i32
    %27 = vector.broadcast %26 : i1 to vector<128x1xi1>
    %28 = vector.broadcast %27 : vector<128x1xi1> to vector<128x1xi1>
    %29 = arith.xori %25, %28 : vector<128x1xi1>
    %30 = arith.andi %29, %23 : vector<128x1xi1>
    %31 = vector.broadcast %19 : i32 to vector<128x1xi32>
    %32 = arith.addi %21, %31 : vector<128x1xi32>
    %33 = arith.select %30, %32, %21 : vector<128x1xi1>, vector<128x1xi32>
    %c1_i32_15 = arith.constant 1 : i32
    %34 = tpu.dynamic_rotate %15 by %c1_i32_15 dim 0 : vector<128x512xf32>, i32 -> vector<128x512xf32>
    %c0_i32_16 = arith.constant 0 : i32
    %35 = vector.broadcast %c0_i32_16 : i32 to vector<128x1xi32>
    %36 = arith.cmpi sgt, %33, %35 : vector<128x1xi32>
    %cst_17 = arith.constant 0.000000e+00 : f32
    %37 = vector.shape_cast %36 : vector<128x1xi1> to vector<128x1xi1>
    %38 = vector.broadcast %37 : vector<128x1xi1> to vector<128x512xi1>
    %39 = vector.broadcast %cst_17 : f32 to vector<128x512xf32>
    %40 = arith.select %38, %34, %39 : vector<128x512xi1>, vector<128x512xf32>
    %c0_18 = arith.constant 0 : index
    %c0_19 = arith.constant 0 : index
    %41 = vector.load %arg6[%c0_18, %c0_19] : memref<9x512xf32, #tpu.memory_space<vmem>>, vector<1x512xf32>
    %c32_i32 = arith.constant 32 : i32
    %42 = tpu.dynamic_rotate %40 by %c32_i32 dim 1 : vector<128x512xf32>, i32 -> vector<128x512xf32>
    %c32_i32_20 = arith.constant 32 : i32
    %43 = vector.broadcast %c32_i32_20 : i32 to vector<1x512xi32>
    %44 = arith.cmpi sge, %16, %43 : vector<1x512xi32>
    %cst_21 = arith.constant 0.000000e+00 : f32
    %45 = vector.shape_cast %44 : vector<1x512xi1> to vector<1x512xi1>
    %46 = vector.broadcast %45 : vector<1x512xi1> to vector<128x512xi1>
    %47 = vector.broadcast %cst_21 : f32 to vector<128x512xf32>
    %48 = arith.select %46, %42, %47 : vector<128x512xi1>, vector<128x512xf32>
    %49 = vector.broadcast %41 : vector<1x512xf32> to vector<128x512xf32>
    %50 = arith.mulf %49, %48 : vector<128x512xf32>
    %c1 = arith.constant 1 : index
    %c0_22 = arith.constant 0 : index
    %51 = vector.load %arg6[%c1, %c0_22] : memref<9x512xf32, #tpu.memory_space<vmem>>, vector<1x512xf32>
    %52 = vector.broadcast %51 : vector<1x512xf32> to vector<128x512xf32>
    %53 = arith.mulf %52, %40 : vector<128x512xf32>
    %54 = arith.addf %50, %53 : vector<128x512xf32>
    %c2 = arith.constant 2 : index
    %c0_23 = arith.constant 0 : index
    %55 = vector.load %arg6[%c2, %c0_23] : memref<9x512xf32, #tpu.memory_space<vmem>>, vector<1x512xf32>
    %c480_i32 = arith.constant 480 : i32
    %56 = tpu.dynamic_rotate %40 by %c480_i32 dim 1 : vector<128x512xf32>, i32 -> vector<128x512xf32>
    %c480_i32_24 = arith.constant 480 : i32
    %57 = vector.broadcast %c480_i32_24 : i32 to vector<1x512xi32>
    %58 = arith.cmpi slt, %16, %57 : vector<1x512xi32>
    %cst_25 = arith.constant 0.000000e+00 : f32
    %59 = vector.shape_cast %58 : vector<1x512xi1> to vector<1x512xi1>
    %60 = vector.broadcast %59 : vector<1x512xi1> to vector<128x512xi1>
    %61 = vector.broadcast %cst_25 : f32 to vector<128x512xf32>
    %62 = arith.select %60, %56, %61 : vector<128x512xi1>, vector<128x512xf32>
    %63 = vector.broadcast %55 : vector<1x512xf32> to vector<128x512xf32>
    %64 = arith.mulf %63, %62 : vector<128x512xf32>
    %65 = arith.addf %54, %64 : vector<128x512xf32>
    %c3 = arith.constant 3 : index
    %c0_26 = arith.constant 0 : index
    %66 = vector.load %arg6[%c3, %c0_26] : memref<9x512xf32, #tpu.memory_space<vmem>>, vector<1x512xf32>
    %c32_i32_27 = arith.constant 32 : i32
    %67 = tpu.dynamic_rotate %15 by %c32_i32_27 dim 1 : vector<128x512xf32>, i32 -> vector<128x512xf32>
    %c32_i32_28 = arith.constant 32 : i32
    %68 = vector.broadcast %c32_i32_28 : i32 to vector<1x512xi32>
    %69 = arith.cmpi sge, %16, %68 : vector<1x512xi32>
    %cst_29 = arith.constant 0.000000e+00 : f32
    %70 = vector.shape_cast %69 : vector<1x512xi1> to vector<1x512xi1>
    %71 = vector.broadcast %70 : vector<1x512xi1> to vector<128x512xi1>
    %72 = vector.broadcast %cst_29 : f32 to vector<128x512xf32>
    %73 = arith.select %71, %67, %72 : vector<128x512xi1>, vector<128x512xf32>
    %74 = vector.broadcast %66 : vector<1x512xf32> to vector<128x512xf32>
    %75 = arith.mulf %74, %73 : vector<128x512xf32>
    %76 = arith.addf %65, %75 : vector<128x512xf32>
    %c4 = arith.constant 4 : index
    %c0_30 = arith.constant 0 : index
    %77 = vector.load %arg6[%c4, %c0_30] : memref<9x512xf32, #tpu.memory_space<vmem>>, vector<1x512xf32>
    %78 = vector.broadcast %77 : vector<1x512xf32> to vector<128x512xf32>
    %79 = arith.mulf %78, %15 : vector<128x512xf32>
    %80 = arith.addf %76, %79 : vector<128x512xf32>
    %c5 = arith.constant 5 : index
    %c0_31 = arith.constant 0 : index
    %81 = vector.load %arg6[%c5, %c0_31] : memref<9x512xf32, #tpu.memory_space<vmem>>, vector<1x512xf32>
    %c480_i32_32 = arith.constant 480 : i32
    %82 = tpu.dynamic_rotate %15 by %c480_i32_32 dim 1 : vector<128x512xf32>, i32 -> vector<128x512xf32>
    %c480_i32_33 = arith.constant 480 : i32
    %83 = vector.broadcast %c480_i32_33 : i32 to vector<1x512xi32>
    %84 = arith.cmpi slt, %16, %83 : vector<1x512xi32>
    %cst_34 = arith.constant 0.000000e+00 : f32
    %85 = vector.shape_cast %84 : vector<1x512xi1> to vector<1x512xi1>
    %86 = vector.broadcast %85 : vector<1x512xi1> to vector<128x512xi1>
    %87 = vector.broadcast %cst_34 : f32 to vector<128x512xf32>
    %88 = arith.select %86, %82, %87 : vector<128x512xi1>, vector<128x512xf32>
    %89 = vector.broadcast %81 : vector<1x512xf32> to vector<128x512xf32>
    %90 = arith.mulf %89, %88 : vector<128x512xf32>
    %91 = arith.addf %80, %90 : vector<128x512xf32>
    %c127_i32 = arith.constant 127 : i32
    %92 = tpu.dynamic_rotate %15 by %c127_i32 dim 0 : vector<128x512xf32>, i32 -> vector<128x512xf32>
    %c15_i32 = arith.constant 15 : i32
    %93 = vector.broadcast %c15_i32 : i32 to vector<128x1xi32>
    %94 = arith.cmpi slt, %33, %93 : vector<128x1xi32>
    %cst_35 = arith.constant 0.000000e+00 : f32
    %95 = vector.shape_cast %94 : vector<128x1xi1> to vector<128x1xi1>
    %96 = vector.broadcast %95 : vector<128x1xi1> to vector<128x512xi1>
    %97 = vector.broadcast %cst_35 : f32 to vector<128x512xf32>
    %98 = arith.select %96, %92, %97 : vector<128x512xi1>, vector<128x512xf32>
    %c6 = arith.constant 6 : index
    %c0_36 = arith.constant 0 : index
    %99 = vector.load %arg6[%c6, %c0_36] : memref<9x512xf32, #tpu.memory_space<vmem>>, vector<1x512xf32>
    %c32_i32_37 = arith.constant 32 : i32
    %100 = tpu.dynamic_rotate %98 by %c32_i32_37 dim 1 : vector<128x512xf32>, i32 -> vector<128x512xf32>
    %c32_i32_38 = arith.constant 32 : i32
    %101 = vector.broadcast %c32_i32_38 : i32 to vector<1x512xi32>
    %102 = arith.cmpi sge, %16, %101 : vector<1x512xi32>
    %cst_39 = arith.constant 0.000000e+00 : f32
    %103 = vector.shape_cast %102 : vector<1x512xi1> to vector<1x512xi1>
    %104 = vector.broadcast %103 : vector<1x512xi1> to vector<128x512xi1>
    %105 = vector.broadcast %cst_39 : f32 to vector<128x512xf32>
    %106 = arith.select %104, %100, %105 : vector<128x512xi1>, vector<128x512xf32>
    %107 = vector.broadcast %99 : vector<1x512xf32> to vector<128x512xf32>
    %108 = arith.mulf %107, %106 : vector<128x512xf32>
    %109 = arith.addf %91, %108 : vector<128x512xf32>
    %c7 = arith.constant 7 : index
    %c0_40 = arith.constant 0 : index
    %110 = vector.load %arg6[%c7, %c0_40] : memref<9x512xf32, #tpu.memory_space<vmem>>, vector<1x512xf32>
    %111 = vector.broadcast %110 : vector<1x512xf32> to vector<128x512xf32>
    %112 = arith.mulf %111, %98 : vector<128x512xf32>
    %113 = arith.addf %109, %112 : vector<128x512xf32>
    %c8 = arith.constant 8 : index
    %c0_41 = arith.constant 0 : index
    %114 = vector.load %arg6[%c8, %c0_41] : memref<9x512xf32, #tpu.memory_space<vmem>>, vector<1x512xf32>
    %c480_i32_42 = arith.constant 480 : i32
    %115 = tpu.dynamic_rotate %98 by %c480_i32_42 dim 1 : vector<128x512xf32>, i32 -> vector<128x512xf32>
    %c480_i32_43 = arith.constant 480 : i32
    %116 = vector.broadcast %c480_i32_43 : i32 to vector<1x512xi32>
    %117 = arith.cmpi slt, %16, %116 : vector<1x512xi32>
    %cst_44 = arith.constant 0.000000e+00 : f32
    %118 = vector.shape_cast %117 : vector<1x512xi1> to vector<1x512xi1>
    %119 = vector.broadcast %118 : vector<1x512xi1> to vector<128x512xi1>
    %120 = vector.broadcast %cst_44 : f32 to vector<128x512xf32>
    %121 = arith.select %119, %115, %120 : vector<128x512xi1>, vector<128x512xf32>
    %122 = vector.broadcast %114 : vector<1x512xf32> to vector<128x512xf32>
    %123 = arith.mulf %122, %121 : vector<128x512xf32>
    %124 = arith.addf %113, %123 : vector<128x512xf32>
    %c0_45 = arith.constant 0 : index
    %c0_46 = arith.constant 0 : index
    %125 = vector.load %arg7[%c0_45, %c0_46] : memref<1x512xf32, #tpu.memory_space<vmem>>, vector<1x512xf32>
    %126 = vector.broadcast %125 : vector<1x512xf32> to vector<128x512xf32>
    %127 = arith.addf %124, %126 : vector<128x512xf32>
    %cst_47 = arith.constant 0.000000e+00 : f32
    %128 = vector.broadcast %cst_47 : f32 to vector<128x512xf32>
    %129 = arith.maximumf %127, %128 : vector<128x512xf32>
    %cst_48 = arith.constant 1.000000e-01 : f32
    %130 = vector.broadcast %cst_48 : f32 to vector<128x512xf32>
    %131 = arith.mulf %130, %129 : vector<128x512xf32>
    %132 = arith.subf %15, %131 : vector<128x512xf32>
    %c0_49 = arith.constant 0 : index
    %c0_50 = arith.constant 0 : index
    %133 = vector.load %arg8[%c0_49, %c0_50] : memref<1x512xf32, #tpu.memory_space<vmem>>, vector<1x512xf32>
    %134 = vector.broadcast %133 : vector<1x512xf32> to vector<128x512xf32>
    %135 = arith.mulf %132, %134 : vector<128x512xf32>
    %c480_i32_51 = arith.constant 480 : i32
    %136 = tpu.dynamic_rotate %135 by %c480_i32_51 dim 1 : vector<128x512xf32>, i32 -> vector<128x512xf32>
    %137 = arith.addf %135, %136 : vector<128x512xf32>
    %c480_i32_52 = arith.constant 480 : i32
    %138 = tpu.dynamic_rotate %137 by %c480_i32_52 dim 1 : vector<128x512xf32>, i32 -> vector<128x512xf32>
    %c224_i32 = arith.constant 224 : i32
    %139 = vector.broadcast %c224_i32 : i32 to vector<1x512xi32>
    %140 = arith.cmpi slt, %16, %139 : vector<1x512xi32>
    %c448_i32 = arith.constant 448 : i32
    %141 = vector.broadcast %c448_i32 : i32 to vector<1x512xi32>
    %142 = arith.cmpi slt, %16, %141 : vector<1x512xi32>
    %cst_53 = arith.constant 0.000000e+00 : f32
    %143 = vector.shape_cast %142 : vector<1x512xi1> to vector<1x512xi1>
    %144 = vector.broadcast %143 : vector<1x512xi1> to vector<128x512xi1>
    %145 = vector.broadcast %cst_53 : f32 to vector<128x512xf32>
    %146 = arith.select %144, %138, %145 : vector<128x512xi1>, vector<128x512xf32>
    %147 = vector.shape_cast %140 : vector<1x512xi1> to vector<1x512xi1>
    %148 = vector.broadcast %147 : vector<1x512xi1> to vector<128x512xi1>
    %149 = arith.select %148, %137, %146 : vector<128x512xi1>, vector<128x512xf32>
    %cst_54 = arith.constant 5.000000e-01 : f32
    %150 = vector.broadcast %cst_54 : f32 to vector<128x512xf32>
    %151 = arith.mulf %150, %149 : vector<128x512xf32>
    %152 = vector.shape_cast %151 : vector<128x512xf32> to vector<8x16x512xf32>
    %153 = vector.extract_strided_slice %152 {offsets = [0, 0, 0], sizes = [8, 1, 512], strides = [1, 1, 1]} : vector<8x16x512xf32> to vector<8x1x512xf32>
    %154 = vector.extract_strided_slice %152 {offsets = [0, 1, 0], sizes = [8, 1, 512], strides = [1, 1, 1]} : vector<8x16x512xf32> to vector<8x1x512xf32>
    %155 = arith.addf %153, %154 : vector<8x1x512xf32>
    %cst_55 = arith.constant 5.000000e-01 : f32
    %156 = vector.broadcast %cst_55 : f32 to vector<8x1x512xf32>
    %157 = arith.mulf %155, %156 : vector<8x1x512xf32>
    %c0_56 = arith.constant 0 : index
    %c0_57 = arith.constant 0 : index
    %c0_58 = arith.constant 0 : index
    %158 = vector.load %arg9[%c0_56, %c0_57, %c0_58] : memref<8x14x512xf32, #tpu.memory_space<vmem>>, vector<8x1x512xf32>
    tpu.vector_store %arg9[%c0_56, %c0_57, %c0_58], %157 {strides = array<i32>} : memref<8x14x512xf32, #tpu.memory_space<vmem>>, vector<8x1x512xf32>,
    %159 = vector.extract_strided_slice %152 {offsets = [0, 1, 0], sizes = [8, 1, 512], strides = [1, 1, 1]} : vector<8x16x512xf32> to vector<8x1x512xf32>
    %160 = vector.extract_strided_slice %152 {offsets = [0, 2, 0], sizes = [8, 1, 512], strides = [1, 1, 1]} : vector<8x16x512xf32> to vector<8x1x512xf32>
    %161 = arith.addf %159, %160 : vector<8x1x512xf32>
    %cst_59 = arith.constant 5.000000e-01 : f32
    %162 = vector.broadcast %cst_59 : f32 to vector<8x1x512xf32>
    %163 = arith.mulf %161, %162 : vector<8x1x512xf32>
    %c0_60 = arith.constant 0 : index
    %c1_61 = arith.constant 1 : index
    %c0_62 = arith.constant 0 : index
    %164 = vector.load %arg9[%c0_60, %c1_61, %c0_62] : memref<8x14x512xf32, #tpu.memory_space<vmem>>, vector<8x1x512xf32>
    tpu.vector_store %arg9[%c0_60, %c1_61, %c0_62], %163 {strides = array<i32>} : memref<8x14x512xf32, #tpu.memory_space<vmem>>, vector<8x1x512xf32>,
    %165 = vector.extract_strided_slice %152 {offsets = [0, 2, 0], sizes = [8, 1, 512], strides = [1, 1, 1]} : vector<8x16x512xf32> to vector<8x1x512xf32>
    %166 = vector.extract_strided_slice %152 {offsets = [0, 3, 0], sizes = [8, 1, 512], strides = [1, 1, 1]} : vector<8x16x512xf32> to vector<8x1x512xf32>
    %167 = arith.addf %165, %166 : vector<8x1x512xf32>
    %cst_63 = arith.constant 5.000000e-01 : f32
    %168 = vector.broadcast %cst_63 : f32 to vector<8x1x512xf32>
    %169 = arith.mulf %167, %168 : vector<8x1x512xf32>
    %c0_64 = arith.constant 0 : index
    %c2_65 = arith.constant 2 : index
    %c0_66 = arith.constant 0 : index
    %170 = vector.load %arg9[%c0_64, %c2_65, %c0_66] : memref<8x14x512xf32, #tpu.memory_space<vmem>>, vector<8x1x512xf32>
    tpu.vector_store %arg9[%c0_64, %c2_65, %c0_66], %169 {strides = array<i32>} : memref<8x14x512xf32, #tpu.memory_space<vmem>>, vector<8x1x512xf32>,
    %171 = vector.extract_strided_slice %152 {offsets = [0, 3, 0], sizes = [8, 1, 512], strides = [1, 1, 1]} : vector<8x16x512xf32> to vector<8x1x512xf32>
    %172 = vector.extract_strided_slice %152 {offsets = [0, 4, 0], sizes = [8, 1, 512], strides = [1, 1, 1]} : vector<8x16x512xf32> to vector<8x1x512xf32>
    %173 = arith.addf %171, %172 : vector<8x1x512xf32>
    %cst_67 = arith.constant 5.000000e-01 : f32
    %174 = vector.broadcast %cst_67 : f32 to vector<8x1x512xf32>
    %175 = arith.mulf %173, %174 : vector<8x1x512xf32>
    %c0_68 = arith.constant 0 : index
    %c3_69 = arith.constant 3 : index
    %c0_70 = arith.constant 0 : index
    %176 = vector.load %arg9[%c0_68, %c3_69, %c0_70] : memref<8x14x512xf32, #tpu.memory_space<vmem>>, vector<8x1x512xf32>
    tpu.vector_store %arg9[%c0_68, %c3_69, %c0_70], %175 {strides = array<i32>} : memref<8x14x512xf32, #tpu.memory_space<vmem>>, vector<8x1x512xf32>,
    %177 = vector.extract_strided_slice %152 {offsets = [0, 4, 0], sizes = [8, 1, 512], strides = [1, 1, 1]} : vector<8x16x512xf32> to vector<8x1x512xf32>
    %178 = vector.extract_strided_slice %152 {offsets = [0, 5, 0], sizes = [8, 1, 512], strides = [1, 1, 1]} : vector<8x16x512xf32> to vector<8x1x512xf32>
    %179 = arith.addf %177, %178 : vector<8x1x512xf32>
    %cst_71 = arith.constant 5.000000e-01 : f32
    %180 = vector.broadcast %cst_71 : f32 to vector<8x1x512xf32>
    %181 = arith.mulf %179, %180 : vector<8x1x512xf32>
    %c0_72 = arith.constant 0 : index
    %c4_73 = arith.constant 4 : index
    %c0_74 = arith.constant 0 : index
    %182 = vector.load %arg9[%c0_72, %c4_73, %c0_74] : memref<8x14x512xf32, #tpu.memory_space<vmem>>, vector<8x1x512xf32>
    tpu.vector_store %arg9[%c0_72, %c4_73, %c0_74], %181 {strides = array<i32>} : memref<8x14x512xf32, #tpu.memory_space<vmem>>, vector<8x1x512xf32>,
    %183 = vector.extract_strided_slice %152 {offsets = [0, 5, 0], sizes = [8, 1, 512], strides = [1, 1, 1]} : vector<8x16x512xf32> to vector<8x1x512xf32>
    %184 = vector.extract_strided_slice %152 {offsets = [0, 6, 0], sizes = [8, 1, 512], strides = [1, 1, 1]} : vector<8x16x512xf32> to vector<8x1x512xf32>
    %185 = arith.addf %183, %184 : vector<8x1x512xf32>
    %cst_75 = arith.constant 5.000000e-01 : f32
    %186 = vector.broadcast %cst_75 : f32 to vector<8x1x512xf32>
    %187 = arith.mulf %185, %186 : vector<8x1x512xf32>
    %c0_76 = arith.constant 0 : index
    %c5_77 = arith.constant 5 : index
    %c0_78 = arith.constant 0 : index
    %188 = vector.load %arg9[%c0_76, %c5_77, %c0_78] : memref<8x14x512xf32, #tpu.memory_space<vmem>>, vector<8x1x512xf32>
    tpu.vector_store %arg9[%c0_76, %c5_77, %c0_78], %187 {strides = array<i32>} : memref<8x14x512xf32, #tpu.memory_space<vmem>>, vector<8x1x512xf32>,
    %189 = vector.extract_strided_slice %152 {offsets = [0, 6, 0], sizes = [8, 1, 512], strides = [1, 1, 1]} : vector<8x16x512xf32> to vector<8x1x512xf32>
    %190 = vector.extract_strided_slice %152 {offsets = [0, 7, 0], sizes = [8, 1, 512], strides = [1, 1, 1]} : vector<8x16x512xf32> to vector<8x1x512xf32>
    %191 = arith.addf %189, %190 : vector<8x1x512xf32>
    %cst_79 = arith.constant 5.000000e-01 : f32
    %192 = vector.broadcast %cst_79 : f32 to vector<8x1x512xf32>
    %193 = arith.mulf %191, %192 : vector<8x1x512xf32>
    %c0_80 = arith.constant 0 : index
    %c6_81 = arith.constant 6 : index
    %c0_82 = arith.constant 0 : index
    %194 = vector.load %arg9[%c0_80, %c6_81, %c0_82] : memref<8x14x512xf32, #tpu.memory_space<vmem>>, vector<8x1x512xf32>
    tpu.vector_store %arg9[%c0_80, %c6_81, %c0_82], %193 {strides = array<i32>} : memref<8x14x512xf32, #tpu.memory_space<vmem>>, vector<8x1x512xf32>,
    %195 = vector.extract_strided_slice %152 {offsets = [0, 8, 0], sizes = [8, 1, 512], strides = [1, 1, 1]} : vector<8x16x512xf32> to vector<8x1x512xf32>
    %196 = vector.extract_strided_slice %152 {offsets = [0, 9, 0], sizes = [8, 1, 512], strides = [1, 1, 1]} : vector<8x16x512xf32> to vector<8x1x512xf32>
    %197 = arith.addf %195, %196 : vector<8x1x512xf32>
    %cst_83 = arith.constant 5.000000e-01 : f32
    %198 = vector.broadcast %cst_83 : f32 to vector<8x1x512xf32>
    %199 = arith.mulf %197, %198 : vector<8x1x512xf32>
    %c0_84 = arith.constant 0 : index
    %c7_85 = arith.constant 7 : index
    %c0_86 = arith.constant 0 : index
    %200 = vector.load %arg9[%c0_84, %c7_85, %c0_86] : memref<8x14x512xf32, #tpu.memory_space<vmem>>, vector<8x1x512xf32>
    tpu.vector_store %arg9[%c0_84, %c7_85, %c0_86], %199 {strides = array<i32>} : memref<8x14x512xf32, #tpu.memory_space<vmem>>, vector<8x1x512xf32>,
    %201 = vector.extract_strided_slice %152 {offsets = [0, 9, 0], sizes = [8, 1, 512], strides = [1, 1, 1]} : vector<8x16x512xf32> to vector<8x1x512xf32>
    %202 = vector.extract_strided_slice %152 {offsets = [0, 10, 0], sizes = [8, 1, 512], strides = [1, 1, 1]} : vector<8x16x512xf32> to vector<8x1x512xf32>
    %203 = arith.addf %201, %202 : vector<8x1x512xf32>
    %cst_87 = arith.constant 5.000000e-01 : f32
    %204 = vector.broadcast %cst_87 : f32 to vector<8x1x512xf32>
    %205 = arith.mulf %203, %204 : vector<8x1x512xf32>
    %c0_88 = arith.constant 0 : index
    %c8_89 = arith.constant 8 : index
    %c0_90 = arith.constant 0 : index
    %206 = vector.load %arg9[%c0_88, %c8_89, %c0_90] : memref<8x14x512xf32, #tpu.memory_space<vmem>>, vector<8x1x512xf32>
    tpu.vector_store %arg9[%c0_88, %c8_89, %c0_90], %205 {strides = array<i32>} : memref<8x14x512xf32, #tpu.memory_space<vmem>>, vector<8x1x512xf32>,
    %207 = vector.extract_strided_slice %152 {offsets = [0, 10, 0], sizes = [8, 1, 512], strides = [1, 1, 1]} : vector<8x16x512xf32> to vector<8x1x512xf32>
    %208 = vector.extract_strided_slice %152 {offsets = [0, 11, 0], sizes = [8, 1, 512], strides = [1, 1, 1]} : vector<8x16x512xf32> to vector<8x1x512xf32>
    %209 = arith.addf %207, %208 : vector<8x1x512xf32>
    %cst_91 = arith.constant 5.000000e-01 : f32
    %210 = vector.broadcast %cst_91 : f32 to vector<8x1x512xf32>
    %211 = arith.mulf %209, %210 : vector<8x1x512xf32>
    %c0_92 = arith.constant 0 : index
    %c9 = arith.constant 9 : index
    %c0_93 = arith.constant 0 : index
    %212 = vector.load %arg9[%c0_92, %c9, %c0_93] : memref<8x14x512xf32, #tpu.memory_space<vmem>>, vector<8x1x512xf32>
    tpu.vector_store %arg9[%c0_92, %c9, %c0_93], %211 {strides = array<i32>} : memref<8x14x512xf32, #tpu.memory_space<vmem>>, vector<8x1x512xf32>,
    %213 = vector.extract_strided_slice %152 {offsets = [0, 11, 0], sizes = [8, 1, 512], strides = [1, 1, 1]} : vector<8x16x512xf32> to vector<8x1x512xf32>
    %214 = vector.extract_strided_slice %152 {offsets = [0, 12, 0], sizes = [8, 1, 512], strides = [1, 1, 1]} : vector<8x16x512xf32> to vector<8x1x512xf32>
    %215 = arith.addf %213, %214 : vector<8x1x512xf32>
    %cst_94 = arith.constant 5.000000e-01 : f32
    %216 = vector.broadcast %cst_94 : f32 to vector<8x1x512xf32>
    %217 = arith.mulf %215, %216 : vector<8x1x512xf32>
    %c0_95 = arith.constant 0 : index
    %c10 = arith.constant 10 : index
    %c0_96 = arith.constant 0 : index
    %218 = vector.load %arg9[%c0_95, %c10, %c0_96] : memref<8x14x512xf32, #tpu.memory_space<vmem>>, vector<8x1x512xf32>
    tpu.vector_store %arg9[%c0_95, %c10, %c0_96], %217 {strides = array<i32>} : memref<8x14x512xf32, #tpu.memory_space<vmem>>, vector<8x1x512xf32>,
    %219 = vector.extract_strided_slice %152 {offsets = [0, 12, 0], sizes = [8, 1, 512], strides = [1, 1, 1]} : vector<8x16x512xf32> to vector<8x1x512xf32>
    %220 = vector.extract_strided_slice %152 {offsets = [0, 13, 0], sizes = [8, 1, 512], strides = [1, 1, 1]} : vector<8x16x512xf32> to vector<8x1x512xf32>
    %221 = arith.addf %219, %220 : vector<8x1x512xf32>
    %cst_97 = arith.constant 5.000000e-01 : f32
    %222 = vector.broadcast %cst_97 : f32 to vector<8x1x512xf32>
    %223 = arith.mulf %221, %222 : vector<8x1x512xf32>
    %c0_98 = arith.constant 0 : index
    %c11 = arith.constant 11 : index
    %c0_99 = arith.constant 0 : index
    %224 = vector.load %arg9[%c0_98, %c11, %c0_99] : memref<8x14x512xf32, #tpu.memory_space<vmem>>, vector<8x1x512xf32>
    tpu.vector_store %arg9[%c0_98, %c11, %c0_99], %223 {strides = array<i32>} : memref<8x14x512xf32, #tpu.memory_space<vmem>>, vector<8x1x512xf32>,
    %225 = vector.extract_strided_slice %152 {offsets = [0, 13, 0], sizes = [8, 1, 512], strides = [1, 1, 1]} : vector<8x16x512xf32> to vector<8x1x512xf32>
    %226 = vector.extract_strided_slice %152 {offsets = [0, 14, 0], sizes = [8, 1, 512], strides = [1, 1, 1]} : vector<8x16x512xf32> to vector<8x1x512xf32>
    %227 = arith.addf %225, %226 : vector<8x1x512xf32>
    %cst_100 = arith.constant 5.000000e-01 : f32
    %228 = vector.broadcast %cst_100 : f32 to vector<8x1x512xf32>
    %229 = arith.mulf %227, %228 : vector<8x1x512xf32>
    %c0_101 = arith.constant 0 : index
    %c12 = arith.constant 12 : index
    %c0_102 = arith.constant 0 : index
    %230 = vector.load %arg9[%c0_101, %c12, %c0_102] : memref<8x14x512xf32, #tpu.memory_space<vmem>>, vector<8x1x512xf32>
    tpu.vector_store %arg9[%c0_101, %c12, %c0_102], %229 {strides = array<i32>} : memref<8x14x512xf32, #tpu.memory_space<vmem>>, vector<8x1x512xf32>,
    %231 = vector.extract_strided_slice %152 {offsets = [0, 14, 0], sizes = [8, 1, 512], strides = [1, 1, 1]} : vector<8x16x512xf32> to vector<8x1x512xf32>
    %232 = vector.extract_strided_slice %152 {offsets = [0, 15, 0], sizes = [8, 1, 512], strides = [1, 1, 1]} : vector<8x16x512xf32> to vector<8x1x512xf32>
    %233 = arith.addf %231, %232 : vector<8x1x512xf32>
    %cst_103 = arith.constant 5.000000e-01 : f32
    %234 = vector.broadcast %cst_103 : f32 to vector<8x1x512xf32>
    %235 = arith.mulf %233, %234 : vector<8x1x512xf32>
    %c0_104 = arith.constant 0 : index
    %c13 = arith.constant 13 : index
    %c0_105 = arith.constant 0 : index
    %236 = vector.load %arg9[%c0_104, %c13, %c0_105] : memref<8x14x512xf32, #tpu.memory_space<vmem>>, vector<8x1x512xf32>
    tpu.vector_store %arg9[%c0_104, %c13, %c0_105], %235 {strides = array<i32>} : memref<8x14x512xf32, #tpu.memory_space<vmem>>, vector<8x1x512xf32>,
    return
  }
  func.func @transform_0(%arg0: i32) -> (i32, i32, i32) {
    %c0_i32 = arith.constant 0 : i32
    %c0_i32_0 = arith.constant 0 : i32
    %c0_i32_1 = arith.constant 0 : i32
    return %arg0, %c0_i32, %c0_i32_0 : i32, i32, i32
  }
  func.func @transform_1(%arg0: i32) -> (i32, i32) {
    %c0_i32 = arith.constant 0 : i32
    %c0_i32_0 = arith.constant 0 : i32
    %c0_i32_1 = arith.constant 0 : i32
    return %c0_i32, %c0_i32_0 : i32, i32
  }
  func.func @transform_2(%arg0: i32) -> (i32, i32) {
    %c0_i32 = arith.constant 0 : i32
    %c0_i32_0 = arith.constant 0 : i32
    %c0_i32_1 = arith.constant 0 : i32
    return %c0_i32, %c0_i32_0 : i32, i32
  }
  func.func @transform_3(%arg0: i32) -> (i32, i32) {
    %c0_i32 = arith.constant 0 : i32
    %c0_i32_0 = arith.constant 0 : i32
    %c0_i32_1 = arith.constant 0 : i32
    return %c0_i32, %c0_i32_0 : i32, i32
  }
  func.func @transform_4(%arg0: i32) -> (i32, i32) {
    %c0_i32 = arith.constant 0 : i32
    %c0_i32_0 = arith.constant 0 : i32
    %c0_i32_1 = arith.constant 0 : i32
    return %c0_i32, %c0_i32_0 : i32, i32
  }
  func.func @transform_5(%arg0: i32) -> (i32, i32) {
    %c0_i32 = arith.constant 0 : i32
    %c0_i32_0 = arith.constant 0 : i32
    %c0_i32_1 = arith.constant 0 : i32
    return %c0_i32, %c0_i32_0 : i32, i32
  }
  func.func @transform_6(%arg0: i32) -> (i32, i32) {
    %c0_i32 = arith.constant 0 : i32
    %c0_i32_0 = arith.constant 0 : i32
    %c0_i32_1 = arith.constant 0 : i32
    return %c0_i32, %c0_i32_0 : i32, i32
  }
  func.func @transform_7(%arg0: i32) -> (i32, i32) {
    %c0_i32 = arith.constant 0 : i32
    %c0_i32_0 = arith.constant 0 : i32
    %c0_i32_1 = arith.constant 0 : i32
    return %c0_i32, %c0_i32_0 : i32, i32
  }
  func.func @transform_8(%arg0: i32) -> (i32, i32, i32) {
    %c0_i32 = arith.constant 0 : i32
    %c0_i32_0 = arith.constant 0 : i32
    %c0_i32_1 = arith.constant 0 : i32
    return %arg0, %c0_i32, %c0_i32_0 : i32, i32, i32
  }
}

</mosaic_0001>

<llo_original>
// kernel: tpu_custom_call.1
$region0: #{tpu_custom_call.1}
  #allocation0 [shape = 'u32[]', space=smem, size = 0x4, offset = 0x4, fixed_abs, tag = 'smem constant byte address 0x4 - core index']
  #allocation1 [shape = 'u32[144,128]{1,0:T(1,128)}', space=vmem, size = 0x12000, scoped, tag = 'internal scratch']
  %s0 = inlined_call_operand.hbm [shape: f32[16,16,160], index: 0, kind: input, shape index: {}]
  %s1 = inlined_call_operand.hbm [shape: bf16[160,512], index: 1, kind: input, shape index: {}]
  %s2 = inlined_call_operand.vmem [shape: f32[1,512], index: 2, kind: input, shape index: {}]
  %s3 = inlined_call_operand.hbm [shape: bf16[512,512], index: 3, kind: input, shape index: {}]
  %s4 = inlined_call_operand.vmem [shape: f32[1,512], index: 4, kind: input, shape index: {}]
  %s5 = inlined_call_operand.hbm [shape: f32[9,512], index: 5, kind: input, shape index: {}]
  %s6 = inlined_call_operand.vmem [shape: f32[1,512], index: 6, kind: input, shape index: {}]
  %s7 = inlined_call_operand.vmem [shape: f32[1,512], index: 7, kind: input, shape index: {}]
  %s8 = inlined_call_operand.vmem [shape: f32[16,14,512], index: 8, kind: output, shape index: {}]
  %s9 = sld [smem:[#allocation0]]
  $region81: #{tpu_custom_call.1} parent=0
    _
  %s11 = ssub.s32 1, %s9
  %s12 = scalar_select 0, %s11, %s9
  $region1: #{tpu_custom_call.1} parent=0
    #allocation2 [shape = 'u8[262144]{0}', space=vmem, size = 0x40000, scoped, tag = 'input window, operand 0']
    #allocation3 [shape = 's32[2]{0}', space=sflag, size = 0x8, scoped, tag = 'scoped memory for tpu_custom_call.1']
    #allocation4 [shape = 'u8[163840]{0}', space=vmem, size = 0x28000, scoped, tag = 'input window, operand 1, single buffered']
    #allocation5 [shape = 's32[1]{0}', space=sflag, size = 0x4, scoped, tag = 'scoped memory for tpu_custom_call.1']
    #allocation6 [shape = 'u8[524288]{0}', space=vmem, size = 0x80000, scoped, tag = 'input window, operand 3, single buffered']
    #allocation7 [shape = 'u8[32768]{0}', space=vmem, size = 0x8000, scoped, tag = 'input window, operand 5, single buffered']
    #allocation8 [shape = 's32[1]{0}', space=sflag, size = 0x4, scoped, tag = 'scoped memory for tpu_custom_call.1']
    %13 = vsyncpa [#allocation3], 0
    %s14 = scalar_lea.sflag [#allocation3], 1
    %15 = vsyncpa %s14, 0
    %16 = vsyncpa [#allocation5], 0
    %17 = vsyncpa [#allocation8], 0
    loop: start=0, step=1, limit=4
    $region2: #{tpu_custom_call.1} parent=1 // loop_pre_header
      _
    $region3: #{tpu_custom_call.1} parent=1 // loop_header
      %s19 = sphi 0, %s23
      %p20 = scmp.ge.s32.totalorder %s19, 4
      %s29 = sphi 0, %s31
      %s32 = sphi 0, %s29
      %s33 = sphi 0, %s32
      %s49 = sphi 0, %s33
      %s53 = sphi 0, %s53
      %s55 = sphi 0, %s53
      %s56 = sphi 0, %s55
      %s70 = sphi 0, %s56
      %s74 = sphi 0, %s74
      %s76 = sphi 0, %s74
      %s77 = sphi 0, %s76
      %s91 = sphi 0, %s77
      %s95 = sphi 0, %s95
      %s97 = sphi 0, %s95
      %s98 = sphi 0, %s97
      %s112 = sphi 0, %s98
      %s116 = sphi 0, %s116
      %s118 = sphi 0, %s116
      %s119 = sphi 0, %s118
      %s133 = sphi 0, %s119
      %s137 = sphi 0, %s137
      %s139 = sphi 0, %s137
      %s140 = sphi 0, %s139
      %s154 = sphi 0, %s140
      %s158 = sphi 0, %s158
      %s160 = sphi 0, %s158
      %s161 = sphi 0, %s160
      %s175 = sphi 0, %s161
      %s179 = sphi 0, %s179
      %s181 = sphi 0, %s179
      %s182 = sphi 0, %s181
      %s196 = sphi 0, %s182
      %s202 = sphi 0, %s204
      %s205 = sphi 0, %s202
      %s206 = sphi 0, %s205
      %s222 = sphi 0, %s206
    $region4: #{tpu_custom_call.1} parent=1 // loop_header_branch
      %22 = sbr.rel (%p20) target = $region8
    $region5: #{tpu_custom_call.1} parent=1 // loop_body
      %s24 = ssub.s32 %s19, 1
      %s25 = ssub.s32 %s19, 2
      %s26 = sadd.s32 %s19, 1
      %s27 = ssub.s32 %s19, %s26
      %p28 = scmp.eq.s32.totalorder %s27, 0
      %s30 = sadd.s32 %s29, 1
      %s31 = scalar_select %p28, %s29, %s30
      %p34 = pneg %p28
      %p35 = scmp.eq.s32.totalorder %s19, 1
      %p36 = por %p34, %p35
      %p37 = scmp.ne.s32.totalorder %s29, %s32
      %p38 = scmp.eq.s32.totalorder %s19, 0
      %p39 = por %p37, %p38
      %p40 = scmp.ne.s32.totalorder %s29, %s32
      %p41 = scmp.eq.s32.totalorder %s24, 1
      %p42 = por %p40, %p41
      %p43 = scmp.ne.s32.totalorder %s32, %s33
      %p44 = scmp.eq.s32.totalorder %s24, 0
      %p45 = por %p43, %p44
      %p46 = scmp.ne.s32.totalorder %s32, %s33
      %p47 = scmp.eq.s32.totalorder %s25, 1
      %p48 = por %p46, %p47
      %p50 = scmp.ne.s32.totalorder %s33, %s49
      %p51 = scmp.eq.s32.totalorder %s25, 0
      %p52 = por %p50, %p51
      %s54 = sadd.s32 %s53, 1
      %p57 = scmp.eq.s32.totalorder %s19, 1
      %p58 = scmp.ne.s32.totalorder %s53, %s55
      %p59 = scmp.eq.s32.totalorder %s19, 0
      %p60 = por %p58, %p59
      %p61 = scmp.ne.s32.totalorder %s53, %s55
      %p62 = scmp.eq.s32.totalorder %s24, 1
      %p63 = por %p61, %p62
      %p64 = scmp.ne.s32.totalorder %s55, %s56
      %p65 = scmp.eq.s32.totalorder %s24, 0
      %p66 = por %p64, %p65
      %p67 = scmp.ne.s32.totalorder %s55, %s56
      %p68 = scmp.eq.s32.totalorder %s25, 1
      %p69 = por %p67, %p68
      %p71 = scmp.ne.s32.totalorder %s56, %s70
      %p72 = scmp.eq.s32.totalorder %s25, 0
      %p73 = por %p71, %p72
      %s75 = sadd.s32 %s74, 1
      %p78 = scmp.eq.s32.totalorder %s19, 1
      %p79 = scmp.ne.s32.totalorder %s74, %s76
      %p80 = scmp.eq.s32.totalorder %s19, 0
      %p81 = por %p79, %p80
      %p82 = scmp.ne.s32.totalorder %s74, %s76
      %p83 = scmp.eq.s32.totalorder %s24, 1
      %p84 = por %p82, %p83
      %p85 = scmp.ne.s32.totalorder %s76, %s77
      %p86 = scmp.eq.s32.totalorder %s24, 0
      %p87 = por %p85, %p86
      %p88 = scmp.ne.s32.totalorder %s76, %s77
      %p89 = scmp.eq.s32.totalorder %s25, 1
      %p90 = por %p88, %p89
      %p92 = scmp.ne.s32.totalorder %s77, %s91
      %p93 = scmp.eq.s32.totalorder %s25, 0
      %p94 = por %p92, %p93
      %s96 = sadd.s32 %s95, 1
      %p99 = scmp.eq.s32.totalorder %s19, 1
      %p100 = scmp.ne.s32.totalorder %s95, %s97
      %p101 = scmp.eq.s32.totalorder %s19, 0
      %p102 = por %p100, %p101
      %p103 = scmp.ne.s32.totalorder %s95, %s97
      %p104 = scmp.eq.s32.totalorder %s24, 1
      %p105 = por %p103, %p104
      %p106 = scmp.ne.s32.totalorder %s97, %s98
      %p107 = scmp.eq.s32.totalorder %s24, 0
      %p108 = por %p106, %p107
      %p109 = scmp.ne.s32.totalorder %s97, %s98
      %p110 = scmp.eq.s32.totalorder %s25, 1
      %p111 = por %p109, %p110
      %p113 = scmp.ne.s32.totalorder %s98, %s112
      %p114 = scmp.eq.s32.totalorder %s25, 0
      %p115 = por %p113, %p114
      %s117 = sadd.s32 %s116, 1
      %p120 = scmp.eq.s32.totalorder %s19, 1
      %p121 = scmp.ne.s32.totalorder %s116, %s118
      %p122 = scmp.eq.s32.totalorder %s19, 0
      %p123 = por %p121, %p122
      %p124 = scmp.ne.s32.totalorder %s116, %s118
      %p125 = scmp.eq.s32.totalorder %s24, 1
      %p126 = por %p124, %p125
      %p127 = scmp.ne.s32.totalorder %s118, %s119
      %p128 = scmp.eq.s32.totalorder %s24, 0
      %p129 = por %p127, %p128
      %p130 = scmp.ne.s32.totalorder %s118, %s119
      %p131 = scmp.eq.s32.totalorder %s25, 1
      %p132 = por %p130, %p131
      %p134 = scmp.ne.s32.totalorder %s119, %s133
      %p135 = scmp.eq.s32.totalorder %s25, 0
      %p136 = por %p134, %p135
      %s138 = sadd.s32 %s137, 1
      %p141 = scmp.eq.s32.totalorder %s19, 1
      %p142 = scmp.ne.s32.totalorder %s137, %s139
      %p143 = scmp.eq.s32.totalorder %s19, 0
      %p144 = por %p142, %p143
      %p145 = scmp.ne.s32.totalorder %s137, %s139
      %p146 = scmp.eq.s32.totalorder %s24, 1
      %p147 = por %p145, %p146
      %p148 = scmp.ne.s32.totalorder %s139, %s140
      %p149 = scmp.eq.s32.totalorder %s24, 0
      %p150 = por %p148, %p149
      %p151 = scmp.ne.s32.totalorder %s139, %s140
      %p152 = scmp.eq.s32.totalorder %s25, 1
      %p153 = por %p151, %p152
      %p155 = scmp.ne.s32.totalorder %s140, %s154
      %p156 = scmp.eq.s32.totalorder %s25, 0
      %p157 = por %p155, %p156
      %s159 = sadd.s32 %s158, 1
      %p162 = scmp.eq.s32.totalorder %s19, 1
      %p163 = scmp.ne.s32.totalorder %s158, %s160
      %p164 = scmp.eq.s32.totalorder %s19, 0
      %p165 = por %p163, %p164
      %p166 = scmp.ne.s32.totalorder %s158, %s160
      %p167 = scmp.eq.s32.totalorder %s24, 1
      %p168 = por %p166, %p167
      %p169 = scmp.ne.s32.totalorder %s160, %s161
      %p170 = scmp.eq.s32.totalorder %s24, 0
      %p171 = por %p169, %p170
      %p172 = scmp.ne.s32.totalorder %s160, %s161
      %p173 = scmp.eq.s32.totalorder %s25, 1
      %p174 = por %p172, %p173
      %p176 = scmp.ne.s32.totalorder %s161, %s175
      %p177 = scmp.eq.s32.totalorder %s25, 0
      %p178 = por %p176, %p177
      %s180 = sadd.s32 %s179, 1
      %p183 = scmp.eq.s32.totalorder %s19, 1
      %p184 = scmp.ne.s32.totalorder %s179, %s181
      %p185 = scmp.eq.s32.totalorder %s19, 0
      %p186 = por %p184, %p185
      %p187 = scmp.ne.s32.totalorder %s179, %s181
      %p188 = scmp.eq.s32.totalorder %s24, 1
      %p189 = por %p187, %p188
      %p190 = scmp.ne.s32.totalorder %s181, %s182
      %p191 = scmp.eq.s32.totalorder %s24, 0
      %p192 = por %p190, %p191
      %p193 = scmp.ne.s32.totalorder %s181, %s182
      %p194 = scmp.eq.s32.totalorder %s25, 1
      %p195 = por %p193, %p194
      %p197 = scmp.ne.s32.totalorder %s182, %s196
      %p198 = scmp.eq.s32.totalorder %s25, 0
      %p199 = por %p197, %p198
      %s200 = ssub.s32 %s19, %s26
      %p201 = scmp.eq.s32.totalorder %s200, 0
      %s203 = sadd.s32 %s202, 1
      %s204 = scalar_select %p201, %s202, %s203
      %p207 = pneg %p201
      %p208 = scmp.eq.s32.totalorder %s19, 1
      %p209 = por %p207, %p208
      %p210 = scmp.ne.s32.totalorder %s202, %s205
      %p211 = scmp.eq.s32.totalorder %s19, 0
      %p212 = por %p210, %p211
      %p213 = scmp.ne.s32.totalorder %s202, %s205
      %p214 = scmp.eq.s32.totalorder %s24, 1
      %p215 = por %p213, %p214
      %p216 = scmp.ne.s32.totalorder %s205, %s206
      %p217 = scmp.eq.s32.totalorder %s24, 0
      %p218 = por %p216, %p217
      %p219 = scmp.ne.s32.totalorder %s205, %s206
      %p220 = scmp.eq.s32.totalorder %s25, 1
      %p221 = por %p219, %p220
      %p223 = scmp.ne.s32.totalorder %s206, %s222
      %p224 = scmp.eq.s32.totalorder %s25, 0
      %p225 = por %p223, %p224
      %p226 = scmp.le.s32.totalorder 1, %s19
      %p227 = scmp.lt.s32.totalorder %s19, 3
      %p228 = pnand %p226, %p227
      %p229 = pneg %p228
      // Predicated region
      $region9: #{tpu_custom_call.1} parent=5 // pred_check
        _
      $region10: #{tpu_custom_call.1} parent=5 // pred_check_branch
        %231 = sbr.rel (%p228) target = $region12
      $region11: #{tpu_custom_call.1} parent=5 // pred_region
        %s232 = ssub.s32 %s19, 1
        // Predicated region
        $region13: #{tpu_custom_call.1} parent=11 // pred_check
          %p233 = pneg %p66
        $region14: #{tpu_custom_call.1} parent=11 // pred_check_branch
          %235 = sbr.rel (%p233) target = $region16
        $region15: #{tpu_custom_call.1} parent=11 // pred_region
          %s237 = ssub.s32 5120, 5120
          %238 = vsyncadd [#allocation5], %s237
          %s239 = sshll.u32 [#allocation4], 4
          %s240 = int_to_ptr.vmem [resolvable:$true] %s239
          %245 = dma.hbm_to_vmem [thread:$0]  %s1, 5120, %s240, [#allocation5], 256, 256, 16
        $region16: #{tpu_custom_call.1} parent=11 // pred_fallthru
          _
        // Predicated region
        $region17: #{tpu_custom_call.1} parent=11 // pred_check
          %p246 = pneg %p87
        $region18: #{tpu_custom_call.1} parent=11 // pred_check_branch
          %248 = sbr.rel (%p246) target = $region20
        $region19: #{tpu_custom_call.1} parent=11 // pred_region
          _
        $region20: #{tpu_custom_call.1} parent=11 // pred_fallthru
          _
        // Predicated region
        $region21: #{tpu_custom_call.1} parent=11 // pred_check
          %p249 = pneg %p108
        $region22: #{tpu_custom_call.1} parent=11 // pred_check_branch
          %251 = sbr.rel (%p249) target = $region24
        $region23: #{tpu_custom_call.1} parent=11 // pred_region
          %s253 = ssub.s32 16384, 16384
          %254 = vsyncadd [#allocation5], %s253
          %s255 = sshll.u32 [#allocation6], 4
          %s256 = int_to_ptr.vmem [resolvable:$true] %s255
          %261 = dma.hbm_to_vmem [thread:$0]  %s3, 16384, %s256, [#allocation5], 256, 256, 16
        $region24: #{tpu_custom_call.1} parent=11 // pred_fallthru
          _
        // Predicated region
        $region25: #{tpu_custom_call.1} parent=11 // pred_check
          %p262 = pneg %p129
        $region26: #{tpu_custom_call.1} parent=11 // pred_check_branch
          %264 = sbr.rel (%p262) target = $region28
        $region27: #{tpu_custom_call.1} parent=11 // pred_region
          _
        $region28: #{tpu_custom_call.1} parent=11 // pred_fallthru
          _
        // Predicated region
        $region29: #{tpu_custom_call.1} parent=11 // pred_check
          %p265 = pneg %p150
        $region30: #{tpu_custom_call.1} parent=11 // pred_check_branch
          %267 = sbr.rel (%p265) target = $region32
        $region31: #{tpu_custom_call.1} parent=11 // pred_region
          %s269 = ssub.s32 1024, 1024
          %270 = vsyncadd [#allocation8], %s269
          %s271 = sshll.u32 [#allocation7], 4
          %s272 = int_to_ptr.vmem [resolvable:$true] %s271
          %277 = dma.hbm_to_vmem [thread:$0]  %s5, 1024, %s272, [#allocation8], 512, 512, 32
        $region32: #{tpu_custom_call.1} parent=11 // pred_fallthru
          _
        // Predicated region
        $region33: #{tpu_custom_call.1} parent=11 // pred_check
          %p278 = pneg %p171
        $region34: #{tpu_custom_call.1} parent=11 // pred_check_branch
          %280 = sbr.rel (%p278) target = $region36
        $region35: #{tpu_custom_call.1} parent=11 // pred_region
          _
        $region36: #{tpu_custom_call.1} parent=11 // pred_fallthru
          _
        // Predicated region
        $region37: #{tpu_custom_call.1} parent=11 // pred_check
          %p281 = pneg %p192
        $region38: #{tpu_custom_call.1} parent=11 // pred_check_branch
          %283 = sbr.rel (%p281) target = $region40
        $region39: #{tpu_custom_call.1} parent=11 // pred_region
          _
        $region40: #{tpu_custom_call.1} parent=11 // pred_fallthru
          _
      $region12: #{tpu_custom_call.1} parent=5 // pred_fallthru
        _
      %p284 = scmp.lt.s32.totalorder %s19, 2
      // Predicated region
      $region41: #{tpu_custom_call.1} parent=5 // pred_check
        %p285 = pneg %p284
      $region42: #{tpu_custom_call.1} parent=5 // pred_check_branch
        %287 = sbr.rel (%p285) target = $region44
      $region43: #{tpu_custom_call.1} parent=5 // pred_region
        // Predicated region
        $region45: #{tpu_custom_call.1} parent=43 // pred_check
          %p288 = pneg %p39
        $region46: #{tpu_custom_call.1} parent=43 // pred_check_branch
          %290 = sbr.rel (%p288) target = $region48
        $region47: #{tpu_custom_call.1} parent=43 // pred_region
          %s291 = sand.u32 %s29, 1
          %s292 = scalar_lea.sflag [#allocation3], %s291
          %s293 = sand.u32 %s29, 1
          %s294 = smul.addr %s293, 256
          %s295 = scalar_lea.vmem [#allocation2], %s294
          %s296 = smul.u32 8, %s19
          %s298 = ssub.s32 4096, 4096
          %299 = vsyncadd %s292, %s298
          %s300 = smul.addr %s296, 4
          %s301 = smul.addr %s300, 128
          %s302 = scalar_lea.hbm %s0, %s301
          %s303 = sshll.u32 %s295, 4
          %s304 = int_to_ptr.vmem [resolvable:$true] %s303
          %309 = dma.hbm_to_vmem [thread:$0]  %s302, 4096, %s304, %s292, 256, 256, 16
        $region48: #{tpu_custom_call.1} parent=43 // pred_fallthru
          _
      $region44: #{tpu_custom_call.1} parent=5 // pred_fallthru
        _
      %p310 = scmp.le.s32.totalorder 1, %s19
      %p311 = scmp.lt.s32.totalorder %s19, 3
      %p312 = pnand %p310, %p311
      %p313 = pneg %p312
      // Predicated region
      $region49: #{tpu_custom_call.1} parent=5 // pred_check
        _
      $region50: #{tpu_custom_call.1} parent=5 // pred_check_branch
        %315 = sbr.rel (%p312) target = $region52
      $region51: #{tpu_custom_call.1} parent=5 // pred_region
        %s316 = ssub.s32 %s19, 1
        %s317 = sand.u32 %s32, 1
        %s318 = scalar_lea.sflag [#allocation3], %s317
        %s319 = sand.u32 %s32, 1
        %s320 = smul.addr %s319, 256
        %s321 = scalar_lea.vmem [#allocation2], %s320
        // Predicated region
        $region53: #{tpu_custom_call.1} parent=51 // pred_check
          %p322 = pneg %p45
        $region54: #{tpu_custom_call.1} parent=51 // pred_check_branch
          %324 = sbr.rel (%p322) target = $region56
        $region55: #{tpu_custom_call.1} parent=51 // pred_region
          %325 = dma.done %s318, 4096
        $region56: #{tpu_custom_call.1} parent=51 // pred_fallthru
          _
        // Predicated region
        $region57: #{tpu_custom_call.1} parent=51 // pred_check
          %p326 = pneg %p66
        $region58: #{tpu_custom_call.1} parent=51 // pred_check_branch
          %328 = sbr.rel (%p326) target = $region60
        $region59: #{tpu_custom_call.1} parent=51 // pred_region
          %329 = dma.done [#allocation5], 5120
        $region60: #{tpu_custom_call.1} parent=51 // pred_fallthru
          _
        // Predicated region
        $region61: #{tpu_custom_call.1} parent=51 // pred_check
          %p330 = pneg %p108
        $region62: #{tpu_custom_call.1} parent=51 // pred_check_branch
          %332 = sbr.rel (%p330) target = $region64
        $region63: #{tpu_custom_call.1} parent=51 // pred_region
          %333 = dma.done [#allocation5], 16384
        $region64: #{tpu_custom_call.1} parent=51 // pred_fallthru
          _
        // Predicated region
        $region65: #{tpu_custom_call.1} parent=51 // pred_check
          %p334 = pneg %p150
        $region66: #{tpu_custom_call.1} parent=51 // pred_check_branch
          %336 = sbr.rel (%p334) target = $region68
        $region67: #{tpu_custom_call.1} parent=51 // pred_region
          %337 = dma.done [#allocation8], 1024
        $region68: #{tpu_custom_call.1} parent=51 // pred_fallthru
          _
        %s338 = sand.u32 %s32, 1
        %s339 = scalar_lea.sflag [#allocation3], %s338
        %s340 = sand.u32 %s32, 1
        %s341 = smul.addr %s340, 256
        %s342 = scalar_lea.vmem [#allocation2], %s341
        %p343 = pneg %p45
        %p344 = pneg %p42
        %p345 = pneg %p66
        %p346 = pneg %p63
        %p347 = pneg %p87
        %p348 = pneg %p84
        %p349 = pneg %p108
        %p350 = pneg %p105
        %p351 = pneg %p129
        %p352 = pneg %p126
        %p353 = pneg %p150
        %p354 = pneg %p147
        %p355 = pneg %p171
        %p356 = pneg %p168
        %p357 = pneg %p192
        %p358 = pneg %p189
        %p359 = pneg %p218
        %p360 = pneg %p215
        %s361 = smul.u32 8, %s24
        %p362 = scmp.lt.s32.totalorder %s361, 15
        %s363 = scalar_select %p362, %s361, 15
        %s364 = smul.addr %s363, 8
        %s365 = smul.addr %s364, 8
        %s366 = scalar_lea.vmem %s8, %s365
        %s367 = smul.u32 8, %s24
        %s368 = smul.u32 8, %s24
        %p369 = scmp.lt.s32.totalorder %s368, 15
        %s370 = scalar_select %p369, %s368, 15
        %s371 = smul.addr %s370, 8
        %s372 = smul.addr %s371, 8
        %s373 = scalar_lea.vmem %s8, %s372
        %s374 = smul.u32 8, %s24
        %v376 = vld [vmem:[%s321] sm:$0xff]
        %v377 = vld [vmem:[%s321 + $0x8] sm:$0xff]
        %v378 = vld [vmem:[%s321 + $0x10] sm:$0xff]
        %v379 = vld [vmem:[%s321 + $0x18] sm:$0xff]
        %v380 = vld [vmem:[%s321 + $0x20] sm:$0xff]
        %v381 = vld [vmem:[%s321 + $0x28] sm:$0xff]
        %v382 = vld [vmem:[%s321 + $0x30] sm:$0xff]
        %v383 = vld [vmem:[%s321 + $0x38] sm:$0xff]
        %v384 = vld [vmem:[%s321 + $0x40] sm:$0xff]
        %v385 = vld [vmem:[%s321 + $0x48] sm:$0xff]
        %v386 = vld [vmem:[%s321 + $0x50] sm:$0xff]
        %v387 = vld [vmem:[%s321 + $0x58] sm:$0xff]
        %v388 = vld [vmem:[%s321 + $0x60] sm:$0xff]
        %v389 = vld [vmem:[%s321 + $0x68] sm:$0xff]
        %v390 = vld [vmem:[%s321 + $0x70] sm:$0xff]
        %v391 = vld [vmem:[%s321 + $0x78] sm:$0xff]
        %v392 = vld [vmem:[%s321 + $0x80] sm:$0xff]
        %v393 = vld [vmem:[%s321 + $0x88] sm:$0xff]
        %v394 = vld [vmem:[%s321 + $0x90] sm:$0xff]
        %v395 = vld [vmem:[%s321 + $0x98] sm:$0xff]
        %v396 = vld [vmem:[%s321 + $0xa0] sm:$0xff]
        %v397 = vld [vmem:[%s321 + $0xa8] sm:$0xff]
        %v398 = vld [vmem:[%s321 + $0xb0] sm:$0xff]
        %v399 = vld [vmem:[%s321 + $0xb8] sm:$0xff]
        %v400 = vld [vmem:[%s321 + $0xc0] sm:$0xff]
        %v401 = vld [vmem:[%s321 + $0xc8] sm:$0xff]
        %v402 = vld [vmem:[%s321 + $0xd0] sm:$0xff]
        %v403 = vld [vmem:[%s321 + $0xd8] sm:$0xff]
        %v404 = vld [vmem:[%s321 + $0xe0] sm:$0xff]
        %v405 = vld [vmem:[%s321 + $0xe8] sm:$0xff]
        %v406 = vld [vmem:[%s321 + $0xf0] sm:$0xff]
        %v407 = vld [vmem:[%s321 + $0xf8] sm:$0xff]
        %v408 = vpack.c.bf16 %v378, %v376
        %v409 = vpack.c.bf16 %v379, %v377
        %v410 = vpack.c.bf16 %v382, %v380
        %v411 = vpack.c.bf16 %v383, %v381
        %v412 = vpack.c.bf16 %v386, %v384
        %v413 = vpack.c.bf16 %v387, %v385
        %v414 = vpack.c.bf16 %v390, %v388
        %v415 = vpack.c.bf16 %v391, %v389
        %v416 = vpack.c.bf16 %v394, %v392
        %v417 = vpack.c.bf16 %v395, %v393
        %v418 = vpack.c.bf16 %v398, %v396
        %v419 = vpack.c.bf16 %v399, %v397
        %v420 = vpack.c.bf16 %v402, %v400
        %v421 = vpack.c.bf16 %v403, %v401
        %v422 = vpack.c.bf16 %v406, %v404
        %v423 = vpack.c.bf16 %v407, %v405
        %v424 = vld [vmem:[#allocation4] sm:$0xff]
        %v425 = vld [vmem:[#allocation4 + $0x8] sm:$0xff]
        %v426 = vld [vmem:[#allocation4 + $0x10] sm:$0xff]
        %v427 = vld [vmem:[#allocation4 + $0x18] sm:$0xff]
        %v428 = vld [vmem:[#allocation4 + $0x20] sm:$0xff]
        %v429 = vld [vmem:[#allocation4 + $0x28] sm:$0xff]
        %v430 = vld [vmem:[#allocation4 + $0x30] sm:$0xff]
        %v431 = vld [vmem:[#allocation4 + $0x38] sm:$0xff]
        %v432 = vld [vmem:[#allocation4 + $0x40] sm:$0xff]
        %v433 = vld [vmem:[#allocation4 + $0x48] sm:$0xff]
        %v434 = vld [vmem:[#allocation4 + $0x50] sm:$0xff]
        %v435 = vld [vmem:[#allocation4 + $0x58] sm:$0xff]
        %v436 = vld [vmem:[#allocation4 + $0x60] sm:$0xff]
        %v437 = vld [vmem:[#allocation4 + $0x68] sm:$0xff]
        %v438 = vld [vmem:[#allocation4 + $0x70] sm:$0xff]
        %v439 = vld [vmem:[#allocation4 + $0x78] sm:$0xff]
        %v440 = vld [vmem:[#allocation4 + $0x80] sm:$0xff]
        %v441 = vld [vmem:[#allocation4 + $0x88] sm:$0xff]
        %v442 = vld [vmem:[#allocation4 + $0x90] sm:$0xff]
        %v443 = vld [vmem:[#allocation4 + $0x98] sm:$0xff]
        %v444 = vld [vmem:[#allocation4 + $0xa0] sm:$0xff]
        %v445 = vld [vmem:[#allocation4 + $0xa8] sm:$0xff]
        %v446 = vld [vmem:[#allocation4 + $0xb0] sm:$0xff]
        %v447 = vld [vmem:[#allocation4 + $0xb8] sm:$0xff]
        %v448 = vld [vmem:[#allocation4 + $0xc0] sm:$0xff]
        %v449 = vld [vmem:[#allocation4 + $0xc8] sm:$0xff]
        %v450 = vld [vmem:[#allocation4 + $0xd0] sm:$0xff]
        %v451 = vld [vmem:[#allocation4 + $0xd8] sm:$0xff]
        %v452 = vld [vmem:[#allocation4 + $0xe0] sm:$0xff]
        %v453 = vld [vmem:[#allocation4 + $0xe8] sm:$0xff]
        %v454 = vld [vmem:[#allocation4 + $0xf0] sm:$0xff]
        %v455 = vld [vmem:[#allocation4 + $0xf8] sm:$0xff]
        %v456 = vld [vmem:[#allocation4 + $0x100] sm:$0xff]
        %v457 = vld [vmem:[#allocation4 + $0x108] sm:$0xff]
        %v458 = vld [vmem:[#allocation4 + $0x110] sm:$0xff]
        %v459 = vld [vmem:[#allocation4 + $0x118] sm:$0xff]
        %v460 = vld [vmem:[#allocation4 + $0x120] sm:$0xff]
        %v461 = vld [vmem:[#allocation4 + $0x128] sm:$0xff]
        %v462 = vld [vmem:[#allocation4 + $0x130] sm:$0xff]
        %v463 = vld [vmem:[#allocation4 + $0x138] sm:$0xff]
        %v464 = vld [vmem:[%s2] sm:$0xf]
        %v466 = vlaneseq
        %v467 = vshrl.u32 %v466, 7
        %v468 = vsub.s32 0, %v467
        %v469 = vrot.slane %v464, %v468
        %v470 = vlaneseq
        %v471 = vshrl.u32 %v470, 7
        %v472 = vsub.s32 1, %v471
        %v473 = vrot.slane %v464, %v472
        %v474 = vlaneseq
        %v475 = vshrl.u32 %v474, 7
        %v476 = vsub.s32 2, %v475
        %v477 = vrot.slane %v464, %v476
        %v478 = vlaneseq
        %v479 = vshrl.u32 %v478, 7
        %v480 = vsub.s32 3, %v479
        %v481 = vrot.slane %v464, %v480
        %v526 = vunpack.c.l.b16 %v424
        %v527 = vunpack.c.h.b16 %v424
        %v528 = vunpack.c.l.b16 %v425
        %v529 = vunpack.c.h.b16 %v425
        %v530 = vunpack.c.l.b16 %v426
        %v531 = vunpack.c.h.b16 %v426
        %v532 = vunpack.c.l.b16 %v427
        %v533 = vunpack.c.h.b16 %v427
        %v534 = vunpack.c.l.b16 %v428
        %v535 = vunpack.c.h.b16 %v428
        %v536 = vunpack.c.l.b16 %v429
        %v537 = vunpack.c.h.b16 %v429
        %v538 = vunpack.c.l.b16 %v430
        %v539 = vunpack.c.h.b16 %v430
        %v540 = vunpack.c.l.b16 %v431
        %v541 = vunpack.c.h.b16 %v431
        %v542 = vunpack.c.l.b16 %v432
        %v543 = vunpack.c.h.b16 %v432
        %v544 = vunpack.c.l.b16 %v433
        %v545 = vunpack.c.h.b16 %v433
        %v546 = vunpack.c.l.b16 %v434
        %v547 = vunpack.c.h.b16 %v434
        %v548 = vunpack.c.l.b16 %v435
        %v549 = vunpack.c.h.b16 %v435
        %v550 = vunpack.c.l.b16 %v436
        %v551 = vunpack.c.h.b16 %v436
        %v552 = vunpack.c.l.b16 %v437
        %v553 = vunpack.c.h.b16 %v437
        %v554 = vunpack.c.l.b16 %v438
        %v555 = vunpack.c.h.b16 %v438
        %v556 = vunpack.c.l.b16 %v439
        %v557 = vunpack.c.h.b16 %v439
        %v558 = vunpack.c.l.b16 %v440
        %v559 = vunpack.c.h.b16 %v440
        %v560 = vunpack.c.l.b16 %v441
        %v561 = vunpack.c.h.b16 %v441
        %v562 = vunpack.c.l.b16 %v442
        %v563 = vunpack.c.h.b16 %v442
        %v564 = vunpack.c.l.b16 %v443
        %v565 = vunpack.c.h.b16 %v443
        %v566 = vunpack.c.l.b16 %v444
        %v567 = vunpack.c.h.b16 %v444
        %v568 = vunpack.c.l.b16 %v445
        %v569 = vunpack.c.h.b16 %v445
        %v570 = vunpack.c.l.b16 %v446
        %v571 = vunpack.c.h.b16 %v446
        %v572 = vunpack.c.l.b16 %v447
        %v573 = vunpack.c.h.b16 %v447
        %v574 = vunpack.c.l.b16 %v448
        %v575 = vunpack.c.h.b16 %v448
        %v576 = vunpack.c.l.b16 %v449
        %v577 = vunpack.c.h.b16 %v449
        %v578 = vunpack.c.l.b16 %v450
        %v579 = vunpack.c.h.b16 %v450
        %v580 = vunpack.c.l.b16 %v451
        %v581 = vunpack.c.h.b16 %v451
        %v582 = vunpack.c.l.b16 %v452
        %v583 = vunpack.c.h.b16 %v452
        %v584 = vunpack.c.l.b16 %v453
        %v585 = vunpack.c.h.b16 %v453
        %v586 = vunpack.c.l.b16 %v454
        %v587 = vunpack.c.h.b16 %v454
        %v588 = vunpack.c.l.b16 %v455
        %v589 = vunpack.c.h.b16 %v455
        %v590 = vunpack.c.l.b16 %v456
        %v591 = vunpack.c.h.b16 %v456
        %v592 = vunpack.c.l.b16 %v457
        %v593 = vunpack.c.h.b16 %v457
        %v594 = vunpack.c.l.b16 %v458
        %v595 = vunpack.c.h.b16 %v458
        %v596 = vunpack.c.l.b16 %v459
        %v597 = vunpack.c.h.b16 %v459
        %v598 = vunpack.c.l.b16 %v460
        %v599 = vunpack.c.h.b16 %v460
        %v600 = vunpack.c.l.b16 %v461
        %v601 = vunpack.c.h.b16 %v461
        %v602 = vunpack.c.l.b16 %v462
        %v603 = vunpack.c.h.b16 %v462
        %v604 = vunpack.c.l.b16 %v463
        %v605 = vunpack.c.h.b16 %v463
        %v606 = vpack.c.b16 %v530, %v526
        %v607 = vpack.c.b16 %v531, %v527
        %v608 = vpack.c.b16 %v532, %v528
        %v609 = vpack.c.b16 %v533, %v529
        %v610 = vpack.c.b16 %v538, %v534
        %v611 = vpack.c.b16 %v539, %v535
        %v612 = vpack.c.b16 %v540, %v536
        %v613 = vpack.c.b16 %v541, %v537
        %v614 = vpack.c.b16 %v546, %v542
        %v615 = vpack.c.b16 %v547, %v543
        %v616 = vpack.c.b16 %v548, %v544
        %v617 = vpack.c.b16 %v549, %v545
        %v618 = vpack.c.b16 %v554, %v550
        %v619 = vpack.c.b16 %v555, %v551
        %v620 = vpack.c.b16 %v556, %v552
        %v621 = vpack.c.b16 %v557, %v553
        %v622 = vpack.c.b16 %v562, %v558
        %v623 = vpack.c.b16 %v563, %v559
        %v624 = vpack.c.b16 %v564, %v560
        %v625 = vpack.c.b16 %v565, %v561
        %v626 = vpack.c.b16 %v570, %v566
        %v627 = vpack.c.b16 %v571, %v567
        %v628 = vpack.c.b16 %v572, %v568
        %v629 = vpack.c.b16 %v573, %v569
        %v630 = vpack.c.b16 %v578, %v574
        %v631 = vpack.c.b16 %v579, %v575
        %v632 = vpack.c.b16 %v580, %v576
        %v633 = vpack.c.b16 %v581, %v577
        %v634 = vpack.c.b16 %v586, %v582
        %v635 = vpack.c.b16 %v587, %v583
        %v636 = vpack.c.b16 %v588, %v584
        %v637 = vpack.c.b16 %v589, %v585
        %v638 = vpack.c.b16 %v594, %v590
        %v639 = vpack.c.b16 %v595, %v591
        %v640 = vpack.c.b16 %v596, %v592
        %v641 = vpack.c.b16 %v597, %v593
        %v642 = vpack.c.b16 %v602, %v598
        %v643 = vpack.c.b16 %v603, %v599
        %v644 = vpack.c.b16 %v604, %v600
        %v645 = vpack.c.b16 %v605, %v601
        %vm686 = vcmask 261120
        %v688 = vsel %vm686, %v409, 0
        %v691 = vsel %vm686, %v411, 0
        %v694 = vsel %vm686, %v413, 0
        %v697 = vsel %vm686, %v415, 0
        %v700 = vsel %vm686, %v417, 0
        %v703 = vsel %vm686, %v419, 0
        %v706 = vsel %vm686, %v421, 0
        %v709 = vsel %vm686, %v423, 0
        %711 = vmatprep.subr.bf16.mxu0 %v607
        %712 = vmatpush1.bf16.msra.mxu0 %v606
        %713 = vmatprep.subr.bf16.mxu0 %v611
        %714 = vmatpush1.bf16.msra.mxu0 %v610
        %715 = vmatprep.subr.bf16.mxu0 %v615
        %716 = vmatpush1.bf16.msra.mxu0 %v614
        %717 = vmatprep.subr.bf16.mxu0 %v619
        %718 = vmatpush1.bf16.msra.mxu0 %v618
        %719 = vmatprep.subr.bf16.mxu0 %v623
        %720 = vmatpush1.bf16.msra.mxu0 %v622
        %721 = vmatprep.subr.bf16.mxu0 %v627
        %722 = vmatpush1.bf16.msra.mxu0 %v626
        %723 = vmatprep.subr.bf16.mxu0 %v631
        %724 = vmatpush1.bf16.msra.mxu0 %v630
        %725 = vmatprep.subr.bf16.mxu0 %v635
        %726 = vmatpush1.bf16.msra.mxu0 %v634
        %727 = vmatprep.subr.bf16.mxu0 %v639
        %728 = vmatpush1.bf16.msra.mxu0 %v638
        %729 = vmatprep.subr.bf16.mxu0 %v643
        %730 = vmatpush1.bf16.msra.mxu0 %v642
        %731 = vmatprep.subr.bf16.mxu0 0
        %732 = vmatpush1.bf16.msra.mxu0 0
        %733 = vmatprep.subr.bf16.mxu0 0
        %734 = vmatpush1.bf16.msra.mxu0 0
        %735 = vmatprep.subr.bf16.mxu0 0
        %736 = vmatpush1.bf16.msra.mxu0 0
        %737 = vmatprep.subr.bf16.mxu0 0
        %738 = vmatpush1.bf16.msra.mxu0 0
        %739 = vmatprep.subr.bf16.mxu0 0
        %740 = vmatpush1.bf16.msra.mxu0 0
        %741 = vmatprep.subr.bf16.mxu0 0
        %742 = vmatpush1.bf16.msra.mxu0 0
        %743 = vmatprep.mubr.bf16.mxu0 %v688
        %744 = vmatmul.mubr.bf16.gmra.mrb[0].mxu0 %v408
        %v745 = vpop.f32.mrb[0].mxu0
        %v746 = vadd.f32 %v469, %v745
        %v747 = vpop.f32.mrb[0].mxu0
        %v748 = vadd.f32 %v473, %v747
        %v749 = vpop.f32.mrb[0].mxu0
        %v750 = vadd.f32 %v469, %v749
        %v751 = vpop.f32.mrb[0].mxu0
        %v752 = vadd.f32 %v473, %v751
        %753 = vmatprep.mubr.bf16.mxu0 %v691
        %754 = vmatmul.mubr.bf16.gmra.mrb[0].mxu0 %v410
        %v755 = vpop.f32.mrb[0].mxu0
        %v756 = vadd.f32 %v469, %v755
        %v757 = vpop.f32.mrb[0].mxu0
        %v758 = vadd.f32 %v473, %v757
        %v759 = vpop.f32.mrb[0].mxu0
        %v760 = vadd.f32 %v469, %v759
        %v761 = vpop.f32.mrb[0].mxu0
        %v762 = vadd.f32 %v473, %v761
        %763 = vmatprep.mubr.bf16.mxu0 %v694
        %764 = vmatmul.mubr.bf16.gmra.mrb[0].mxu0 %v412
        %v765 = vpop.f32.mrb[0].mxu0
        %v766 = vadd.f32 %v469, %v765
        %v767 = vpop.f32.mrb[0].mxu0
        %v768 = vadd.f32 %v473, %v767
        %v769 = vpop.f32.mrb[0].mxu0
        %v770 = vadd.f32 %v469, %v769
        %v771 = vpop.f32.mrb[0].mxu0
        %v772 = vadd.f32 %v473, %v771
        %773 = vmatprep.mubr.bf16.mxu0 %v697
        %774 = vmatmul.mubr.bf16.gmra.mrb[0].mxu0 %v414
        %v775 = vpop.f32.mrb[0].mxu0
        %v776 = vadd.f32 %v469, %v775
        %v777 = vpop.f32.mrb[0].mxu0
        %v778 = vadd.f32 %v473, %v777
        %v779 = vpop.f32.mrb[0].mxu0
        %v780 = vadd.f32 %v469, %v779
        %v781 = vpop.f32.mrb[0].mxu0
        %v782 = vadd.f32 %v473, %v781
        %783 = vmatprep.mubr.bf16.mxu0 %v700
        %784 = vmatmul.mubr.bf16.gmra.mrb[0].mxu0 %v416
        %v785 = vpop.f32.mrb[0].mxu0
        %v786 = vadd.f32 %v469, %v785
        %v787 = vpop.f32.mrb[0].mxu0
        %v788 = vadd.f32 %v473, %v787
        %v789 = vpop.f32.mrb[0].mxu0
        %v790 = vadd.f32 %v469, %v789
        %v791 = vpop.f32.mrb[0].mxu0
        %v792 = vadd.f32 %v473, %v791
        %793 = vmatprep.mubr.bf16.mxu0 %v703
        %794 = vmatmul.mubr.bf16.gmra.mrb[0].mxu0 %v418
        %v795 = vpop.f32.mrb[0].mxu0
        %v796 = vadd.f32 %v469, %v795
        %v797 = vpop.f32.mrb[0].mxu0
        %v798 = vadd.f32 %v473, %v797
        %v799 = vpop.f32.mrb[0].mxu0
        %v800 = vadd.f32 %v469, %v799
        %v801 = vpop.f32.mrb[0].mxu0
        %v802 = vadd.f32 %v473, %v801
        %803 = vmatprep.mubr.bf16.mxu0 %v706
        %804 = vmatmul.mubr.bf16.gmra.mrb[0].mxu0 %v420
        %v805 = vpop.f32.mrb[0].mxu0
        %v806 = vadd.f32 %v469, %v805
        %v807 = vpop.f32.mrb[0].mxu0
        %v808 = vadd.f32 %v473, %v807
        %v809 = vpop.f32.mrb[0].mxu0
        %v810 = vadd.f32 %v469, %v809
        %v811 = vpop.f32.mrb[0].mxu0
        %v812 = vadd.f32 %v473, %v811
        %813 = vmatprep.mubr.bf16.mxu0 %v709
        %814 = vmatmul.mubr.bf16.gmra.mrb[0].mxu0 %v422
        %v815 = vpop.f32.mrb[0].mxu0
        %v816 = vadd.f32 %v469, %v815
        %v817 = vpop.f32.mrb[0].mxu0
        %v818 = vadd.f32 %v473, %v817
        %v819 = vpop.f32.mrb[0].mxu0
        %v820 = vadd.f32 %v469, %v819
        %v821 = vpop.f32.mrb[0].mxu0
        %v822 = vadd.f32 %v473, %v821
        %823 = vdwg.mxu0
        %824 = vmatprep.subr.bf16.mxu0 %v609
        %825 = vmatpush1.bf16.msra.mxu0 %v608
        %826 = vmatprep.subr.bf16.mxu0 %v613
        %827 = vmatpush1.bf16.msra.mxu0 %v612
        %828 = vmatprep.subr.bf16.mxu0 %v617
        %829 = vmatpush1.bf16.msra.mxu0 %v616
        %830 = vmatprep.subr.bf16.mxu0 %v621
        %831 = vmatpush1.bf16.msra.mxu0 %v620
        %832 = vmatprep.subr.bf16.mxu0 %v625
        %833 = vmatpush1.bf16.msra.mxu0 %v624
        %834 = vmatprep.subr.bf16.mxu0 %v629
        %835 = vmatpush1.bf16.msra.mxu0 %v628
        %836 = vmatprep.subr.bf16.mxu0 %v633
        %837 = vmatpush1.bf16.msra.mxu0 %v632
        %838 = vmatprep.subr.bf16.mxu0 %v637
        %839 = vmatpush1.bf16.msra.mxu0 %v636
        %840 = vmatprep.subr.bf16.mxu0 %v641
        %841 = vmatpush1.bf16.msra.mxu0 %v640
        %842 = vmatprep.subr.bf16.mxu0 %v645
        %843 = vmatpush1.bf16.msra.mxu0 %v644
        %844 = vmatprep.subr.bf16.mxu0 0
        %845 = vmatpush1.bf16.msra.mxu0 0
        %846 = vmatprep.subr.bf16.mxu0 0
        %847 = vmatpush1.bf16.msra.mxu0 0
        %848 = vmatprep.subr.bf16.mxu0 0
        %849 = vmatpush1.bf16.msra.mxu0 0
        %850 = vmatprep.subr.bf16.mxu0 0
        %851 = vmatpush1.bf16.msra.mxu0 0
        %852 = vmatprep.subr.bf16.mxu0 0
        %853 = vmatpush1.bf16.msra.mxu0 0
        %854 = vmatprep.subr.bf16.mxu0 0
        %855 = vmatpush1.bf16.msra.mxu0 0
        %856 = vmatprep.mubr.bf16.mxu0 %v688
        %857 = vmatmul.mubr.bf16.gmra.mrb[0].mxu0 %v408
        %v858 = vpop.f32.mrb[0].mxu0
        %v859 = vadd.f32 %v477, %v858
        %v860 = vpop.f32.mrb[0].mxu0
        %v861 = vadd.f32 %v481, %v860
        %v862 = vpop.f32.mrb[0].mxu0
        %v863 = vadd.f32 %v477, %v862
        %v864 = vpop.f32.mrb[0].mxu0
        %v865 = vadd.f32 %v481, %v864
        %866 = vmatprep.mubr.bf16.mxu0 %v691
        %867 = vmatmul.mubr.bf16.gmra.mrb[0].mxu0 %v410
        %v868 = vpop.f32.mrb[0].mxu0
        %v869 = vadd.f32 %v477, %v868
        %v870 = vpop.f32.mrb[0].mxu0
        %v871 = vadd.f32 %v481, %v870
        %v872 = vpop.f32.mrb[0].mxu0
        %v873 = vadd.f32 %v477, %v872
        %v874 = vpop.f32.mrb[0].mxu0
        %v875 = vadd.f32 %v481, %v874
        %876 = vmatprep.mubr.bf16.mxu0 %v694
        %877 = vmatmul.mubr.bf16.gmra.mrb[0].mxu0 %v412
        %v878 = vpop.f32.mrb[0].mxu0
        %v879 = vadd.f32 %v477, %v878
        %v880 = vpop.f32.mrb[0].mxu0
        %v881 = vadd.f32 %v481, %v880
        %v882 = vpop.f32.mrb[0].mxu0
        %v883 = vadd.f32 %v477, %v882
        %v884 = vpop.f32.mrb[0].mxu0
        %v885 = vadd.f32 %v481, %v884
        %886 = vmatprep.mubr.bf16.mxu0 %v697
        %887 = vmatmul.mubr.bf16.gmra.mrb[0].mxu0 %v414
        %v888 = vpop.f32.mrb[0].mxu0
        %v889 = vadd.f32 %v477, %v888
        %v890 = vpop.f32.mrb[0].mxu0
        %v891 = vadd.f32 %v481, %v890
        %v892 = vpop.f32.mrb[0].mxu0
        %v893 = vadd.f32 %v477, %v892
        %v894 = vpop.f32.mrb[0].mxu0
        %v895 = vadd.f32 %v481, %v894
        %896 = vmatprep.mubr.bf16.mxu0 %v700
        %897 = vmatmul.mubr.bf16.gmra.mrb[0].mxu0 %v416
        %v898 = vpop.f32.mrb[0].mxu0
        %v899 = vadd.f32 %v477, %v898
        %v900 = vpop.f32.mrb[0].mxu0
        %v901 = vadd.f32 %v481, %v900
        %v902 = vpop.f32.mrb[0].mxu0
        %v903 = vadd.f32 %v477, %v902
        %v904 = vpop.f32.mrb[0].mxu0
        %v905 = vadd.f32 %v481, %v904
        %906 = vmatprep.mubr.bf16.mxu0 %v703
        %907 = vmatmul.mubr.bf16.gmra.mrb[0].mxu0 %v418
        %v908 = vpop.f32.mrb[0].mxu0
        %v909 = vadd.f32 %v477, %v908
        %v910 = vpop.f32.mrb[0].mxu0
        %v911 = vadd.f32 %v481, %v910
        %v912 = vpop.f32.mrb[0].mxu0
        %v913 = vadd.f32 %v477, %v912
        %v914 = vpop.f32.mrb[0].mxu0
        %v915 = vadd.f32 %v481, %v914
        %916 = vmatprep.mubr.bf16.mxu0 %v706
        %917 = vmatmul.mubr.bf16.gmra.mrb[0].mxu0 %v420
        %v918 = vpop.f32.mrb[0].mxu0
        %v919 = vadd.f32 %v477, %v918
        %v920 = vpop.f32.mrb[0].mxu0
        %v921 = vadd.f32 %v481, %v920
        %v922 = vpop.f32.mrb[0].mxu0
        %v923 = vadd.f32 %v477, %v922
        %v924 = vpop.f32.mrb[0].mxu0
        %v925 = vadd.f32 %v481, %v924
        %926 = vmatprep.mubr.bf16.mxu0 %v709
        %927 = vmatmul.mubr.bf16.gmra.mrb[0].mxu0 %v422
        %v928 = vpop.f32.mrb[0].mxu0
        %v929 = vadd.f32 %v477, %v928
        %v930 = vpop.f32.mrb[0].mxu0
        %v931 = vadd.f32 %v481, %v930
        %v932 = vpop.f32.mrb[0].mxu0
        %v933 = vadd.f32 %v477, %v932
        %v934 = vpop.f32.mrb[0].mxu0
        %v935 = vadd.f32 %v481, %v934
        %936 = vdwg.mxu0
        %v937 = vmax.f32 %v746, 0.0
        %v938 = vmax.f32 %v748, 0.0
        %v939 = vmax.f32 %v859, 0.0
        %v940 = vmax.f32 %v861, 0.0
        %v941 = vmax.f32 %v750, 0.0
        %v942 = vmax.f32 %v752, 0.0
        %v943 = vmax.f32 %v863, 0.0
        %v944 = vmax.f32 %v865, 0.0
        %v945 = vmax.f32 %v756, 0.0
        %v946 = vmax.f32 %v758, 0.0
        %v947 = vmax.f32 %v869, 0.0
        %v948 = vmax.f32 %v871, 0.0
        %v949 = vmax.f32 %v760, 0.0
        %v950 = vmax.f32 %v762, 0.0
        %v951 = vmax.f32 %v873, 0.0
        %v952 = vmax.f32 %v875, 0.0
        %v953 = vmax.f32 %v766, 0.0
        %v954 = vmax.f32 %v768, 0.0
        %v955 = vmax.f32 %v879, 0.0
        %v956 = vmax.f32 %v881, 0.0
        %v957 = vmax.f32 %v770, 0.0
        %v958 = vmax.f32 %v772, 0.0
        %v959 = vmax.f32 %v883, 0.0
        %v960 = vmax.f32 %v885, 0.0
        %v961 = vmax.f32 %v776, 0.0
        %v962 = vmax.f32 %v778, 0.0
        %v963 = vmax.f32 %v889, 0.0
        %v964 = vmax.f32 %v891, 0.0
        %v965 = vmax.f32 %v780, 0.0
        %v966 = vmax.f32 %v782, 0.0
        %v967 = vmax.f32 %v893, 0.0
        %v968 = vmax.f32 %v895, 0.0
        %v969 = vmax.f32 %v786, 0.0
        %v970 = vmax.f32 %v788, 0.0
        %v971 = vmax.f32 %v899, 0.0
        %v972 = vmax.f32 %v901, 0.0
        %v973 = vmax.f32 %v790, 0.0
        %v974 = vmax.f32 %v792, 0.0
        %v975 = vmax.f32 %v903, 0.0
        %v976 = vmax.f32 %v905, 0.0
        %v977 = vmax.f32 %v796, 0.0
        %v978 = vmax.f32 %v798, 0.0
        %v979 = vmax.f32 %v909, 0.0
        %v980 = vmax.f32 %v911, 0.0
        %v981 = vmax.f32 %v800, 0.0
        %v982 = vmax.f32 %v802, 0.0
        %v983 = vmax.f32 %v913, 0.0
        %v984 = vmax.f32 %v915, 0.0
        %v985 = vmax.f32 %v806, 0.0
        %v986 = vmax.f32 %v808, 0.0
        %v987 = vmax.f32 %v919, 0.0
        %v988 = vmax.f32 %v921, 0.0
        %v989 = vmax.f32 %v810, 0.0
        %v990 = vmax.f32 %v812, 0.0
        %v991 = vmax.f32 %v923, 0.0
        %v992 = vmax.f32 %v925, 0.0
        %v993 = vmax.f32 %v816, 0.0
        %v994 = vmax.f32 %v818, 0.0
        %v995 = vmax.f32 %v929, 0.0
        %v996 = vmax.f32 %v931, 0.0
        %v997 = vmax.f32 %v820, 0.0
        %v998 = vmax.f32 %v822, 0.0
        %v999 = vmax.f32 %v933, 0.0
        %v1000 = vmax.f32 %v935, 0.0
        %v1001 = vpack.c.bf16 %v941, %v937
        %v1002 = vpack.c.bf16 %v942, %v938
        %v1003 = vpack.c.bf16 %v943, %v939
        %v1004 = vpack.c.bf16 %v944, %v940
        %v1005 = vpack.c.bf16 %v949, %v945
        %v1006 = vpack.c.bf16 %v950, %v946
        %v1007 = vpack.c.bf16 %v951, %v947
        %v1008 = vpack.c.bf16 %v952, %v948
        %v1009 = vpack.c.bf16 %v957, %v953
        %v1010 = vpack.c.bf16 %v958, %v954
        %v1011 = vpack.c.bf16 %v959, %v955
        %v1012 = vpack.c.bf16 %v960, %v956
        %v1013 = vpack.c.bf16 %v965, %v961
        %v1014 = vpack.c.bf16 %v966, %v962
        %v1015 = vpack.c.bf16 %v967, %v963
        %v1016 = vpack.c.bf16 %v968, %v964
        %v1017 = vpack.c.bf16 %v973, %v969
        %v1018 = vpack.c.bf16 %v974, %v970
        %v1019 = vpack.c.bf16 %v975, %v971
        %v1020 = vpack.c.bf16 %v976, %v972
        %v1021 = vpack.c.bf16 %v981, %v977
        %v1022 = vpack.c.bf16 %v982, %v978
        %v1023 = vpack.c.bf16 %v983, %v979
        %v1024 = vpack.c.bf16 %v984, %v980
        %v1025 = vpack.c.bf16 %v989, %v985
        %v1026 = vpack.c.bf16 %v990, %v986
        %v1027 = vpack.c.bf16 %v991, %v987
        %v1028 = vpack.c.bf16 %v992, %v988
        %v1029 = vpack.c.bf16 %v997, %v993
        %v1030 = vpack.c.bf16 %v998, %v994
        %v1031 = vpack.c.bf16 %v999, %v995
        %v1032 = vpack.c.bf16 %v1000, %v996
        %v1033 = vld [vmem:[#allocation6] sm:$0xff]
        %v1034 = vld [vmem:[#allocation6 + $0x8] sm:$0xff]
        %v1035 = vld [vmem:[#allocation6 + $0x10] sm:$0xff]
        %v1036 = vld [vmem:[#allocation6 + $0x18] sm:$0xff]
        %v1037 = vld [vmem:[#allocation6 + $0x20] sm:$0xff]
        %v1038 = vld [vmem:[#allocation6 + $0x28] sm:$0xff]
        %v1039 = vld [vmem:[#allocation6 + $0x30] sm:$0xff]
        %v1040 = vld [vmem:[#allocation6 + $0x38] sm:$0xff]
        %v1041 = vld [vmem:[#allocation6 + $0x40] sm:$0xff]
        %v1042 = vld [vmem:[#allocation6 + $0x48] sm:$0xff]
        %v1043 = vld [vmem:[#allocation6 + $0x50] sm:$0xff]
        %v1044 = vld [vmem:[#allocation6 + $0x58] sm:$0xff]
        %v1045 = vld [vmem:[#allocation6 + $0x60] sm:$0xff]
        %v1046 = vld [vmem:[#allocation6 + $0x68] sm:$0xff]
        %v1047 = vld [vmem:[#allocation6 + $0x70] sm:$0xff]
        %v1048 = vld [vmem:[#allocation6 + $0x78] sm:$0xff]
        %v1049 = vld [vmem:[#allocation6 + $0x80] sm:$0xff]
        %v1050 = vld [vmem:[#allocation6 + $0x88] sm:$0xff]
        %v1051 = vld [vmem:[#allocation6 + $0x90] sm:$0xff]
        %v1052 = vld [vmem:[#allocation6 + $0x98] sm:$0xff]
        %v1053 = vld [vmem:[#allocation6 + $0xa0] sm:$0xff]
        %v1054 = vld [vmem:[#allocation6 + $0xa8] sm:$0xff]
        %v1055 = vld [vmem:[#allocation6 + $0xb0] sm:$0xff]
        %v1056 = vld [vmem:[#allocation6 + $0xb8] sm:$0xff]
        %v1057 = vld [vmem:[#allocation6 + $0xc0] sm:$0xff]
        %v1058 = vld [vmem:[#allocation6 + $0xc8] sm:$0xff]
        %v1059 = vld [vmem:[#allocation6 + $0xd0] sm:$0xff]
        %v1060 = vld [vmem:[#allocation6 + $0xd8] sm:$0xff]
        %v1061 = vld [vmem:[#allocation6 + $0xe0] sm:$0xff]
        %v1062 = vld [vmem:[#allocation6 + $0xe8] sm:$0xff]
        %v1063 = vld [vmem:[#allocation6 + $0xf0] sm:$0xff]
        %v1064 = vld [vmem:[#allocation6 + $0xf8] sm:$0xff]
        %v1065 = vld [vmem:[#allocation6 + $0x100] sm:$0xff]
        %v1066 = vld [vmem:[#allocation6 + $0x108] sm:$0xff]
        %v1067 = vld [vmem:[#allocation6 + $0x110] sm:$0xff]
        %v1068 = vld [vmem:[#allocation6 + $0x118] sm:$0xff]
        %v1069 = vld [vmem:[#allocation6 + $0x120] sm:$0xff]
        %v1070 = vld [vmem:[#allocation6 + $0x128] sm:$0xff]
        %v1071 = vld [vmem:[#allocation6 + $0x130] sm:$0xff]
        %v1072 = vld [vmem:[#allocation6 + $0x138] sm:$0xff]
        %v1073 = vld [vmem:[#allocation6 + $0x140] sm:$0xff]
        %v1074 = vld [vmem:[#allocation6 + $0x148] sm:$0xff]
        %v1075 = vld [vmem:[#allocation6 + $0x150] sm:$0xff]
        %v1076 = vld [vmem:[#allocation6 + $0x158] sm:$0xff]
        %v1077 = vld [vmem:[#allocation6 + $0x160] sm:$0xff]
        %v1078 = vld [vmem:[#allocation6 + $0x168] sm:$0xff]
        %v1079 = vld [vmem:[#allocation6 + $0x170] sm:$0xff]
        %v1080 = vld [vmem:[#allocation6 + $0x178] sm:$0xff]
        %v1081 = vld [vmem:[#allocation6 + $0x180] sm:$0xff]
        %v1082 = vld [vmem:[#allocation6 + $0x188] sm:$0xff]
        %v1083 = vld [vmem:[#allocation6 + $0x190] sm:$0xff]
        %v1084 = vld [vmem:[#allocation6 + $0x198] sm:$0xff]
        %v1085 = vld [vmem:[#allocation6 + $0x1a0] sm:$0xff]
        %v1086 = vld [vmem:[#allocation6 + $0x1a8] sm:$0xff]
        %v1087 = vld [vmem:[#allocation6 + $0x1b0] sm:$0xff]
        %v1088 = vld [vmem:[#allocation6 + $0x1b8] sm:$0xff]
        %v1089 = vld [vmem:[#allocation6 + $0x1c0] sm:$0xff]
        %v1090 = vld [vmem:[#allocation6 + $0x1c8] sm:$0xff]
        %v1091 = vld [vmem:[#allocation6 + $0x1d0] sm:$0xff]
        %v1092 = vld [vmem:[#allocation6 + $0x1d8] sm:$0xff]
        %v1093 = vld [vmem:[#allocation6 + $0x1e0] sm:$0xff]
        %v1094 = vld [vmem:[#allocation6 + $0x1e8] sm:$0xff]
        %v1095 = vld [vmem:[#allocation6 + $0x1f0] sm:$0xff]
        %v1096 = vld [vmem:[#allocation6 + $0x1f8] sm:$0xff]
        %v1097 = vld [vmem:[#allocation6 + $0x200] sm:$0xff]
        %v1098 = vld [vmem:[#allocation6 + $0x208] sm:$0xff]
        %v1099 = vld [vmem:[#allocation6 + $0x210] sm:$0xff]
        %v1100 = vld [vmem:[#allocation6 + $0x218] sm:$0xff]
        %v1101 = vld [vmem:[#allocation6 + $0x220] sm:$0xff]
        %v1102 = vld [vmem:[#allocation6 + $0x228] sm:$0xff]
        %v1103 = vld [vmem:[#allocation6 + $0x230] sm:$0xff]
        %v1104 = vld [vmem:[#allocation6 + $0x238] sm:$0xff]
        %v1105 = vld [vmem:[#allocation6 + $0x240] sm:$0xff]
        %v1106 = vld [vmem:[#allocation6 + $0x248] sm:$0xff]
        %v1107 = vld [vmem:[#allocation6 + $0x250] sm:$0xff]
        %v1108 = vld [vmem:[#allocation6 + $0x258] sm:$0xff]
        %v1109 = vld [vmem:[#allocation6 + $0x260] sm:$0xff]
        %v1110 = vld [vmem:[#allocation6 + $0x268] sm:$0xff]
        %v1111 = vld [vmem:[#allocation6 + $0x270] sm:$0xff]
        %v1112 = vld [vmem:[#allocation6 + $0x278] sm:$0xff]
        %v1113 = vld [vmem:[#allocation6 + $0x280] sm:$0xff]
        %v1114 = vld [vmem:[#allocation6 + $0x288] sm:$0xff]
        %v1115 = vld [vmem:[#allocation6 + $0x290] sm:$0xff]
        %v1116 = vld [vmem:[#allocation6 + $0x298] sm:$0xff]
        %v1117 = vld [vmem:[#allocation6 + $0x2a0] sm:$0xff]
        %v1118 = vld [vmem:[#allocation6 + $0x2a8] sm:$0xff]
        %v1119 = vld [vmem:[#allocation6 + $0x2b0] sm:$0xff]
        %v1120 = vld [vmem:[#allocation6 + $0x2b8] sm:$0xff]
        %v1121 = vld [vmem:[#allocation6 + $0x2c0] sm:$0xff]
        %v1122 = vld [vmem:[#allocation6 + $0x2c8] sm:$0xff]
        %v1123 = vld [vmem:[#allocation6 + $0x2d0] sm:$0xff]
        %v1124 = vld [vmem:[#allocation6 + $0x2d8] sm:$0xff]
        %v1125 = vld [vmem:[#allocation6 + $0x2e0] sm:$0xff]
        %v1126 = vld [vmem:[#allocation6 + $0x2e8] sm:$0xff]
        %v1127 = vld [vmem:[#allocation6 + $0x2f0] sm:$0xff]
        %v1128 = vld [vmem:[#allocation6 + $0x2f8] sm:$0xff]
        %v1129 = vld [vmem:[#allocation6 + $0x300] sm:$0xff]
        %v1130 = vld [vmem:[#allocation6 + $0x308] sm:$0xff]
        %v1131 = vld [vmem:[#allocation6 + $0x310] sm:$0xff]
        %v1132 = vld [vmem:[#allocation6 + $0x318] sm:$0xff]
        %v1133 = vld [vmem:[#allocation6 + $0x320] sm:$0xff]
        %v1134 = vld [vmem:[#allocation6 + $0x328] sm:$0xff]
        %v1135 = vld [vmem:[#allocation6 + $0x330] sm:$0xff]
        %v1136 = vld [vmem:[#allocation6 + $0x338] sm:$0xff]
        %v1137 = vld [vmem:[#allocation6 + $0x340] sm:$0xff]
        %v1138 = vld [vmem:[#allocation6 + $0x348] sm:$0xff]
        %v1139 = vld [vmem:[#allocation6 + $0x350] sm:$0xff]
        %v1140 = vld [vmem:[#allocation6 + $0x358] sm:$0xff]
        %v1141 = vld [vmem:[#allocation6 + $0x360] sm:$0xff]
        %v1142 = vld [vmem:[#allocation6 + $0x368] sm:$0xff]
        %v1143 = vld [vmem:[#allocation6 + $0x370] sm:$0xff]
        %v1144 = vld [vmem:[#allocation6 + $0x378] sm:$0xff]
        %v1145 = vld [vmem:[#allocation6 + $0x380] sm:$0xff]
        %v1146 = vld [vmem:[#allocation6 + $0x388] sm:$0xff]
        %v1147 = vld [vmem:[#allocation6 + $0x390] sm:$0xff]
        %v1148 = vld [vmem:[#allocation6 + $0x398] sm:$0xff]
        %v1149 = vld [vmem:[#allocation6 + $0x3a0] sm:$0xff]
        %v1150 = vld [vmem:[#allocation6 + $0x3a8] sm:$0xff]
        %v1151 = vld [vmem:[#allocation6 + $0x3b0] sm:$0xff]
        %v1152 = vld [vmem:[#allocation6 + $0x3b8] sm:$0xff]
        %v1153 = vld [vmem:[#allocation6 + $0x3c0] sm:$0xff]
        %v1154 = vld [vmem:[#allocation6 + $0x3c8] sm:$0xff]
        %v1155 = vld [vmem:[#allocation6 + $0x3d0] sm:$0xff]
        %v1156 = vld [vmem:[#allocation6 + $0x3d8] sm:$0xff]
        %v1157 = vld [vmem:[#allocation6 + $0x3e0] sm:$0xff]
        %v1158 = vld [vmem:[#allocation6 + $0x3e8] sm:$0xff]
        %v1159 = vld [vmem:[#allocation6 + $0x3f0] sm:$0xff]
        %v1160 = vld [vmem:[#allocation6 + $0x3f8] sm:$0xff]
        %v1161 = vld [vmem:[%s4] sm:$0xf]
        %v1163 = vlaneseq
        %v1164 = vshrl.u32 %v1163, 7
        %v1165 = vsub.s32 0, %v1164
        %v1166 = vrot.slane %v1161, %v1165
        %v1167 = vlaneseq
        %v1168 = vshrl.u32 %v1167, 7
        %v1169 = vsub.s32 1, %v1168
        %v1170 = vrot.slane %v1161, %v1169
        %v1171 = vlaneseq
        %v1172 = vshrl.u32 %v1171, 7
        %v1173 = vsub.s32 2, %v1172
        %v1174 = vrot.slane %v1161, %v1173
        %v1175 = vlaneseq
        %v1176 = vshrl.u32 %v1175, 7
        %v1177 = vsub.s32 3, %v1176
        %v1178 = vrot.slane %v1161, %v1177
        %v1311 = vunpack.c.l.b16 %v1033
        %v1312 = vunpack.c.h.b16 %v1033
        %v1313 = vunpack.c.l.b16 %v1034
        %v1314 = vunpack.c.h.b16 %v1034
        %v1315 = vunpack.c.l.b16 %v1035
        %v1316 = vunpack.c.h.b16 %v1035
        %v1317 = vunpack.c.l.b16 %v1036
        %v1318 = vunpack.c.h.b16 %v1036
        %v1319 = vunpack.c.l.b16 %v1037
        %v1320 = vunpack.c.h.b16 %v1037
        %v1321 = vunpack.c.l.b16 %v1038
        %v1322 = vunpack.c.h.b16 %v1038
        %v1323 = vunpack.c.l.b16 %v1039
        %v1324 = vunpack.c.h.b16 %v1039
        %v1325 = vunpack.c.l.b16 %v1040
        %v1326 = vunpack.c.h.b16 %v1040
        %v1327 = vunpack.c.l.b16 %v1041
        %v1328 = vunpack.c.h.b16 %v1041
        %v1329 = vunpack.c.l.b16 %v1042
        %v1330 = vunpack.c.h.b16 %v1042
        %v1331 = vunpack.c.l.b16 %v1043
        %v1332 = vunpack.c.h.b16 %v1043
        %v1333 = vunpack.c.l.b16 %v1044
        %v1334 = vunpack.c.h.b16 %v1044
        %v1335 = vunpack.c.l.b16 %v1045
        %v1336 = vunpack.c.h.b16 %v1045
        %v1337 = vunpack.c.l.b16 %v1046
        %v1338 = vunpack.c.h.b16 %v1046
        %v1339 = vunpack.c.l.b16 %v1047
        %v1340 = vunpack.c.h.b16 %v1047
        %v1341 = vunpack.c.l.b16 %v1048
        %v1342 = vunpack.c.h.b16 %v1048
        %v1343 = vunpack.c.l.b16 %v1049
        %v1344 = vunpack.c.h.b16 %v1049
        %v1345 = vunpack.c.l.b16 %v1050
        %v1346 = vunpack.c.h.b16 %v1050
        %v1347 = vunpack.c.l.b16 %v1051
        %v1348 = vunpack.c.h.b16 %v1051
        %v1349 = vunpack.c.l.b16 %v1052
        %v1350 = vunpack.c.h.b16 %v1052
        %v1351 = vunpack.c.l.b16 %v1053
        %v1352 = vunpack.c.h.b16 %v1053
        %v1353 = vunpack.c.l.b16 %v1054
        %v1354 = vunpack.c.h.b16 %v1054
        %v1355 = vunpack.c.l.b16 %v1055
        %v1356 = vunpack.c.h.b16 %v1055
        %v1357 = vunpack.c.l.b16 %v1056
        %v1358 = vunpack.c.h.b16 %v1056
        %v1359 = vunpack.c.l.b16 %v1057
        %v1360 = vunpack.c.h.b16 %v1057
        %v1361 = vunpack.c.l.b16 %v1058
        %v1362 = vunpack.c.h.b16 %v1058
        %v1363 = vunpack.c.l.b16 %v1059
        %v1364 = vunpack.c.h.b16 %v1059
        %v1365 = vunpack.c.l.b16 %v1060
        %v1366 = vunpack.c.h.b16 %v1060
        %v1367 = vunpack.c.l.b16 %v1061
        %v1368 = vunpack.c.h.b16 %v1061
        %v1369 = vunpack.c.l.b16 %v1062
        %v1370 = vunpack.c.h.b16 %v1062
        %v1371 = vunpack.c.l.b16 %v1063
        %v1372 = vunpack.c.h.b16 %v1063
        %v1373 = vunpack.c.l.b16 %v1064
        %v1374 = vunpack.c.h.b16 %v1064
        %v1375 = vunpack.c.l.b16 %v1065
        %v1376 = vunpack.c.h.b16 %v1065
        %v1377 = vunpack.c.l.b16 %v1066
        %v1378 = vunpack.c.h.b16 %v1066
        %v1379 = vunpack.c.l.b16 %v1067
        %v1380 = vunpack.c.h.b16 %v1067
        %v1381 = vunpack.c.l.b16 %v1068
        %v1382 = vunpack.c.h.b16 %v1068
        %v1383 = vunpack.c.l.b16 %v1069
        %v1384 = vunpack.c.h.b16 %v1069
        %v1385 = vunpack.c.l.b16 %v1070
        %v1386 = vunpack.c.h.b16 %v1070
        %v1387 = vunpack.c.l.b16 %v1071
        %v1388 = vunpack.c.h.b16 %v1071
        %v1389 = vunpack.c.l.b16 %v1072
        %v1390 = vunpack.c.h.b16 %v1072
        %v1391 = vunpack.c.l.b16 %v1073
        %v1392 = vunpack.c.h.b16 %v1073
        %v1393 = vunpack.c.l.b16 %v1074
        %v1394 = vunpack.c.h.b16 %v1074
        %v1395 = vunpack.c.l.b16 %v1075
        %v1396 = vunpack.c.h.b16 %v1075
        %v1397 = vunpack.c.l.b16 %v1076
        %v1398 = vunpack.c.h.b16 %v1076
        %v1399 = vunpack.c.l.b16 %v1077
        %v1400 = vunpack.c.h.b16 %v1077
        %v1401 = vunpack.c.l.b16 %v1078
        %v1402 = vunpack.c.h.b16 %v1078
        %v1403 = vunpack.c.l.b16 %v1079
        %v1404 = vunpack.c.h.b16 %v1079
        %v1405 = vunpack.c.l.b16 %v1080
        %v1406 = vunpack.c.h.b16 %v1080
        %v1407 = vunpack.c.l.b16 %v1081
        %v1408 = vunpack.c.h.b16 %v1081
        %v1409 = vunpack.c.l.b16 %v1082
        %v1410 = vunpack.c.h.b16 %v1082
        %v1411 = vunpack.c.l.b16 %v1083
        %v1412 = vunpack.c.h.b16 %v1083
        %v1413 = vunpack.c.l.b16 %v1084
        %v1414 = vunpack.c.h.b16 %v1084
        %v1415 = vunpack.c.l.b16 %v1085
        %v1416 = vunpack.c.h.b16 %v1085
        %v1417 = vunpack.c.l.b16 %v1086
        %v1418 = vunpack.c.h.b16 %v1086
        %v1419 = vunpack.c.l.b16 %v1087
        %v1420 = vunpack.c.h.b16 %v1087
        %v1421 = vunpack.c.l.b16 %v1088
        %v1422 = vunpack.c.h.b16 %v1088
        %v1423 = vunpack.c.l.b16 %v1089
        %v1424 = vunpack.c.h.b16 %v1089
        %v1425 = vunpack.c.l.b16 %v1090
        %v1426 = vunpack.c.h.b16 %v1090
        %v1427 = vunpack.c.l.b16 %v1091
        %v1428 = vunpack.c.h.b16 %v1091
        %v1429 = vunpack.c.l.b16 %v1092
        %v1430 = vunpack.c.h.b16 %v1092
        %v1431 = vunpack.c.l.b16 %v1093
        %v1432 = vunpack.c.h.b16 %v1093
        %v1433 = vunpack.c.l.b16 %v1094
        %v1434 = vunpack.c.h.b16 %v1094
        %v1435 = vunpack.c.l.b16 %v1095
        %v1436 = vunpack.c.h.b16 %v1095
        %v1437 = vunpack.c.l.b16 %v1096
        %v1438 = vunpack.c.h.b16 %v1096
        %v1439 = vunpack.c.l.b16 %v1097
        %v1440 = vunpack.c.h.b16 %v1097
        %v1441 = vunpack.c.l.b16 %v1098
        %v1442 = vunpack.c.h.b16 %v1098
        %v1443 = vunpack.c.l.b16 %v1099
        %v1444 = vunpack.c.h.b16 %v1099
        %v1445 = vunpack.c.l.b16 %v1100
        %v1446 = vunpack.c.h.b16 %v1100
        %v1447 = vunpack.c.l.b16 %v1101
        %v1448 = vunpack.c.h.b16 %v1101
        %v1449 = vunpack.c.l.b16 %v1102
        %v1450 = vunpack.c.h.b16 %v1102
        %v1451 = vunpack.c.l.b16 %v1103
        %v1452 = vunpack.c.h.b16 %v1103
        %v1453 = vunpack.c.l.b16 %v1104
        %v1454 = vunpack.c.h.b16 %v1104
        %v1455 = vunpack.c.l.b16 %v1105
        %v1456 = vunpack.c.h.b16 %v1105
        %v1457 = vunpack.c.l.b16 %v1106
        %v1458 = vunpack.c.h.b16 %v1106
        %v1459 = vunpack.c.l.b16 %v1107
        %v1460 = vunpack.c.h.b16 %v1107
        %v1461 = vunpack.c.l.b16 %v1108
        %v1462 = vunpack.c.h.b16 %v1108
        %v1463 = vunpack.c.l.b16 %v1109
        %v1464 = vunpack.c.h.b16 %v1109
        %v1465 = vunpack.c.l.b16 %v1110
        %v1466 = vunpack.c.h.b16 %v1110
        %v1467 = vunpack.c.l.b16 %v1111
        %v1468 = vunpack.c.h.b16 %v1111
        %v1469 = vunpack.c.l.b16 %v1112
        %v1470 = vunpack.c.h.b16 %v1112
        %v1471 = vunpack.c.l.b16 %v1113
        %v1472 = vunpack.c.h.b16 %v1113
        %v1473 = vunpack.c.l.b16 %v1114
        %v1474 = vunpack.c.h.b16 %v1114
        %v1475 = vunpack.c.l.b16 %v1115
        %v1476 = vunpack.c.h.b16 %v1115
        %v1477 = vunpack.c.l.b16 %v1116
        %v1478 = vunpack.c.h.b16 %v1116
        %v1479 = vunpack.c.l.b16 %v1117
        %v1480 = vunpack.c.h.b16 %v1117
        %v1481 = vunpack.c.l.b16 %v1118
        %v1482 = vunpack.c.h.b16 %v1118
        %v1483 = vunpack.c.l.b16 %v1119
        %v1484 = vunpack.c.h.b16 %v1119
        %v1485 = vunpack.c.l.b16 %v1120
        %v1486 = vunpack.c.h.b16 %v1120
        %v1487 = vunpack.c.l.b16 %v1121
        %v1488 = vunpack.c.h.b16 %v1121
        %v1489 = vunpack.c.l.b16 %v1122
        %v1490 = vunpack.c.h.b16 %v1122
        %v1491 = vunpack.c.l.b16 %v1123
        %v1492 = vunpack.c.h.b16 %v1123
        %v1493 = vunpack.c.l.b16 %v1124
        %v1494 = vunpack.c.h.b16 %v1124
        %v1495 = vunpack.c.l.b16 %v1125
        %v1496 = vunpack.c.h.b16 %v1125
        %v1497 = vunpack.c.l.b16 %v1126
        %v1498 = vunpack.c.h.b16 %v1126
        %v1499 = vunpack.c.l.b16 %v1127
        %v1500 = vunpack.c.h.b16 %v1127
        %v1501 = vunpack.c.l.b16 %v1128
        %v1502 = vunpack.c.h.b16 %v1128
        %v1503 = vunpack.c.l.b16 %v1129
        %v1504 = vunpack.c.h.b16 %v1129
        %v1505 = vunpack.c.l.b16 %v1130
        %v1506 = vunpack.c.h.b16 %v1130
        %v1507 = vunpack.c.l.b16 %v1131
        %v1508 = vunpack.c.h.b16 %v1131
        %v1509 = vunpack.c.l.b16 %v1132
        %v1510 = vunpack.c.h.b16 %v1132
        %v1511 = vunpack.c.l.b16 %v1133
        %v1512 = vunpack.c.h.b16 %v1133
        %v1513 = vunpack.c.l.b16 %v1134
        %v1514 = vunpack.c.h.b16 %v1134
        %v1515 = vunpack.c.l.b16 %v1135
        %v1516 = vunpack.c.h.b16 %v1135
        %v1517 = vunpack.c.l.b16 %v1136
        %v1518 = vunpack.c.h.b16 %v1136
        %v1519 = vunpack.c.l.b16 %v1137
        %v1520 = vunpack.c.h.b16 %v1137
        %v1521 = vunpack.c.l.b16 %v1138
        %v1522 = vunpack.c.h.b16 %v1138
        %v1523 = vunpack.c.l.b16 %v1139
        %v1524 = vunpack.c.h.b16 %v1139
        %v1525 = vunpack.c.l.b16 %v1140
        %v1526 = vunpack.c.h.b16 %v1140
        %v1527 = vunpack.c.l.b16 %v1141
        %v1528 = vunpack.c.h.b16 %v1141
        %v1529 = vunpack.c.l.b16 %v1142
        %v1530 = vunpack.c.h.b16 %v1142
        %v1531 = vunpack.c.l.b16 %v1143
        %v1532 = vunpack.c.h.b16 %v1143
        %v1533 = vunpack.c.l.b16 %v1144
        %v1534 = vunpack.c.h.b16 %v1144
        %v1535 = vunpack.c.l.b16 %v1145
        %v1536 = vunpack.c.h.b16 %v1145
        %v1537 = vunpack.c.l.b16 %v1146
        %v1538 = vunpack.c.h.b16 %v1146
        %v1539 = vunpack.c.l.b16 %v1147
        %v1540 = vunpack.c.h.b16 %v1147
        %v1541 = vunpack.c.l.b16 %v1148
        %v1542 = vunpack.c.h.b16 %v1148
        %v1543 = vunpack.c.l.b16 %v1149
        %v1544 = vunpack.c.h.b16 %v1149
        %v1545 = vunpack.c.l.b16 %v1150
        %v1546 = vunpack.c.h.b16 %v1150
        %v1547 = vunpack.c.l.b16 %v1151
        %v1548 = vunpack.c.h.b16 %v1151
        %v1549 = vunpack.c.l.b16 %v1152
        %v1550 = vunpack.c.h.b16 %v1152
        %v1551 = vunpack.c.l.b16 %v1153
        %v1552 = vunpack.c.h.b16 %v1153
        %v1553 = vunpack.c.l.b16 %v1154
        %v1554 = vunpack.c.h.b16 %v1154
        %v1555 = vunpack.c.l.b16 %v1155
        %v1556 = vunpack.c.h.b16 %v1155
        %v1557 = vunpack.c.l.b16 %v1156
        %v1558 = vunpack.c.h.b16 %v1156
        %v1559 = vunpack.c.l.b16 %v1157
        %v1560 = vunpack.c.h.b16 %v1157
        %v1561 = vunpack.c.l.b16 %v1158
        %v1562 = vunpack.c.h.b16 %v1158
        %v1563 = vunpack.c.l.b16 %v1159
        %v1564 = vunpack.c.h.b16 %v1159
        %v1565 = vunpack.c.l.b16 %v1160
        %v1566 = vunpack.c.h.b16 %v1160
        %v1567 = vpack.c.b16 %v1315, %v1311
        %v1568 = vpack.c.b16 %v1316, %v1312
        %v1569 = vpack.c.b16 %v1317, %v1313
        %v1570 = vpack.c.b16 %v1318, %v1314
        %v1571 = vpack.c.b16 %v1323, %v1319
        %v1572 = vpack.c.b16 %v1324, %v1320
        %v1573 = vpack.c.b16 %v1325, %v1321
        %v1574 = vpack.c.b16 %v1326, %v1322
        %v1575 = vpack.c.b16 %v1331, %v1327
        %v1576 = vpack.c.b16 %v1332, %v1328
        %v1577 = vpack.c.b16 %v1333, %v1329
        %v1578 = vpack.c.b16 %v1334, %v1330
        %v1579 = vpack.c.b16 %v1339, %v1335
        %v1580 = vpack.c.b16 %v1340, %v1336
        %v1581 = vpack.c.b16 %v1341, %v1337
        %v1582 = vpack.c.b16 %v1342, %v1338
        %v1583 = vpack.c.b16 %v1347, %v1343
        %v1584 = vpack.c.b16 %v1348, %v1344
        %v1585 = vpack.c.b16 %v1349, %v1345
        %v1586 = vpack.c.b16 %v1350, %v1346
        %v1587 = vpack.c.b16 %v1355, %v1351
        %v1588 = vpack.c.b16 %v1356, %v1352
        %v1589 = vpack.c.b16 %v1357, %v1353
        %v1590 = vpack.c.b16 %v1358, %v1354
        %v1591 = vpack.c.b16 %v1363, %v1359
        %v1592 = vpack.c.b16 %v1364, %v1360
        %v1593 = vpack.c.b16 %v1365, %v1361
        %v1594 = vpack.c.b16 %v1366, %v1362
        %v1595 = vpack.c.b16 %v1371, %v1367
        %v1596 = vpack.c.b16 %v1372, %v1368
        %v1597 = vpack.c.b16 %v1373, %v1369
        %v1598 = vpack.c.b16 %v1374, %v1370
        %v1599 = vpack.c.b16 %v1379, %v1375
        %v1600 = vpack.c.b16 %v1380, %v1376
        %v1601 = vpack.c.b16 %v1381, %v1377
        %v1602 = vpack.c.b16 %v1382, %v1378
        %v1603 = vpack.c.b16 %v1387, %v1383
        %v1604 = vpack.c.b16 %v1388, %v1384
        %v1605 = vpack.c.b16 %v1389, %v1385
        %v1606 = vpack.c.b16 %v1390, %v1386
        %v1607 = vpack.c.b16 %v1395, %v1391
        %v1608 = vpack.c.b16 %v1396, %v1392
        %v1609 = vpack.c.b16 %v1397, %v1393
        %v1610 = vpack.c.b16 %v1398, %v1394
        %v1611 = vpack.c.b16 %v1403, %v1399
        %v1612 = vpack.c.b16 %v1404, %v1400
        %v1613 = vpack.c.b16 %v1405, %v1401
        %v1614 = vpack.c.b16 %v1406, %v1402
        %v1615 = vpack.c.b16 %v1411, %v1407
        %v1616 = vpack.c.b16 %v1412, %v1408
        %v1617 = vpack.c.b16 %v1413, %v1409
        %v1618 = vpack.c.b16 %v1414, %v1410
        %v1619 = vpack.c.b16 %v1419, %v1415
        %v1620 = vpack.c.b16 %v1420, %v1416
        %v1621 = vpack.c.b16 %v1421, %v1417
        %v1622 = vpack.c.b16 %v1422, %v1418
        %v1623 = vpack.c.b16 %v1427, %v1423
        %v1624 = vpack.c.b16 %v1428, %v1424
        %v1625 = vpack.c.b16 %v1429, %v1425
        %v1626 = vpack.c.b16 %v1430, %v1426
        %v1627 = vpack.c.b16 %v1435, %v1431
        %v1628 = vpack.c.b16 %v1436, %v1432
        %v1629 = vpack.c.b16 %v1437, %v1433
        %v1630 = vpack.c.b16 %v1438, %v1434
        %v1631 = vpack.c.b16 %v1443, %v1439
        %v1632 = vpack.c.b16 %v1444, %v1440
        %v1633 = vpack.c.b16 %v1445, %v1441
        %v1634 = vpack.c.b16 %v1446, %v1442
        %v1635 = vpack.c.b16 %v1451, %v1447
        %v1636 = vpack.c.b16 %v1452, %v1448
        %v1637 = vpack.c.b16 %v1453, %v1449
        %v1638 = vpack.c.b16 %v1454, %v1450
        %v1639 = vpack.c.b16 %v1459, %v1455
        %v1640 = vpack.c.b16 %v1460, %v1456
        %v1641 = vpack.c.b16 %v1461, %v1457
        %v1642 = vpack.c.b16 %v1462, %v1458
        %v1643 = vpack.c.b16 %v1467, %v1463
        %v1644 = vpack.c.b16 %v1468, %v1464
        %v1645 = vpack.c.b16 %v1469, %v1465
        %v1646 = vpack.c.b16 %v1470, %v1466
        %v1647 = vpack.c.b16 %v1475, %v1471
        %v1648 = vpack.c.b16 %v1476, %v1472
        %v1649 = vpack.c.b16 %v1477, %v1473
        %v1650 = vpack.c.b16 %v1478, %v1474
        %v1651 = vpack.c.b16 %v1483, %v1479
        %v1652 = vpack.c.b16 %v1484, %v1480
        %v1653 = vpack.c.b16 %v1485, %v1481
        %v1654 = vpack.c.b16 %v1486, %v1482
        %v1655 = vpack.c.b16 %v1491, %v1487
        %v1656 = vpack.c.b16 %v1492, %v1488
        %v1657 = vpack.c.b16 %v1493, %v1489
        %v1658 = vpack.c.b16 %v1494, %v1490
        %v1659 = vpack.c.b16 %v1499, %v1495
        %v1660 = vpack.c.b16 %v1500, %v1496
        %v1661 = vpack.c.b16 %v1501, %v1497
        %v1662 = vpack.c.b16 %v1502, %v1498
        %v1663 = vpack.c.b16 %v1507, %v1503
        %v1664 = vpack.c.b16 %v1508, %v1504
        %v1665 = vpack.c.b16 %v1509, %v1505
        %v1666 = vpack.c.b16 %v1510, %v1506
        %v1667 = vpack.c.b16 %v1515, %v1511
        %v1668 = vpack.c.b16 %v1516, %v1512
        %v1669 = vpack.c.b16 %v1517, %v1513
        %v1670 = vpack.c.b16 %v1518, %v1514
        %v1671 = vpack.c.b16 %v1523, %v1519
        %v1672 = vpack.c.b16 %v1524, %v1520
        %v1673 = vpack.c.b16 %v1525, %v1521
        %v1674 = vpack.c.b16 %v1526, %v1522
        %v1675 = vpack.c.b16 %v1531, %v1527
        %v1676 = vpack.c.b16 %v1532, %v1528
        %v1677 = vpack.c.b16 %v1533, %v1529
        %v1678 = vpack.c.b16 %v1534, %v1530
        %v1679 = vpack.c.b16 %v1539, %v1535
        %v1680 = vpack.c.b16 %v1540, %v1536
        %v1681 = vpack.c.b16 %v1541, %v1537
        %v1682 = vpack.c.b16 %v1542, %v1538
        %v1683 = vpack.c.b16 %v1547, %v1543
        %v1684 = vpack.c.b16 %v1548, %v1544
        %v1685 = vpack.c.b16 %v1549, %v1545
        %v1686 = vpack.c.b16 %v1550, %v1546
        %v1687 = vpack.c.b16 %v1555, %v1551
        %v1688 = vpack.c.b16 %v1556, %v1552
        %v1689 = vpack.c.b16 %v1557, %v1553
        %v1690 = vpack.c.b16 %v1558, %v1554
        %v1691 = vpack.c.b16 %v1563, %v1559
        %v1692 = vpack.c.b16 %v1564, %v1560
        %v1693 = vpack.c.b16 %v1565, %v1561
        %v1694 = vpack.c.b16 %v1566, %v1562
        %1823 = vmatprep.subr.bf16.mxu0 %v1568
        %1824 = vmatpush1.bf16.msra.mxu0 %v1567
        %1825 = vmatprep.subr.bf16.mxu0 %v1572
        %1826 = vmatpush1.bf16.msra.mxu0 %v1571
        %1827 = vmatprep.subr.bf16.mxu0 %v1576
        %1828 = vmatpush1.bf16.msra.mxu0 %v1575
        %1829 = vmatprep.subr.bf16.mxu0 %v1580
        %1830 = vmatpush1.bf16.msra.mxu0 %v1579
        %1831 = vmatprep.subr.bf16.mxu0 %v1584
        %1832 = vmatpush1.bf16.msra.mxu0 %v1583
        %1833 = vmatprep.subr.bf16.mxu0 %v1588
        %1834 = vmatpush1.bf16.msra.mxu0 %v1587
        %1835 = vmatprep.subr.bf16.mxu0 %v1592
        %1836 = vmatpush1.bf16.msra.mxu0 %v1591
        %1837 = vmatprep.subr.bf16.mxu0 %v1596
        %1838 = vmatpush1.bf16.msra.mxu0 %v1595
        %1839 = vmatprep.subr.bf16.mxu0 %v1600
        %1840 = vmatpush1.bf16.msra.mxu0 %v1599
        %1841 = vmatprep.subr.bf16.mxu0 %v1604
        %1842 = vmatpush1.bf16.msra.mxu0 %v1603
        %1843 = vmatprep.subr.bf16.mxu0 %v1608
        %1844 = vmatpush1.bf16.msra.mxu0 %v1607
        %1845 = vmatprep.subr.bf16.mxu0 %v1612
        %1846 = vmatpush1.bf16.msra.mxu0 %v1611
        %1847 = vmatprep.subr.bf16.mxu0 %v1616
        %1848 = vmatpush1.bf16.msra.mxu0 %v1615
        %1849 = vmatprep.subr.bf16.mxu0 %v1620
        %1850 = vmatpush1.bf16.msra.mxu0 %v1619
        %1851 = vmatprep.subr.bf16.mxu0 %v1624
        %1852 = vmatpush1.bf16.msra.mxu0 %v1623
        %1853 = vmatprep.subr.bf16.mxu0 %v1628
        %1854 = vmatpush1.bf16.msra.mxu0 %v1627
        %1855 = vmatprep.mubr.bf16.mxu0 %v1002
        %1856 = vmatmul.mubr.bf16.gmra.mrb[0].mxu0 %v1001
        %v1857 = vpop.f32.mrb[0].mxu0
        %v1858 = vadd.f32 %v1166, %v1857
        %v1859 = vpop.f32.mrb[0].mxu0
        %v1860 = vadd.f32 %v1170, %v1859
        %v1861 = vpop.f32.mrb[0].mxu0
        %v1862 = vadd.f32 %v1166, %v1861
        %v1863 = vpop.f32.mrb[0].mxu0
        %v1864 = vadd.f32 %v1170, %v1863
        %1865 = vmatprep.mubr.bf16.mxu0 %v1006
        %1866 = vmatmul.mubr.bf16.gmra.mrb[0].mxu0 %v1005
        %v1867 = vpop.f32.mrb[0].mxu0
        %v1868 = vadd.f32 %v1166, %v1867
        %v1869 = vpop.f32.mrb[0].mxu0
        %v1870 = vadd.f32 %v1170, %v1869
        %v1871 = vpop.f32.mrb[0].mxu0
        %v1872 = vadd.f32 %v1166, %v1871
        %v1873 = vpop.f32.mrb[0].mxu0
        %v1874 = vadd.f32 %v1170, %v1873
        %1875 = vmatprep.mubr.bf16.mxu0 %v1010
        %1876 = vmatmul.mubr.bf16.gmra.mrb[0].mxu0 %v1009
        %v1877 = vpop.f32.mrb[0].mxu0
        %v1878 = vadd.f32 %v1166, %v1877
        %v1879 = vpop.f32.mrb[0].mxu0
        %v1880 = vadd.f32 %v1170, %v1879
        %v1881 = vpop.f32.mrb[0].mxu0
        %v1882 = vadd.f32 %v1166, %v1881
        %v1883 = vpop.f32.mrb[0].mxu0
        %v1884 = vadd.f32 %v1170, %v1883
        %1885 = vmatprep.mubr.bf16.mxu0 %v1014
        %1886 = vmatmul.mubr.bf16.gmra.mrb[0].mxu0 %v1013
        %v1887 = vpop.f32.mrb[0].mxu0
        %v1888 = vadd.f32 %v1166, %v1887
        %v1889 = vpop.f32.mrb[0].mxu0
        %v1890 = vadd.f32 %v1170, %v1889
        %v1891 = vpop.f32.mrb[0].mxu0
        %v1892 = vadd.f32 %v1166, %v1891
        %v1893 = vpop.f32.mrb[0].mxu0
        %v1894 = vadd.f32 %v1170, %v1893
        %1895 = vmatprep.mubr.bf16.mxu0 %v1018
        %1896 = vmatmul.mubr.bf16.gmra.mrb[0].mxu0 %v1017
        %v1897 = vpop.f32.mrb[0].mxu0
        %v1898 = vadd.f32 %v1166, %v1897
        %v1899 = vpop.f32.mrb[0].mxu0
        %v1900 = vadd.f32 %v1170, %v1899
        %v1901 = vpop.f32.mrb[0].mxu0
        %v1902 = vadd.f32 %v1166, %v1901
        %v1903 = vpop.f32.mrb[0].mxu0
        %v1904 = vadd.f32 %v1170, %v1903
        %1905 = vmatprep.mubr.bf16.mxu0 %v1022
        %1906 = vmatmul.mubr.bf16.gmra.mrb[0].mxu0 %v1021
        %v1907 = vpop.f32.mrb[0].mxu0
        %v1908 = vadd.f32 %v1166, %v1907
        %v1909 = vpop.f32.mrb[0].mxu0
        %v1910 = vadd.f32 %v1170, %v1909
        %v1911 = vpop.f32.mrb[0].mxu0
        %v1912 = vadd.f32 %v1166, %v1911
        %v1913 = vpop.f32.mrb[0].mxu0
        %v1914 = vadd.f32 %v1170, %v1913
        %1915 = vmatprep.mubr.bf16.mxu0 %v1026
        %1916 = vmatmul.mubr.bf16.gmra.mrb[0].mxu0 %v1025
        %v1917 = vpop.f32.mrb[0].mxu0
        %v1918 = vadd.f32 %v1166, %v1917
        %v1919 = vpop.f32.mrb[0].mxu0
        %v1920 = vadd.f32 %v1170, %v1919
        %v1921 = vpop.f32.mrb[0].mxu0
        %v1922 = vadd.f32 %v1166, %v1921
        %v1923 = vpop.f32.mrb[0].mxu0
        %v1924 = vadd.f32 %v1170, %v1923
        %1925 = vmatprep.mubr.bf16.mxu0 %v1030
        %1926 = vmatmul.mubr.bf16.gmra.mrb[0].mxu0 %v1029
        %v1927 = vpop.f32.mrb[0].mxu0
        %v1928 = vadd.f32 %v1166, %v1927
        %v1929 = vpop.f32.mrb[0].mxu0
        %v1930 = vadd.f32 %v1170, %v1929
        %v1931 = vpop.f32.mrb[0].mxu0
        %v1932 = vadd.f32 %v1166, %v1931
        %v1933 = vpop.f32.mrb[0].mxu0
        %v1934 = vadd.f32 %v1170, %v1933
        %1935 = vdwg.mxu0
        %1936 = vmatprep.subr.bf16.mxu0 %v1632
        %1937 = vmatpush1.bf16.msra.mxu0 %v1631
        %1938 = vmatprep.subr.bf16.mxu0 %v1636
        %1939 = vmatpush1.bf16.msra.mxu0 %v1635
        %1940 = vmatprep.subr.bf16.mxu0 %v1640
        %1941 = vmatpush1.bf16.msra.mxu0 %v1639
        %1942 = vmatprep.subr.bf16.mxu0 %v1644
        %1943 = vmatpush1.bf16.msra.mxu0 %v1643
        %1944 = vmatprep.subr.bf16.mxu0 %v1648
        %1945 = vmatpush1.bf16.msra.mxu0 %v1647
        %1946 = vmatprep.subr.bf16.mxu0 %v1652
        %1947 = vmatpush1.bf16.msra.mxu0 %v1651
        %1948 = vmatprep.subr.bf16.mxu0 %v1656
        %1949 = vmatpush1.bf16.msra.mxu0 %v1655
        %1950 = vmatprep.subr.bf16.mxu0 %v1660
        %1951 = vmatpush1.bf16.msra.mxu0 %v1659
        %1952 = vmatprep.subr.bf16.mxu0 %v1664
        %1953 = vmatpush1.bf16.msra.mxu0 %v1663
        %1954 = vmatprep.subr.bf16.mxu0 %v1668
        %1955 = vmatpush1.bf16.msra.mxu0 %v1667
        %1956 = vmatprep.subr.bf16.mxu0 %v1672
        %1957 = vmatpush1.bf16.msra.mxu0 %v1671
        %1958 = vmatprep.subr.bf16.mxu0 %v1676
        %1959 = vmatpush1.bf16.msra.mxu0 %v1675
        %1960 = vmatprep.subr.bf16.mxu0 %v1680
        %1961 = vmatpush1.bf16.msra.mxu0 %v1679
        %1962 = vmatprep.subr.bf16.mxu0 %v1684
        %1963 = vmatpush1.bf16.msra.mxu0 %v1683
        %1964 = vmatprep.subr.bf16.mxu0 %v1688
        %1965 = vmatpush1.bf16.msra.mxu0 %v1687
        %1966 = vmatprep.subr.bf16.mxu0 %v1692
        %1967 = vmatpush1.bf16.msra.mxu0 %v1691
        %1968 = vmatprep.mubr.bf16.mxu0 %v1004
        %1969 = vmatmul.mubr.bf16.gmra.mrb[0].mxu0 %v1003
        %v1970 = vpop.f32.mrb[0].mxu0
        %v1971 = vadd.f32 %v1858, %v1970
        %v1972 = vpop.f32.mrb[0].mxu0
        %v1973 = vadd.f32 %v1860, %v1972
        %v1974 = vpop.f32.mrb[0].mxu0
        %v1975 = vadd.f32 %v1862, %v1974
        %v1976 = vpop.f32.mrb[0].mxu0
        %v1977 = vadd.f32 %v1864, %v1976
        %1978 = vmatprep.mubr.bf16.mxu0 %v1008
        %1979 = vmatmul.mubr.bf16.gmra.mrb[0].mxu0 %v1007
        %v1980 = vpop.f32.mrb[0].mxu0
        %v1981 = vadd.f32 %v1868, %v1980
        %v1982 = vpop.f32.mrb[0].mxu0
        %v1983 = vadd.f32 %v1870, %v1982
        %v1984 = vpop.f32.mrb[0].mxu0
        %v1985 = vadd.f32 %v1872, %v1984
        %v1986 = vpop.f32.mrb[0].mxu0
        %v1987 = vadd.f32 %v1874, %v1986
        %1988 = vmatprep.mubr.bf16.mxu0 %v1012
        %1989 = vmatmul.mubr.bf16.gmra.mrb[0].mxu0 %v1011
        %v1990 = vpop.f32.mrb[0].mxu0
        %v1991 = vadd.f32 %v1878, %v1990
        %v1992 = vpop.f32.mrb[0].mxu0
        %v1993 = vadd.f32 %v1880, %v1992
        %v1994 = vpop.f32.mrb[0].mxu0
        %v1995 = vadd.f32 %v1882, %v1994
        %v1996 = vpop.f32.mrb[0].mxu0
        %v1997 = vadd.f32 %v1884, %v1996
        %1998 = vmatprep.mubr.bf16.mxu0 %v1016
        %1999 = vmatmul.mubr.bf16.gmra.mrb[0].mxu0 %v1015
        %v2000 = vpop.f32.mrb[0].mxu0
        %v2001 = vadd.f32 %v1888, %v2000
        %v2002 = vpop.f32.mrb[0].mxu0
        %v2003 = vadd.f32 %v1890, %v2002
        %v2004 = vpop.f32.mrb[0].mxu0
        %v2005 = vadd.f32 %v1892, %v2004
        %v2006 = vpop.f32.mrb[0].mxu0
        %v2007 = vadd.f32 %v1894, %v2006
        %2008 = vmatprep.mubr.bf16.mxu0 %v1020
        %2009 = vmatmul.mubr.bf16.gmra.mrb[0].mxu0 %v1019
        %v2010 = vpop.f32.mrb[0].mxu0
        %v2011 = vadd.f32 %v1898, %v2010
        %v2012 = vpop.f32.mrb[0].mxu0
        %v2013 = vadd.f32 %v1900, %v2012
        %v2014 = vpop.f32.mrb[0].mxu0
        %v2015 = vadd.f32 %v1902, %v2014
        %v2016 = vpop.f32.mrb[0].mxu0
        %v2017 = vadd.f32 %v1904, %v2016
        %2018 = vmatprep.mubr.bf16.mxu0 %v1024
        %2019 = vmatmul.mubr.bf16.gmra.mrb[0].mxu0 %v1023
        %v2020 = vpop.f32.mrb[0].mxu0
        %v2021 = vadd.f32 %v1908, %v2020
        %v2022 = vpop.f32.mrb[0].mxu0
        %v2023 = vadd.f32 %v1910, %v2022
        %v2024 = vpop.f32.mrb[0].mxu0
        %v2025 = vadd.f32 %v1912, %v2024
        %v2026 = vpop.f32.mrb[0].mxu0
        %v2027 = vadd.f32 %v1914, %v2026
        %2028 = vmatprep.mubr.bf16.mxu0 %v1028
        %2029 = vmatmul.mubr.bf16.gmra.mrb[0].mxu0 %v1027
        %v2030 = vpop.f32.mrb[0].mxu0
        %v2031 = vadd.f32 %v1918, %v2030
        %v2032 = vpop.f32.mrb[0].mxu0
        %v2033 = vadd.f32 %v1920, %v2032
        %v2034 = vpop.f32.mrb[0].mxu0
        %v2035 = vadd.f32 %v1922, %v2034
        %v2036 = vpop.f32.mrb[0].mxu0
        %v2037 = vadd.f32 %v1924, %v2036
        %2038 = vmatprep.mubr.bf16.mxu0 %v1032
        %2039 = vmatmul.mubr.bf16.gmra.mrb[0].mxu0 %v1031
        %v2040 = vpop.f32.mrb[0].mxu0
        %v2041 = vadd.f32 %v1928, %v2040
        %v2042 = vpop.f32.mrb[0].mxu0
        %v2043 = vadd.f32 %v1930, %v2042
        %v2044 = vpop.f32.mrb[0].mxu0
        %v2045 = vadd.f32 %v1932, %v2044
        %v2046 = vpop.f32.mrb[0].mxu0
        %v2047 = vadd.f32 %v1934, %v2046
        %2048 = vdwg.mxu0
        %2049 = vmatprep.subr.bf16.mxu0 %v1570
        %2050 = vmatpush1.bf16.msra.mxu0 %v1569
        %2051 = vmatprep.subr.bf16.mxu0 %v1574
        %2052 = vmatpush1.bf16.msra.mxu0 %v1573
        %2053 = vmatprep.subr.bf16.mxu0 %v1578
        %2054 = vmatpush1.bf16.msra.mxu0 %v1577
        %2055 = vmatprep.subr.bf16.mxu0 %v1582
        %2056 = vmatpush1.bf16.msra.mxu0 %v1581
        %2057 = vmatprep.subr.bf16.mxu0 %v1586
        %2058 = vmatpush1.bf16.msra.mxu0 %v1585
        %2059 = vmatprep.subr.bf16.mxu0 %v1590
        %2060 = vmatpush1.bf16.msra.mxu0 %v1589
        %2061 = vmatprep.subr.bf16.mxu0 %v1594
        %2062 = vmatpush1.bf16.msra.mxu0 %v1593
        %2063 = vmatprep.subr.bf16.mxu0 %v1598
        %2064 = vmatpush1.bf16.msra.mxu0 %v1597
        %2065 = vmatprep.subr.bf16.mxu0 %v1602
        %2066 = vmatpush1.bf16.msra.mxu0 %v1601
        %2067 = vmatprep.subr.bf16.mxu0 %v1606
        %2068 = vmatpush1.bf16.msra.mxu0 %v1605
        %2069 = vmatprep.subr.bf16.mxu0 %v1610
        %2070 = vmatpush1.bf16.msra.mxu0 %v1609
        %2071 = vmatprep.subr.bf16.mxu0 %v1614
        %2072 = vmatpush1.bf16.msra.mxu0 %v1613
        %2073 = vmatprep.subr.bf16.mxu0 %v1618
        %2074 = vmatpush1.bf16.msra.mxu0 %v1617
        %2075 = vmatprep.subr.bf16.mxu0 %v1622
        %2076 = vmatpush1.bf16.msra.mxu0 %v1621
        %2077 = vmatprep.subr.bf16.mxu0 %v1626
        %2078 = vmatpush1.bf16.msra.mxu0 %v1625
        %2079 = vmatprep.subr.bf16.mxu0 %v1630
        %2080 = vmatpush1.bf16.msra.mxu0 %v1629
        %2081 = vmatprep.mubr.bf16.mxu0 %v1002
        %2082 = vmatmul.mubr.bf16.gmra.mrb[0].mxu0 %v1001
        %v2083 = vpop.f32.mrb[0].mxu0
        %v2084 = vadd.f32 %v1174, %v2083
        %v2085 = vpop.f32.mrb[0].mxu0
        %v2086 = vadd.f32 %v1178, %v2085
        %v2087 = vpop.f32.mrb[0].mxu0
        %v2088 = vadd.f32 %v1174, %v2087
        %v2089 = vpop.f32.mrb[0].mxu0
        %v2090 = vadd.f32 %v1178, %v2089
        %2091 = vmatprep.mubr.bf16.mxu0 %v1006
        %2092 = vmatmul.mubr.bf16.gmra.mrb[0].mxu0 %v1005
        %v2093 = vpop.f32.mrb[0].mxu0
        %v2094 = vadd.f32 %v1174, %v2093
        %v2095 = vpop.f32.mrb[0].mxu0
        %v2096 = vadd.f32 %v1178, %v2095
        %v2097 = vpop.f32.mrb[0].mxu0
        %v2098 = vadd.f32 %v1174, %v2097
        %v2099 = vpop.f32.mrb[0].mxu0
        %v2100 = vadd.f32 %v1178, %v2099
        %2101 = vmatprep.mubr.bf16.mxu0 %v1010
        %2102 = vmatmul.mubr.bf16.gmra.mrb[0].mxu0 %v1009
        %v2103 = vpop.f32.mrb[0].mxu0
        %v2104 = vadd.f32 %v1174, %v2103
        %v2105 = vpop.f32.mrb[0].mxu0
        %v2106 = vadd.f32 %v1178, %v2105
        %v2107 = vpop.f32.mrb[0].mxu0
        %v2108 = vadd.f32 %v1174, %v2107
        %v2109 = vpop.f32.mrb[0].mxu0
        %v2110 = vadd.f32 %v1178, %v2109
        %2111 = vmatprep.mubr.bf16.mxu0 %v1014
        %2112 = vmatmul.mubr.bf16.gmra.mrb[0].mxu0 %v1013
        %v2113 = vpop.f32.mrb[0].mxu0
        %v2114 = vadd.f32 %v1174, %v2113
        %v2115 = vpop.f32.mrb[0].mxu0
        %v2116 = vadd.f32 %v1178, %v2115
        %v2117 = vpop.f32.mrb[0].mxu0
        %v2118 = vadd.f32 %v1174, %v2117
        %v2119 = vpop.f32.mrb[0].mxu0
        %v2120 = vadd.f32 %v1178, %v2119
        %2121 = vmatprep.mubr.bf16.mxu0 %v1018
        %2122 = vmatmul.mubr.bf16.gmra.mrb[0].mxu0 %v1017
        %v2123 = vpop.f32.mrb[0].mxu0
        %v2124 = vadd.f32 %v1174, %v2123
        %v2125 = vpop.f32.mrb[0].mxu0
        %v2126 = vadd.f32 %v1178, %v2125
        %v2127 = vpop.f32.mrb[0].mxu0
        %v2128 = vadd.f32 %v1174, %v2127
        %v2129 = vpop.f32.mrb[0].mxu0
        %v2130 = vadd.f32 %v1178, %v2129
        %2131 = vmatprep.mubr.bf16.mxu0 %v1022
        %2132 = vmatmul.mubr.bf16.gmra.mrb[0].mxu0 %v1021
        %v2133 = vpop.f32.mrb[0].mxu0
        %v2134 = vadd.f32 %v1174, %v2133
        %v2135 = vpop.f32.mrb[0].mxu0
        %v2136 = vadd.f32 %v1178, %v2135
        %v2137 = vpop.f32.mrb[0].mxu0
        %v2138 = vadd.f32 %v1174, %v2137
        %v2139 = vpop.f32.mrb[0].mxu0
        %v2140 = vadd.f32 %v1178, %v2139
        %2141 = vmatprep.mubr.bf16.mxu0 %v1026
        %2142 = vmatmul.mubr.bf16.gmra.mrb[0].mxu0 %v1025
        %v2143 = vpop.f32.mrb[0].mxu0
        %v2144 = vadd.f32 %v1174, %v2143
        %v2145 = vpop.f32.mrb[0].mxu0
        %v2146 = vadd.f32 %v1178, %v2145
        %v2147 = vpop.f32.mrb[0].mxu0
        %v2148 = vadd.f32 %v1174, %v2147
        %v2149 = vpop.f32.mrb[0].mxu0
        %v2150 = vadd.f32 %v1178, %v2149
        %2151 = vmatprep.mubr.bf16.mxu0 %v1030
        %2152 = vmatmul.mubr.bf16.gmra.mrb[0].mxu0 %v1029
        %v2153 = vpop.f32.mrb[0].mxu0
        %v2154 = vadd.f32 %v1174, %v2153
        %v2155 = vpop.f32.mrb[0].mxu0
        %v2156 = vadd.f32 %v1178, %v2155
        %v2157 = vpop.f32.mrb[0].mxu0
        %v2158 = vadd.f32 %v1174, %v2157
        %v2159 = vpop.f32.mrb[0].mxu0
        %v2160 = vadd.f32 %v1178, %v2159
        %2161 = vdwg.mxu0
        %2162 = vmatprep.subr.bf16.mxu0 %v1634
        %2163 = vmatpush1.bf16.msra.mxu0 %v1633
        %2164 = vmatprep.subr.bf16.mxu0 %v1638
        %2165 = vmatpush1.bf16.msra.mxu0 %v1637
        %2166 = vmatprep.subr.bf16.mxu0 %v1642
        %2167 = vmatpush1.bf16.msra.mxu0 %v1641
        %2168 = vmatprep.subr.bf16.mxu0 %v1646
        %2169 = vmatpush1.bf16.msra.mxu0 %v1645
        %2170 = vmatprep.subr.bf16.mxu0 %v1650
        %2171 = vmatpush1.bf16.msra.mxu0 %v1649
        %2172 = vmatprep.subr.bf16.mxu0 %v1654
        %2173 = vmatpush1.bf16.msra.mxu0 %v1653
        %2174 = vmatprep.subr.bf16.mxu0 %v1658
        %2175 = vmatpush1.bf16.msra.mxu0 %v1657
        %2176 = vmatprep.subr.bf16.mxu0 %v1662
        %2177 = vmatpush1.bf16.msra.mxu0 %v1661
        %2178 = vmatprep.subr.bf16.mxu0 %v1666
        %2179 = vmatpush1.bf16.msra.mxu0 %v1665
        %2180 = vmatprep.subr.bf16.mxu0 %v1670
        %2181 = vmatpush1.bf16.msra.mxu0 %v1669
        %2182 = vmatprep.subr.bf16.mxu0 %v1674
        %2183 = vmatpush1.bf16.msra.mxu0 %v1673
        %2184 = vmatprep.subr.bf16.mxu0 %v1678
        %2185 = vmatpush1.bf16.msra.mxu0 %v1677
        %2186 = vmatprep.subr.bf16.mxu0 %v1682
        %2187 = vmatpush1.bf16.msra.mxu0 %v1681
        %2188 = vmatprep.subr.bf16.mxu0 %v1686
        %2189 = vmatpush1.bf16.msra.mxu0 %v1685
        %2190 = vmatprep.subr.bf16.mxu0 %v1690
        %2191 = vmatpush1.bf16.msra.mxu0 %v1689
        %2192 = vmatprep.subr.bf16.mxu0 %v1694
        %2193 = vmatpush1.bf16.msra.mxu0 %v1693
        %2194 = vmatprep.mubr.bf16.mxu0 %v1004
        %2195 = vmatmul.mubr.bf16.gmra.mrb[0].mxu0 %v1003
        %v2196 = vpop.f32.mrb[0].mxu0
        %v2197 = vadd.f32 %v2084, %v2196
        %v2198 = vpop.f32.mrb[0].mxu0
        %v2199 = vadd.f32 %v2086, %v2198
        %v2200 = vpop.f32.mrb[0].mxu0
        %v2201 = vadd.f32 %v2088, %v2200
        %v2202 = vpop.f32.mrb[0].mxu0
        %v2203 = vadd.f32 %v2090, %v2202
        %2204 = vmatprep.mubr.bf16.mxu0 %v1008
        %2205 = vmatmul.mubr.bf16.gmra.mrb[0].mxu0 %v1007
        %v2206 = vpop.f32.mrb[0].mxu0
        %v2207 = vadd.f32 %v2094, %v2206
        %v2208 = vpop.f32.mrb[0].mxu0
        %v2209 = vadd.f32 %v2096, %v2208
        %v2210 = vpop.f32.mrb[0].mxu0
        %v2211 = vadd.f32 %v2098, %v2210
        %v2212 = vpop.f32.mrb[0].mxu0
        %v2213 = vadd.f32 %v2100, %v2212
        %2214 = vmatprep.mubr.bf16.mxu0 %v1012
        %2215 = vmatmul.mubr.bf16.gmra.mrb[0].mxu0 %v1011
        %v2216 = vpop.f32.mrb[0].mxu0
        %v2217 = vadd.f32 %v2104, %v2216
        %v2218 = vpop.f32.mrb[0].mxu0
        %v2219 = vadd.f32 %v2106, %v2218
        %v2220 = vpop.f32.mrb[0].mxu0
        %v2221 = vadd.f32 %v2108, %v2220
        %v2222 = vpop.f32.mrb[0].mxu0
        %v2223 = vadd.f32 %v2110, %v2222
        %2224 = vmatprep.mubr.bf16.mxu0 %v1016
        %2225 = vmatmul.mubr.bf16.gmra.mrb[0].mxu0 %v1015
        %v2226 = vpop.f32.mrb[0].mxu0
        %v2227 = vadd.f32 %v2114, %v2226
        %v2228 = vpop.f32.mrb[0].mxu0
        %v2229 = vadd.f32 %v2116, %v2228
        %v2230 = vpop.f32.mrb[0].mxu0
        %v2231 = vadd.f32 %v2118, %v2230
        %v2232 = vpop.f32.mrb[0].mxu0
        %v2233 = vadd.f32 %v2120, %v2232
        %2234 = vmatprep.mubr.bf16.mxu0 %v1020
        %2235 = vmatmul.mubr.bf16.gmra.mrb[0].mxu0 %v1019
        %v2236 = vpop.f32.mrb[0].mxu0
        %v2237 = vadd.f32 %v2124, %v2236
        %v2238 = vpop.f32.mrb[0].mxu0
        %v2239 = vadd.f32 %v2126, %v2238
        %v2240 = vpop.f32.mrb[0].mxu0
        %v2241 = vadd.f32 %v2128, %v2240
        %v2242 = vpop.f32.mrb[0].mxu0
        %v2243 = vadd.f32 %v2130, %v2242
        %2244 = vmatprep.mubr.bf16.mxu0 %v1024
        %2245 = vmatmul.mubr.bf16.gmra.mrb[0].mxu0 %v1023
        %v2246 = vpop.f32.mrb[0].mxu0
        %v2247 = vadd.f32 %v2134, %v2246
        %v2248 = vpop.f32.mrb[0].mxu0
        %v2249 = vadd.f32 %v2136, %v2248
        %v2250 = vpop.f32.mrb[0].mxu0
        %v2251 = vadd.f32 %v2138, %v2250
        %v2252 = vpop.f32.mrb[0].mxu0
        %v2253 = vadd.f32 %v2140, %v2252
        %2254 = vmatprep.mubr.bf16.mxu0 %v1028
        %2255 = vmatmul.mubr.bf16.gmra.mrb[0].mxu0 %v1027
        %v2256 = vpop.f32.mrb[0].mxu0
        %v2257 = vadd.f32 %v2144, %v2256
        %v2258 = vpop.f32.mrb[0].mxu0
        %v2259 = vadd.f32 %v2146, %v2258
        %v2260 = vpop.f32.mrb[0].mxu0
        %v2261 = vadd.f32 %v2148, %v2260
        %v2262 = vpop.f32.mrb[0].mxu0
        %v2263 = vadd.f32 %v2150, %v2262
        %2264 = vmatprep.mubr.bf16.mxu0 %v1032
        %2265 = vmatmul.mubr.bf16.gmra.mrb[0].mxu0 %v1031
        %v2266 = vpop.f32.mrb[0].mxu0
        %v2267 = vadd.f32 %v2154, %v2266
        %v2268 = vpop.f32.mrb[0].mxu0
        %v2269 = vadd.f32 %v2156, %v2268
        %v2270 = vpop.f32.mrb[0].mxu0
        %v2271 = vadd.f32 %v2158, %v2270
        %v2272 = vpop.f32.mrb[0].mxu0
        %v2273 = vadd.f32 %v2160, %v2272
        %2274 = vdwg.mxu0
        %v2275 = vlaneseq
        %v2276 = vand.u32 %v2275, 127
        %v2277 = vadd.s32 %v2276, 128
        %v2278 = vadd.s32 %v2276, 256
        %v2279 = vadd.s32 %v2276, 384
        %v2280 = vlaneseq
        %v2281 = vshrl.u32 %v2280, 7
        %v2282 = vadd.s32 %v2281, 8
        %v2283 = vadd.s32 %v2281, 16
        %v2284 = vadd.s32 %v2281, 24
        %v2285 = vadd.s32 %v2281, 32
        %v2286 = vadd.s32 %v2281, 40
        %v2287 = vadd.s32 %v2281, 48
        %v2288 = vadd.s32 %v2281, 56
        %v2289 = vadd.s32 %v2281, 64
        %v2290 = vadd.s32 %v2281, 72
        %v2291 = vadd.s32 %v2281, 80
        %v2292 = vadd.s32 %v2281, 88
        %v2293 = vadd.s32 %v2281, 96
        %v2294 = vadd.s32 %v2281, 104
        %v2295 = vadd.s32 %v2281, 112
        %v2296 = vadd.s32 %v2281, 120
        %vm2297 = vcmp.lt.s32.totalorder %v2281, 0
        %v2298 = vsub.s32 0, %v2281
        %v2299 = vsel %vm2297, %v2298, %v2281
        %v2300 = vshrl.u32 %v2299, 4
        %v2301 = vand.u32 %v2299, 15
        %v2302 = vsub.s32 0, %v2301
        %v2303 = vsel %vm2297, %v2302, %v2301
        %vm2304 = vcmp.lt.s32.totalorder %v2282, 0
        %v2305 = vsub.s32 0, %v2282
        %v2306 = vsel %vm2304, %v2305, %v2282
        %v2307 = vshrl.u32 %v2306, 4
        %v2308 = vand.u32 %v2306, 15
        %v2309 = vsub.s32 0, %v2308
        %v2310 = vsel %vm2304, %v2309, %v2308
        %vm2311 = vcmp.lt.s32.totalorder %v2283, 0
        %v2312 = vsub.s32 0, %v2283
        %v2313 = vsel %vm2311, %v2312, %v2283
        %v2314 = vshrl.u32 %v2313, 4
        %v2315 = vand.u32 %v2313, 15
        %v2316 = vsub.s32 0, %v2315
        %v2317 = vsel %vm2311, %v2316, %v2315
        %vm2318 = vcmp.lt.s32.totalorder %v2284, 0
        %v2319 = vsub.s32 0, %v2284
        %v2320 = vsel %vm2318, %v2319, %v2284
        %v2321 = vshrl.u32 %v2320, 4
        %v2322 = vand.u32 %v2320, 15
        %v2323 = vsub.s32 0, %v2322
        %v2324 = vsel %vm2318, %v2323, %v2322
        %vm2325 = vcmp.lt.s32.totalorder %v2285, 0
        %v2326 = vsub.s32 0, %v2285
        %v2327 = vsel %vm2325, %v2326, %v2285
        %v2328 = vshrl.u32 %v2327, 4
        %v2329 = vand.u32 %v2327, 15
        %v2330 = vsub.s32 0, %v2329
        %v2331 = vsel %vm2325, %v2330, %v2329
        %vm2332 = vcmp.lt.s32.totalorder %v2286, 0
        %v2333 = vsub.s32 0, %v2286
        %v2334 = vsel %vm2332, %v2333, %v2286
        %v2335 = vshrl.u32 %v2334, 4
        %v2336 = vand.u32 %v2334, 15
        %v2337 = vsub.s32 0, %v2336
        %v2338 = vsel %vm2332, %v2337, %v2336
        %vm2339 = vcmp.lt.s32.totalorder %v2287, 0
        %v2340 = vsub.s32 0, %v2287
        %v2341 = vsel %vm2339, %v2340, %v2287
        %v2342 = vshrl.u32 %v2341, 4
        %v2343 = vand.u32 %v2341, 15
        %v2344 = vsub.s32 0, %v2343
        %v2345 = vsel %vm2339, %v2344, %v2343
        %vm2346 = vcmp.lt.s32.totalorder %v2288, 0
        %v2347 = vsub.s32 0, %v2288
        %v2348 = vsel %vm2346, %v2347, %v2288
        %v2349 = vshrl.u32 %v2348, 4
        %v2350 = vand.u32 %v2348, 15
        %v2351 = vsub.s32 0, %v2350
        %v2352 = vsel %vm2346, %v2351, %v2350
        %vm2353 = vcmp.lt.s32.totalorder %v2289, 0
        %v2354 = vsub.s32 0, %v2289
        %v2355 = vsel %vm2353, %v2354, %v2289
        %v2356 = vshrl.u32 %v2355, 4
        %v2357 = vand.u32 %v2355, 15
        %v2358 = vsub.s32 0, %v2357
        %v2359 = vsel %vm2353, %v2358, %v2357
        %vm2360 = vcmp.lt.s32.totalorder %v2290, 0
        %v2361 = vsub.s32 0, %v2290
        %v2362 = vsel %vm2360, %v2361, %v2290
        %v2363 = vshrl.u32 %v2362, 4
        %v2364 = vand.u32 %v2362, 15
        %v2365 = vsub.s32 0, %v2364
        %v2366 = vsel %vm2360, %v2365, %v2364
        %vm2367 = vcmp.lt.s32.totalorder %v2291, 0
        %v2368 = vsub.s32 0, %v2291
        %v2369 = vsel %vm2367, %v2368, %v2291
        %v2370 = vshrl.u32 %v2369, 4
        %v2371 = vand.u32 %v2369, 15
        %v2372 = vsub.s32 0, %v2371
        %v2373 = vsel %vm2367, %v2372, %v2371
        %vm2374 = vcmp.lt.s32.totalorder %v2292, 0
        %v2375 = vsub.s32 0, %v2292
        %v2376 = vsel %vm2374, %v2375, %v2292
        %v2377 = vshrl.u32 %v2376, 4
        %v2378 = vand.u32 %v2376, 15
        %v2379 = vsub.s32 0, %v2378
        %v2380 = vsel %vm2374, %v2379, %v2378
        %vm2381 = vcmp.lt.s32.totalorder %v2293, 0
        %v2382 = vsub.s32 0, %v2293
        %v2383 = vsel %vm2381, %v2382, %v2293
        %v2384 = vshrl.u32 %v2383, 4
        %v2385 = vand.u32 %v2383, 15
        %v2386 = vsub.s32 0, %v2385
        %v2387 = vsel %vm2381, %v2386, %v2385
        %vm2388 = vcmp.lt.s32.totalorder %v2294, 0
        %v2389 = vsub.s32 0, %v2294
        %v2390 = vsel %vm2388, %v2389, %v2294
        %v2391 = vshrl.u32 %v2390, 4
        %v2392 = vand.u32 %v2390, 15
        %v2393 = vsub.s32 0, %v2392
        %v2394 = vsel %vm2388, %v2393, %v2392
        %vm2395 = vcmp.lt.s32.totalorder %v2295, 0
        %v2396 = vsub.s32 0, %v2295
        %v2397 = vsel %vm2395, %v2396, %v2295
        %v2398 = vshrl.u32 %v2397, 4
        %v2399 = vand.u32 %v2397, 15
        %v2400 = vsub.s32 0, %v2399
        %v2401 = vsel %vm2395, %v2400, %v2399
        %vm2402 = vcmp.lt.s32.totalorder %v2296, 0
        %v2403 = vsub.s32 0, %v2296
        %v2404 = vsel %vm2402, %v2403, %v2296
        %v2405 = vshrl.u32 %v2404, 4
        %v2406 = vand.u32 %v2404, 15
        %v2407 = vsub.s32 0, %v2406
        %v2408 = vsel %vm2402, %v2407, %v2406
        %vm2409 = vcmp.ne.s32.totalorder %v2303, 0
        %vm2410 = vcmp.ne.s32.totalorder %v2310, 0
        %vm2411 = vcmp.ne.s32.totalorder %v2317, 0
        %vm2412 = vcmp.ne.s32.totalorder %v2324, 0
        %vm2413 = vcmp.ne.s32.totalorder %v2331, 0
        %vm2414 = vcmp.ne.s32.totalorder %v2338, 0
        %vm2415 = vcmp.ne.s32.totalorder %v2345, 0
        %vm2416 = vcmp.ne.s32.totalorder %v2352, 0
        %vm2417 = vcmp.ne.s32.totalorder %v2359, 0
        %vm2418 = vcmp.ne.s32.totalorder %v2366, 0
        %vm2419 = vcmp.ne.s32.totalorder %v2373, 0
        %vm2420 = vcmp.ne.s32.totalorder %v2380, 0
        %vm2421 = vcmp.ne.s32.totalorder %v2387, 0
        %vm2422 = vcmp.ne.s32.totalorder %v2394, 0
        %vm2423 = vcmp.ne.s32.totalorder %v2401, 0
        %vm2424 = vcmp.ne.s32.totalorder %v2408, 0
        %vm2425 = vcmp.lt.s32.totalorder %v2303, 0
        %vm2426 = vcmp.lt.s32.totalorder %v2310, 0
        %vm2427 = vcmp.lt.s32.totalorder %v2317, 0
        %vm2428 = vcmp.lt.s32.totalorder %v2324, 0
        %vm2429 = vcmp.lt.s32.totalorder %v2331, 0
        %vm2430 = vcmp.lt.s32.totalorder %v2338, 0
        %vm2431 = vcmp.lt.s32.totalorder %v2345, 0
        %vm2432 = vcmp.lt.s32.totalorder %v2352, 0
        %vm2433 = vcmp.lt.s32.totalorder %v2359, 0
        %vm2434 = vcmp.lt.s32.totalorder %v2366, 0
        %vm2435 = vcmp.lt.s32.totalorder %v2373, 0
        %vm2436 = vcmp.lt.s32.totalorder %v2380, 0
        %vm2437 = vcmp.lt.s32.totalorder %v2387, 0
        %vm2438 = vcmp.lt.s32.totalorder %v2394, 0
        %vm2439 = vcmp.lt.s32.totalorder %v2401, 0
        %vm2440 = vcmp.lt.s32.totalorder %v2408, 0
        %vm2441 = vmand %vm2425, %vm2409
        %vm2442 = vmand %vm2426, %vm2410
        %vm2443 = vmand %vm2427, %vm2411
        %vm2444 = vmand %vm2428, %vm2412
        %vm2445 = vmand %vm2429, %vm2413
        %vm2446 = vmand %vm2430, %vm2414
        %vm2447 = vmand %vm2431, %vm2415
        %vm2448 = vmand %vm2432, %vm2416
        %vm2449 = vmand %vm2433, %vm2417
        %vm2450 = vmand %vm2434, %vm2418
        %vm2451 = vmand %vm2435, %vm2419
        %vm2452 = vmand %vm2436, %vm2420
        %vm2453 = vmand %vm2437, %vm2421
        %vm2454 = vmand %vm2438, %vm2422
        %vm2455 = vmand %vm2439, %vm2423
        %vm2456 = vmand %vm2440, %vm2424
        %v2457 = vadd.s32 %v2303, 16
        %v2458 = vadd.s32 %v2310, 16
        %v2459 = vadd.s32 %v2317, 16
        %v2460 = vadd.s32 %v2324, 16
        %v2461 = vadd.s32 %v2331, 16
        %v2462 = vadd.s32 %v2338, 16
        %v2463 = vadd.s32 %v2345, 16
        %v2464 = vadd.s32 %v2352, 16
        %v2465 = vadd.s32 %v2359, 16
        %v2466 = vadd.s32 %v2366, 16
        %v2467 = vadd.s32 %v2373, 16
        %v2468 = vadd.s32 %v2380, 16
        %v2469 = vadd.s32 %v2387, 16
        %v2470 = vadd.s32 %v2394, 16
        %v2471 = vadd.s32 %v2401, 16
        %v2472 = vadd.s32 %v2408, 16
        %v2473 = vsel %vm2441, %v2457, %v2303
        %v2474 = vsel %vm2442, %v2458, %v2310
        %v2475 = vsel %vm2443, %v2459, %v2317
        %v2476 = vsel %vm2444, %v2460, %v2324
        %v2477 = vsel %vm2445, %v2461, %v2331
        %v2478 = vsel %vm2446, %v2462, %v2338
        %v2479 = vsel %vm2447, %v2463, %v2345
        %v2480 = vsel %vm2448, %v2464, %v2352
        %v2481 = vsel %vm2449, %v2465, %v2359
        %v2482 = vsel %vm2450, %v2466, %v2366
        %v2483 = vsel %vm2451, %v2467, %v2373
        %v2484 = vsel %vm2452, %v2468, %v2380
        %v2485 = vsel %vm2453, %v2469, %v2387
        %v2486 = vsel %vm2454, %v2470, %v2394
        %v2487 = vsel %vm2455, %v2471, %v2401
        %v2488 = vsel %vm2456, %v2472, %v2408
        %v2489 = vrot.slane %v1971, 7
        %v2490 = vrot.slane %v1973, 7
        %v2491 = vrot.slane %v2197, 7
        %v2492 = vrot.slane %v2199, 7
        %v2493 = vrot.slane %v1975, 7
        %v2494 = vrot.slane %v1977, 7
        %v2495 = vrot.slane %v2201, 7
        %v2496 = vrot.slane %v2203, 7
        %v2497 = vrot.slane %v1981, 7
        %v2498 = vrot.slane %v1983, 7
        %v2499 = vrot.slane %v2207, 7
        %v2500 = vrot.slane %v2209, 7
        %v2501 = vrot.slane %v1985, 7
        %v2502 = vrot.slane %v1987, 7
        %v2503 = vrot.slane %v2211, 7
        %v2504 = vrot.slane %v2213, 7
        %v2505 = vrot.slane %v1991, 7
        %v2506 = vrot.slane %v1993, 7
        %v2507 = vrot.slane %v2217, 7
        %v2508 = vrot.slane %v2219, 7
        %v2509 = vrot.slane %v1995, 7
        %v2510 = vrot.slane %v1997, 7
        %v2511 = vrot.slane %v2221, 7
        %v2512 = vrot.slane %v2223, 7
        %v2513 = vrot.slane %v2001, 7
        %v2514 = vrot.slane %v2003, 7
        %v2515 = vrot.slane %v2227, 7
        %v2516 = vrot.slane %v2229, 7
        %v2517 = vrot.slane %v2005, 7
        %v2518 = vrot.slane %v2007, 7
        %v2519 = vrot.slane %v2231, 7
        %v2520 = vrot.slane %v2233, 7
        %v2521 = vrot.slane %v2011, 7
        %v2522 = vrot.slane %v2013, 7
        %v2523 = vrot.slane %v2237, 7
        %v2524 = vrot.slane %v2239, 7
        %v2525 = vrot.slane %v2015, 7
        %v2526 = vrot.slane %v2017, 7
        %v2527 = vrot.slane %v2241, 7
        %v2528 = vrot.slane %v2243, 7
        %v2529 = vrot.slane %v2021, 7
        %v2530 = vrot.slane %v2023, 7
        %v2531 = vrot.slane %v2247, 7
        %v2532 = vrot.slane %v2249, 7
        %v2533 = vrot.slane %v2025, 7
        %v2534 = vrot.slane %v2027, 7
        %v2535 = vrot.slane %v2251, 7
        %v2536 = vrot.slane %v2253, 7
        %v2537 = vrot.slane %v2031, 7
        %v2538 = vrot.slane %v2033, 7
        %v2539 = vrot.slane %v2257, 7
        %v2540 = vrot.slane %v2259, 7
        %v2541 = vrot.slane %v2035, 7
        %v2542 = vrot.slane %v2037, 7
        %v2543 = vrot.slane %v2261, 7
        %v2544 = vrot.slane %v2263, 7
        %v2545 = vrot.slane %v2041, 7
        %v2546 = vrot.slane %v2043, 7
        %v2547 = vrot.slane %v2267, 7
        %v2548 = vrot.slane %v2269, 7
        %v2549 = vrot.slane %v2045, 7
        %v2550 = vrot.slane %v2047, 7
        %v2551 = vrot.slane %v2271, 7
        %v2552 = vrot.slane %v2273, 7
        %vm2553 = vcmp.lt.s32.totalorder %v2281, 1
        %v2554 = vsel %vm2553, %v2545, %v2549
        %v2555 = vsel %vm2553, %v2546, %v2550
        %v2556 = vsel %vm2553, %v2547, %v2551
        %v2557 = vsel %vm2553, %v2548, %v2552
        %v2558 = vsel %vm2553, %v2541, %v2545
        %v2559 = vsel %vm2553, %v2542, %v2546
        %v2560 = vsel %vm2553, %v2543, %v2547
        %v2561 = vsel %vm2553, %v2544, %v2548
        %v2562 = vsel %vm2553, %v2537, %v2541
        %v2563 = vsel %vm2553, %v2538, %v2542
        %v2564 = vsel %vm2553, %v2539, %v2543
        %v2565 = vsel %vm2553, %v2540, %v2544
        %v2566 = vsel %vm2553, %v2533, %v2537
        %v2567 = vsel %vm2553, %v2534, %v2538
        %v2568 = vsel %vm2553, %v2535, %v2539
        %v2569 = vsel %vm2553, %v2536, %v2540
        %v2570 = vsel %vm2553, %v2529, %v2533
        %v2571 = vsel %vm2553, %v2530, %v2534
        %v2572 = vsel %vm2553, %v2531, %v2535
        %v2573 = vsel %vm2553, %v2532, %v2536
        %v2574 = vsel %vm2553, %v2525, %v2529
        %v2575 = vsel %vm2553, %v2526, %v2530
        %v2576 = vsel %vm2553, %v2527, %v2531
        %v2577 = vsel %vm2553, %v2528, %v2532
        %v2578 = vsel %vm2553, %v2521, %v2525
        %v2579 = vsel %vm2553, %v2522, %v2526
        %v2580 = vsel %vm2553, %v2523, %v2527
        %v2581 = vsel %vm2553, %v2524, %v2528
        %v2582 = vsel %vm2553, %v2517, %v2521
        %v2583 = vsel %vm2553, %v2518, %v2522
        %v2584 = vsel %vm2553, %v2519, %v2523
        %v2585 = vsel %vm2553, %v2520, %v2524
        %v2586 = vsel %vm2553, %v2513, %v2517
        %v2587 = vsel %vm2553, %v2514, %v2518
        %v2588 = vsel %vm2553, %v2515, %v2519
        %v2589 = vsel %vm2553, %v2516, %v2520
        %v2590 = vsel %vm2553, %v2509, %v2513
        %v2591 = vsel %vm2553, %v2510, %v2514
        %v2592 = vsel %vm2553, %v2511, %v2515
        %v2593 = vsel %vm2553, %v2512, %v2516
        %v2594 = vsel %vm2553, %v2505, %v2509
        %v2595 = vsel %vm2553, %v2506, %v2510
        %v2596 = vsel %vm2553, %v2507, %v2511
        %v2597 = vsel %vm2553, %v2508, %v2512
        %v2598 = vsel %vm2553, %v2501, %v2505
        %v2599 = vsel %vm2553, %v2502, %v2506
        %v2600 = vsel %vm2553, %v2503, %v2507
        %v2601 = vsel %vm2553, %v2504, %v2508
        %v2602 = vsel %vm2553, %v2497, %v2501
        %v2603 = vsel %vm2553, %v2498, %v2502
        %v2604 = vsel %vm2553, %v2499, %v2503
        %v2605 = vsel %vm2553, %v2500, %v2504
        %v2606 = vsel %vm2553, %v2493, %v2497
        %v2607 = vsel %vm2553, %v2494, %v2498
        %v2608 = vsel %vm2553, %v2495, %v2499
        %v2609 = vsel %vm2553, %v2496, %v2500
        %v2610 = vsel %vm2553, %v2489, %v2493
        %v2611 = vsel %vm2553, %v2490, %v2494
        %v2612 = vsel %vm2553, %v2491, %v2495
        %v2613 = vsel %vm2553, %v2492, %v2496
        %v2614 = vsel %vm2553, %v2549, %v2489
        %v2615 = vsel %vm2553, %v2550, %v2490
        %v2616 = vsel %vm2553, %v2551, %v2491
        %v2617 = vsel %vm2553, %v2552, %v2492
        %vm2618 = vcmp.gt.s32.totalorder %v2473, 0
        %vm2619 = vcmp.gt.s32.totalorder %v2474, 0
        %vm2620 = vcmp.gt.s32.totalorder %v2475, 0
        %vm2621 = vcmp.gt.s32.totalorder %v2476, 0
        %vm2622 = vcmp.gt.s32.totalorder %v2477, 0
        %vm2623 = vcmp.gt.s32.totalorder %v2478, 0
        %vm2624 = vcmp.gt.s32.totalorder %v2479, 0
        %vm2625 = vcmp.gt.s32.totalorder %v2480, 0
        %vm2626 = vcmp.gt.s32.totalorder %v2481, 0
        %vm2627 = vcmp.gt.s32.totalorder %v2482, 0
        %vm2628 = vcmp.gt.s32.totalorder %v2483, 0
        %vm2629 = vcmp.gt.s32.totalorder %v2484, 0
        %vm2630 = vcmp.gt.s32.totalorder %v2485, 0
        %vm2631 = vcmp.gt.s32.totalorder %v2486, 0
        %vm2632 = vcmp.gt.s32.totalorder %v2487, 0
        %vm2633 = vcmp.gt.s32.totalorder %v2488, 0
        %v2634 = vsel %vm2618, 1, 0
        %v2635 = vsel %vm2619, 1, 0
        %v2636 = vsel %vm2620, 1, 0
        %v2637 = vsel %vm2621, 1, 0
        %v2638 = vsel %vm2622, 1, 0
        %v2639 = vsel %vm2623, 1, 0
        %v2640 = vsel %vm2624, 1, 0
        %v2641 = vsel %vm2625, 1, 0
        %v2642 = vsel %vm2626, 1, 0
        %v2643 = vsel %vm2627, 1, 0
        %v2644 = vsel %vm2628, 1, 0
        %v2645 = vsel %vm2629, 1, 0
        %v2646 = vsel %vm2630, 1, 0
        %v2647 = vsel %vm2631, 1, 0
        %v2648 = vsel %vm2632, 1, 0
        %v2649 = vsel %vm2633, 1, 0
        %vm2650 = vcmp.eq.s32.totalorder %v2634, 1
        %vm2651 = vcmp.eq.s32.totalorder %v2635, 1
        %vm2652 = vcmp.eq.s32.totalorder %v2636, 1
        %vm2653 = vcmp.eq.s32.totalorder %v2637, 1
        %vm2654 = vcmp.eq.s32.totalorder %v2638, 1
        %vm2655 = vcmp.eq.s32.totalorder %v2639, 1
        %vm2656 = vcmp.eq.s32.totalorder %v2640, 1
        %vm2657 = vcmp.eq.s32.totalorder %v2641, 1
        %vm2658 = vcmp.eq.s32.totalorder %v2642, 1
        %vm2659 = vcmp.eq.s32.totalorder %v2643, 1
        %vm2660 = vcmp.eq.s32.totalorder %v2644, 1
        %vm2661 = vcmp.eq.s32.totalorder %v2645, 1
        %vm2662 = vcmp.eq.s32.totalorder %v2646, 1
        %vm2663 = vcmp.eq.s32.totalorder %v2647, 1
        %vm2664 = vcmp.eq.s32.totalorder %v2648, 1
        %vm2665 = vcmp.eq.s32.totalorder %v2649, 1
        %v2666 = vsel %vm2650, %v2614, 0.0
        %v2667 = vsel %vm2650, %v2615, 0.0
        %v2668 = vsel %vm2650, %v2616, 0.0
        %v2669 = vsel %vm2650, %v2617, 0.0
        %v2670 = vsel %vm2651, %v2610, 0.0
        %v2671 = vsel %vm2651, %v2611, 0.0
        %v2672 = vsel %vm2651, %v2612, 0.0
        %v2673 = vsel %vm2651, %v2613, 0.0
        %v2674 = vsel %vm2652, %v2606, 0.0
        %v2675 = vsel %vm2652, %v2607, 0.0
        %v2676 = vsel %vm2652, %v2608, 0.0
        %v2677 = vsel %vm2652, %v2609, 0.0
        %v2678 = vsel %vm2653, %v2602, 0.0
        %v2679 = vsel %vm2653, %v2603, 0.0
        %v2680 = vsel %vm2653, %v2604, 0.0
        %v2681 = vsel %vm2653, %v2605, 0.0
        %v2682 = vsel %vm2654, %v2598, 0.0
        %v2683 = vsel %vm2654, %v2599, 0.0
        %v2684 = vsel %vm2654, %v2600, 0.0
        %v2685 = vsel %vm2654, %v2601, 0.0
        %v2686 = vsel %vm2655, %v2594, 0.0
        %v2687 = vsel %vm2655, %v2595, 0.0
        %v2688 = vsel %vm2655, %v2596, 0.0
        %v2689 = vsel %vm2655, %v2597, 0.0
        %v2690 = vsel %vm2656, %v2590, 0.0
        %v2691 = vsel %vm2656, %v2591, 0.0
        %v2692 = vsel %vm2656, %v2592, 0.0
        %v2693 = vsel %vm2656, %v2593, 0.0
        %v2694 = vsel %vm2657, %v2586, 0.0
        %v2695 = vsel %vm2657, %v2587, 0.0
        %v2696 = vsel %vm2657, %v2588, 0.0
        %v2697 = vsel %vm2657, %v2589, 0.0
        %v2698 = vsel %vm2658, %v2582, 0.0
        %v2699 = vsel %vm2658, %v2583, 0.0
        %v2700 = vsel %vm2658, %v2584, 0.0
        %v2701 = vsel %vm2658, %v2585, 0.0
        %v2702 = vsel %vm2659, %v2578, 0.0
        %v2703 = vsel %vm2659, %v2579, 0.0
        %v2704 = vsel %vm2659, %v2580, 0.0
        %v2705 = vsel %vm2659, %v2581, 0.0
        %v2706 = vsel %vm2660, %v2574, 0.0
        %v2707 = vsel %vm2660, %v2575, 0.0
        %v2708 = vsel %vm2660, %v2576, 0.0
        %v2709 = vsel %vm2660, %v2577, 0.0
        %v2710 = vsel %vm2661, %v2570, 0.0
        %v2711 = vsel %vm2661, %v2571, 0.0
        %v2712 = vsel %vm2661, %v2572, 0.0
        %v2713 = vsel %vm2661, %v2573, 0.0
        %v2714 = vsel %vm2662, %v2566, 0.0
        %v2715 = vsel %vm2662, %v2567, 0.0
        %v2716 = vsel %vm2662, %v2568, 0.0
        %v2717 = vsel %vm2662, %v2569, 0.0
        %v2718 = vsel %vm2663, %v2562, 0.0
        %v2719 = vsel %vm2663, %v2563, 0.0
        %v2720 = vsel %vm2663, %v2564, 0.0
        %v2721 = vsel %vm2663, %v2565, 0.0
        %v2722 = vsel %vm2664, %v2558, 0.0
        %v2723 = vsel %vm2664, %v2559, 0.0
        %v2724 = vsel %vm2664, %v2560, 0.0
        %v2725 = vsel %vm2664, %v2561, 0.0
        %v2726 = vsel %vm2665, %v2554, 0.0
        %v2727 = vsel %vm2665, %v2555, 0.0
        %v2728 = vsel %vm2665, %v2556, 0.0
        %v2729 = vsel %vm2665, %v2557, 0.0
        %v2730 = vld [vmem:[#allocation7] ss:$8 sm:$0xf]
        %2731 = vrot.lane.b32.xlu0 %v2666, 32
        %v2732 = vpop.permute.xlu0 %2731
        %2733 = vrot.lane.b32.xlu0 %v2670, 32
        %v2734 = vpop.permute.xlu0 %2733
        %2735 = vrot.lane.b32.xlu0 %v2674, 32
        %v2736 = vpop.permute.xlu0 %2735
        %2737 = vrot.lane.b32.xlu0 %v2678, 32
        %v2738 = vpop.permute.xlu0 %2737
        %2739 = vrot.lane.b32.xlu0 %v2682, 32
        %v2740 = vpop.permute.xlu0 %2739
        %2741 = vrot.lane.b32.xlu0 %v2686, 32
        %v2742 = vpop.permute.xlu0 %2741
        %2743 = vrot.lane.b32.xlu0 %v2690, 32
        %v2744 = vpop.permute.xlu0 %2743
        %2745 = vrot.lane.b32.xlu0 %v2694, 32
        %v2746 = vpop.permute.xlu0 %2745
        %2747 = vrot.lane.b32.xlu0 %v2698, 32
        %v2748 = vpop.permute.xlu0 %2747
        %2749 = vrot.lane.b32.xlu0 %v2702, 32
        %v2750 = vpop.permute.xlu0 %2749
        %2751 = vrot.lane.b32.xlu0 %v2706, 32
        %v2752 = vpop.permute.xlu0 %2751
        %2753 = vrot.lane.b32.xlu0 %v2710, 32
        %v2754 = vpop.permute.xlu0 %2753
        %2755 = vrot.lane.b32.xlu0 %v2714, 32
        %v2756 = vpop.permute.xlu0 %2755
        %2757 = vrot.lane.b32.xlu0 %v2718, 32
        %v2758 = vpop.permute.xlu0 %2757
        %2759 = vrot.lane.b32.xlu0 %v2722, 32
        %v2760 = vpop.permute.xlu0 %2759
        %2761 = vrot.lane.b32.xlu0 %v2726, 32
        %v2762 = vpop.permute.xlu0 %2761
        %2763 = vrot.lane.b32.xlu0 %v2667, 32
        %v2764 = vpop.permute.xlu0 %2763
        %2765 = vrot.lane.b32.xlu0 %v2671, 32
        %v2766 = vpop.permute.xlu0 %2765
        %2767 = vrot.lane.b32.xlu0 %v2675, 32
        %v2768 = vpop.permute.xlu0 %2767
        %2769 = vrot.lane.b32.xlu0 %v2679, 32
        %v2770 = vpop.permute.xlu0 %2769
        %2771 = vrot.lane.b32.xlu0 %v2683, 32
        %v2772 = vpop.permute.xlu0 %2771
        %2773 = vrot.lane.b32.xlu0 %v2687, 32
        %v2774 = vpop.permute.xlu0 %2773
        %2775 = vrot.lane.b32.xlu0 %v2691, 32
        %v2776 = vpop.permute.xlu0 %2775
        %2777 = vrot.lane.b32.xlu0 %v2695, 32
        %v2778 = vpop.permute.xlu0 %2777
        %2779 = vrot.lane.b32.xlu0 %v2699, 32
        %v2780 = vpop.permute.xlu0 %2779
        %2781 = vrot.lane.b32.xlu0 %v2703, 32
        %v2782 = vpop.permute.xlu0 %2781
        %2783 = vrot.lane.b32.xlu0 %v2707, 32
        %v2784 = vpop.permute.xlu0 %2783
        %2785 = vrot.lane.b32.xlu0 %v2711, 32
        %v2786 = vpop.permute.xlu0 %2785
        %2787 = vrot.lane.b32.xlu0 %v2715, 32
        %v2788 = vpop.permute.xlu0 %2787
        %2789 = vrot.lane.b32.xlu0 %v2719, 32
        %v2790 = vpop.permute.xlu0 %2789
        %2791 = vrot.lane.b32.xlu0 %v2723, 32
        %v2792 = vpop.permute.xlu0 %2791
        %2793 = vrot.lane.b32.xlu0 %v2727, 32
        %v2794 = vpop.permute.xlu0 %2793
        %2795 = vrot.lane.b32.xlu0 %v2668, 32
        %v2796 = vpop.permute.xlu0 %2795
        %2797 = vrot.lane.b32.xlu0 %v2672, 32
        %v2798 = vpop.permute.xlu0 %2797
        %2799 = vrot.lane.b32.xlu0 %v2676, 32
        %v2800 = vpop.permute.xlu0 %2799
        %2801 = vrot.lane.b32.xlu0 %v2680, 32
        %v2802 = vpop.permute.xlu0 %2801
        %2803 = vrot.lane.b32.xlu0 %v2684, 32
        %v2804 = vpop.permute.xlu0 %2803
        %2805 = vrot.lane.b32.xlu0 %v2688, 32
        %v2806 = vpop.permute.xlu0 %2805
        %2807 = vrot.lane.b32.xlu0 %v2692, 32
        %v2808 = vpop.permute.xlu0 %2807
        %2809 = vrot.lane.b32.xlu0 %v2696, 32
        %v2810 = vpop.permute.xlu0 %2809
        %2811 = vrot.lane.b32.xlu0 %v2700, 32
        %v2812 = vpop.permute.xlu0 %2811
        %2813 = vrot.lane.b32.xlu0 %v2704, 32
        %v2814 = vpop.permute.xlu0 %2813
        %2815 = vrot.lane.b32.xlu0 %v2708, 32
        %v2816 = vpop.permute.xlu0 %2815
        %2817 = vrot.lane.b32.xlu0 %v2712, 32
        %v2818 = vpop.permute.xlu0 %2817
        %2819 = vrot.lane.b32.xlu0 %v2716, 32
        %v2820 = vpop.permute.xlu0 %2819
        %2821 = vrot.lane.b32.xlu0 %v2720, 32
        %v2822 = vpop.permute.xlu0 %2821
        %2823 = vrot.lane.b32.xlu0 %v2724, 32
        %v2824 = vpop.permute.xlu0 %2823
        %2825 = vrot.lane.b32.xlu0 %v2728, 32
        %v2826 = vpop.permute.xlu0 %2825
        %2827 = vrot.lane.b32.xlu0 %v2669, 32
        %v2828 = vpop.permute.xlu0 %2827
        %2829 = vrot.lane.b32.xlu0 %v2673, 32
        %v2830 = vpop.permute.xlu0 %2829
        %2831 = vrot.lane.b32.xlu0 %v2677, 32
        %v2832 = vpop.permute.xlu0 %2831
        %2833 = vrot.lane.b32.xlu0 %v2681, 32
        %v2834 = vpop.permute.xlu0 %2833
        %2835 = vrot.lane.b32.xlu0 %v2685, 32
        %v2836 = vpop.permute.xlu0 %2835
        %2837 = vrot.lane.b32.xlu0 %v2689, 32
        %v2838 = vpop.permute.xlu0 %2837
        %2839 = vrot.lane.b32.xlu0 %v2693, 32
        %v2840 = vpop.permute.xlu0 %2839
        %2841 = vrot.lane.b32.xlu0 %v2697, 32
        %v2842 = vpop.permute.xlu0 %2841
        %2843 = vrot.lane.b32.xlu0 %v2701, 32
        %v2844 = vpop.permute.xlu0 %2843
        %2845 = vrot.lane.b32.xlu0 %v2705, 32
        %v2846 = vpop.permute.xlu0 %2845
        %2847 = vrot.lane.b32.xlu0 %v2709, 32
        %v2848 = vpop.permute.xlu0 %2847
        %2849 = vrot.lane.b32.xlu0 %v2713, 32
        %v2850 = vpop.permute.xlu0 %2849
        %2851 = vrot.lane.b32.xlu0 %v2717, 32
        %v2852 = vpop.permute.xlu0 %2851
        %2853 = vrot.lane.b32.xlu0 %v2721, 32
        %v2854 = vpop.permute.xlu0 %2853
        %2855 = vrot.lane.b32.xlu0 %v2725, 32
        %v2856 = vpop.permute.xlu0 %2855
        %2857 = vrot.lane.b32.xlu0 %v2729, 32
        %v2858 = vpop.permute.xlu0 %2857
        %vm2859 = vcmp.lt.s32.totalorder %v2276, 32
        %v2860 = vsel %vm2859, %v2796, %v2828
        %v2861 = vsel %vm2859, %v2798, %v2830
        %v2862 = vsel %vm2859, %v2800, %v2832
        %v2863 = vsel %vm2859, %v2802, %v2834
        %v2864 = vsel %vm2859, %v2804, %v2836
        %v2865 = vsel %vm2859, %v2806, %v2838
        %v2866 = vsel %vm2859, %v2808, %v2840
        %v2867 = vsel %vm2859, %v2810, %v2842
        %v2868 = vsel %vm2859, %v2812, %v2844
        %v2869 = vsel %vm2859, %v2814, %v2846
        %v2870 = vsel %vm2859, %v2816, %v2848
        %v2871 = vsel %vm2859, %v2818, %v2850
        %v2872 = vsel %vm2859, %v2820, %v2852
        %v2873 = vsel %vm2859, %v2822, %v2854
        %v2874 = vsel %vm2859, %v2824, %v2856
        %v2875 = vsel %vm2859, %v2826, %v2858
        %v2876 = vsel %vm2859, %v2764, %v2796
        %v2877 = vsel %vm2859, %v2766, %v2798
        %v2878 = vsel %vm2859, %v2768, %v2800
        %v2879 = vsel %vm2859, %v2770, %v2802
        %v2880 = vsel %vm2859, %v2772, %v2804
        %v2881 = vsel %vm2859, %v2774, %v2806
        %v2882 = vsel %vm2859, %v2776, %v2808
        %v2883 = vsel %vm2859, %v2778, %v2810
        %v2884 = vsel %vm2859, %v2780, %v2812
        %v2885 = vsel %vm2859, %v2782, %v2814
        %v2886 = vsel %vm2859, %v2784, %v2816
        %v2887 = vsel %vm2859, %v2786, %v2818
        %v2888 = vsel %vm2859, %v2788, %v2820
        %v2889 = vsel %vm2859, %v2790, %v2822
        %v2890 = vsel %vm2859, %v2792, %v2824
        %v2891 = vsel %vm2859, %v2794, %v2826
        %v2892 = vsel %vm2859, %v2732, %v2764
        %v2893 = vsel %vm2859, %v2734, %v2766
        %v2894 = vsel %vm2859, %v2736, %v2768
        %v2895 = vsel %vm2859, %v2738, %v2770
        %v2896 = vsel %vm2859, %v2740, %v2772
        %v2897 = vsel %vm2859, %v2742, %v2774
        %v2898 = vsel %vm2859, %v2744, %v2776
        %v2899 = vsel %vm2859, %v2746, %v2778
        %v2900 = vsel %vm2859, %v2748, %v2780
        %v2901 = vsel %vm2859, %v2750, %v2782
        %v2902 = vsel %vm2859, %v2752, %v2784
        %v2903 = vsel %vm2859, %v2754, %v2786
        %v2904 = vsel %vm2859, %v2756, %v2788
        %v2905 = vsel %vm2859, %v2758, %v2790
        %v2906 = vsel %vm2859, %v2760, %v2792
        %v2907 = vsel %vm2859, %v2762, %v2794
        %v2908 = vsel %vm2859, %v2828, %v2732
        %v2909 = vsel %vm2859, %v2830, %v2734
        %v2910 = vsel %vm2859, %v2832, %v2736
        %v2911 = vsel %vm2859, %v2834, %v2738
        %v2912 = vsel %vm2859, %v2836, %v2740
        %v2913 = vsel %vm2859, %v2838, %v2742
        %v2914 = vsel %vm2859, %v2840, %v2744
        %v2915 = vsel %vm2859, %v2842, %v2746
        %v2916 = vsel %vm2859, %v2844, %v2748
        %v2917 = vsel %vm2859, %v2846, %v2750
        %v2918 = vsel %vm2859, %v2848, %v2752
        %v2919 = vsel %vm2859, %v2850, %v2754
        %v2920 = vsel %vm2859, %v2852, %v2756
        %v2921 = vsel %vm2859, %v2854, %v2758
        %v2922 = vsel %vm2859, %v2856, %v2760
        %v2923 = vsel %vm2859, %v2858, %v2762
        %vm2924 = vcmp.ge.s32.totalorder %v2276, 32
        %vm2925 = vcmp.ge.s32.totalorder %v2277, 32
        %vm2926 = vcmp.ge.s32.totalorder %v2278, 32
        %vm2927 = vcmp.ge.s32.totalorder %v2279, 32
        %v2928 = vsel %vm2924, 1, 0
        %v2929 = vsel %vm2925, 1, 0
        %v2930 = vsel %vm2926, 1, 0
        %v2931 = vsel %vm2927, 1, 0
        %vm2932 = vcmp.eq.s32.totalorder %v2928, 1
        %vm2933 = vcmp.eq.s32.totalorder %v2929, 1
        %vm2934 = vcmp.eq.s32.totalorder %v2930, 1
        %vm2935 = vcmp.eq.s32.totalorder %v2931, 1
        %v2936 = vsel %vm2932, %v2908, 0.0
        %v2937 = vsel %vm2933, %v2892, 0.0
        %v2938 = vsel %vm2934, %v2876, 0.0
        %v2939 = vsel %vm2935, %v2860, 0.0
        %v2940 = vsel %vm2932, %v2909, 0.0
        %v2941 = vsel %vm2933, %v2893, 0.0
        %v2942 = vsel %vm2934, %v2877, 0.0
        %v2943 = vsel %vm2935, %v2861, 0.0
        %v2944 = vsel %vm2932, %v2910, 0.0
        %v2945 = vsel %vm2933, %v2894, 0.0
        %v2946 = vsel %vm2934, %v2878, 0.0
        %v2947 = vsel %vm2935, %v2862, 0.0
        %v2948 = vsel %vm2932, %v2911, 0.0
        %v2949 = vsel %vm2933, %v2895, 0.0
        %v2950 = vsel %vm2934, %v2879, 0.0
        %v2951 = vsel %vm2935, %v2863, 0.0
        %v2952 = vsel %vm2932, %v2912, 0.0
        %v2953 = vsel %vm2933, %v2896, 0.0
        %v2954 = vsel %vm2934, %v2880, 0.0
        %v2955 = vsel %vm2935, %v2864, 0.0
        %v2956 = vsel %vm2932, %v2913, 0.0
        %v2957 = vsel %vm2933, %v2897, 0.0
        %v2958 = vsel %vm2934, %v2881, 0.0
        %v2959 = vsel %vm2935, %v2865, 0.0
        %v2960 = vsel %vm2932, %v2914, 0.0
        %v2961 = vsel %vm2933, %v2898, 0.0
        %v2962 = vsel %vm2934, %v2882, 0.0
        %v2963 = vsel %vm2935, %v2866, 0.0
        %v2964 = vsel %vm2932, %v2915, 0.0
        %v2965 = vsel %vm2933, %v2899, 0.0
        %v2966 = vsel %vm2934, %v2883, 0.0
        %v2967 = vsel %vm2935, %v2867, 0.0
        %v2968 = vsel %vm2932, %v2916, 0.0
        %v2969 = vsel %vm2933, %v2900, 0.0
        %v2970 = vsel %vm2934, %v2884, 0.0
        %v2971 = vsel %vm2935, %v2868, 0.0
        %v2972 = vsel %vm2932, %v2917, 0.0
        %v2973 = vsel %vm2933, %v2901, 0.0
        %v2974 = vsel %vm2934, %v2885, 0.0
        %v2975 = vsel %vm2935, %v2869, 0.0
        %v2976 = vsel %vm2932, %v2918, 0.0
        %v2977 = vsel %vm2933, %v2902, 0.0
        %v2978 = vsel %vm2934, %v2886, 0.0
        %v2979 = vsel %vm2935, %v2870, 0.0
        %v2980 = vsel %vm2932, %v2919, 0.0
        %v2981 = vsel %vm2933, %v2903, 0.0
        %v2982 = vsel %vm2934, %v2887, 0.0
        %v2983 = vsel %vm2935, %v2871, 0.0
        %v2984 = vsel %vm2932, %v2920, 0.0
        %v2985 = vsel %vm2933, %v2904, 0.0
        %v2986 = vsel %vm2934, %v2888, 0.0
        %v2987 = vsel %vm2935, %v2872, 0.0
        %v2988 = vsel %vm2932, %v2921, 0.0
        %v2989 = vsel %vm2933, %v2905, 0.0
        %v2990 = vsel %vm2934, %v2889, 0.0
        %v2991 = vsel %vm2935, %v2873, 0.0
        %v2992 = vsel %vm2932, %v2922, 0.0
        %v2993 = vsel %vm2933, %v2906, 0.0
        %v2994 = vsel %vm2934, %v2890, 0.0
        %v2995 = vsel %vm2935, %v2874, 0.0
        %v2996 = vsel %vm2932, %v2923, 0.0
        %v2997 = vsel %vm2933, %v2907, 0.0
        %v2998 = vsel %vm2934, %v2891, 0.0
        %v2999 = vsel %vm2935, %v2875, 0.0
        %v3001 = vlaneseq
        %v3002 = vshrl.u32 %v3001, 7
        %v3003 = vsub.s32 0, %v3002
        %v3004 = vrot.slane %v2730, %v3003
        %v3005 = vlaneseq
        %v3006 = vshrl.u32 %v3005, 7
        %v3007 = vsub.s32 1, %v3006
        %v3008 = vrot.slane %v2730, %v3007
        %v3009 = vlaneseq
        %v3010 = vshrl.u32 %v3009, 7
        %v3011 = vsub.s32 2, %v3010
        %v3012 = vrot.slane %v2730, %v3011
        %v3013 = vlaneseq
        %v3014 = vshrl.u32 %v3013, 7
        %v3015 = vsub.s32 3, %v3014
        %v3016 = vrot.slane %v2730, %v3015
        %v3021 = vmul.f32 %v3004, %v2936
        %v3022 = vmul.f32 %v3008, %v2937
        %v3023 = vmul.f32 %v3012, %v2938
        %v3024 = vmul.f32 %v3016, %v2939
        %v3025 = vmul.f32 %v3004, %v2940
        %v3026 = vmul.f32 %v3008, %v2941
        %v3027 = vmul.f32 %v3012, %v2942
        %v3028 = vmul.f32 %v3016, %v2943
        %v3029 = vmul.f32 %v3004, %v2944
        %v3030 = vmul.f32 %v3008, %v2945
        %v3031 = vmul.f32 %v3012, %v2946
        %v3032 = vmul.f32 %v3016, %v2947
        %v3033 = vmul.f32 %v3004, %v2948
        %v3034 = vmul.f32 %v3008, %v2949
        %v3035 = vmul.f32 %v3012, %v2950
        %v3036 = vmul.f32 %v3016, %v2951
        %v3037 = vmul.f32 %v3004, %v2952
        %v3038 = vmul.f32 %v3008, %v2953
        %v3039 = vmul.f32 %v3012, %v2954
        %v3040 = vmul.f32 %v3016, %v2955
        %v3041 = vmul.f32 %v3004, %v2956
        %v3042 = vmul.f32 %v3008, %v2957
        %v3043 = vmul.f32 %v3012, %v2958
        %v3044 = vmul.f32 %v3016, %v2959
        %v3045 = vmul.f32 %v3004, %v2960
        %v3046 = vmul.f32 %v3008, %v2961
        %v3047 = vmul.f32 %v3012, %v2962
        %v3048 = vmul.f32 %v3016, %v2963
        %v3049 = vmul.f32 %v3004, %v2964
        %v3050 = vmul.f32 %v3008, %v2965
        %v3051 = vmul.f32 %v3012, %v2966
        %v3052 = vmul.f32 %v3016, %v2967
        %v3053 = vmul.f32 %v3004, %v2968
        %v3054 = vmul.f32 %v3008, %v2969
        %v3055 = vmul.f32 %v3012, %v2970
        %v3056 = vmul.f32 %v3016, %v2971
        %v3057 = vmul.f32 %v3004, %v2972
        %v3058 = vmul.f32 %v3008, %v2973
        %v3059 = vmul.f32 %v3012, %v2974
        %v3060 = vmul.f32 %v3016, %v2975
        %v3061 = vmul.f32 %v3004, %v2976
        %v3062 = vmul.f32 %v3008, %v2977
        %v3063 = vmul.f32 %v3012, %v2978
        %v3064 = vmul.f32 %v3016, %v2979
        %v3065 = vmul.f32 %v3004, %v2980
        %v3066 = vmul.f32 %v3008, %v2981
        %v3067 = vmul.f32 %v3012, %v2982
        %v3068 = vmul.f32 %v3016, %v2983
        %v3069 = vmul.f32 %v3004, %v2984
        %v3070 = vmul.f32 %v3008, %v2985
        %v3071 = vmul.f32 %v3012, %v2986
        %v3072 = vmul.f32 %v3016, %v2987
        %v3073 = vmul.f32 %v3004, %v2988
        %v3074 = vmul.f32 %v3008, %v2989
        %v3075 = vmul.f32 %v3012, %v2990
        %v3076 = vmul.f32 %v3016, %v2991
        %v3077 = vmul.f32 %v3004, %v2992
        %v3078 = vmul.f32 %v3008, %v2993
        %v3079 = vmul.f32 %v3012, %v2994
        %v3080 = vmul.f32 %v3016, %v2995
        %v3081 = vmul.f32 %v3004, %v2996
        %v3082 = vmul.f32 %v3008, %v2997
        %v3083 = vmul.f32 %v3012, %v2998
        %v3084 = vmul.f32 %v3016, %v2999
        %s3085 = scalar_lea.vmem [#allocation7], 1
        %v3086 = vld [vmem:[%s3085] ss:$8 sm:$0xf]
        %v3088 = vlaneseq
        %v3089 = vshrl.u32 %v3088, 7
        %v3090 = vsub.s32 0, %v3089
        %v3091 = vrot.slane %v3086, %v3090
        %v3092 = vlaneseq
        %v3093 = vshrl.u32 %v3092, 7
        %v3094 = vsub.s32 1, %v3093
        %v3095 = vrot.slane %v3086, %v3094
        %v3096 = vlaneseq
        %v3097 = vshrl.u32 %v3096, 7
        %v3098 = vsub.s32 2, %v3097
        %v3099 = vrot.slane %v3086, %v3098
        %v3100 = vlaneseq
        %v3101 = vshrl.u32 %v3100, 7
        %v3102 = vsub.s32 3, %v3101
        %v3103 = vrot.slane %v3086, %v3102
        %v3108 = vmul.f32 %v3091, %v2666
        %v3109 = vmul.f32 %v3095, %v2667
        %v3110 = vmul.f32 %v3099, %v2668
        %v3111 = vmul.f32 %v3103, %v2669
        %v3112 = vmul.f32 %v3091, %v2670
        %v3113 = vmul.f32 %v3095, %v2671
        %v3114 = vmul.f32 %v3099, %v2672
        %v3115 = vmul.f32 %v3103, %v2673
        %v3116 = vmul.f32 %v3091, %v2674
        %v3117 = vmul.f32 %v3095, %v2675
        %v3118 = vmul.f32 %v3099, %v2676
        %v3119 = vmul.f32 %v3103, %v2677
        %v3120 = vmul.f32 %v3091, %v2678
        %v3121 = vmul.f32 %v3095, %v2679
        %v3122 = vmul.f32 %v3099, %v2680
        %v3123 = vmul.f32 %v3103, %v2681
        %v3124 = vmul.f32 %v3091, %v2682
        %v3125 = vmul.f32 %v3095, %v2683
        %v3126 = vmul.f32 %v3099, %v2684
        %v3127 = vmul.f32 %v3103, %v2685
        %v3128 = vmul.f32 %v3091, %v2686
        %v3129 = vmul.f32 %v3095, %v2687
        %v3130 = vmul.f32 %v3099, %v2688
        %v3131 = vmul.f32 %v3103, %v2689
        %v3132 = vmul.f32 %v3091, %v2690
        %v3133 = vmul.f32 %v3095, %v2691
        %v3134 = vmul.f32 %v3099, %v2692
        %v3135 = vmul.f32 %v3103, %v2693
        %v3136 = vmul.f32 %v3091, %v2694
        %v3137 = vmul.f32 %v3095, %v2695
        %v3138 = vmul.f32 %v3099, %v2696
        %v3139 = vmul.f32 %v3103, %v2697
        %v3140 = vmul.f32 %v3091, %v2698
        %v3141 = vmul.f32 %v3095, %v2699
        %v3142 = vmul.f32 %v3099, %v2700
        %v3143 = vmul.f32 %v3103, %v2701
        %v3144 = vmul.f32 %v3091, %v2702
        %v3145 = vmul.f32 %v3095, %v2703
        %v3146 = vmul.f32 %v3099, %v2704
        %v3147 = vmul.f32 %v3103, %v2705
        %v3148 = vmul.f32 %v3091, %v2706
        %v3149 = vmul.f32 %v3095, %v2707
        %v3150 = vmul.f32 %v3099, %v2708
        %v3151 = vmul.f32 %v3103, %v2709
        %v3152 = vmul.f32 %v3091, %v2710
        %v3153 = vmul.f32 %v3095, %v2711
        %v3154 = vmul.f32 %v3099, %v2712
        %v3155 = vmul.f32 %v3103, %v2713
        %v3156 = vmul.f32 %v3091, %v2714
        %v3157 = vmul.f32 %v3095, %v2715
        %v3158 = vmul.f32 %v3099, %v2716
        %v3159 = vmul.f32 %v3103, %v2717
        %v3160 = vmul.f32 %v3091, %v2718
        %v3161 = vmul.f32 %v3095, %v2719
        %v3162 = vmul.f32 %v3099, %v2720
        %v3163 = vmul.f32 %v3103, %v2721
        %v3164 = vmul.f32 %v3091, %v2722
        %v3165 = vmul.f32 %v3095, %v2723
        %v3166 = vmul.f32 %v3099, %v2724
        %v3167 = vmul.f32 %v3103, %v2725
        %v3168 = vmul.f32 %v3091, %v2726
        %v3169 = vmul.f32 %v3095, %v2727
        %v3170 = vmul.f32 %v3099, %v2728
        %v3171 = vmul.f32 %v3103, %v2729
        %v3172 = vadd.f32 %v3021, %v3108
        %v3173 = vadd.f32 %v3022, %v3109
        %v3174 = vadd.f32 %v3023, %v3110
        %v3175 = vadd.f32 %v3024, %v3111
        %v3176 = vadd.f32 %v3025, %v3112
        %v3177 = vadd.f32 %v3026, %v3113
        %v3178 = vadd.f32 %v3027, %v3114
        %v3179 = vadd.f32 %v3028, %v3115
        %v3180 = vadd.f32 %v3029, %v3116
        %v3181 = vadd.f32 %v3030, %v3117
        %v3182 = vadd.f32 %v3031, %v3118
        %v3183 = vadd.f32 %v3032, %v3119
        %v3184 = vadd.f32 %v3033, %v3120
        %v3185 = vadd.f32 %v3034, %v3121
        %v3186 = vadd.f32 %v3035, %v3122
        %v3187 = vadd.f32 %v3036, %v3123
        %v3188 = vadd.f32 %v3037, %v3124
        %v3189 = vadd.f32 %v3038, %v3125
        %v3190 = vadd.f32 %v3039, %v3126
        %v3191 = vadd.f32 %v3040, %v3127
        %v3192 = vadd.f32 %v3041, %v3128
        %v3193 = vadd.f32 %v3042, %v3129
        %v3194 = vadd.f32 %v3043, %v3130
        %v3195 = vadd.f32 %v3044, %v3131
        %v3196 = vadd.f32 %v3045, %v3132
        %v3197 = vadd.f32 %v3046, %v3133
        %v3198 = vadd.f32 %v3047, %v3134
        %v3199 = vadd.f32 %v3048, %v3135
        %v3200 = vadd.f32 %v3049, %v3136
        %v3201 = vadd.f32 %v3050, %v3137
        %v3202 = vadd.f32 %v3051, %v3138
        %v3203 = vadd.f32 %v3052, %v3139
        %v3204 = vadd.f32 %v3053, %v3140
        %v3205 = vadd.f32 %v3054, %v3141
        %v3206 = vadd.f32 %v3055, %v3142
        %v3207 = vadd.f32 %v3056, %v3143
        %v3208 = vadd.f32 %v3057, %v3144
        %v3209 = vadd.f32 %v3058, %v3145
        %v3210 = vadd.f32 %v3059, %v3146
        %v3211 = vadd.f32 %v3060, %v3147
        %v3212 = vadd.f32 %v3061, %v3148
        %v3213 = vadd.f32 %v3062, %v3149
        %v3214 = vadd.f32 %v3063, %v3150
        %v3215 = vadd.f32 %v3064, %v3151
        %v3216 = vadd.f32 %v3065, %v3152
        %v3217 = vadd.f32 %v3066, %v3153
        %v3218 = vadd.f32 %v3067, %v3154
        %v3219 = vadd.f32 %v3068, %v3155
        %v3220 = vadd.f32 %v3069, %v3156
        %v3221 = vadd.f32 %v3070, %v3157
        %v3222 = vadd.f32 %v3071, %v3158
        %v3223 = vadd.f32 %v3072, %v3159
        %v3224 = vadd.f32 %v3073, %v3160
        %v3225 = vadd.f32 %v3074, %v3161
        %v3226 = vadd.f32 %v3075, %v3162
        %v3227 = vadd.f32 %v3076, %v3163
        %v3228 = vadd.f32 %v3077, %v3164
        %v3229 = vadd.f32 %v3078, %v3165
        %v3230 = vadd.f32 %v3079, %v3166
        %v3231 = vadd.f32 %v3080, %v3167
        %v3232 = vadd.f32 %v3081, %v3168
        %v3233 = vadd.f32 %v3082, %v3169
        %v3234 = vadd.f32 %v3083, %v3170
        %v3235 = vadd.f32 %v3084, %v3171
        %s3236 = scalar_lea.vmem [#allocation7], 2
        %v3237 = vld [vmem:[%s3236] ss:$8 sm:$0xf]
        %3238 = vrot.lane.b32.xlu0 %v2666, 96
        %v3239 = vpop.permute.xlu0 %3238
        %3240 = vrot.lane.b32.xlu0 %v2670, 96
        %v3241 = vpop.permute.xlu0 %3240
        %3242 = vrot.lane.b32.xlu0 %v2674, 96
        %v3243 = vpop.permute.xlu0 %3242
        %3244 = vrot.lane.b32.xlu0 %v2678, 96
        %v3245 = vpop.permute.xlu0 %3244
        %3246 = vrot.lane.b32.xlu0 %v2682, 96
        %v3247 = vpop.permute.xlu0 %3246
        %3248 = vrot.lane.b32.xlu0 %v2686, 96
        %v3249 = vpop.permute.xlu0 %3248
        %3250 = vrot.lane.b32.xlu0 %v2690, 96
        %v3251 = vpop.permute.xlu0 %3250
        %3252 = vrot.lane.b32.xlu0 %v2694, 96
        %v3253 = vpop.permute.xlu0 %3252
        %3254 = vrot.lane.b32.xlu0 %v2698, 96
        %v3255 = vpop.permute.xlu0 %3254
        %3256 = vrot.lane.b32.xlu0 %v2702, 96
        %v3257 = vpop.permute.xlu0 %3256
        %3258 = vrot.lane.b32.xlu0 %v2706, 96
        %v3259 = vpop.permute.xlu0 %3258
        %3260 = vrot.lane.b32.xlu0 %v2710, 96
        %v3261 = vpop.permute.xlu0 %3260
        %3262 = vrot.lane.b32.xlu0 %v2714, 96
        %v3263 = vpop.permute.xlu0 %3262
        %3264 = vrot.lane.b32.xlu0 %v2718, 96
        %v3265 = vpop.permute.xlu0 %3264
        %3266 = vrot.lane.b32.xlu0 %v2722, 96
        %v3267 = vpop.permute.xlu0 %3266
        %3268 = vrot.lane.b32.xlu0 %v2726, 96
        %v3269 = vpop.permute.xlu0 %3268
        %3270 = vrot.lane.b32.xlu0 %v2667, 96
        %v3271 = vpop.permute.xlu0 %3270
        %3272 = vrot.lane.b32.xlu0 %v2671, 96
        %v3273 = vpop.permute.xlu0 %3272
        %3274 = vrot.lane.b32.xlu0 %v2675, 96
        %v3275 = vpop.permute.xlu0 %3274
        %3276 = vrot.lane.b32.xlu0 %v2679, 96
        %v3277 = vpop.permute.xlu0 %3276
        %3278 = vrot.lane.b32.xlu0 %v2683, 96
        %v3279 = vpop.permute.xlu0 %3278
        %3280 = vrot.lane.b32.xlu0 %v2687, 96
        %v3281 = vpop.permute.xlu0 %3280
        %3282 = vrot.lane.b32.xlu0 %v2691, 96
        %v3283 = vpop.permute.xlu0 %3282
        %3284 = vrot.lane.b32.xlu0 %v2695, 96
        %v3285 = vpop.permute.xlu0 %3284
        %3286 = vrot.lane.b32.xlu0 %v2699, 96
        %v3287 = vpop.permute.xlu0 %3286
        %3288 = vrot.lane.b32.xlu0 %v2703, 96
        %v3289 = vpop.permute.xlu0 %3288
        %3290 = vrot.lane.b32.xlu0 %v2707, 96
        %v3291 = vpop.permute.xlu0 %3290
        %3292 = vrot.lane.b32.xlu0 %v2711, 96
        %v3293 = vpop.permute.xlu0 %3292
        %3294 = vrot.lane.b32.xlu0 %v2715, 96
        %v3295 = vpop.permute.xlu0 %3294
        %3296 = vrot.lane.b32.xlu0 %v2719, 96
        %v3297 = vpop.permute.xlu0 %3296
        %3298 = vrot.lane.b32.xlu0 %v2723, 96
        %v3299 = vpop.permute.xlu0 %3298
        %3300 = vrot.lane.b32.xlu0 %v2727, 96
        %v3301 = vpop.permute.xlu0 %3300
        %3302 = vrot.lane.b32.xlu0 %v2668, 96
        %v3303 = vpop.permute.xlu0 %3302
        %3304 = vrot.lane.b32.xlu0 %v2672, 96
        %v3305 = vpop.permute.xlu0 %3304
        %3306 = vrot.lane.b32.xlu0 %v2676, 96
        %v3307 = vpop.permute.xlu0 %3306
        %3308 = vrot.lane.b32.xlu0 %v2680, 96
        %v3309 = vpop.permute.xlu0 %3308
        %3310 = vrot.lane.b32.xlu0 %v2684, 96
        %v3311 = vpop.permute.xlu0 %3310
        %3312 = vrot.lane.b32.xlu0 %v2688, 96
        %v3313 = vpop.permute.xlu0 %3312
        %3314 = vrot.lane.b32.xlu0 %v2692, 96
        %v3315 = vpop.permute.xlu0 %3314
        %3316 = vrot.lane.b32.xlu0 %v2696, 96
        %v3317 = vpop.permute.xlu0 %3316
        %3318 = vrot.lane.b32.xlu0 %v2700, 96
        %v3319 = vpop.permute.xlu0 %3318
        %3320 = vrot.lane.b32.xlu0 %v2704, 96
        %v3321 = vpop.permute.xlu0 %3320
        %3322 = vrot.lane.b32.xlu0 %v2708, 96
        %v3323 = vpop.permute.xlu0 %3322
        %3324 = vrot.lane.b32.xlu0 %v2712, 96
        %v3325 = vpop.permute.xlu0 %3324
        %3326 = vrot.lane.b32.xlu0 %v2716, 96
        %v3327 = vpop.permute.xlu0 %3326
        %3328 = vrot.lane.b32.xlu0 %v2720, 96
        %v3329 = vpop.permute.xlu0 %3328
        %3330 = vrot.lane.b32.xlu0 %v2724, 96
        %v3331 = vpop.permute.xlu0 %3330
        %3332 = vrot.lane.b32.xlu0 %v2728, 96
        %v3333 = vpop.permute.xlu0 %3332
        %3334 = vrot.lane.b32.xlu0 %v2669, 96
        %v3335 = vpop.permute.xlu0 %3334
        %3336 = vrot.lane.b32.xlu0 %v2673, 96
        %v3337 = vpop.permute.xlu0 %3336
        %3338 = vrot.lane.b32.xlu0 %v2677, 96
        %v3339 = vpop.permute.xlu0 %3338
        %3340 = vrot.lane.b32.xlu0 %v2681, 96
        %v3341 = vpop.permute.xlu0 %3340
        %3342 = vrot.lane.b32.xlu0 %v2685, 96
        %v3343 = vpop.permute.xlu0 %3342
        %3344 = vrot.lane.b32.xlu0 %v2689, 96
        %v3345 = vpop.permute.xlu0 %3344
        %3346 = vrot.lane.b32.xlu0 %v2693, 96
        %v3347 = vpop.permute.xlu0 %3346
        %3348 = vrot.lane.b32.xlu0 %v2697, 96
        %v3349 = vpop.permute.xlu0 %3348
        %3350 = vrot.lane.b32.xlu0 %v2701, 96
        %v3351 = vpop.permute.xlu0 %3350
        %3352 = vrot.lane.b32.xlu0 %v2705, 96
        %v3353 = vpop.permute.xlu0 %3352
        %3354 = vrot.lane.b32.xlu0 %v2709, 96
        %v3355 = vpop.permute.xlu0 %3354
        %3356 = vrot.lane.b32.xlu0 %v2713, 96
        %v3357 = vpop.permute.xlu0 %3356
        %3358 = vrot.lane.b32.xlu0 %v2717, 96
        %v3359 = vpop.permute.xlu0 %3358
        %3360 = vrot.lane.b32.xlu0 %v2721, 96
        %v3361 = vpop.permute.xlu0 %3360
        %3362 = vrot.lane.b32.xlu0 %v2725, 96
        %v3363 = vpop.permute.xlu0 %3362
        %3364 = vrot.lane.b32.xlu0 %v2729, 96
        %v3365 = vpop.permute.xlu0 %3364
        %vm3366 = vcmp.lt.s32.totalorder %v2276, 96
        %v3367 = vsel %vm3366, %v3303, %v3335
        %v3368 = vsel %vm3366, %v3305, %v3337
        %v3369 = vsel %vm3366, %v3307, %v3339
        %v3370 = vsel %vm3366, %v3309, %v3341
        %v3371 = vsel %vm3366, %v3311, %v3343
        %v3372 = vsel %vm3366, %v3313, %v3345
        %v3373 = vsel %vm3366, %v3315, %v3347
        %v3374 = vsel %vm3366, %v3317, %v3349
        %v3375 = vsel %vm3366, %v3319, %v3351
        %v3376 = vsel %vm3366, %v3321, %v3353
        %v3377 = vsel %vm3366, %v3323, %v3355
        %v3378 = vsel %vm3366, %v3325, %v3357
        %v3379 = vsel %vm3366, %v3327, %v3359
        %v3380 = vsel %vm3366, %v3329, %v3361
        %v3381 = vsel %vm3366, %v3331, %v3363
        %v3382 = vsel %vm3366, %v3333, %v3365
        %v3383 = vsel %vm3366, %v3271, %v3303
        %v3384 = vsel %vm3366, %v3273, %v3305
        %v3385 = vsel %vm3366, %v3275, %v3307
        %v3386 = vsel %vm3366, %v3277, %v3309
        %v3387 = vsel %vm3366, %v3279, %v3311
        %v3388 = vsel %vm3366, %v3281, %v3313
        %v3389 = vsel %vm3366, %v3283, %v3315
        %v3390 = vsel %vm3366, %v3285, %v3317
        %v3391 = vsel %vm3366, %v3287, %v3319
        %v3392 = vsel %vm3366, %v3289, %v3321
        %v3393 = vsel %vm3366, %v3291, %v3323
        %v3394 = vsel %vm3366, %v3293, %v3325
        %v3395 = vsel %vm3366, %v3295, %v3327
        %v3396 = vsel %vm3366, %v3297, %v3329
        %v3397 = vsel %vm3366, %v3299, %v3331
        %v3398 = vsel %vm3366, %v3301, %v3333
        %v3399 = vsel %vm3366, %v3239, %v3271
        %v3400 = vsel %vm3366, %v3241, %v3273
        %v3401 = vsel %vm3366, %v3243, %v3275
        %v3402 = vsel %vm3366, %v3245, %v3277
        %v3403 = vsel %vm3366, %v3247, %v3279
        %v3404 = vsel %vm3366, %v3249, %v3281
        %v3405 = vsel %vm3366, %v3251, %v3283
        %v3406 = vsel %vm3366, %v3253, %v3285
        %v3407 = vsel %vm3366, %v3255, %v3287
        %v3408 = vsel %vm3366, %v3257, %v3289
        %v3409 = vsel %vm3366, %v3259, %v3291
        %v3410 = vsel %vm3366, %v3261, %v3293
        %v3411 = vsel %vm3366, %v3263, %v3295
        %v3412 = vsel %vm3366, %v3265, %v3297
        %v3413 = vsel %vm3366, %v3267, %v3299
        %v3414 = vsel %vm3366, %v3269, %v3301
        %v3415 = vsel %vm3366, %v3335, %v3239
        %v3416 = vsel %vm3366, %v3337, %v3241
        %v3417 = vsel %vm3366, %v3339, %v3243
        %v3418 = vsel %vm3366, %v3341, %v3245
        %v3419 = vsel %vm3366, %v3343, %v3247
        %v3420 = vsel %vm3366, %v3345, %v3249
        %v3421 = vsel %vm3366, %v3347, %v3251
        %v3422 = vsel %vm3366, %v3349, %v3253
        %v3423 = vsel %vm3366, %v3351, %v3255
        %v3424 = vsel %vm3366, %v3353, %v3257
        %v3425 = vsel %vm3366, %v3355, %v3259
        %v3426 = vsel %vm3366, %v3357, %v3261
        %v3427 = vsel %vm3366, %v3359, %v3263
        %v3428 = vsel %vm3366, %v3361, %v3265
        %v3429 = vsel %vm3366, %v3363, %v3267
        %v3430 = vsel %vm3366, %v3365, %v3269
        %vm3431 = vcmp.lt.s32.totalorder %v2276, 480
        %vm3432 = vcmp.lt.s32.totalorder %v2277, 480
        %vm3433 = vcmp.lt.s32.totalorder %v2278, 480
        %vm3434 = vcmp.lt.s32.totalorder %v2279, 480
        %v3435 = vsel %vm3431, 1, 0
        %v3436 = vsel %vm3432, 1, 0
        %v3437 = vsel %vm3433, 1, 0
        %v3438 = vsel %vm3434, 1, 0
        %vm3439 = vcmp.eq.s32.totalorder %v3435, 1
        %vm3440 = vcmp.eq.s32.totalorder %v3436, 1
        %vm3441 = vcmp.eq.s32.totalorder %v3437, 1
        %vm3442 = vcmp.eq.s32.totalorder %v3438, 1
        %v3443 = vsel %vm3439, %v3399, 0.0
        %v3444 = vsel %vm3440, %v3383, 0.0
        %v3445 = vsel %vm3441, %v3367, 0.0
        %v3446 = vsel %vm3442, %v3415, 0.0
        %v3447 = vsel %vm3439, %v3400, 0.0
        %v3448 = vsel %vm3440, %v3384, 0.0
        %v3449 = vsel %vm3441, %v3368, 0.0
        %v3450 = vsel %vm3442, %v3416, 0.0
        %v3451 = vsel %vm3439, %v3401, 0.0
        %v3452 = vsel %vm3440, %v3385, 0.0
        %v3453 = vsel %vm3441, %v3369, 0.0
        %v3454 = vsel %vm3442, %v3417, 0.0
        %v3455 = vsel %vm3439, %v3402, 0.0
        %v3456 = vsel %vm3440, %v3386, 0.0
        %v3457 = vsel %vm3441, %v3370, 0.0
        %v3458 = vsel %vm3442, %v3418, 0.0
        %v3459 = vsel %vm3439, %v3403, 0.0
        %v3460 = vsel %vm3440, %v3387, 0.0
        %v3461 = vsel %vm3441, %v3371, 0.0
        %v3462 = vsel %vm3442, %v3419, 0.0
        %v3463 = vsel %vm3439, %v3404, 0.0
        %v3464 = vsel %vm3440, %v3388, 0.0
        %v3465 = vsel %vm3441, %v3372, 0.0
        %v3466 = vsel %vm3442, %v3420, 0.0
        %v3467 = vsel %vm3439, %v3405, 0.0
        %v3468 = vsel %vm3440, %v3389, 0.0
        %v3469 = vsel %vm3441, %v3373, 0.0
        %v3470 = vsel %vm3442, %v3421, 0.0
        %v3471 = vsel %vm3439, %v3406, 0.0
        %v3472 = vsel %vm3440, %v3390, 0.0
        %v3473 = vsel %vm3441, %v3374, 0.0
        %v3474 = vsel %vm3442, %v3422, 0.0
        %v3475 = vsel %vm3439, %v3407, 0.0
        %v3476 = vsel %vm3440, %v3391, 0.0
        %v3477 = vsel %vm3441, %v3375, 0.0
        %v3478 = vsel %vm3442, %v3423, 0.0
        %v3479 = vsel %vm3439, %v3408, 0.0
        %v3480 = vsel %vm3440, %v3392, 0.0
        %v3481 = vsel %vm3441, %v3376, 0.0
        %v3482 = vsel %vm3442, %v3424, 0.0
        %v3483 = vsel %vm3439, %v3409, 0.0
        %v3484 = vsel %vm3440, %v3393, 0.0
        %v3485 = vsel %vm3441, %v3377, 0.0
        %v3486 = vsel %vm3442, %v3425, 0.0
        %v3487 = vsel %vm3439, %v3410, 0.0
        %v3488 = vsel %vm3440, %v3394, 0.0
        %v3489 = vsel %vm3441, %v3378, 0.0
        %v3490 = vsel %vm3442, %v3426, 0.0
        %v3491 = vsel %vm3439, %v3411, 0.0
        %v3492 = vsel %vm3440, %v3395, 0.0
        %v3493 = vsel %vm3441, %v3379, 0.0
        %v3494 = vsel %vm3442, %v3427, 0.0
        %v3495 = vsel %vm3439, %v3412, 0.0
        %v3496 = vsel %vm3440, %v3396, 0.0
        %v3497 = vsel %vm3441, %v3380, 0.0
        %v3498 = vsel %vm3442, %v3428, 0.0
        %v3499 = vsel %vm3439, %v3413, 0.0
        %v3500 = vsel %vm3440, %v3397, 0.0
        %v3501 = vsel %vm3441, %v3381, 0.0
        %v3502 = vsel %vm3442, %v3429, 0.0
        %v3503 = vsel %vm3439, %v3414, 0.0
        %v3504 = vsel %vm3440, %v3398, 0.0
        %v3505 = vsel %vm3441, %v3382, 0.0
        %v3506 = vsel %vm3442, %v3430, 0.0
        %v3508 = vlaneseq
        %v3509 = vshrl.u32 %v3508, 7
        %v3510 = vsub.s32 0, %v3509
        %v3511 = vrot.slane %v3237, %v3510
        %v3512 = vlaneseq
        %v3513 = vshrl.u32 %v3512, 7
        %v3514 = vsub.s32 1, %v3513
        %v3515 = vrot.slane %v3237, %v3514
        %v3516 = vlaneseq
        %v3517 = vshrl.u32 %v3516, 7
        %v3518 = vsub.s32 2, %v3517
        %v3519 = vrot.slane %v3237, %v3518
        %v3520 = vlaneseq
        %v3521 = vshrl.u32 %v3520, 7
        %v3522 = vsub.s32 3, %v3521
        %v3523 = vrot.slane %v3237, %v3522
        %v3528 = vmul.f32 %v3511, %v3443
        %v3529 = vmul.f32 %v3515, %v3444
        %v3530 = vmul.f32 %v3519, %v3445
        %v3531 = vmul.f32 %v3523, %v3446
        %v3532 = vmul.f32 %v3511, %v3447
        %v3533 = vmul.f32 %v3515, %v3448
        %v3534 = vmul.f32 %v3519, %v3449
        %v3535 = vmul.f32 %v3523, %v3450
        %v3536 = vmul.f32 %v3511, %v3451
        %v3537 = vmul.f32 %v3515, %v3452
        %v3538 = vmul.f32 %v3519, %v3453
        %v3539 = vmul.f32 %v3523, %v3454
        %v3540 = vmul.f32 %v3511, %v3455
        %v3541 = vmul.f32 %v3515, %v3456
        %v3542 = vmul.f32 %v3519, %v3457
        %v3543 = vmul.f32 %v3523, %v3458
        %v3544 = vmul.f32 %v3511, %v3459
        %v3545 = vmul.f32 %v3515, %v3460
        %v3546 = vmul.f32 %v3519, %v3461
        %v3547 = vmul.f32 %v3523, %v3462
        %v3548 = vmul.f32 %v3511, %v3463
        %v3549 = vmul.f32 %v3515, %v3464
        %v3550 = vmul.f32 %v3519, %v3465
        %v3551 = vmul.f32 %v3523, %v3466
        %v3552 = vmul.f32 %v3511, %v3467
        %v3553 = vmul.f32 %v3515, %v3468
        %v3554 = vmul.f32 %v3519, %v3469
        %v3555 = vmul.f32 %v3523, %v3470
        %v3556 = vmul.f32 %v3511, %v3471
        %v3557 = vmul.f32 %v3515, %v3472
        %v3558 = vmul.f32 %v3519, %v3473
        %v3559 = vmul.f32 %v3523, %v3474
        %v3560 = vmul.f32 %v3511, %v3475
        %v3561 = vmul.f32 %v3515, %v3476
        %v3562 = vmul.f32 %v3519, %v3477
        %v3563 = vmul.f32 %v3523, %v3478
        %v3564 = vmul.f32 %v3511, %v3479
        %v3565 = vmul.f32 %v3515, %v3480
        %v3566 = vmul.f32 %v3519, %v3481
        %v3567 = vmul.f32 %v3523, %v3482
        %v3568 = vmul.f32 %v3511, %v3483
        %v3569 = vmul.f32 %v3515, %v3484
        %v3570 = vmul.f32 %v3519, %v3485
        %v3571 = vmul.f32 %v3523, %v3486
        %v3572 = vmul.f32 %v3511, %v3487
        %v3573 = vmul.f32 %v3515, %v3488
        %v3574 = vmul.f32 %v3519, %v3489
        %v3575 = vmul.f32 %v3523, %v3490
        %v3576 = vmul.f32 %v3511, %v3491
        %v3577 = vmul.f32 %v3515, %v3492
        %v3578 = vmul.f32 %v3519, %v3493
        %v3579 = vmul.f32 %v3523, %v3494
        %v3580 = vmul.f32 %v3511, %v3495
        %v3581 = vmul.f32 %v3515, %v3496
        %v3582 = vmul.f32 %v3519, %v3497
        %v3583 = vmul.f32 %v3523, %v3498
        %v3584 = vmul.f32 %v3511, %v3499
        %v3585 = vmul.f32 %v3515, %v3500
        %v3586 = vmul.f32 %v3519, %v3501
        %v3587 = vmul.f32 %v3523, %v3502
        %v3588 = vmul.f32 %v3511, %v3503
        %v3589 = vmul.f32 %v3515, %v3504
        %v3590 = vmul.f32 %v3519, %v3505
        %v3591 = vmul.f32 %v3523, %v3506
        %v3592 = vadd.f32 %v3172, %v3528
        %v3593 = vadd.f32 %v3173, %v3529
        %v3594 = vadd.f32 %v3174, %v3530
        %v3595 = vadd.f32 %v3175, %v3531
        %v3596 = vadd.f32 %v3176, %v3532
        %v3597 = vadd.f32 %v3177, %v3533
        %v3598 = vadd.f32 %v3178, %v3534
        %v3599 = vadd.f32 %v3179, %v3535
        %v3600 = vadd.f32 %v3180, %v3536
        %v3601 = vadd.f32 %v3181, %v3537
        %v3602 = vadd.f32 %v3182, %v3538
        %v3603 = vadd.f32 %v3183, %v3539
        %v3604 = vadd.f32 %v3184, %v3540
        %v3605 = vadd.f32 %v3185, %v3541
        %v3606 = vadd.f32 %v3186, %v3542
        %v3607 = vadd.f32 %v3187, %v3543
        %v3608 = vadd.f32 %v3188, %v3544
        %v3609 = vadd.f32 %v3189, %v3545
        %v3610 = vadd.f32 %v3190, %v3546
        %v3611 = vadd.f32 %v3191, %v3547
        %v3612 = vadd.f32 %v3192, %v3548
        %v3613 = vadd.f32 %v3193, %v3549
        %v3614 = vadd.f32 %v3194, %v3550
        %v3615 = vadd.f32 %v3195, %v3551
        %v3616 = vadd.f32 %v3196, %v3552
        %v3617 = vadd.f32 %v3197, %v3553
        %v3618 = vadd.f32 %v3198, %v3554
        %v3619 = vadd.f32 %v3199, %v3555
        %v3620 = vadd.f32 %v3200, %v3556
        %v3621 = vadd.f32 %v3201, %v3557
        %v3622 = vadd.f32 %v3202, %v3558
        %v3623 = vadd.f32 %v3203, %v3559
        %v3624 = vadd.f32 %v3204, %v3560
        %v3625 = vadd.f32 %v3205, %v3561
        %v3626 = vadd.f32 %v3206, %v3562
        %v3627 = vadd.f32 %v3207, %v3563
        %v3628 = vadd.f32 %v3208, %v3564
        %v3629 = vadd.f32 %v3209, %v3565
        %v3630 = vadd.f32 %v3210, %v3566
        %v3631 = vadd.f32 %v3211, %v3567
        %v3632 = vadd.f32 %v3212, %v3568
        %v3633 = vadd.f32 %v3213, %v3569
        %v3634 = vadd.f32 %v3214, %v3570
        %v3635 = vadd.f32 %v3215, %v3571
        %v3636 = vadd.f32 %v3216, %v3572
        %v3637 = vadd.f32 %v3217, %v3573
        %v3638 = vadd.f32 %v3218, %v3574
        %v3639 = vadd.f32 %v3219, %v3575
        %v3640 = vadd.f32 %v3220, %v3576
        %v3641 = vadd.f32 %v3221, %v3577
        %v3642 = vadd.f32 %v3222, %v3578
        %v3643 = vadd.f32 %v3223, %v3579
        %v3644 = vadd.f32 %v3224, %v3580
        %v3645 = vadd.f32 %v3225, %v3581
        %v3646 = vadd.f32 %v3226, %v3582
        %v3647 = vadd.f32 %v3227, %v3583
        %v3648 = vadd.f32 %v3228, %v3584
        %v3649 = vadd.f32 %v3229, %v3585
        %v3650 = vadd.f32 %v3230, %v3586
        %v3651 = vadd.f32 %v3231, %v3587
        %v3652 = vadd.f32 %v3232, %v3588
        %v3653 = vadd.f32 %v3233, %v3589
        %v3654 = vadd.f32 %v3234, %v3590
        %v3655 = vadd.f32 %v3235, %v3591
        %s3656 = scalar_lea.vmem [#allocation7], 3
        %v3657 = vld [vmem:[%s3656] ss:$8 sm:$0xf]
        %3658 = vrot.lane.b32.xlu0 %v1971, 32
        %v3659 = vpop.permute.xlu0 %3658
        %3660 = vrot.lane.b32.xlu0 %v1975, 32
        %v3661 = vpop.permute.xlu0 %3660
        %3662 = vrot.lane.b32.xlu0 %v1981, 32
        %v3663 = vpop.permute.xlu0 %3662
        %3664 = vrot.lane.b32.xlu0 %v1985, 32
        %v3665 = vpop.permute.xlu0 %3664
        %3666 = vrot.lane.b32.xlu0 %v1991, 32
        %v3667 = vpop.permute.xlu0 %3666
        %3668 = vrot.lane.b32.xlu0 %v1995, 32
        %v3669 = vpop.permute.xlu0 %3668
        %3670 = vrot.lane.b32.xlu0 %v2001, 32
        %v3671 = vpop.permute.xlu0 %3670
        %3672 = vrot.lane.b32.xlu0 %v2005, 32
        %v3673 = vpop.permute.xlu0 %3672
        %3674 = vrot.lane.b32.xlu0 %v2011, 32
        %v3675 = vpop.permute.xlu0 %3674
        %3676 = vrot.lane.b32.xlu0 %v2015, 32
        %v3677 = vpop.permute.xlu0 %3676
        %3678 = vrot.lane.b32.xlu0 %v2021, 32
        %v3679 = vpop.permute.xlu0 %3678
        %3680 = vrot.lane.b32.xlu0 %v2025, 32
        %v3681 = vpop.permute.xlu0 %3680
        %3682 = vrot.lane.b32.xlu0 %v2031, 32
        %v3683 = vpop.permute.xlu0 %3682
        %3684 = vrot.lane.b32.xlu0 %v2035, 32
        %v3685 = vpop.permute.xlu0 %3684
        %3686 = vrot.lane.b32.xlu0 %v2041, 32
        %v3687 = vpop.permute.xlu0 %3686
        %3688 = vrot.lane.b32.xlu0 %v2045, 32
        %v3689 = vpop.permute.xlu0 %3688
        %3690 = vrot.lane.b32.xlu0 %v1973, 32
        %v3691 = vpop.permute.xlu0 %3690
        %3692 = vrot.lane.b32.xlu0 %v1977, 32
        %v3693 = vpop.permute.xlu0 %3692
        %3694 = vrot.lane.b32.xlu0 %v1983, 32
        %v3695 = vpop.permute.xlu0 %3694
        %3696 = vrot.lane.b32.xlu0 %v1987, 32
        %v3697 = vpop.permute.xlu0 %3696
        %3698 = vrot.lane.b32.xlu0 %v1993, 32
        %v3699 = vpop.permute.xlu0 %3698
        %3700 = vrot.lane.b32.xlu0 %v1997, 32
        %v3701 = vpop.permute.xlu0 %3700
        %3702 = vrot.lane.b32.xlu0 %v2003, 32
        %v3703 = vpop.permute.xlu0 %3702
        %3704 = vrot.lane.b32.xlu0 %v2007, 32
        %v3705 = vpop.permute.xlu0 %3704
        %3706 = vrot.lane.b32.xlu0 %v2013, 32
        %v3707 = vpop.permute.xlu0 %3706
        %3708 = vrot.lane.b32.xlu0 %v2017, 32
        %v3709 = vpop.permute.xlu0 %3708
        %3710 = vrot.lane.b32.xlu0 %v2023, 32
        %v3711 = vpop.permute.xlu0 %3710
        %3712 = vrot.lane.b32.xlu0 %v2027, 32
        %v3713 = vpop.permute.xlu0 %3712
        %3714 = vrot.lane.b32.xlu0 %v2033, 32
        %v3715 = vpop.permute.xlu0 %3714
        %3716 = vrot.lane.b32.xlu0 %v2037, 32
        %v3717 = vpop.permute.xlu0 %3716
        %3718 = vrot.lane.b32.xlu0 %v2043, 32
        %v3719 = vpop.permute.xlu0 %3718
        %3720 = vrot.lane.b32.xlu0 %v2047, 32
        %v3721 = vpop.permute.xlu0 %3720
        %3722 = vrot.lane.b32.xlu0 %v2197, 32
        %v3723 = vpop.permute.xlu0 %3722
        %3724 = vrot.lane.b32.xlu0 %v2201, 32
        %v3725 = vpop.permute.xlu0 %3724
        %3726 = vrot.lane.b32.xlu0 %v2207, 32
        %v3727 = vpop.permute.xlu0 %3726
        %3728 = vrot.lane.b32.xlu0 %v2211, 32
        %v3729 = vpop.permute.xlu0 %3728
        %3730 = vrot.lane.b32.xlu0 %v2217, 32
        %v3731 = vpop.permute.xlu0 %3730
        %3732 = vrot.lane.b32.xlu0 %v2221, 32
        %v3733 = vpop.permute.xlu0 %3732
        %3734 = vrot.lane.b32.xlu0 %v2227, 32
        %v3735 = vpop.permute.xlu0 %3734
        %3736 = vrot.lane.b32.xlu0 %v2231, 32
        %v3737 = vpop.permute.xlu0 %3736
        %3738 = vrot.lane.b32.xlu0 %v2237, 32
        %v3739 = vpop.permute.xlu0 %3738
        %3740 = vrot.lane.b32.xlu0 %v2241, 32
        %v3741 = vpop.permute.xlu0 %3740
        %3742 = vrot.lane.b32.xlu0 %v2247, 32
        %v3743 = vpop.permute.xlu0 %3742
        %3744 = vrot.lane.b32.xlu0 %v2251, 32
        %v3745 = vpop.permute.xlu0 %3744
        %3746 = vrot.lane.b32.xlu0 %v2257, 32
        %v3747 = vpop.permute.xlu0 %3746
        %3748 = vrot.lane.b32.xlu0 %v2261, 32
        %v3749 = vpop.permute.xlu0 %3748
        %3750 = vrot.lane.b32.xlu0 %v2267, 32
        %v3751 = vpop.permute.xlu0 %3750
        %3752 = vrot.lane.b32.xlu0 %v2271, 32
        %v3753 = vpop.permute.xlu0 %3752
        %3754 = vrot.lane.b32.xlu0 %v2199, 32
        %v3755 = vpop.permute.xlu0 %3754
        %3756 = vrot.lane.b32.xlu0 %v2203, 32
        %v3757 = vpop.permute.xlu0 %3756
        %3758 = vrot.lane.b32.xlu0 %v2209, 32
        %v3759 = vpop.permute.xlu0 %3758
        %3760 = vrot.lane.b32.xlu0 %v2213, 32
        %v3761 = vpop.permute.xlu0 %3760
        %3762 = vrot.lane.b32.xlu0 %v2219, 32
        %v3763 = vpop.permute.xlu0 %3762
        %3764 = vrot.lane.b32.xlu0 %v2223, 32
        %v3765 = vpop.permute.xlu0 %3764
        %3766 = vrot.lane.b32.xlu0 %v2229, 32
        %v3767 = vpop.permute.xlu0 %3766
        %3768 = vrot.lane.b32.xlu0 %v2233, 32
        %v3769 = vpop.permute.xlu0 %3768
        %3770 = vrot.lane.b32.xlu0 %v2239, 32
        %v3771 = vpop.permute.xlu0 %3770
        %3772 = vrot.lane.b32.xlu0 %v2243, 32
        %v3773 = vpop.permute.xlu0 %3772
        %3774 = vrot.lane.b32.xlu0 %v2249, 32
        %v3775 = vpop.permute.xlu0 %3774
        %3776 = vrot.lane.b32.xlu0 %v2253, 32
        %v3777 = vpop.permute.xlu0 %3776
        %3778 = vrot.lane.b32.xlu0 %v2259, 32
        %v3779 = vpop.permute.xlu0 %3778
        %3780 = vrot.lane.b32.xlu0 %v2263, 32
        %v3781 = vpop.permute.xlu0 %3780
        %3782 = vrot.lane.b32.xlu0 %v2269, 32
        %v3783 = vpop.permute.xlu0 %3782
        %3784 = vrot.lane.b32.xlu0 %v2273, 32
        %v3785 = vpop.permute.xlu0 %3784
        %v3786 = vsel %vm2859, %v3723, %v3755
        %v3787 = vsel %vm2859, %v3725, %v3757
        %v3788 = vsel %vm2859, %v3727, %v3759
        %v3789 = vsel %vm2859, %v3729, %v3761
        %v3790 = vsel %vm2859, %v3731, %v3763
        %v3791 = vsel %vm2859, %v3733, %v3765
        %v3792 = vsel %vm2859, %v3735, %v3767
        %v3793 = vsel %vm2859, %v3737, %v3769
        %v3794 = vsel %vm2859, %v3739, %v3771
        %v3795 = vsel %vm2859, %v3741, %v3773
        %v3796 = vsel %vm2859, %v3743, %v3775
        %v3797 = vsel %vm2859, %v3745, %v3777
        %v3798 = vsel %vm2859, %v3747, %v3779
        %v3799 = vsel %vm2859, %v3749, %v3781
        %v3800 = vsel %vm2859, %v3751, %v3783
        %v3801 = vsel %vm2859, %v3753, %v3785
        %v3802 = vsel %vm2859, %v3691, %v3723
        %v3803 = vsel %vm2859, %v3693, %v3725
        %v3804 = vsel %vm2859, %v3695, %v3727
        %v3805 = vsel %vm2859, %v3697, %v3729
        %v3806 = vsel %vm2859, %v3699, %v3731
        %v3807 = vsel %vm2859, %v3701, %v3733
        %v3808 = vsel %vm2859, %v3703, %v3735
        %v3809 = vsel %vm2859, %v3705, %v3737
        %v3810 = vsel %vm2859, %v3707, %v3739
        %v3811 = vsel %vm2859, %v3709, %v3741
        %v3812 = vsel %vm2859, %v3711, %v3743
        %v3813 = vsel %vm2859, %v3713, %v3745
        %v3814 = vsel %vm2859, %v3715, %v3747
        %v3815 = vsel %vm2859, %v3717, %v3749
        %v3816 = vsel %vm2859, %v3719, %v3751
        %v3817 = vsel %vm2859, %v3721, %v3753
        %v3818 = vsel %vm2859, %v3659, %v3691
        %v3819 = vsel %vm2859, %v3661, %v3693
        %v3820 = vsel %vm2859, %v3663, %v3695
        %v3821 = vsel %vm2859, %v3665, %v3697
        %v3822 = vsel %vm2859, %v3667, %v3699
        %v3823 = vsel %vm2859, %v3669, %v3701
        %v3824 = vsel %vm2859, %v3671, %v3703
        %v3825 = vsel %vm2859, %v3673, %v3705
        %v3826 = vsel %vm2859, %v3675, %v3707
        %v3827 = vsel %vm2859, %v3677, %v3709
        %v3828 = vsel %vm2859, %v3679, %v3711
        %v3829 = vsel %vm2859, %v3681, %v3713
        %v3830 = vsel %vm2859, %v3683, %v3715
        %v3831 = vsel %vm2859, %v3685, %v3717
        %v3832 = vsel %vm2859, %v3687, %v3719
        %v3833 = vsel %vm2859, %v3689, %v3721
        %v3834 = vsel %vm2859, %v3755, %v3659
        %v3835 = vsel %vm2859, %v3757, %v3661
        %v3836 = vsel %vm2859, %v3759, %v3663
        %v3837 = vsel %vm2859, %v3761, %v3665
        %v3838 = vsel %vm2859, %v3763, %v3667
        %v3839 = vsel %vm2859, %v3765, %v3669
        %v3840 = vsel %vm2859, %v3767, %v3671
        %v3841 = vsel %vm2859, %v3769, %v3673
        %v3842 = vsel %vm2859, %v3771, %v3675
        %v3843 = vsel %vm2859, %v3773, %v3677
        %v3844 = vsel %vm2859, %v3775, %v3679
        %v3845 = vsel %vm2859, %v3777, %v3681
        %v3846 = vsel %vm2859, %v3779, %v3683
        %v3847 = vsel %vm2859, %v3781, %v3685
        %v3848 = vsel %vm2859, %v3783, %v3687
        %v3849 = vsel %vm2859, %v3785, %v3689
        %v3850 = vsel %vm2932, %v3834, 0.0
        %v3851 = vsel %vm2933, %v3818, 0.0
        %v3852 = vsel %vm2934, %v3802, 0.0
        %v3853 = vsel %vm2935, %v3786, 0.0
        %v3854 = vsel %vm2932, %v3835, 0.0
        %v3855 = vsel %vm2933, %v3819, 0.0
        %v3856 = vsel %vm2934, %v3803, 0.0
        %v3857 = vsel %vm2935, %v3787, 0.0
        %v3858 = vsel %vm2932, %v3836, 0.0
        %v3859 = vsel %vm2933, %v3820, 0.0
        %v3860 = vsel %vm2934, %v3804, 0.0
        %v3861 = vsel %vm2935, %v3788, 0.0
        %v3862 = vsel %vm2932, %v3837, 0.0
        %v3863 = vsel %vm2933, %v3821, 0.0
        %v3864 = vsel %vm2934, %v3805, 0.0
        %v3865 = vsel %vm2935, %v3789, 0.0
        %v3866 = vsel %vm2932, %v3838, 0.0
        %v3867 = vsel %vm2933, %v3822, 0.0
        %v3868 = vsel %vm2934, %v3806, 0.0
        %v3869 = vsel %vm2935, %v3790, 0.0
        %v3870 = vsel %vm2932, %v3839, 0.0
        %v3871 = vsel %vm2933, %v3823, 0.0
        %v3872 = vsel %vm2934, %v3807, 0.0
        %v3873 = vsel %vm2935, %v3791, 0.0
        %v3874 = vsel %vm2932, %v3840, 0.0
        %v3875 = vsel %vm2933, %v3824, 0.0
        %v3876 = vsel %vm2934, %v3808, 0.0
        %v3877 = vsel %vm2935, %v3792, 0.0
        %v3878 = vsel %vm2932, %v3841, 0.0
        %v3879 = vsel %vm2933, %v3825, 0.0
        %v3880 = vsel %vm2934, %v3809, 0.0
        %v3881 = vsel %vm2935, %v3793, 0.0
        %v3882 = vsel %vm2932, %v3842, 0.0
        %v3883 = vsel %vm2933, %v3826, 0.0
        %v3884 = vsel %vm2934, %v3810, 0.0
        %v3885 = vsel %vm2935, %v3794, 0.0
        %v3886 = vsel %vm2932, %v3843, 0.0
        %v3887 = vsel %vm2933, %v3827, 0.0
        %v3888 = vsel %vm2934, %v3811, 0.0
        %v3889 = vsel %vm2935, %v3795, 0.0
        %v3890 = vsel %vm2932, %v3844, 0.0
        %v3891 = vsel %vm2933, %v3828, 0.0
        %v3892 = vsel %vm2934, %v3812, 0.0
        %v3893 = vsel %vm2935, %v3796, 0.0
        %v3894 = vsel %vm2932, %v3845, 0.0
        %v3895 = vsel %vm2933, %v3829, 0.0
        %v3896 = vsel %vm2934, %v3813, 0.0
        %v3897 = vsel %vm2935, %v3797, 0.0
        %v3898 = vsel %vm2932, %v3846, 0.0
        %v3899 = vsel %vm2933, %v3830, 0.0
        %v3900 = vsel %vm2934, %v3814, 0.0
        %v3901 = vsel %vm2935, %v3798, 0.0
        %v3902 = vsel %vm2932, %v3847, 0.0
        %v3903 = vsel %vm2933, %v3831, 0.0
        %v3904 = vsel %vm2934, %v3815, 0.0
        %v3905 = vsel %vm2935, %v3799, 0.0
        %v3906 = vsel %vm2932, %v3848, 0.0
        %v3907 = vsel %vm2933, %v3832, 0.0
        %v3908 = vsel %vm2934, %v3816, 0.0
        %v3909 = vsel %vm2935, %v3800, 0.0
        %v3910 = vsel %vm2932, %v3849, 0.0
        %v3911 = vsel %vm2933, %v3833, 0.0
        %v3912 = vsel %vm2934, %v3817, 0.0
        %v3913 = vsel %vm2935, %v3801, 0.0
        %v3915 = vlaneseq
        %v3916 = vshrl.u32 %v3915, 7
        %v3917 = vsub.s32 0, %v3916
        %v3918 = vrot.slane %v3657, %v3917
        %v3919 = vlaneseq
        %v3920 = vshrl.u32 %v3919, 7
        %v3921 = vsub.s32 1, %v3920
        %v3922 = vrot.slane %v3657, %v3921
        %v3923 = vlaneseq
        %v3924 = vshrl.u32 %v3923, 7
        %v3925 = vsub.s32 2, %v3924
        %v3926 = vrot.slane %v3657, %v3925
        %v3927 = vlaneseq
        %v3928 = vshrl.u32 %v3927, 7
        %v3929 = vsub.s32 3, %v3928
        %v3930 = vrot.slane %v3657, %v3929
        %v3935 = vmul.f32 %v3918, %v3850
        %v3936 = vmul.f32 %v3922, %v3851
        %v3937 = vmul.f32 %v3926, %v3852
        %v3938 = vmul.f32 %v3930, %v3853
        %v3939 = vmul.f32 %v3918, %v3854
        %v3940 = vmul.f32 %v3922, %v3855
        %v3941 = vmul.f32 %v3926, %v3856
        %v3942 = vmul.f32 %v3930, %v3857
        %v3943 = vmul.f32 %v3918, %v3858
        %v3944 = vmul.f32 %v3922, %v3859
        %v3945 = vmul.f32 %v3926, %v3860
        %v3946 = vmul.f32 %v3930, %v3861
        %v3947 = vmul.f32 %v3918, %v3862
        %v3948 = vmul.f32 %v3922, %v3863
        %v3949 = vmul.f32 %v3926, %v3864
        %v3950 = vmul.f32 %v3930, %v3865
        %v3951 = vmul.f32 %v3918, %v3866
        %v3952 = vmul.f32 %v3922, %v3867
        %v3953 = vmul.f32 %v3926, %v3868
        %v3954 = vmul.f32 %v3930, %v3869
        %v3955 = vmul.f32 %v3918, %v3870
        %v3956 = vmul.f32 %v3922, %v3871
        %v3957 = vmul.f32 %v3926, %v3872
        %v3958 = vmul.f32 %v3930, %v3873
        %v3959 = vmul.f32 %v3918, %v3874
        %v3960 = vmul.f32 %v3922, %v3875
        %v3961 = vmul.f32 %v3926, %v3876
        %v3962 = vmul.f32 %v3930, %v3877
        %v3963 = vmul.f32 %v3918, %v3878
        %v3964 = vmul.f32 %v3922, %v3879
        %v3965 = vmul.f32 %v3926, %v3880
        %v3966 = vmul.f32 %v3930, %v3881
        %v3967 = vmul.f32 %v3918, %v3882
        %v3968 = vmul.f32 %v3922, %v3883
        %v3969 = vmul.f32 %v3926, %v3884
        %v3970 = vmul.f32 %v3930, %v3885
        %v3971 = vmul.f32 %v3918, %v3886
        %v3972 = vmul.f32 %v3922, %v3887
        %v3973 = vmul.f32 %v3926, %v3888
        %v3974 = vmul.f32 %v3930, %v3889
        %v3975 = vmul.f32 %v3918, %v3890
        %v3976 = vmul.f32 %v3922, %v3891
        %v3977 = vmul.f32 %v3926, %v3892
        %v3978 = vmul.f32 %v3930, %v3893
        %v3979 = vmul.f32 %v3918, %v3894
        %v3980 = vmul.f32 %v3922, %v3895
        %v3981 = vmul.f32 %v3926, %v3896
        %v3982 = vmul.f32 %v3930, %v3897
        %v3983 = vmul.f32 %v3918, %v3898
        %v3984 = vmul.f32 %v3922, %v3899
        %v3985 = vmul.f32 %v3926, %v3900
        %v3986 = vmul.f32 %v3930, %v3901
        %v3987 = vmul.f32 %v3918, %v3902
        %v3988 = vmul.f32 %v3922, %v3903
        %v3989 = vmul.f32 %v3926, %v3904
        %v3990 = vmul.f32 %v3930, %v3905
        %v3991 = vmul.f32 %v3918, %v3906
        %v3992 = vmul.f32 %v3922, %v3907
        %v3993 = vmul.f32 %v3926, %v3908
        %v3994 = vmul.f32 %v3930, %v3909
        %v3995 = vmul.f32 %v3918, %v3910
        %v3996 = vmul.f32 %v3922, %v3911
        %v3997 = vmul.f32 %v3926, %v3912
        %v3998 = vmul.f32 %v3930, %v3913
        %v3999 = vadd.f32 %v3592, %v3935
        %v4000 = vadd.f32 %v3593, %v3936
        %v4001 = vadd.f32 %v3594, %v3937
        %v4002 = vadd.f32 %v3595, %v3938
        %v4003 = vadd.f32 %v3596, %v3939
        %v4004 = vadd.f32 %v3597, %v3940
        %v4005 = vadd.f32 %v3598, %v3941
        %v4006 = vadd.f32 %v3599, %v3942
        %v4007 = vadd.f32 %v3600, %v3943
        %v4008 = vadd.f32 %v3601, %v3944
        %v4009 = vadd.f32 %v3602, %v3945
        %v4010 = vadd.f32 %v3603, %v3946
        %v4011 = vadd.f32 %v3604, %v3947
        %v4012 = vadd.f32 %v3605, %v3948
        %v4013 = vadd.f32 %v3606, %v3949
        %v4014 = vadd.f32 %v3607, %v3950
        %v4015 = vadd.f32 %v3608, %v3951
        %v4016 = vadd.f32 %v3609, %v3952
        %v4017 = vadd.f32 %v3610, %v3953
        %v4018 = vadd.f32 %v3611, %v3954
        %v4019 = vadd.f32 %v3612, %v3955
        %v4020 = vadd.f32 %v3613, %v3956
        %v4021 = vadd.f32 %v3614, %v3957
        %v4022 = vadd.f32 %v3615, %v3958
        %v4023 = vadd.f32 %v3616, %v3959
        %v4024 = vadd.f32 %v3617, %v3960
        %v4025 = vadd.f32 %v3618, %v3961
        %v4026 = vadd.f32 %v3619, %v3962
        %v4027 = vadd.f32 %v3620, %v3963
        %v4028 = vadd.f32 %v3621, %v3964
        %v4029 = vadd.f32 %v3622, %v3965
        %v4030 = vadd.f32 %v3623, %v3966
        %v4031 = vadd.f32 %v3624, %v3967
        %v4032 = vadd.f32 %v3625, %v3968
        %v4033 = vadd.f32 %v3626, %v3969
        %v4034 = vadd.f32 %v3627, %v3970
        %v4035 = vadd.f32 %v3628, %v3971
        %v4036 = vadd.f32 %v3629, %v3972
        %v4037 = vadd.f32 %v3630, %v3973
        %v4038 = vadd.f32 %v3631, %v3974
        %v4039 = vadd.f32 %v3632, %v3975
        %v4040 = vadd.f32 %v3633, %v3976
        %v4041 = vadd.f32 %v3634, %v3977
        %v4042 = vadd.f32 %v3635, %v3978
        %v4043 = vadd.f32 %v3636, %v3979
        %v4044 = vadd.f32 %v3637, %v3980
        %v4045 = vadd.f32 %v3638, %v3981
        %v4046 = vadd.f32 %v3639, %v3982
        %v4047 = vadd.f32 %v3640, %v3983
        %v4048 = vadd.f32 %v3641, %v3984
        %v4049 = vadd.f32 %v3642, %v3985
        %v4050 = vadd.f32 %v3643, %v3986
        %v4051 = vadd.f32 %v3644, %v3987
        %v4052 = vadd.f32 %v3645, %v3988
        %v4053 = vadd.f32 %v3646, %v3989
        %v4054 = vadd.f32 %v3647, %v3990
        %v4055 = vadd.f32 %v3648, %v3991
        %v4056 = vadd.f32 %v3649, %v3992
        %v4057 = vadd.f32 %v3650, %v3993
        %v4058 = vadd.f32 %v3651, %v3994
        %v4059 = vadd.f32 %v3652, %v3995
        %v4060 = vadd.f32 %v3653, %v3996
        %v4061 = vadd.f32 %v3654, %v3997
        %v4062 = vadd.f32 %v3655, %v3998
        %s4063 = scalar_lea.vmem [#allocation7], 4
        %v4064 = vld [vmem:[%s4063] ss:$8 sm:$0xf]
        %v4066 = vlaneseq
        %v4067 = vshrl.u32 %v4066, 7
        %v4068 = vsub.s32 0, %v4067
        %v4069 = vrot.slane %v4064, %v4068
        %v4070 = vlaneseq
        %v4071 = vshrl.u32 %v4070, 7
        %v4072 = vsub.s32 1, %v4071
        %v4073 = vrot.slane %v4064, %v4072
        %v4074 = vlaneseq
        %v4075 = vshrl.u32 %v4074, 7
        %v4076 = vsub.s32 2, %v4075
        %v4077 = vrot.slane %v4064, %v4076
        %v4078 = vlaneseq
        %v4079 = vshrl.u32 %v4078, 7
        %v4080 = vsub.s32 3, %v4079
        %v4081 = vrot.slane %v4064, %v4080
        %v4086 = vmul.f32 %v4069, %v1971
        %v4087 = vmul.f32 %v4073, %v1973
        %v4088 = vmul.f32 %v4077, %v2197
        %v4089 = vmul.f32 %v4081, %v2199
        %v4090 = vmul.f32 %v4069, %v1975
        %v4091 = vmul.f32 %v4073, %v1977
        %v4092 = vmul.f32 %v4077, %v2201
        %v4093 = vmul.f32 %v4081, %v2203
        %v4094 = vmul.f32 %v4069, %v1981
        %v4095 = vmul.f32 %v4073, %v1983
        %v4096 = vmul.f32 %v4077, %v2207
        %v4097 = vmul.f32 %v4081, %v2209
        %v4098 = vmul.f32 %v4069, %v1985
        %v4099 = vmul.f32 %v4073, %v1987
        %v4100 = vmul.f32 %v4077, %v2211
        %v4101 = vmul.f32 %v4081, %v2213
        %v4102 = vmul.f32 %v4069, %v1991
        %v4103 = vmul.f32 %v4073, %v1993
        %v4104 = vmul.f32 %v4077, %v2217
        %v4105 = vmul.f32 %v4081, %v2219
        %v4106 = vmul.f32 %v4069, %v1995
        %v4107 = vmul.f32 %v4073, %v1997
        %v4108 = vmul.f32 %v4077, %v2221
        %v4109 = vmul.f32 %v4081, %v2223
        %v4110 = vmul.f32 %v4069, %v2001
        %v4111 = vmul.f32 %v4073, %v2003
        %v4112 = vmul.f32 %v4077, %v2227
        %v4113 = vmul.f32 %v4081, %v2229
        %v4114 = vmul.f32 %v4069, %v2005
        %v4115 = vmul.f32 %v4073, %v2007
        %v4116 = vmul.f32 %v4077, %v2231
        %v4117 = vmul.f32 %v4081, %v2233
        %v4118 = vmul.f32 %v4069, %v2011
        %v4119 = vmul.f32 %v4073, %v2013
        %v4120 = vmul.f32 %v4077, %v2237
        %v4121 = vmul.f32 %v4081, %v2239
        %v4122 = vmul.f32 %v4069, %v2015
        %v4123 = vmul.f32 %v4073, %v2017
        %v4124 = vmul.f32 %v4077, %v2241
        %v4125 = vmul.f32 %v4081, %v2243
        %v4126 = vmul.f32 %v4069, %v2021
        %v4127 = vmul.f32 %v4073, %v2023
        %v4128 = vmul.f32 %v4077, %v2247
        %v4129 = vmul.f32 %v4081, %v2249
        %v4130 = vmul.f32 %v4069, %v2025
        %v4131 = vmul.f32 %v4073, %v2027
        %v4132 = vmul.f32 %v4077, %v2251
        %v4133 = vmul.f32 %v4081, %v2253
        %v4134 = vmul.f32 %v4069, %v2031
        %v4135 = vmul.f32 %v4073, %v2033
        %v4136 = vmul.f32 %v4077, %v2257
        %v4137 = vmul.f32 %v4081, %v2259
        %v4138 = vmul.f32 %v4069, %v2035
        %v4139 = vmul.f32 %v4073, %v2037
        %v4140 = vmul.f32 %v4077, %v2261
        %v4141 = vmul.f32 %v4081, %v2263
        %v4142 = vmul.f32 %v4069, %v2041
        %v4143 = vmul.f32 %v4073, %v2043
        %v4144 = vmul.f32 %v4077, %v2267
        %v4145 = vmul.f32 %v4081, %v2269
        %v4146 = vmul.f32 %v4069, %v2045
        %v4147 = vmul.f32 %v4073, %v2047
        %v4148 = vmul.f32 %v4077, %v2271
        %v4149 = vmul.f32 %v4081, %v2273
        %v4150 = vadd.f32 %v3999, %v4086
        %v4151 = vadd.f32 %v4000, %v4087
        %v4152 = vadd.f32 %v4001, %v4088
        %v4153 = vadd.f32 %v4002, %v4089
        %v4154 = vadd.f32 %v4003, %v4090
        %v4155 = vadd.f32 %v4004, %v4091
        %v4156 = vadd.f32 %v4005, %v4092
        %v4157 = vadd.f32 %v4006, %v4093
        %v4158 = vadd.f32 %v4007, %v4094
        %v4159 = vadd.f32 %v4008, %v4095
        %v4160 = vadd.f32 %v4009, %v4096
        %v4161 = vadd.f32 %v4010, %v4097
        %v4162 = vadd.f32 %v4011, %v4098
        %v4163 = vadd.f32 %v4012, %v4099
        %v4164 = vadd.f32 %v4013, %v4100
        %v4165 = vadd.f32 %v4014, %v4101
        %v4166 = vadd.f32 %v4015, %v4102
        %v4167 = vadd.f32 %v4016, %v4103
        %v4168 = vadd.f32 %v4017, %v4104
        %v4169 = vadd.f32 %v4018, %v4105
        %v4170 = vadd.f32 %v4019, %v4106
        %v4171 = vadd.f32 %v4020, %v4107
        %v4172 = vadd.f32 %v4021, %v4108
        %v4173 = vadd.f32 %v4022, %v4109
        %v4174 = vadd.f32 %v4023, %v4110
        %v4175 = vadd.f32 %v4024, %v4111
        %v4176 = vadd.f32 %v4025, %v4112
        %v4177 = vadd.f32 %v4026, %v4113
        %v4178 = vadd.f32 %v4027, %v4114
        %v4179 = vadd.f32 %v4028, %v4115
        %v4180 = vadd.f32 %v4029, %v4116
        %v4181 = vadd.f32 %v4030, %v4117
        %v4182 = vadd.f32 %v4031, %v4118
        %v4183 = vadd.f32 %v4032, %v4119
        %v4184 = vadd.f32 %v4033, %v4120
        %v4185 = vadd.f32 %v4034, %v4121
        %v4186 = vadd.f32 %v4035, %v4122
        %v4187 = vadd.f32 %v4036, %v4123
        %v4188 = vadd.f32 %v4037, %v4124
        %v4189 = vadd.f32 %v4038, %v4125
        %v4190 = vadd.f32 %v4039, %v4126
        %v4191 = vadd.f32 %v4040, %v4127
        %v4192 = vadd.f32 %v4041, %v4128
        %v4193 = vadd.f32 %v4042, %v4129
        %v4194 = vadd.f32 %v4043, %v4130
        %v4195 = vadd.f32 %v4044, %v4131
        %v4196 = vadd.f32 %v4045, %v4132
        %v4197 = vadd.f32 %v4046, %v4133
        %v4198 = vadd.f32 %v4047, %v4134
        %v4199 = vadd.f32 %v4048, %v4135
        %v4200 = vadd.f32 %v4049, %v4136
        %v4201 = vadd.f32 %v4050, %v4137
        %v4202 = vadd.f32 %v4051, %v4138
        %v4203 = vadd.f32 %v4052, %v4139
        %v4204 = vadd.f32 %v4053, %v4140
        %v4205 = vadd.f32 %v4054, %v4141
        %v4206 = vadd.f32 %v4055, %v4142
        %v4207 = vadd.f32 %v4056, %v4143
        %v4208 = vadd.f32 %v4057, %v4144
        %v4209 = vadd.f32 %v4058, %v4145
        %v4210 = vadd.f32 %v4059, %v4146
        %v4211 = vadd.f32 %v4060, %v4147
        %v4212 = vadd.f32 %v4061, %v4148
        %v4213 = vadd.f32 %v4062, %v4149
        %s4214 = scalar_lea.vmem [#allocation7], 5
        %v4215 = vld [vmem:[%s4214] ss:$8 sm:$0xf]
        %4216 = vrot.lane.b32.xlu0 %v1971, 96
        %v4217 = vpop.permute.xlu0 %4216
        %4218 = vrot.lane.b32.xlu0 %v1975, 96
        %v4219 = vpop.permute.xlu0 %4218
        %4220 = vrot.lane.b32.xlu0 %v1981, 96
        %v4221 = vpop.permute.xlu0 %4220
        %4222 = vrot.lane.b32.xlu0 %v1985, 96
        %v4223 = vpop.permute.xlu0 %4222
        %4224 = vrot.lane.b32.xlu0 %v1991, 96
        %v4225 = vpop.permute.xlu0 %4224
        %4226 = vrot.lane.b32.xlu0 %v1995, 96
        %v4227 = vpop.permute.xlu0 %4226
        %4228 = vrot.lane.b32.xlu0 %v2001, 96
        %v4229 = vpop.permute.xlu0 %4228
        %4230 = vrot.lane.b32.xlu0 %v2005, 96
        %v4231 = vpop.permute.xlu0 %4230
        %4232 = vrot.lane.b32.xlu0 %v2011, 96
        %v4233 = vpop.permute.xlu0 %4232
        %4234 = vrot.lane.b32.xlu0 %v2015, 96
        %v4235 = vpop.permute.xlu0 %4234
        %4236 = vrot.lane.b32.xlu0 %v2021, 96
        %v4237 = vpop.permute.xlu0 %4236
        %4238 = vrot.lane.b32.xlu0 %v2025, 96
        %v4239 = vpop.permute.xlu0 %4238
        %4240 = vrot.lane.b32.xlu0 %v2031, 96
        %v4241 = vpop.permute.xlu0 %4240
        %4242 = vrot.lane.b32.xlu0 %v2035, 96
        %v4243 = vpop.permute.xlu0 %4242
        %4244 = vrot.lane.b32.xlu0 %v2041, 96
        %v4245 = vpop.permute.xlu0 %4244
        %4246 = vrot.lane.b32.xlu0 %v2045, 96
        %v4247 = vpop.permute.xlu0 %4246
        %4248 = vrot.lane.b32.xlu0 %v1973, 96
        %v4249 = vpop.permute.xlu0 %4248
        %4250 = vrot.lane.b32.xlu0 %v1977, 96
        %v4251 = vpop.permute.xlu0 %4250
        %4252 = vrot.lane.b32.xlu0 %v1983, 96
        %v4253 = vpop.permute.xlu0 %4252
        %4254 = vrot.lane.b32.xlu0 %v1987, 96
        %v4255 = vpop.permute.xlu0 %4254
        %4256 = vrot.lane.b32.xlu0 %v1993, 96
        %v4257 = vpop.permute.xlu0 %4256
        %4258 = vrot.lane.b32.xlu0 %v1997, 96
        %v4259 = vpop.permute.xlu0 %4258
        %4260 = vrot.lane.b32.xlu0 %v2003, 96
        %v4261 = vpop.permute.xlu0 %4260
        %4262 = vrot.lane.b32.xlu0 %v2007, 96
        %v4263 = vpop.permute.xlu0 %4262
        %4264 = vrot.lane.b32.xlu0 %v2013, 96
        %v4265 = vpop.permute.xlu0 %4264
        %4266 = vrot.lane.b32.xlu0 %v2017, 96
        %v4267 = vpop.permute.xlu0 %4266
        %4268 = vrot.lane.b32.xlu0 %v2023, 96
        %v4269 = vpop.permute.xlu0 %4268
        %4270 = vrot.lane.b32.xlu0 %v2027, 96
        %v4271 = vpop.permute.xlu0 %4270
        %4272 = vrot.lane.b32.xlu0 %v2033, 96
        %v4273 = vpop.permute.xlu0 %4272
        %4274 = vrot.lane.b32.xlu0 %v2037, 96
        %v4275 = vpop.permute.xlu0 %4274
        %4276 = vrot.lane.b32.xlu0 %v2043, 96
        %v4277 = vpop.permute.xlu0 %4276
        %4278 = vrot.lane.b32.xlu0 %v2047, 96
        %v4279 = vpop.permute.xlu0 %4278
        %4280 = vrot.lane.b32.xlu0 %v2197, 96
        %v4281 = vpop.permute.xlu0 %4280
        %4282 = vrot.lane.b32.xlu0 %v2201, 96
        %v4283 = vpop.permute.xlu0 %4282
        %4284 = vrot.lane.b32.xlu0 %v2207, 96
        %v4285 = vpop.permute.xlu0 %4284
        %4286 = vrot.lane.b32.xlu0 %v2211, 96
        %v4287 = vpop.permute.xlu0 %4286
        %4288 = vrot.lane.b32.xlu0 %v2217, 96
        %v4289 = vpop.permute.xlu0 %4288
        %4290 = vrot.lane.b32.xlu0 %v2221, 96
        %v4291 = vpop.permute.xlu0 %4290
        %4292 = vrot.lane.b32.xlu0 %v2227, 96
        %v4293 = vpop.permute.xlu0 %4292
        %4294 = vrot.lane.b32.xlu0 %v2231, 96
        %v4295 = vpop.permute.xlu0 %4294
        %4296 = vrot.lane.b32.xlu0 %v2237, 96
        %v4297 = vpop.permute.xlu0 %4296
        %4298 = vrot.lane.b32.xlu0 %v2241, 96
        %v4299 = vpop.permute.xlu0 %4298
        %4300 = vrot.lane.b32.xlu0 %v2247, 96
        %v4301 = vpop.permute.xlu0 %4300
        %4302 = vrot.lane.b32.xlu0 %v2251, 96
        %v4303 = vpop.permute.xlu0 %4302
        %4304 = vrot.lane.b32.xlu0 %v2257, 96
        %v4305 = vpop.permute.xlu0 %4304
        %4306 = vrot.lane.b32.xlu0 %v2261, 96
        %v4307 = vpop.permute.xlu0 %4306
        %4308 = vrot.lane.b32.xlu0 %v2267, 96
        %v4309 = vpop.permute.xlu0 %4308
        %4310 = vrot.lane.b32.xlu0 %v2271, 96
        %v4311 = vpop.permute.xlu0 %4310
        %4312 = vrot.lane.b32.xlu0 %v2199, 96
        %v4313 = vpop.permute.xlu0 %4312
        %4314 = vrot.lane.b32.xlu0 %v2203, 96
        %v4315 = vpop.permute.xlu0 %4314
        %4316 = vrot.lane.b32.xlu0 %v2209, 96
        %v4317 = vpop.permute.xlu0 %4316
        %4318 = vrot.lane.b32.xlu0 %v2213, 96
        %v4319 = vpop.permute.xlu0 %4318
        %4320 = vrot.lane.b32.xlu0 %v2219, 96
        %v4321 = vpop.permute.xlu0 %4320
        %4322 = vrot.lane.b32.xlu0 %v2223, 96
        %v4323 = vpop.permute.xlu0 %4322
        %4324 = vrot.lane.b32.xlu0 %v2229, 96
        %v4325 = vpop.permute.xlu0 %4324
        %4326 = vrot.lane.b32.xlu0 %v2233, 96
        %v4327 = vpop.permute.xlu0 %4326
        %4328 = vrot.lane.b32.xlu0 %v2239, 96
        %v4329 = vpop.permute.xlu0 %4328
        %4330 = vrot.lane.b32.xlu0 %v2243, 96
        %v4331 = vpop.permute.xlu0 %4330
        %4332 = vrot.lane.b32.xlu0 %v2249, 96
        %v4333 = vpop.permute.xlu0 %4332
        %4334 = vrot.lane.b32.xlu0 %v2253, 96
        %v4335 = vpop.permute.xlu0 %4334
        %4336 = vrot.lane.b32.xlu0 %v2259, 96
        %v4337 = vpop.permute.xlu0 %4336
        %4338 = vrot.lane.b32.xlu0 %v2263, 96
        %v4339 = vpop.permute.xlu0 %4338
        %4340 = vrot.lane.b32.xlu0 %v2269, 96
        %v4341 = vpop.permute.xlu0 %4340
        %4342 = vrot.lane.b32.xlu0 %v2273, 96
        %v4343 = vpop.permute.xlu0 %4342
        %v4344 = vsel %vm3366, %v4281, %v4313
        %v4345 = vsel %vm3366, %v4283, %v4315
        %v4346 = vsel %vm3366, %v4285, %v4317
        %v4347 = vsel %vm3366, %v4287, %v4319
        %v4348 = vsel %vm3366, %v4289, %v4321
        %v4349 = vsel %vm3366, %v4291, %v4323
        %v4350 = vsel %vm3366, %v4293, %v4325
        %v4351 = vsel %vm3366, %v4295, %v4327
        %v4352 = vsel %vm3366, %v4297, %v4329
        %v4353 = vsel %vm3366, %v4299, %v4331
        %v4354 = vsel %vm3366, %v4301, %v4333
        %v4355 = vsel %vm3366, %v4303, %v4335
        %v4356 = vsel %vm3366, %v4305, %v4337
        %v4357 = vsel %vm3366, %v4307, %v4339
        %v4358 = vsel %vm3366, %v4309, %v4341
        %v4359 = vsel %vm3366, %v4311, %v4343
        %v4360 = vsel %vm3366, %v4249, %v4281
        %v4361 = vsel %vm3366, %v4251, %v4283
        %v4362 = vsel %vm3366, %v4253, %v4285
        %v4363 = vsel %vm3366, %v4255, %v4287
        %v4364 = vsel %vm3366, %v4257, %v4289
        %v4365 = vsel %vm3366, %v4259, %v4291
        %v4366 = vsel %vm3366, %v4261, %v4293
        %v4367 = vsel %vm3366, %v4263, %v4295
        %v4368 = vsel %vm3366, %v4265, %v4297
        %v4369 = vsel %vm3366, %v4267, %v4299
        %v4370 = vsel %vm3366, %v4269, %v4301
        %v4371 = vsel %vm3366, %v4271, %v4303
        %v4372 = vsel %vm3366, %v4273, %v4305
        %v4373 = vsel %vm3366, %v4275, %v4307
        %v4374 = vsel %vm3366, %v4277, %v4309
        %v4375 = vsel %vm3366, %v4279, %v4311
        %v4376 = vsel %vm3366, %v4217, %v4249
        %v4377 = vsel %vm3366, %v4219, %v4251
        %v4378 = vsel %vm3366, %v4221, %v4253
        %v4379 = vsel %vm3366, %v4223, %v4255
        %v4380 = vsel %vm3366, %v4225, %v4257
        %v4381 = vsel %vm3366, %v4227, %v4259
        %v4382 = vsel %vm3366, %v4229, %v4261
        %v4383 = vsel %vm3366, %v4231, %v4263
        %v4384 = vsel %vm3366, %v4233, %v4265
        %v4385 = vsel %vm3366, %v4235, %v4267
        %v4386 = vsel %vm3366, %v4237, %v4269
        %v4387 = vsel %vm3366, %v4239, %v4271
        %v4388 = vsel %vm3366, %v4241, %v4273
        %v4389 = vsel %vm3366, %v4243, %v4275
        %v4390 = vsel %vm3366, %v4245, %v4277
        %v4391 = vsel %vm3366, %v4247, %v4279
        %v4392 = vsel %vm3366, %v4313, %v4217
        %v4393 = vsel %vm3366, %v4315, %v4219
        %v4394 = vsel %vm3366, %v4317, %v4221
        %v4395 = vsel %vm3366, %v4319, %v4223
        %v4396 = vsel %vm3366, %v4321, %v4225
        %v4397 = vsel %vm3366, %v4323, %v4227
        %v4398 = vsel %vm3366, %v4325, %v4229
        %v4399 = vsel %vm3366, %v4327, %v4231
        %v4400 = vsel %vm3366, %v4329, %v4233
        %v4401 = vsel %vm3366, %v4331, %v4235
        %v4402 = vsel %vm3366, %v4333, %v4237
        %v4403 = vsel %vm3366, %v4335, %v4239
        %v4404 = vsel %vm3366, %v4337, %v4241
        %v4405 = vsel %vm3366, %v4339, %v4243
        %v4406 = vsel %vm3366, %v4341, %v4245
        %v4407 = vsel %vm3366, %v4343, %v4247
        %v4408 = vsel %vm3439, %v4376, 0.0
        %v4409 = vsel %vm3440, %v4360, 0.0
        %v4410 = vsel %vm3441, %v4344, 0.0
        %v4411 = vsel %vm3442, %v4392, 0.0
        %v4412 = vsel %vm3439, %v4377, 0.0
        %v4413 = vsel %vm3440, %v4361, 0.0
        %v4414 = vsel %vm3441, %v4345, 0.0
        %v4415 = vsel %vm3442, %v4393, 0.0
        %v4416 = vsel %vm3439, %v4378, 0.0
        %v4417 = vsel %vm3440, %v4362, 0.0
        %v4418 = vsel %vm3441, %v4346, 0.0
        %v4419 = vsel %vm3442, %v4394, 0.0
        %v4420 = vsel %vm3439, %v4379, 0.0
        %v4421 = vsel %vm3440, %v4363, 0.0
        %v4422 = vsel %vm3441, %v4347, 0.0
        %v4423 = vsel %vm3442, %v4395, 0.0
        %v4424 = vsel %vm3439, %v4380, 0.0
        %v4425 = vsel %vm3440, %v4364, 0.0
        %v4426 = vsel %vm3441, %v4348, 0.0
        %v4427 = vsel %vm3442, %v4396, 0.0
        %v4428 = vsel %vm3439, %v4381, 0.0
        %v4429 = vsel %vm3440, %v4365, 0.0
        %v4430 = vsel %vm3441, %v4349, 0.0
        %v4431 = vsel %vm3442, %v4397, 0.0
        %v4432 = vsel %vm3439, %v4382, 0.0
        %v4433 = vsel %vm3440, %v4366, 0.0
        %v4434 = vsel %vm3441, %v4350, 0.0
        %v4435 = vsel %vm3442, %v4398, 0.0
        %v4436 = vsel %vm3439, %v4383, 0.0
        %v4437 = vsel %vm3440, %v4367, 0.0
        %v4438 = vsel %vm3441, %v4351, 0.0
        %v4439 = vsel %vm3442, %v4399, 0.0
        %v4440 = vsel %vm3439, %v4384, 0.0
        %v4441 = vsel %vm3440, %v4368, 0.0
        %v4442 = vsel %vm3441, %v4352, 0.0
        %v4443 = vsel %vm3442, %v4400, 0.0
        %v4444 = vsel %vm3439, %v4385, 0.0
        %v4445 = vsel %vm3440, %v4369, 0.0
        %v4446 = vsel %vm3441, %v4353, 0.0
        %v4447 = vsel %vm3442, %v4401, 0.0
        %v4448 = vsel %vm3439, %v4386, 0.0
        %v4449 = vsel %vm3440, %v4370, 0.0
        %v4450 = vsel %vm3441, %v4354, 0.0
        %v4451 = vsel %vm3442, %v4402, 0.0
        %v4452 = vsel %vm3439, %v4387, 0.0
        %v4453 = vsel %vm3440, %v4371, 0.0
        %v4454 = vsel %vm3441, %v4355, 0.0
        %v4455 = vsel %vm3442, %v4403, 0.0
        %v4456 = vsel %vm3439, %v4388, 0.0
        %v4457 = vsel %vm3440, %v4372, 0.0
        %v4458 = vsel %vm3441, %v4356, 0.0
        %v4459 = vsel %vm3442, %v4404, 0.0
        %v4460 = vsel %vm3439, %v4389, 0.0
        %v4461 = vsel %vm3440, %v4373, 0.0
        %v4462 = vsel %vm3441, %v4357, 0.0
        %v4463 = vsel %vm3442, %v4405, 0.0
        %v4464 = vsel %vm3439, %v4390, 0.0
        %v4465 = vsel %vm3440, %v4374, 0.0
        %v4466 = vsel %vm3441, %v4358, 0.0
        %v4467 = vsel %vm3442, %v4406, 0.0
        %v4468 = vsel %vm3439, %v4391, 0.0
        %v4469 = vsel %vm3440, %v4375, 0.0
        %v4470 = vsel %vm3441, %v4359, 0.0
        %v4471 = vsel %vm3442, %v4407, 0.0
        %v4473 = vlaneseq
        %v4474 = vshrl.u32 %v4473, 7
        %v4475 = vsub.s32 0, %v4474
        %v4476 = vrot.slane %v4215, %v4475
        %v4477 = vlaneseq
        %v4478 = vshrl.u32 %v4477, 7
        %v4479 = vsub.s32 1, %v4478
        %v4480 = vrot.slane %v4215, %v4479
        %v4481 = vlaneseq
        %v4482 = vshrl.u32 %v4481, 7
        %v4483 = vsub.s32 2, %v4482
        %v4484 = vrot.slane %v4215, %v4483
        %v4485 = vlaneseq
        %v4486 = vshrl.u32 %v4485, 7
        %v4487 = vsub.s32 3, %v4486
        %v4488 = vrot.slane %v4215, %v4487
        %v4493 = vmul.f32 %v4476, %v4408
        %v4494 = vmul.f32 %v4480, %v4409
        %v4495 = vmul.f32 %v4484, %v4410
        %v4496 = vmul.f32 %v4488, %v4411
        %v4497 = vmul.f32 %v4476, %v4412
        %v4498 = vmul.f32 %v4480, %v4413
        %v4499 = vmul.f32 %v4484, %v4414
        %v4500 = vmul.f32 %v4488, %v4415
        %v4501 = vmul.f32 %v4476, %v4416
        %v4502 = vmul.f32 %v4480, %v4417
        %v4503 = vmul.f32 %v4484, %v4418
        %v4504 = vmul.f32 %v4488, %v4419
        %v4505 = vmul.f32 %v4476, %v4420
        %v4506 = vmul.f32 %v4480, %v4421
        %v4507 = vmul.f32 %v4484, %v4422
        %v4508 = vmul.f32 %v4488, %v4423
        %v4509 = vmul.f32 %v4476, %v4424
        %v4510 = vmul.f32 %v4480, %v4425
        %v4511 = vmul.f32 %v4484, %v4426
        %v4512 = vmul.f32 %v4488, %v4427
        %v4513 = vmul.f32 %v4476, %v4428
        %v4514 = vmul.f32 %v4480, %v4429
        %v4515 = vmul.f32 %v4484, %v4430
        %v4516 = vmul.f32 %v4488, %v4431
        %v4517 = vmul.f32 %v4476, %v4432
        %v4518 = vmul.f32 %v4480, %v4433
        %v4519 = vmul.f32 %v4484, %v4434
        %v4520 = vmul.f32 %v4488, %v4435
        %v4521 = vmul.f32 %v4476, %v4436
        %v4522 = vmul.f32 %v4480, %v4437
        %v4523 = vmul.f32 %v4484, %v4438
        %v4524 = vmul.f32 %v4488, %v4439
        %v4525 = vmul.f32 %v4476, %v4440
        %v4526 = vmul.f32 %v4480, %v4441
        %v4527 = vmul.f32 %v4484, %v4442
        %v4528 = vmul.f32 %v4488, %v4443
        %v4529 = vmul.f32 %v4476, %v4444
        %v4530 = vmul.f32 %v4480, %v4445
        %v4531 = vmul.f32 %v4484, %v4446
        %v4532 = vmul.f32 %v4488, %v4447
        %v4533 = vmul.f32 %v4476, %v4448
        %v4534 = vmul.f32 %v4480, %v4449
        %v4535 = vmul.f32 %v4484, %v4450
        %v4536 = vmul.f32 %v4488, %v4451
        %v4537 = vmul.f32 %v4476, %v4452
        %v4538 = vmul.f32 %v4480, %v4453
        %v4539 = vmul.f32 %v4484, %v4454
        %v4540 = vmul.f32 %v4488, %v4455
        %v4541 = vmul.f32 %v4476, %v4456
        %v4542 = vmul.f32 %v4480, %v4457
        %v4543 = vmul.f32 %v4484, %v4458
        %v4544 = vmul.f32 %v4488, %v4459
        %v4545 = vmul.f32 %v4476, %v4460
        %v4546 = vmul.f32 %v4480, %v4461
        %v4547 = vmul.f32 %v4484, %v4462
        %v4548 = vmul.f32 %v4488, %v4463
        %v4549 = vmul.f32 %v4476, %v4464
        %v4550 = vmul.f32 %v4480, %v4465
        %v4551 = vmul.f32 %v4484, %v4466
        %v4552 = vmul.f32 %v4488, %v4467
        %v4553 = vmul.f32 %v4476, %v4468
        %v4554 = vmul.f32 %v4480, %v4469
        %v4555 = vmul.f32 %v4484, %v4470
        %v4556 = vmul.f32 %v4488, %v4471
        %v4557 = vadd.f32 %v4150, %v4493
        %v4558 = vadd.f32 %v4151, %v4494
        %v4559 = vadd.f32 %v4152, %v4495
        %v4560 = vadd.f32 %v4153, %v4496
        %v4561 = vadd.f32 %v4154, %v4497
        %v4562 = vadd.f32 %v4155, %v4498
        %v4563 = vadd.f32 %v4156, %v4499
        %v4564 = vadd.f32 %v4157, %v4500
        %v4565 = vadd.f32 %v4158, %v4501
        %v4566 = vadd.f32 %v4159, %v4502
        %v4567 = vadd.f32 %v4160, %v4503
        %v4568 = vadd.f32 %v4161, %v4504
        %v4569 = vadd.f32 %v4162, %v4505
        %v4570 = vadd.f32 %v4163, %v4506
        %v4571 = vadd.f32 %v4164, %v4507
        %v4572 = vadd.f32 %v4165, %v4508
        %v4573 = vadd.f32 %v4166, %v4509
        %v4574 = vadd.f32 %v4167, %v4510
        %v4575 = vadd.f32 %v4168, %v4511
        %v4576 = vadd.f32 %v4169, %v4512
        %v4577 = vadd.f32 %v4170, %v4513
        %v4578 = vadd.f32 %v4171, %v4514
        %v4579 = vadd.f32 %v4172, %v4515
        %v4580 = vadd.f32 %v4173, %v4516
        %v4581 = vadd.f32 %v4174, %v4517
        %v4582 = vadd.f32 %v4175, %v4518
        %v4583 = vadd.f32 %v4176, %v4519
        %v4584 = vadd.f32 %v4177, %v4520
        %v4585 = vadd.f32 %v4178, %v4521
        %v4586 = vadd.f32 %v4179, %v4522
        %v4587 = vadd.f32 %v4180, %v4523
        %v4588 = vadd.f32 %v4181, %v4524
        %v4589 = vadd.f32 %v4182, %v4525
        %v4590 = vadd.f32 %v4183, %v4526
        %v4591 = vadd.f32 %v4184, %v4527
        %v4592 = vadd.f32 %v4185, %v4528
        %v4593 = vadd.f32 %v4186, %v4529
        %v4594 = vadd.f32 %v4187, %v4530
        %v4595 = vadd.f32 %v4188, %v4531
        %v4596 = vadd.f32 %v4189, %v4532
        %v4597 = vadd.f32 %v4190, %v4533
        %v4598 = vadd.f32 %v4191, %v4534
        %v4599 = vadd.f32 %v4192, %v4535
        %v4600 = vadd.f32 %v4193, %v4536
        %v4601 = vadd.f32 %v4194, %v4537
        %v4602 = vadd.f32 %v4195, %v4538
        %v4603 = vadd.f32 %v4196, %v4539
        %v4604 = vadd.f32 %v4197, %v4540
        %v4605 = vadd.f32 %v4198, %v4541
        %v4606 = vadd.f32 %v4199, %v4542
        %v4607 = vadd.f32 %v4200, %v4543
        %v4608 = vadd.f32 %v4201, %v4544
        %v4609 = vadd.f32 %v4202, %v4545
        %v4610 = vadd.f32 %v4203, %v4546
        %v4611 = vadd.f32 %v4204, %v4547
        %v4612 = vadd.f32 %v4205, %v4548
        %v4613 = vadd.f32 %v4206, %v4549
        %v4614 = vadd.f32 %v4207, %v4550
        %v4615 = vadd.f32 %v4208, %v4551
        %v4616 = vadd.f32 %v4209, %v4552
        %v4617 = vadd.f32 %v4210, %v4553
        %v4618 = vadd.f32 %v4211, %v4554
        %v4619 = vadd.f32 %v4212, %v4555
        %v4620 = vadd.f32 %v4213, %v4556
        %v4621 = vrot.slane %v1971, 1
        %v4622 = vrot.slane %v1973, 1
        %v4623 = vrot.slane %v2197, 1
        %v4624 = vrot.slane %v2199, 1
        %v4625 = vrot.slane %v1975, 1
        %v4626 = vrot.slane %v1977, 1
        %v4627 = vrot.slane %v2201, 1
        %v4628 = vrot.slane %v2203, 1
        %v4629 = vrot.slane %v1981, 1
        %v4630 = vrot.slane %v1983, 1
        %v4631 = vrot.slane %v2207, 1
        %v4632 = vrot.slane %v2209, 1
        %v4633 = vrot.slane %v1985, 1
        %v4634 = vrot.slane %v1987, 1
        %v4635 = vrot.slane %v2211, 1
        %v4636 = vrot.slane %v2213, 1
        %v4637 = vrot.slane %v1991, 1
        %v4638 = vrot.slane %v1993, 1
        %v4639 = vrot.slane %v2217, 1
        %v4640 = vrot.slane %v2219, 1
        %v4641 = vrot.slane %v1995, 1
        %v4642 = vrot.slane %v1997, 1
        %v4643 = vrot.slane %v2221, 1
        %v4644 = vrot.slane %v2223, 1
        %v4645 = vrot.slane %v2001, 1
        %v4646 = vrot.slane %v2003, 1
        %v4647 = vrot.slane %v2227, 1
        %v4648 = vrot.slane %v2229, 1
        %v4649 = vrot.slane %v2005, 1
        %v4650 = vrot.slane %v2007, 1
        %v4651 = vrot.slane %v2231, 1
        %v4652 = vrot.slane %v2233, 1
        %v4653 = vrot.slane %v2011, 1
        %v4654 = vrot.slane %v2013, 1
        %v4655 = vrot.slane %v2237, 1
        %v4656 = vrot.slane %v2239, 1
        %v4657 = vrot.slane %v2015, 1
        %v4658 = vrot.slane %v2017, 1
        %v4659 = vrot.slane %v2241, 1
        %v4660 = vrot.slane %v2243, 1
        %v4661 = vrot.slane %v2021, 1
        %v4662 = vrot.slane %v2023, 1
        %v4663 = vrot.slane %v2247, 1
        %v4664 = vrot.slane %v2249, 1
        %v4665 = vrot.slane %v2025, 1
        %v4666 = vrot.slane %v2027, 1
        %v4667 = vrot.slane %v2251, 1
        %v4668 = vrot.slane %v2253, 1
        %v4669 = vrot.slane %v2031, 1
        %v4670 = vrot.slane %v2033, 1
        %v4671 = vrot.slane %v2257, 1
        %v4672 = vrot.slane %v2259, 1
        %v4673 = vrot.slane %v2035, 1
        %v4674 = vrot.slane %v2037, 1
        %v4675 = vrot.slane %v2261, 1
        %v4676 = vrot.slane %v2263, 1
        %v4677 = vrot.slane %v2041, 1
        %v4678 = vrot.slane %v2043, 1
        %v4679 = vrot.slane %v2267, 1
        %v4680 = vrot.slane %v2269, 1
        %v4681 = vrot.slane %v2045, 1
        %v4682 = vrot.slane %v2047, 1
        %v4683 = vrot.slane %v2271, 1
        %v4684 = vrot.slane %v2273, 1
        %vm4685 = vcmp.lt.s32.totalorder %v2281, 7
        %v4686 = vsel %vm4685, %v4677, %v4681
        %v4687 = vsel %vm4685, %v4678, %v4682
        %v4688 = vsel %vm4685, %v4679, %v4683
        %v4689 = vsel %vm4685, %v4680, %v4684
        %v4690 = vsel %vm4685, %v4673, %v4677
        %v4691 = vsel %vm4685, %v4674, %v4678
        %v4692 = vsel %vm4685, %v4675, %v4679
        %v4693 = vsel %vm4685, %v4676, %v4680
        %v4694 = vsel %vm4685, %v4669, %v4673
        %v4695 = vsel %vm4685, %v4670, %v4674
        %v4696 = vsel %vm4685, %v4671, %v4675
        %v4697 = vsel %vm4685, %v4672, %v4676
        %v4698 = vsel %vm4685, %v4665, %v4669
        %v4699 = vsel %vm4685, %v4666, %v4670
        %v4700 = vsel %vm4685, %v4667, %v4671
        %v4701 = vsel %vm4685, %v4668, %v4672
        %v4702 = vsel %vm4685, %v4661, %v4665
        %v4703 = vsel %vm4685, %v4662, %v4666
        %v4704 = vsel %vm4685, %v4663, %v4667
        %v4705 = vsel %vm4685, %v4664, %v4668
        %v4706 = vsel %vm4685, %v4657, %v4661
        %v4707 = vsel %vm4685, %v4658, %v4662
        %v4708 = vsel %vm4685, %v4659, %v4663
        %v4709 = vsel %vm4685, %v4660, %v4664
        %v4710 = vsel %vm4685, %v4653, %v4657
        %v4711 = vsel %vm4685, %v4654, %v4658
        %v4712 = vsel %vm4685, %v4655, %v4659
        %v4713 = vsel %vm4685, %v4656, %v4660
        %v4714 = vsel %vm4685, %v4649, %v4653
        %v4715 = vsel %vm4685, %v4650, %v4654
        %v4716 = vsel %vm4685, %v4651, %v4655
        %v4717 = vsel %vm4685, %v4652, %v4656
        %v4718 = vsel %vm4685, %v4645, %v4649
        %v4719 = vsel %vm4685, %v4646, %v4650
        %v4720 = vsel %vm4685, %v4647, %v4651
        %v4721 = vsel %vm4685, %v4648, %v4652
        %v4722 = vsel %vm4685, %v4641, %v4645
        %v4723 = vsel %vm4685, %v4642, %v4646
        %v4724 = vsel %vm4685, %v4643, %v4647
        %v4725 = vsel %vm4685, %v4644, %v4648
        %v4726 = vsel %vm4685, %v4637, %v4641
        %v4727 = vsel %vm4685, %v4638, %v4642
        %v4728 = vsel %vm4685, %v4639, %v4643
        %v4729 = vsel %vm4685, %v4640, %v4644
        %v4730 = vsel %vm4685, %v4633, %v4637
        %v4731 = vsel %vm4685, %v4634, %v4638
        %v4732 = vsel %vm4685, %v4635, %v4639
        %v4733 = vsel %vm4685, %v4636, %v4640
        %v4734 = vsel %vm4685, %v4629, %v4633
        %v4735 = vsel %vm4685, %v4630, %v4634
        %v4736 = vsel %vm4685, %v4631, %v4635
        %v4737 = vsel %vm4685, %v4632, %v4636
        %v4738 = vsel %vm4685, %v4625, %v4629
        %v4739 = vsel %vm4685, %v4626, %v4630
        %v4740 = vsel %vm4685, %v4627, %v4631
        %v4741 = vsel %vm4685, %v4628, %v4632
        %v4742 = vsel %vm4685, %v4621, %v4625
        %v4743 = vsel %vm4685, %v4622, %v4626
        %v4744 = vsel %vm4685, %v4623, %v4627
        %v4745 = vsel %vm4685, %v4624, %v4628
        %v4746 = vsel %vm4685, %v4681, %v4621
        %v4747 = vsel %vm4685, %v4682, %v4622
        %v4748 = vsel %vm4685, %v4683, %v4623
        %v4749 = vsel %vm4685, %v4684, %v4624
        %vm4750 = vcmp.lt.s32.totalorder %v2473, 15
        %vm4751 = vcmp.lt.s32.totalorder %v2474, 15
        %vm4752 = vcmp.lt.s32.totalorder %v2475, 15
        %vm4753 = vcmp.lt.s32.totalorder %v2476, 15
        %vm4754 = vcmp.lt.s32.totalorder %v2477, 15
        %vm4755 = vcmp.lt.s32.totalorder %v2478, 15
        %vm4756 = vcmp.lt.s32.totalorder %v2479, 15
        %vm4757 = vcmp.lt.s32.totalorder %v2480, 15
        %vm4758 = vcmp.lt.s32.totalorder %v2481, 15
        %vm4759 = vcmp.lt.s32.totalorder %v2482, 15
        %vm4760 = vcmp.lt.s32.totalorder %v2483, 15
        %vm4761 = vcmp.lt.s32.totalorder %v2484, 15
        %vm4762 = vcmp.lt.s32.totalorder %v2485, 15
        %vm4763 = vcmp.lt.s32.totalorder %v2486, 15
        %vm4764 = vcmp.lt.s32.totalorder %v2487, 15
        %vm4765 = vcmp.lt.s32.totalorder %v2488, 15
        %v4766 = vsel %vm4750, 1, 0
        %v4767 = vsel %vm4751, 1, 0
        %v4768 = vsel %vm4752, 1, 0
        %v4769 = vsel %vm4753, 1, 0
        %v4770 = vsel %vm4754, 1, 0
        %v4771 = vsel %vm4755, 1, 0
        %v4772 = vsel %vm4756, 1, 0
        %v4773 = vsel %vm4757, 1, 0
        %v4774 = vsel %vm4758, 1, 0
        %v4775 = vsel %vm4759, 1, 0
        %v4776 = vsel %vm4760, 1, 0
        %v4777 = vsel %vm4761, 1, 0
        %v4778 = vsel %vm4762, 1, 0
        %v4779 = vsel %vm4763, 1, 0
        %v4780 = vsel %vm4764, 1, 0
        %v4781 = vsel %vm4765, 1, 0
        %vm4782 = vcmp.eq.s32.totalorder %v4766, 1
        %vm4783 = vcmp.eq.s32.totalorder %v4767, 1
        %vm4784 = vcmp.eq.s32.totalorder %v4768, 1
        %vm4785 = vcmp.eq.s32.totalorder %v4769, 1
        %vm4786 = vcmp.eq.s32.totalorder %v4770, 1
        %vm4787 = vcmp.eq.s32.totalorder %v4771, 1
        %vm4788 = vcmp.eq.s32.totalorder %v4772, 1
        %vm4789 = vcmp.eq.s32.totalorder %v4773, 1
        %vm4790 = vcmp.eq.s32.totalorder %v4774, 1
        %vm4791 = vcmp.eq.s32.totalorder %v4775, 1
        %vm4792 = vcmp.eq.s32.totalorder %v4776, 1
        %vm4793 = vcmp.eq.s32.totalorder %v4777, 1
        %vm4794 = vcmp.eq.s32.totalorder %v4778, 1
        %vm4795 = vcmp.eq.s32.totalorder %v4779, 1
        %vm4796 = vcmp.eq.s32.totalorder %v4780, 1
        %vm4797 = vcmp.eq.s32.totalorder %v4781, 1
        %v4798 = vsel %vm4782, %v4742, 0.0
        %v4799 = vsel %vm4782, %v4743, 0.0
        %v4800 = vsel %vm4782, %v4744, 0.0
        %v4801 = vsel %vm4782, %v4745, 0.0
        %v4802 = vsel %vm4783, %v4738, 0.0
        %v4803 = vsel %vm4783, %v4739, 0.0
        %v4804 = vsel %vm4783, %v4740, 0.0
        %v4805 = vsel %vm4783, %v4741, 0.0
        %v4806 = vsel %vm4784, %v4734, 0.0
        %v4807 = vsel %vm4784, %v4735, 0.0
        %v4808 = vsel %vm4784, %v4736, 0.0
        %v4809 = vsel %vm4784, %v4737, 0.0
        %v4810 = vsel %vm4785, %v4730, 0.0
        %v4811 = vsel %vm4785, %v4731, 0.0
        %v4812 = vsel %vm4785, %v4732, 0.0
        %v4813 = vsel %vm4785, %v4733, 0.0
        %v4814 = vsel %vm4786, %v4726, 0.0
        %v4815 = vsel %vm4786, %v4727, 0.0
        %v4816 = vsel %vm4786, %v4728, 0.0
        %v4817 = vsel %vm4786, %v4729, 0.0
        %v4818 = vsel %vm4787, %v4722, 0.0
        %v4819 = vsel %vm4787, %v4723, 0.0
        %v4820 = vsel %vm4787, %v4724, 0.0
        %v4821 = vsel %vm4787, %v4725, 0.0
        %v4822 = vsel %vm4788, %v4718, 0.0
        %v4823 = vsel %vm4788, %v4719, 0.0
        %v4824 = vsel %vm4788, %v4720, 0.0
        %v4825 = vsel %vm4788, %v4721, 0.0
        %v4826 = vsel %vm4789, %v4714, 0.0
        %v4827 = vsel %vm4789, %v4715, 0.0
        %v4828 = vsel %vm4789, %v4716, 0.0
        %v4829 = vsel %vm4789, %v4717, 0.0
        %v4830 = vsel %vm4790, %v4710, 0.0
        %v4831 = vsel %vm4790, %v4711, 0.0
        %v4832 = vsel %vm4790, %v4712, 0.0
        %v4833 = vsel %vm4790, %v4713, 0.0
        %v4834 = vsel %vm4791, %v4706, 0.0
        %v4835 = vsel %vm4791, %v4707, 0.0
        %v4836 = vsel %vm4791, %v4708, 0.0
        %v4837 = vsel %vm4791, %v4709, 0.0
        %v4838 = vsel %vm4792, %v4702, 0.0
        %v4839 = vsel %vm4792, %v4703, 0.0
        %v4840 = vsel %vm4792, %v4704, 0.0
        %v4841 = vsel %vm4792, %v4705, 0.0
        %v4842 = vsel %vm4793, %v4698, 0.0
        %v4843 = vsel %vm4793, %v4699, 0.0
        %v4844 = vsel %vm4793, %v4700, 0.0
        %v4845 = vsel %vm4793, %v4701, 0.0
        %v4846 = vsel %vm4794, %v4694, 0.0
        %v4847 = vsel %vm4794, %v4695, 0.0
        %v4848 = vsel %vm4794, %v4696, 0.0
        %v4849 = vsel %vm4794, %v4697, 0.0
        %v4850 = vsel %vm4795, %v4690, 0.0
        %v4851 = vsel %vm4795, %v4691, 0.0
        %v4852 = vsel %vm4795, %v4692, 0.0
        %v4853 = vsel %vm4795, %v4693, 0.0
        %v4854 = vsel %vm4796, %v4686, 0.0
        %v4855 = vsel %vm4796, %v4687, 0.0
        %v4856 = vsel %vm4796, %v4688, 0.0
        %v4857 = vsel %vm4796, %v4689, 0.0
        %v4858 = vsel %vm4797, %v4746, 0.0
        %v4859 = vsel %vm4797, %v4747, 0.0
        %v4860 = vsel %vm4797, %v4748, 0.0
        %v4861 = vsel %vm4797, %v4749, 0.0
        %s4862 = scalar_lea.vmem [#allocation7], 6
        %v4863 = vld [vmem:[%s4862] ss:$8 sm:$0xf]
        %4864 = vrot.lane.b32.xlu0 %v4798, 32
        %v4865 = vpop.permute.xlu0 %4864
        %4866 = vrot.lane.b32.xlu0 %v4802, 32
        %v4867 = vpop.permute.xlu0 %4866
        %4868 = vrot.lane.b32.xlu0 %v4806, 32
        %v4869 = vpop.permute.xlu0 %4868
        %4870 = vrot.lane.b32.xlu0 %v4810, 32
        %v4871 = vpop.permute.xlu0 %4870
        %4872 = vrot.lane.b32.xlu0 %v4814, 32
        %v4873 = vpop.permute.xlu0 %4872
        %4874 = vrot.lane.b32.xlu0 %v4818, 32
        %v4875 = vpop.permute.xlu0 %4874
        %4876 = vrot.lane.b32.xlu0 %v4822, 32
        %v4877 = vpop.permute.xlu0 %4876
        %4878 = vrot.lane.b32.xlu0 %v4826, 32
        %v4879 = vpop.permute.xlu0 %4878
        %4880 = vrot.lane.b32.xlu0 %v4830, 32
        %v4881 = vpop.permute.xlu0 %4880
        %4882 = vrot.lane.b32.xlu0 %v4834, 32
        %v4883 = vpop.permute.xlu0 %4882
        %4884 = vrot.lane.b32.xlu0 %v4838, 32
        %v4885 = vpop.permute.xlu0 %4884
        %4886 = vrot.lane.b32.xlu0 %v4842, 32
        %v4887 = vpop.permute.xlu0 %4886
        %4888 = vrot.lane.b32.xlu0 %v4846, 32
        %v4889 = vpop.permute.xlu0 %4888
        %4890 = vrot.lane.b32.xlu0 %v4850, 32
        %v4891 = vpop.permute.xlu0 %4890
        %4892 = vrot.lane.b32.xlu0 %v4854, 32
        %v4893 = vpop.permute.xlu0 %4892
        %4894 = vrot.lane.b32.xlu0 %v4858, 32
        %v4895 = vpop.permute.xlu0 %4894
        %4896 = vrot.lane.b32.xlu0 %v4799, 32
        %v4897 = vpop.permute.xlu0 %4896
        %4898 = vrot.lane.b32.xlu0 %v4803, 32
        %v4899 = vpop.permute.xlu0 %4898
        %4900 = vrot.lane.b32.xlu0 %v4807, 32
        %v4901 = vpop.permute.xlu0 %4900
        %4902 = vrot.lane.b32.xlu0 %v4811, 32
        %v4903 = vpop.permute.xlu0 %4902
        %4904 = vrot.lane.b32.xlu0 %v4815, 32
        %v4905 = vpop.permute.xlu0 %4904
        %4906 = vrot.lane.b32.xlu0 %v4819, 32
        %v4907 = vpop.permute.xlu0 %4906
        %4908 = vrot.lane.b32.xlu0 %v4823, 32
        %v4909 = vpop.permute.xlu0 %4908
        %4910 = vrot.lane.b32.xlu0 %v4827, 32
        %v4911 = vpop.permute.xlu0 %4910
        %4912 = vrot.lane.b32.xlu0 %v4831, 32
        %v4913 = vpop.permute.xlu0 %4912
        %4914 = vrot.lane.b32.xlu0 %v4835, 32
        %v4915 = vpop.permute.xlu0 %4914
        %4916 = vrot.lane.b32.xlu0 %v4839, 32
        %v4917 = vpop.permute.xlu0 %4916
        %4918 = vrot.lane.b32.xlu0 %v4843, 32
        %v4919 = vpop.permute.xlu0 %4918
        %4920 = vrot.lane.b32.xlu0 %v4847, 32
        %v4921 = vpop.permute.xlu0 %4920
        %4922 = vrot.lane.b32.xlu0 %v4851, 32
        %v4923 = vpop.permute.xlu0 %4922
        %4924 = vrot.lane.b32.xlu0 %v4855, 32
        %v4925 = vpop.permute.xlu0 %4924
        %4926 = vrot.lane.b32.xlu0 %v4859, 32
        %v4927 = vpop.permute.xlu0 %4926
        %4928 = vrot.lane.b32.xlu0 %v4800, 32
        %v4929 = vpop.permute.xlu0 %4928
        %4930 = vrot.lane.b32.xlu0 %v4804, 32
        %v4931 = vpop.permute.xlu0 %4930
        %4932 = vrot.lane.b32.xlu0 %v4808, 32
        %v4933 = vpop.permute.xlu0 %4932
        %4934 = vrot.lane.b32.xlu0 %v4812, 32
        %v4935 = vpop.permute.xlu0 %4934
        %4936 = vrot.lane.b32.xlu0 %v4816, 32
        %v4937 = vpop.permute.xlu0 %4936
        %4938 = vrot.lane.b32.xlu0 %v4820, 32
        %v4939 = vpop.permute.xlu0 %4938
        %4940 = vrot.lane.b32.xlu0 %v4824, 32
        %v4941 = vpop.permute.xlu0 %4940
        %4942 = vrot.lane.b32.xlu0 %v4828, 32
        %v4943 = vpop.permute.xlu0 %4942
        %4944 = vrot.lane.b32.xlu0 %v4832, 32
        %v4945 = vpop.permute.xlu0 %4944
        %4946 = vrot.lane.b32.xlu0 %v4836, 32
        %v4947 = vpop.permute.xlu0 %4946
        %4948 = vrot.lane.b32.xlu0 %v4840, 32
        %v4949 = vpop.permute.xlu0 %4948
        %4950 = vrot.lane.b32.xlu0 %v4844, 32
        %v4951 = vpop.permute.xlu0 %4950
        %4952 = vrot.lane.b32.xlu0 %v4848, 32
        %v4953 = vpop.permute.xlu0 %4952
        %4954 = vrot.lane.b32.xlu0 %v4852, 32
        %v4955 = vpop.permute.xlu0 %4954
        %4956 = vrot.lane.b32.xlu0 %v4856, 32
        %v4957 = vpop.permute.xlu0 %4956
        %4958 = vrot.lane.b32.xlu0 %v4860, 32
        %v4959 = vpop.permute.xlu0 %4958
        %4960 = vrot.lane.b32.xlu0 %v4801, 32
        %v4961 = vpop.permute.xlu0 %4960
        %4962 = vrot.lane.b32.xlu0 %v4805, 32
        %v4963 = vpop.permute.xlu0 %4962
        %4964 = vrot.lane.b32.xlu0 %v4809, 32
        %v4965 = vpop.permute.xlu0 %4964
        %4966 = vrot.lane.b32.xlu0 %v4813, 32
        %v4967 = vpop.permute.xlu0 %4966
        %4968 = vrot.lane.b32.xlu0 %v4817, 32
        %v4969 = vpop.permute.xlu0 %4968
        %4970 = vrot.lane.b32.xlu0 %v4821, 32
        %v4971 = vpop.permute.xlu0 %4970
        %4972 = vrot.lane.b32.xlu0 %v4825, 32
        %v4973 = vpop.permute.xlu0 %4972
        %4974 = vrot.lane.b32.xlu0 %v4829, 32
        %v4975 = vpop.permute.xlu0 %4974
        %4976 = vrot.lane.b32.xlu0 %v4833, 32
        %v4977 = vpop.permute.xlu0 %4976
        %4978 = vrot.lane.b32.xlu0 %v4837, 32
        %v4979 = vpop.permute.xlu0 %4978
        %4980 = vrot.lane.b32.xlu0 %v4841, 32
        %v4981 = vpop.permute.xlu0 %4980
        %4982 = vrot.lane.b32.xlu0 %v4845, 32
        %v4983 = vpop.permute.xlu0 %4982
        %4984 = vrot.lane.b32.xlu0 %v4849, 32
        %v4985 = vpop.permute.xlu0 %4984
        %4986 = vrot.lane.b32.xlu0 %v4853, 32
        %v4987 = vpop.permute.xlu0 %4986
        %4988 = vrot.lane.b32.xlu0 %v4857, 32
        %v4989 = vpop.permute.xlu0 %4988
        %4990 = vrot.lane.b32.xlu0 %v4861, 32
        %v4991 = vpop.permute.xlu0 %4990
        %v4992 = vsel %vm2859, %v4929, %v4961
        %v4993 = vsel %vm2859, %v4931, %v4963
        %v4994 = vsel %vm2859, %v4933, %v4965
        %v4995 = vsel %vm2859, %v4935, %v4967
        %v4996 = vsel %vm2859, %v4937, %v4969
        %v4997 = vsel %vm2859, %v4939, %v4971
        %v4998 = vsel %vm2859, %v4941, %v4973
        %v4999 = vsel %vm2859, %v4943, %v4975
        %v5000 = vsel %vm2859, %v4945, %v4977
        %v5001 = vsel %vm2859, %v4947, %v4979
        %v5002 = vsel %vm2859, %v4949, %v4981
        %v5003 = vsel %vm2859, %v4951, %v4983
        %v5004 = vsel %vm2859, %v4953, %v4985
        %v5005 = vsel %vm2859, %v4955, %v4987
        %v5006 = vsel %vm2859, %v4957, %v4989
        %v5007 = vsel %vm2859, %v4959, %v4991
        %v5008 = vsel %vm2859, %v4897, %v4929
        %v5009 = vsel %vm2859, %v4899, %v4931
        %v5010 = vsel %vm2859, %v4901, %v4933
        %v5011 = vsel %vm2859, %v4903, %v4935
        %v5012 = vsel %vm2859, %v4905, %v4937
        %v5013 = vsel %vm2859, %v4907, %v4939
        %v5014 = vsel %vm2859, %v4909, %v4941
        %v5015 = vsel %vm2859, %v4911, %v4943
        %v5016 = vsel %vm2859, %v4913, %v4945
        %v5017 = vsel %vm2859, %v4915, %v4947
        %v5018 = vsel %vm2859, %v4917, %v4949
        %v5019 = vsel %vm2859, %v4919, %v4951
        %v5020 = vsel %vm2859, %v4921, %v4953
        %v5021 = vsel %vm2859, %v4923, %v4955
        %v5022 = vsel %vm2859, %v4925, %v4957
        %v5023 = vsel %vm2859, %v4927, %v4959
        %v5024 = vsel %vm2859, %v4865, %v4897
        %v5025 = vsel %vm2859, %v4867, %v4899
        %v5026 = vsel %vm2859, %v4869, %v4901
        %v5027 = vsel %vm2859, %v4871, %v4903
        %v5028 = vsel %vm2859, %v4873, %v4905
        %v5029 = vsel %vm2859, %v4875, %v4907
        %v5030 = vsel %vm2859, %v4877, %v4909
        %v5031 = vsel %vm2859, %v4879, %v4911
        %v5032 = vsel %vm2859, %v4881, %v4913
        %v5033 = vsel %vm2859, %v4883, %v4915
        %v5034 = vsel %vm2859, %v4885, %v4917
        %v5035 = vsel %vm2859, %v4887, %v4919
        %v5036 = vsel %vm2859, %v4889, %v4921
        %v5037 = vsel %vm2859, %v4891, %v4923
        %v5038 = vsel %vm2859, %v4893, %v4925
        %v5039 = vsel %vm2859, %v4895, %v4927
        %v5040 = vsel %vm2859, %v4961, %v4865
        %v5041 = vsel %vm2859, %v4963, %v4867
        %v5042 = vsel %vm2859, %v4965, %v4869
        %v5043 = vsel %vm2859, %v4967, %v4871
        %v5044 = vsel %vm2859, %v4969, %v4873
        %v5045 = vsel %vm2859, %v4971, %v4875
        %v5046 = vsel %vm2859, %v4973, %v4877
        %v5047 = vsel %vm2859, %v4975, %v4879
        %v5048 = vsel %vm2859, %v4977, %v4881
        %v5049 = vsel %vm2859, %v4979, %v4883
        %v5050 = vsel %vm2859, %v4981, %v4885
        %v5051 = vsel %vm2859, %v4983, %v4887
        %v5052 = vsel %vm2859, %v4985, %v4889
        %v5053 = vsel %vm2859, %v4987, %v4891
        %v5054 = vsel %vm2859, %v4989, %v4893
        %v5055 = vsel %vm2859, %v4991, %v4895
        %v5056 = vsel %vm2932, %v5040, 0.0
        %v5057 = vsel %vm2933, %v5024, 0.0
        %v5058 = vsel %vm2934, %v5008, 0.0
        %v5059 = vsel %vm2935, %v4992, 0.0
        %v5060 = vsel %vm2932, %v5041, 0.0
        %v5061 = vsel %vm2933, %v5025, 0.0
        %v5062 = vsel %vm2934, %v5009, 0.0
        %v5063 = vsel %vm2935, %v4993, 0.0
        %v5064 = vsel %vm2932, %v5042, 0.0
        %v5065 = vsel %vm2933, %v5026, 0.0
        %v5066 = vsel %vm2934, %v5010, 0.0
        %v5067 = vsel %vm2935, %v4994, 0.0
        %v5068 = vsel %vm2932, %v5043, 0.0
        %v5069 = vsel %vm2933, %v5027, 0.0
        %v5070 = vsel %vm2934, %v5011, 0.0
        %v5071 = vsel %vm2935, %v4995, 0.0
        %v5072 = vsel %vm2932, %v5044, 0.0
        %v5073 = vsel %vm2933, %v5028, 0.0
        %v5074 = vsel %vm2934, %v5012, 0.0
        %v5075 = vsel %vm2935, %v4996, 0.0
        %v5076 = vsel %vm2932, %v5045, 0.0
        %v5077 = vsel %vm2933, %v5029, 0.0
        %v5078 = vsel %vm2934, %v5013, 0.0
        %v5079 = vsel %vm2935, %v4997, 0.0
        %v5080 = vsel %vm2932, %v5046, 0.0
        %v5081 = vsel %vm2933, %v5030, 0.0
        %v5082 = vsel %vm2934, %v5014, 0.0
        %v5083 = vsel %vm2935, %v4998, 0.0
        %v5084 = vsel %vm2932, %v5047, 0.0
        %v5085 = vsel %vm2933, %v5031, 0.0
        %v5086 = vsel %vm2934, %v5015, 0.0
        %v5087 = vsel %vm2935, %v4999, 0.0
        %v5088 = vsel %vm2932, %v5048, 0.0
        %v5089 = vsel %vm2933, %v5032, 0.0
        %v5090 = vsel %vm2934, %v5016, 0.0
        %v5091 = vsel %vm2935, %v5000, 0.0
        %v5092 = vsel %vm2932, %v5049, 0.0
        %v5093 = vsel %vm2933, %v5033, 0.0
        %v5094 = vsel %vm2934, %v5017, 0.0
        %v5095 = vsel %vm2935, %v5001, 0.0
        %v5096 = vsel %vm2932, %v5050, 0.0
        %v5097 = vsel %vm2933, %v5034, 0.0
        %v5098 = vsel %vm2934, %v5018, 0.0
        %v5099 = vsel %vm2935, %v5002, 0.0
        %v5100 = vsel %vm2932, %v5051, 0.0
        %v5101 = vsel %vm2933, %v5035, 0.0
        %v5102 = vsel %vm2934, %v5019, 0.0
        %v5103 = vsel %vm2935, %v5003, 0.0
        %v5104 = vsel %vm2932, %v5052, 0.0
        %v5105 = vsel %vm2933, %v5036, 0.0
        %v5106 = vsel %vm2934, %v5020, 0.0
        %v5107 = vsel %vm2935, %v5004, 0.0
        %v5108 = vsel %vm2932, %v5053, 0.0
        %v5109 = vsel %vm2933, %v5037, 0.0
        %v5110 = vsel %vm2934, %v5021, 0.0
        %v5111 = vsel %vm2935, %v5005, 0.0
        %v5112 = vsel %vm2932, %v5054, 0.0
        %v5113 = vsel %vm2933, %v5038, 0.0
        %v5114 = vsel %vm2934, %v5022, 0.0
        %v5115 = vsel %vm2935, %v5006, 0.0
        %v5116 = vsel %vm2932, %v5055, 0.0
        %v5117 = vsel %vm2933, %v5039, 0.0
        %v5118 = vsel %vm2934, %v5023, 0.0
        %v5119 = vsel %vm2935, %v5007, 0.0
        %v5121 = vlaneseq
        %v5122 = vshrl.u32 %v5121, 7
        %v5123 = vsub.s32 0, %v5122
        %v5124 = vrot.slane %v4863, %v5123
        %v5125 = vlaneseq
        %v5126 = vshrl.u32 %v5125, 7
        %v5127 = vsub.s32 1, %v5126
        %v5128 = vrot.slane %v4863, %v5127
        %v5129 = vlaneseq
        %v5130 = vshrl.u32 %v5129, 7
        %v5131 = vsub.s32 2, %v5130
        %v5132 = vrot.slane %v4863, %v5131
        %v5133 = vlaneseq
        %v5134 = vshrl.u32 %v5133, 7
        %v5135 = vsub.s32 3, %v5134
        %v5136 = vrot.slane %v4863, %v5135
        %v5141 = vmul.f32 %v5124, %v5056
        %v5142 = vmul.f32 %v5128, %v5057
        %v5143 = vmul.f32 %v5132, %v5058
        %v5144 = vmul.f32 %v5136, %v5059
        %v5145 = vmul.f32 %v5124, %v5060
        %v5146 = vmul.f32 %v5128, %v5061
        %v5147 = vmul.f32 %v5132, %v5062
        %v5148 = vmul.f32 %v5136, %v5063
        %v5149 = vmul.f32 %v5124, %v5064
        %v5150 = vmul.f32 %v5128, %v5065
        %v5151 = vmul.f32 %v5132, %v5066
        %v5152 = vmul.f32 %v5136, %v5067
        %v5153 = vmul.f32 %v5124, %v5068
        %v5154 = vmul.f32 %v5128, %v5069
        %v5155 = vmul.f32 %v5132, %v5070
        %v5156 = vmul.f32 %v5136, %v5071
        %v5157 = vmul.f32 %v5124, %v5072
        %v5158 = vmul.f32 %v5128, %v5073
        %v5159 = vmul.f32 %v5132, %v5074
        %v5160 = vmul.f32 %v5136, %v5075
        %v5161 = vmul.f32 %v5124, %v5076
        %v5162 = vmul.f32 %v5128, %v5077
        %v5163 = vmul.f32 %v5132, %v5078
        %v5164 = vmul.f32 %v5136, %v5079
        %v5165 = vmul.f32 %v5124, %v5080
        %v5166 = vmul.f32 %v5128, %v5081
        %v5167 = vmul.f32 %v5132, %v5082
        %v5168 = vmul.f32 %v5136, %v5083
        %v5169 = vmul.f32 %v5124, %v5084
        %v5170 = vmul.f32 %v5128, %v5085
        %v5171 = vmul.f32 %v5132, %v5086
        %v5172 = vmul.f32 %v5136, %v5087
        %v5173 = vmul.f32 %v5124, %v5088
        %v5174 = vmul.f32 %v5128, %v5089
        %v5175 = vmul.f32 %v5132, %v5090
        %v5176 = vmul.f32 %v5136, %v5091
        %v5177 = vmul.f32 %v5124, %v5092
        %v5178 = vmul.f32 %v5128, %v5093
        %v5179 = vmul.f32 %v5132, %v5094
        %v5180 = vmul.f32 %v5136, %v5095
        %v5181 = vmul.f32 %v5124, %v5096
        %v5182 = vmul.f32 %v5128, %v5097
        %v5183 = vmul.f32 %v5132, %v5098
        %v5184 = vmul.f32 %v5136, %v5099
        %v5185 = vmul.f32 %v5124, %v5100
        %v5186 = vmul.f32 %v5128, %v5101
        %v5187 = vmul.f32 %v5132, %v5102
        %v5188 = vmul.f32 %v5136, %v5103
        %v5189 = vmul.f32 %v5124, %v5104
        %v5190 = vmul.f32 %v5128, %v5105
        %v5191 = vmul.f32 %v5132, %v5106
        %v5192 = vmul.f32 %v5136, %v5107
        %v5193 = vmul.f32 %v5124, %v5108
        %v5194 = vmul.f32 %v5128, %v5109
        %v5195 = vmul.f32 %v5132, %v5110
        %v5196 = vmul.f32 %v5136, %v5111
        %v5197 = vmul.f32 %v5124, %v5112
        %v5198 = vmul.f32 %v5128, %v5113
        %v5199 = vmul.f32 %v5132, %v5114
        %v5200 = vmul.f32 %v5136, %v5115
        %v5201 = vmul.f32 %v5124, %v5116
        %v5202 = vmul.f32 %v5128, %v5117
        %v5203 = vmul.f32 %v5132, %v5118
        %v5204 = vmul.f32 %v5136, %v5119
        %v5205 = vadd.f32 %v4557, %v5141
        %v5206 = vadd.f32 %v4558, %v5142
        %v5207 = vadd.f32 %v4559, %v5143
        %v5208 = vadd.f32 %v4560, %v5144
        %v5209 = vadd.f32 %v4561, %v5145
        %v5210 = vadd.f32 %v4562, %v5146
        %v5211 = vadd.f32 %v4563, %v5147
        %v5212 = vadd.f32 %v4564, %v5148
        %v5213 = vadd.f32 %v4565, %v5149
        %v5214 = vadd.f32 %v4566, %v5150
        %v5215 = vadd.f32 %v4567, %v5151
        %v5216 = vadd.f32 %v4568, %v5152
        %v5217 = vadd.f32 %v4569, %v5153
        %v5218 = vadd.f32 %v4570, %v5154
        %v5219 = vadd.f32 %v4571, %v5155
        %v5220 = vadd.f32 %v4572, %v5156
        %v5221 = vadd.f32 %v4573, %v5157
        %v5222 = vadd.f32 %v4574, %v5158
        %v5223 = vadd.f32 %v4575, %v5159
        %v5224 = vadd.f32 %v4576, %v5160
        %v5225 = vadd.f32 %v4577, %v5161
        %v5226 = vadd.f32 %v4578, %v5162
        %v5227 = vadd.f32 %v4579, %v5163
        %v5228 = vadd.f32 %v4580, %v5164
        %v5229 = vadd.f32 %v4581, %v5165
        %v5230 = vadd.f32 %v4582, %v5166
        %v5231 = vadd.f32 %v4583, %v5167
        %v5232 = vadd.f32 %v4584, %v5168
        %v5233 = vadd.f32 %v4585, %v5169
        %v5234 = vadd.f32 %v4586, %v5170
        %v5235 = vadd.f32 %v4587, %v5171
        %v5236 = vadd.f32 %v4588, %v5172
        %v5237 = vadd.f32 %v4589, %v5173
        %v5238 = vadd.f32 %v4590, %v5174
        %v5239 = vadd.f32 %v4591, %v5175
        %v5240 = vadd.f32 %v4592, %v5176
        %v5241 = vadd.f32 %v4593, %v5177
        %v5242 = vadd.f32 %v4594, %v5178
        %v5243 = vadd.f32 %v4595, %v5179
        %v5244 = vadd.f32 %v4596, %v5180
        %v5245 = vadd.f32 %v4597, %v5181
        %v5246 = vadd.f32 %v4598, %v5182
        %v5247 = vadd.f32 %v4599, %v5183
        %v5248 = vadd.f32 %v4600, %v5184
        %v5249 = vadd.f32 %v4601, %v5185
        %v5250 = vadd.f32 %v4602, %v5186
        %v5251 = vadd.f32 %v4603, %v5187
        %v5252 = vadd.f32 %v4604, %v5188
        %v5253 = vadd.f32 %v4605, %v5189
        %v5254 = vadd.f32 %v4606, %v5190
        %v5255 = vadd.f32 %v4607, %v5191
        %v5256 = vadd.f32 %v4608, %v5192
        %v5257 = vadd.f32 %v4609, %v5193
        %v5258 = vadd.f32 %v4610, %v5194
        %v5259 = vadd.f32 %v4611, %v5195
        %v5260 = vadd.f32 %v4612, %v5196
        %v5261 = vadd.f32 %v4613, %v5197
        %v5262 = vadd.f32 %v4614, %v5198
        %v5263 = vadd.f32 %v4615, %v5199
        %v5264 = vadd.f32 %v4616, %v5200
        %v5265 = vadd.f32 %v4617, %v5201
        %v5266 = vadd.f32 %v4618, %v5202
        %v5267 = vadd.f32 %v4619, %v5203
        %v5268 = vadd.f32 %v4620, %v5204
        %s5269 = scalar_lea.vmem [#allocation7], 7
        %v5270 = vld [vmem:[%s5269] ss:$8 sm:$0xf]
        %v5272 = vlaneseq
        %v5273 = vshrl.u32 %v5272, 7
        %v5274 = vsub.s32 0, %v5273
        %v5275 = vrot.slane %v5270, %v5274
        %v5276 = vlaneseq
        %v5277 = vshrl.u32 %v5276, 7
        %v5278 = vsub.s32 1, %v5277
        %v5279 = vrot.slane %v5270, %v5278
        %v5280 = vlaneseq
        %v5281 = vshrl.u32 %v5280, 7
        %v5282 = vsub.s32 2, %v5281
        %v5283 = vrot.slane %v5270, %v5282
        %v5284 = vlaneseq
        %v5285 = vshrl.u32 %v5284, 7
        %v5286 = vsub.s32 3, %v5285
        %v5287 = vrot.slane %v5270, %v5286
        %v5292 = vmul.f32 %v5275, %v4798
        %v5293 = vmul.f32 %v5279, %v4799
        %v5294 = vmul.f32 %v5283, %v4800
        %v5295 = vmul.f32 %v5287, %v4801
        %v5296 = vmul.f32 %v5275, %v4802
        %v5297 = vmul.f32 %v5279, %v4803
        %v5298 = vmul.f32 %v5283, %v4804
        %v5299 = vmul.f32 %v5287, %v4805
        %v5300 = vmul.f32 %v5275, %v4806
        %v5301 = vmul.f32 %v5279, %v4807
        %v5302 = vmul.f32 %v5283, %v4808
        %v5303 = vmul.f32 %v5287, %v4809
        %v5304 = vmul.f32 %v5275, %v4810
        %v5305 = vmul.f32 %v5279, %v4811
        %v5306 = vmul.f32 %v5283, %v4812
        %v5307 = vmul.f32 %v5287, %v4813
        %v5308 = vmul.f32 %v5275, %v4814
        %v5309 = vmul.f32 %v5279, %v4815
        %v5310 = vmul.f32 %v5283, %v4816
        %v5311 = vmul.f32 %v5287, %v4817
        %v5312 = vmul.f32 %v5275, %v4818
        %v5313 = vmul.f32 %v5279, %v4819
        %v5314 = vmul.f32 %v5283, %v4820
        %v5315 = vmul.f32 %v5287, %v4821
        %v5316 = vmul.f32 %v5275, %v4822
        %v5317 = vmul.f32 %v5279, %v4823
        %v5318 = vmul.f32 %v5283, %v4824
        %v5319 = vmul.f32 %v5287, %v4825
        %v5320 = vmul.f32 %v5275, %v4826
        %v5321 = vmul.f32 %v5279, %v4827
        %v5322 = vmul.f32 %v5283, %v4828
        %v5323 = vmul.f32 %v5287, %v4829
        %v5324 = vmul.f32 %v5275, %v4830
        %v5325 = vmul.f32 %v5279, %v4831
        %v5326 = vmul.f32 %v5283, %v4832
        %v5327 = vmul.f32 %v5287, %v4833
        %v5328 = vmul.f32 %v5275, %v4834
        %v5329 = vmul.f32 %v5279, %v4835
        %v5330 = vmul.f32 %v5283, %v4836
        %v5331 = vmul.f32 %v5287, %v4837
        %v5332 = vmul.f32 %v5275, %v4838
        %v5333 = vmul.f32 %v5279, %v4839
        %v5334 = vmul.f32 %v5283, %v4840
        %v5335 = vmul.f32 %v5287, %v4841
        %v5336 = vmul.f32 %v5275, %v4842
        %v5337 = vmul.f32 %v5279, %v4843
        %v5338 = vmul.f32 %v5283, %v4844
        %v5339 = vmul.f32 %v5287, %v4845
        %v5340 = vmul.f32 %v5275, %v4846
        %v5341 = vmul.f32 %v5279, %v4847
        %v5342 = vmul.f32 %v5283, %v4848
        %v5343 = vmul.f32 %v5287, %v4849
        %v5344 = vmul.f32 %v5275, %v4850
        %v5345 = vmul.f32 %v5279, %v4851
        %v5346 = vmul.f32 %v5283, %v4852
        %v5347 = vmul.f32 %v5287, %v4853
        %v5348 = vmul.f32 %v5275, %v4854
        %v5349 = vmul.f32 %v5279, %v4855
        %v5350 = vmul.f32 %v5283, %v4856
        %v5351 = vmul.f32 %v5287, %v4857
        %v5352 = vmul.f32 %v5275, %v4858
        %v5353 = vmul.f32 %v5279, %v4859
        %v5354 = vmul.f32 %v5283, %v4860
        %v5355 = vmul.f32 %v5287, %v4861
        %v5356 = vadd.f32 %v5205, %v5292
        %v5357 = vadd.f32 %v5206, %v5293
        %v5358 = vadd.f32 %v5207, %v5294
        %v5359 = vadd.f32 %v5208, %v5295
        %v5360 = vadd.f32 %v5209, %v5296
        %v5361 = vadd.f32 %v5210, %v5297
        %v5362 = vadd.f32 %v5211, %v5298
        %v5363 = vadd.f32 %v5212, %v5299
        %v5364 = vadd.f32 %v5213, %v5300
        %v5365 = vadd.f32 %v5214, %v5301
        %v5366 = vadd.f32 %v5215, %v5302
        %v5367 = vadd.f32 %v5216, %v5303
        %v5368 = vadd.f32 %v5217, %v5304
        %v5369 = vadd.f32 %v5218, %v5305
        %v5370 = vadd.f32 %v5219, %v5306
        %v5371 = vadd.f32 %v5220, %v5307
        %v5372 = vadd.f32 %v5221, %v5308
        %v5373 = vadd.f32 %v5222, %v5309
        %v5374 = vadd.f32 %v5223, %v5310
        %v5375 = vadd.f32 %v5224, %v5311
        %v5376 = vadd.f32 %v5225, %v5312
        %v5377 = vadd.f32 %v5226, %v5313
        %v5378 = vadd.f32 %v5227, %v5314
        %v5379 = vadd.f32 %v5228, %v5315
        %v5380 = vadd.f32 %v5229, %v5316
        %v5381 = vadd.f32 %v5230, %v5317
        %v5382 = vadd.f32 %v5231, %v5318
        %v5383 = vadd.f32 %v5232, %v5319
        %v5384 = vadd.f32 %v5233, %v5320
        %v5385 = vadd.f32 %v5234, %v5321
        %v5386 = vadd.f32 %v5235, %v5322
        %v5387 = vadd.f32 %v5236, %v5323
        %v5388 = vadd.f32 %v5237, %v5324
        %v5389 = vadd.f32 %v5238, %v5325
        %v5390 = vadd.f32 %v5239, %v5326
        %v5391 = vadd.f32 %v5240, %v5327
        %v5392 = vadd.f32 %v5241, %v5328
        %v5393 = vadd.f32 %v5242, %v5329
        %v5394 = vadd.f32 %v5243, %v5330
        %v5395 = vadd.f32 %v5244, %v5331
        %v5396 = vadd.f32 %v5245, %v5332
        %v5397 = vadd.f32 %v5246, %v5333
        %v5398 = vadd.f32 %v5247, %v5334
        %v5399 = vadd.f32 %v5248, %v5335
        %v5400 = vadd.f32 %v5249, %v5336
        %v5401 = vadd.f32 %v5250, %v5337
        %v5402 = vadd.f32 %v5251, %v5338
        %v5403 = vadd.f32 %v5252, %v5339
        %v5404 = vadd.f32 %v5253, %v5340
        %v5405 = vadd.f32 %v5254, %v5341
        %v5406 = vadd.f32 %v5255, %v5342
        %v5407 = vadd.f32 %v5256, %v5343
        %v5408 = vadd.f32 %v5257, %v5344
        %v5409 = vadd.f32 %v5258, %v5345
        %v5410 = vadd.f32 %v5259, %v5346
        %v5411 = vadd.f32 %v5260, %v5347
        %v5412 = vadd.f32 %v5261, %v5348
        %v5413 = vadd.f32 %v5262, %v5349
        %v5414 = vadd.f32 %v5263, %v5350
        %v5415 = vadd.f32 %v5264, %v5351
        %v5416 = vadd.f32 %v5265, %v5352
        %v5417 = vadd.f32 %v5266, %v5353
        %v5418 = vadd.f32 %v5267, %v5354
        %v5419 = vadd.f32 %v5268, %v5355
        %s5420 = scalar_lea.vmem [#allocation7], 32
        %v5421 = vld [vmem:[%s5420] ss:$8 sm:$0xf]
        %5422 = vrot.lane.b32.xlu0 %v4798, 96
        %v5423 = vpop.permute.xlu0 %5422
        %5424 = vrot.lane.b32.xlu0 %v4802, 96
        %v5425 = vpop.permute.xlu0 %5424
        %5426 = vrot.lane.b32.xlu0 %v4806, 96
        %v5427 = vpop.permute.xlu0 %5426
        %5428 = vrot.lane.b32.xlu0 %v4810, 96
        %v5429 = vpop.permute.xlu0 %5428
        %5430 = vrot.lane.b32.xlu0 %v4814, 96
        %v5431 = vpop.permute.xlu0 %5430
        %5432 = vrot.lane.b32.xlu0 %v4818, 96
        %v5433 = vpop.permute.xlu0 %5432
        %5434 = vrot.lane.b32.xlu0 %v4822, 96
        %v5435 = vpop.permute.xlu0 %5434
        %5436 = vrot.lane.b32.xlu0 %v4826, 96
        %v5437 = vpop.permute.xlu0 %5436
        %5438 = vrot.lane.b32.xlu0 %v4830, 96
        %v5439 = vpop.permute.xlu0 %5438
        %5440 = vrot.lane.b32.xlu0 %v4834, 96
        %v5441 = vpop.permute.xlu0 %5440
        %5442 = vrot.lane.b32.xlu0 %v4838, 96
        %v5443 = vpop.permute.xlu0 %5442
        %5444 = vrot.lane.b32.xlu0 %v4842, 96
        %v5445 = vpop.permute.xlu0 %5444
        %5446 = vrot.lane.b32.xlu0 %v4846, 96
        %v5447 = vpop.permute.xlu0 %5446
        %5448 = vrot.lane.b32.xlu0 %v4850, 96
        %v5449 = vpop.permute.xlu0 %5448
        %5450 = vrot.lane.b32.xlu0 %v4854, 96
        %v5451 = vpop.permute.xlu0 %5450
        %5452 = vrot.lane.b32.xlu0 %v4858, 96
        %v5453 = vpop.permute.xlu0 %5452
        %5454 = vrot.lane.b32.xlu0 %v4799, 96
        %v5455 = vpop.permute.xlu0 %5454
        %5456 = vrot.lane.b32.xlu0 %v4803, 96
        %v5457 = vpop.permute.xlu0 %5456
        %5458 = vrot.lane.b32.xlu0 %v4807, 96
        %v5459 = vpop.permute.xlu0 %5458
        %5460 = vrot.lane.b32.xlu0 %v4811, 96
        %v5461 = vpop.permute.xlu0 %5460
        %5462 = vrot.lane.b32.xlu0 %v4815, 96
        %v5463 = vpop.permute.xlu0 %5462
        %5464 = vrot.lane.b32.xlu0 %v4819, 96
        %v5465 = vpop.permute.xlu0 %5464
        %5466 = vrot.lane.b32.xlu0 %v4823, 96
        %v5467 = vpop.permute.xlu0 %5466
        %5468 = vrot.lane.b32.xlu0 %v4827, 96
        %v5469 = vpop.permute.xlu0 %5468
        %5470 = vrot.lane.b32.xlu0 %v4831, 96
        %v5471 = vpop.permute.xlu0 %5470
        %5472 = vrot.lane.b32.xlu0 %v4835, 96
        %v5473 = vpop.permute.xlu0 %5472
        %5474 = vrot.lane.b32.xlu0 %v4839, 96
        %v5475 = vpop.permute.xlu0 %5474
        %5476 = vrot.lane.b32.xlu0 %v4843, 96
        %v5477 = vpop.permute.xlu0 %5476
        %5478 = vrot.lane.b32.xlu0 %v4847, 96
        %v5479 = vpop.permute.xlu0 %5478
        %5480 = vrot.lane.b32.xlu0 %v4851, 96
        %v5481 = vpop.permute.xlu0 %5480
        %5482 = vrot.lane.b32.xlu0 %v4855, 96
        %v5483 = vpop.permute.xlu0 %5482
        %5484 = vrot.lane.b32.xlu0 %v4859, 96
        %v5485 = vpop.permute.xlu0 %5484
        %5486 = vrot.lane.b32.xlu0 %v4800, 96
        %v5487 = vpop.permute.xlu0 %5486
        %5488 = vrot.lane.b32.xlu0 %v4804, 96
        %v5489 = vpop.permute.xlu0 %5488
        %5490 = vrot.lane.b32.xlu0 %v4808, 96
        %v5491 = vpop.permute.xlu0 %5490
        %5492 = vrot.lane.b32.xlu0 %v4812, 96
        %v5493 = vpop.permute.xlu0 %5492
        %5494 = vrot.lane.b32.xlu0 %v4816, 96
        %v5495 = vpop.permute.xlu0 %5494
        %5496 = vrot.lane.b32.xlu0 %v4820, 96
        %v5497 = vpop.permute.xlu0 %5496
        %5498 = vrot.lane.b32.xlu0 %v4824, 96
        %v5499 = vpop.permute.xlu0 %5498
        %5500 = vrot.lane.b32.xlu0 %v4828, 96
        %v5501 = vpop.permute.xlu0 %5500
        %5502 = vrot.lane.b32.xlu0 %v4832, 96
        %v5503 = vpop.permute.xlu0 %5502
        %5504 = vrot.lane.b32.xlu0 %v4836, 96
        %v5505 = vpop.permute.xlu0 %5504
        %5506 = vrot.lane.b32.xlu0 %v4840, 96
        %v5507 = vpop.permute.xlu0 %5506
        %5508 = vrot.lane.b32.xlu0 %v4844, 96
        %v5509 = vpop.permute.xlu0 %5508
        %5510 = vrot.lane.b32.xlu0 %v4848, 96
        %v5511 = vpop.permute.xlu0 %5510
        %5512 = vrot.lane.b32.xlu0 %v4852, 96
        %v5513 = vpop.permute.xlu0 %5512
        %5514 = vrot.lane.b32.xlu0 %v4856, 96
        %v5515 = vpop.permute.xlu0 %5514
        %5516 = vrot.lane.b32.xlu0 %v4860, 96
        %v5517 = vpop.permute.xlu0 %5516
        %5518 = vrot.lane.b32.xlu0 %v4801, 96
        %v5519 = vpop.permute.xlu0 %5518
        %5520 = vrot.lane.b32.xlu0 %v4805, 96
        %v5521 = vpop.permute.xlu0 %5520
        %5522 = vrot.lane.b32.xlu0 %v4809, 96
        %v5523 = vpop.permute.xlu0 %5522
        %5524 = vrot.lane.b32.xlu0 %v4813, 96
        %v5525 = vpop.permute.xlu0 %5524
        %5526 = vrot.lane.b32.xlu0 %v4817, 96
        %v5527 = vpop.permute.xlu0 %5526
        %5528 = vrot.lane.b32.xlu0 %v4821, 96
        %v5529 = vpop.permute.xlu0 %5528
        %5530 = vrot.lane.b32.xlu0 %v4825, 96
        %v5531 = vpop.permute.xlu0 %5530
        %5532 = vrot.lane.b32.xlu0 %v4829, 96
        %v5533 = vpop.permute.xlu0 %5532
        %5534 = vrot.lane.b32.xlu0 %v4833, 96
        %v5535 = vpop.permute.xlu0 %5534
        %5536 = vrot.lane.b32.xlu0 %v4837, 96
        %v5537 = vpop.permute.xlu0 %5536
        %5538 = vrot.lane.b32.xlu0 %v4841, 96
        %v5539 = vpop.permute.xlu0 %5538
        %5540 = vrot.lane.b32.xlu0 %v4845, 96
        %v5541 = vpop.permute.xlu0 %5540
        %5542 = vrot.lane.b32.xlu0 %v4849, 96
        %v5543 = vpop.permute.xlu0 %5542
        %5544 = vrot.lane.b32.xlu0 %v4853, 96
        %v5545 = vpop.permute.xlu0 %5544
        %5546 = vrot.lane.b32.xlu0 %v4857, 96
        %v5547 = vpop.permute.xlu0 %5546
        %5548 = vrot.lane.b32.xlu0 %v4861, 96
        %v5549 = vpop.permute.xlu0 %5548
        %v5550 = vsel %vm3366, %v5487, %v5519
        %v5551 = vsel %vm3366, %v5489, %v5521
        %v5552 = vsel %vm3366, %v5491, %v5523
        %v5553 = vsel %vm3366, %v5493, %v5525
        %v5554 = vsel %vm3366, %v5495, %v5527
        %v5555 = vsel %vm3366, %v5497, %v5529
        %v5556 = vsel %vm3366, %v5499, %v5531
        %v5557 = vsel %vm3366, %v5501, %v5533
        %v5558 = vsel %vm3366, %v5503, %v5535
        %v5559 = vsel %vm3366, %v5505, %v5537
        %v5560 = vsel %vm3366, %v5507, %v5539
        %v5561 = vsel %vm3366, %v5509, %v5541
        %v5562 = vsel %vm3366, %v5511, %v5543
        %v5563 = vsel %vm3366, %v5513, %v5545
        %v5564 = vsel %vm3366, %v5515, %v5547
        %v5565 = vsel %vm3366, %v5517, %v5549
        %v5566 = vsel %vm3366, %v5455, %v5487
        %v5567 = vsel %vm3366, %v5457, %v5489
        %v5568 = vsel %vm3366, %v5459, %v5491
        %v5569 = vsel %vm3366, %v5461, %v5493
        %v5570 = vsel %vm3366, %v5463, %v5495
        %v5571 = vsel %vm3366, %v5465, %v5497
        %v5572 = vsel %vm3366, %v5467, %v5499
        %v5573 = vsel %vm3366, %v5469, %v5501
        %v5574 = vsel %vm3366, %v5471, %v5503
        %v5575 = vsel %vm3366, %v5473, %v5505
        %v5576 = vsel %vm3366, %v5475, %v5507
        %v5577 = vsel %vm3366, %v5477, %v5509
        %v5578 = vsel %vm3366, %v5479, %v5511
        %v5579 = vsel %vm3366, %v5481, %v5513
        %v5580 = vsel %vm3366, %v5483, %v5515
        %v5581 = vsel %vm3366, %v5485, %v5517
        %v5582 = vsel %vm3366, %v5423, %v5455
        %v5583 = vsel %vm3366, %v5425, %v5457
        %v5584 = vsel %vm3366, %v5427, %v5459
        %v5585 = vsel %vm3366, %v5429, %v5461
        %v5586 = vsel %vm3366, %v5431, %v5463
        %v5587 = vsel %vm3366, %v5433, %v5465
        %v5588 = vsel %vm3366, %v5435, %v5467
        %v5589 = vsel %vm3366, %v5437, %v5469
        %v5590 = vsel %vm3366, %v5439, %v5471
        %v5591 = vsel %vm3366, %v5441, %v5473
        %v5592 = vsel %vm3366, %v5443, %v5475
        %v5593 = vsel %vm3366, %v5445, %v5477
        %v5594 = vsel %vm3366, %v5447, %v5479
        %v5595 = vsel %vm3366, %v5449, %v5481
        %v5596 = vsel %vm3366, %v5451, %v5483
        %v5597 = vsel %vm3366, %v5453, %v5485
        %v5598 = vsel %vm3366, %v5519, %v5423
        %v5599 = vsel %vm3366, %v5521, %v5425
        %v5600 = vsel %vm3366, %v5523, %v5427
        %v5601 = vsel %vm3366, %v5525, %v5429
        %v5602 = vsel %vm3366, %v5527, %v5431
        %v5603 = vsel %vm3366, %v5529, %v5433
        %v5604 = vsel %vm3366, %v5531, %v5435
        %v5605 = vsel %vm3366, %v5533, %v5437
        %v5606 = vsel %vm3366, %v5535, %v5439
        %v5607 = vsel %vm3366, %v5537, %v5441
        %v5608 = vsel %vm3366, %v5539, %v5443
        %v5609 = vsel %vm3366, %v5541, %v5445
        %v5610 = vsel %vm3366, %v5543, %v5447
        %v5611 = vsel %vm3366, %v5545, %v5449
        %v5612 = vsel %vm3366, %v5547, %v5451
        %v5613 = vsel %vm3366, %v5549, %v5453
        %v5614 = vsel %vm3439, %v5582, 0.0
        %v5615 = vsel %vm3440, %v5566, 0.0
        %v5616 = vsel %vm3441, %v5550, 0.0
        %v5617 = vsel %vm3442, %v5598, 0.0
        %v5618 = vsel %vm3439, %v5583, 0.0
        %v5619 = vsel %vm3440, %v5567, 0.0
        %v5620 = vsel %vm3441, %v5551, 0.0
        %v5621 = vsel %vm3442, %v5599, 0.0
        %v5622 = vsel %vm3439, %v5584, 0.0
        %v5623 = vsel %vm3440, %v5568, 0.0
        %v5624 = vsel %vm3441, %v5552, 0.0
        %v5625 = vsel %vm3442, %v5600, 0.0
        %v5626 = vsel %vm3439, %v5585, 0.0
        %v5627 = vsel %vm3440, %v5569, 0.0
        %v5628 = vsel %vm3441, %v5553, 0.0
        %v5629 = vsel %vm3442, %v5601, 0.0
        %v5630 = vsel %vm3439, %v5586, 0.0
        %v5631 = vsel %vm3440, %v5570, 0.0
        %v5632 = vsel %vm3441, %v5554, 0.0
        %v5633 = vsel %vm3442, %v5602, 0.0
        %v5634 = vsel %vm3439, %v5587, 0.0
        %v5635 = vsel %vm3440, %v5571, 0.0
        %v5636 = vsel %vm3441, %v5555, 0.0
        %v5637 = vsel %vm3442, %v5603, 0.0
        %v5638 = vsel %vm3439, %v5588, 0.0
        %v5639 = vsel %vm3440, %v5572, 0.0
        %v5640 = vsel %vm3441, %v5556, 0.0
        %v5641 = vsel %vm3442, %v5604, 0.0
        %v5642 = vsel %vm3439, %v5589, 0.0
        %v5643 = vsel %vm3440, %v5573, 0.0
        %v5644 = vsel %vm3441, %v5557, 0.0
        %v5645 = vsel %vm3442, %v5605, 0.0
        %v5646 = vsel %vm3439, %v5590, 0.0
        %v5647 = vsel %vm3440, %v5574, 0.0
        %v5648 = vsel %vm3441, %v5558, 0.0
        %v5649 = vsel %vm3442, %v5606, 0.0
        %v5650 = vsel %vm3439, %v5591, 0.0
        %v5651 = vsel %vm3440, %v5575, 0.0
        %v5652 = vsel %vm3441, %v5559, 0.0
        %v5653 = vsel %vm3442, %v5607, 0.0
        %v5654 = vsel %vm3439, %v5592, 0.0
        %v5655 = vsel %vm3440, %v5576, 0.0
        %v5656 = vsel %vm3441, %v5560, 0.0
        %v5657 = vsel %vm3442, %v5608, 0.0
        %v5658 = vsel %vm3439, %v5593, 0.0
        %v5659 = vsel %vm3440, %v5577, 0.0
        %v5660 = vsel %vm3441, %v5561, 0.0
        %v5661 = vsel %vm3442, %v5609, 0.0
        %v5662 = vsel %vm3439, %v5594, 0.0
        %v5663 = vsel %vm3440, %v5578, 0.0
        %v5664 = vsel %vm3441, %v5562, 0.0
        %v5665 = vsel %vm3442, %v5610, 0.0
        %v5666 = vsel %vm3439, %v5595, 0.0
        %v5667 = vsel %vm3440, %v5579, 0.0
        %v5668 = vsel %vm3441, %v5563, 0.0
        %v5669 = vsel %vm3442, %v5611, 0.0
        %v5670 = vsel %vm3439, %v5596, 0.0
        %v5671 = vsel %vm3440, %v5580, 0.0
        %v5672 = vsel %vm3441, %v5564, 0.0
        %v5673 = vsel %vm3442, %v5612, 0.0
        %v5674 = vsel %vm3439, %v5597, 0.0
        %v5675 = vsel %vm3440, %v5581, 0.0
        %v5676 = vsel %vm3441, %v5565, 0.0
        %v5677 = vsel %vm3442, %v5613, 0.0
        %v5679 = vlaneseq
        %v5680 = vshrl.u32 %v5679, 7
        %v5681 = vsub.s32 0, %v5680
        %v5682 = vrot.slane %v5421, %v5681
        %v5683 = vlaneseq
        %v5684 = vshrl.u32 %v5683, 7
        %v5685 = vsub.s32 1, %v5684
        %v5686 = vrot.slane %v5421, %v5685
        %v5687 = vlaneseq
        %v5688 = vshrl.u32 %v5687, 7
        %v5689 = vsub.s32 2, %v5688
        %v5690 = vrot.slane %v5421, %v5689
        %v5691 = vlaneseq
        %v5692 = vshrl.u32 %v5691, 7
        %v5693 = vsub.s32 3, %v5692
        %v5694 = vrot.slane %v5421, %v5693
        %v5699 = vmul.f32 %v5682, %v5614
        %v5700 = vmul.f32 %v5686, %v5615
        %v5701 = vmul.f32 %v5690, %v5616
        %v5702 = vmul.f32 %v5694, %v5617
        %v5703 = vmul.f32 %v5682, %v5618
        %v5704 = vmul.f32 %v5686, %v5619
        %v5705 = vmul.f32 %v5690, %v5620
        %v5706 = vmul.f32 %v5694, %v5621
        %v5707 = vmul.f32 %v5682, %v5622
        %v5708 = vmul.f32 %v5686, %v5623
        %v5709 = vmul.f32 %v5690, %v5624
        %v5710 = vmul.f32 %v5694, %v5625
        %v5711 = vmul.f32 %v5682, %v5626
        %v5712 = vmul.f32 %v5686, %v5627
        %v5713 = vmul.f32 %v5690, %v5628
        %v5714 = vmul.f32 %v5694, %v5629
        %v5715 = vmul.f32 %v5682, %v5630
        %v5716 = vmul.f32 %v5686, %v5631
        %v5717 = vmul.f32 %v5690, %v5632
        %v5718 = vmul.f32 %v5694, %v5633
        %v5719 = vmul.f32 %v5682, %v5634
        %v5720 = vmul.f32 %v5686, %v5635
        %v5721 = vmul.f32 %v5690, %v5636
        %v5722 = vmul.f32 %v5694, %v5637
        %v5723 = vmul.f32 %v5682, %v5638
        %v5724 = vmul.f32 %v5686, %v5639
        %v5725 = vmul.f32 %v5690, %v5640
        %v5726 = vmul.f32 %v5694, %v5641
        %v5727 = vmul.f32 %v5682, %v5642
        %v5728 = vmul.f32 %v5686, %v5643
        %v5729 = vmul.f32 %v5690, %v5644
        %v5730 = vmul.f32 %v5694, %v5645
        %v5731 = vmul.f32 %v5682, %v5646
        %v5732 = vmul.f32 %v5686, %v5647
        %v5733 = vmul.f32 %v5690, %v5648
        %v5734 = vmul.f32 %v5694, %v5649
        %v5735 = vmul.f32 %v5682, %v5650
        %v5736 = vmul.f32 %v5686, %v5651
        %v5737 = vmul.f32 %v5690, %v5652
        %v5738 = vmul.f32 %v5694, %v5653
        %v5739 = vmul.f32 %v5682, %v5654
        %v5740 = vmul.f32 %v5686, %v5655
        %v5741 = vmul.f32 %v5690, %v5656
        %v5742 = vmul.f32 %v5694, %v5657
        %v5743 = vmul.f32 %v5682, %v5658
        %v5744 = vmul.f32 %v5686, %v5659
        %v5745 = vmul.f32 %v5690, %v5660
        %v5746 = vmul.f32 %v5694, %v5661
        %v5747 = vmul.f32 %v5682, %v5662
        %v5748 = vmul.f32 %v5686, %v5663
        %v5749 = vmul.f32 %v5690, %v5664
        %v5750 = vmul.f32 %v5694, %v5665
        %v5751 = vmul.f32 %v5682, %v5666
        %v5752 = vmul.f32 %v5686, %v5667
        %v5753 = vmul.f32 %v5690, %v5668
        %v5754 = vmul.f32 %v5694, %v5669
        %v5755 = vmul.f32 %v5682, %v5670
        %v5756 = vmul.f32 %v5686, %v5671
        %v5757 = vmul.f32 %v5690, %v5672
        %v5758 = vmul.f32 %v5694, %v5673
        %v5759 = vmul.f32 %v5682, %v5674
        %v5760 = vmul.f32 %v5686, %v5675
        %v5761 = vmul.f32 %v5690, %v5676
        %v5762 = vmul.f32 %v5694, %v5677
        %v5763 = vadd.f32 %v5356, %v5699
        %v5764 = vadd.f32 %v5357, %v5700
        %v5765 = vadd.f32 %v5358, %v5701
        %v5766 = vadd.f32 %v5359, %v5702
        %v5767 = vadd.f32 %v5360, %v5703
        %v5768 = vadd.f32 %v5361, %v5704
        %v5769 = vadd.f32 %v5362, %v5705
        %v5770 = vadd.f32 %v5363, %v5706
        %v5771 = vadd.f32 %v5364, %v5707
        %v5772 = vadd.f32 %v5365, %v5708
        %v5773 = vadd.f32 %v5366, %v5709
        %v5774 = vadd.f32 %v5367, %v5710
        %v5775 = vadd.f32 %v5368, %v5711
        %v5776 = vadd.f32 %v5369, %v5712
        %v5777 = vadd.f32 %v5370, %v5713
        %v5778 = vadd.f32 %v5371, %v5714
        %v5779 = vadd.f32 %v5372, %v5715
        %v5780 = vadd.f32 %v5373, %v5716
        %v5781 = vadd.f32 %v5374, %v5717
        %v5782 = vadd.f32 %v5375, %v5718
        %v5783 = vadd.f32 %v5376, %v5719
        %v5784 = vadd.f32 %v5377, %v5720
        %v5785 = vadd.f32 %v5378, %v5721
        %v5786 = vadd.f32 %v5379, %v5722
        %v5787 = vadd.f32 %v5380, %v5723
        %v5788 = vadd.f32 %v5381, %v5724
        %v5789 = vadd.f32 %v5382, %v5725
        %v5790 = vadd.f32 %v5383, %v5726
        %v5791 = vadd.f32 %v5384, %v5727
        %v5792 = vadd.f32 %v5385, %v5728
        %v5793 = vadd.f32 %v5386, %v5729
        %v5794 = vadd.f32 %v5387, %v5730
        %v5795 = vadd.f32 %v5388, %v5731
        %v5796 = vadd.f32 %v5389, %v5732
        %v5797 = vadd.f32 %v5390, %v5733
        %v5798 = vadd.f32 %v5391, %v5734
        %v5799 = vadd.f32 %v5392, %v5735
        %v5800 = vadd.f32 %v5393, %v5736
        %v5801 = vadd.f32 %v5394, %v5737
        %v5802 = vadd.f32 %v5395, %v5738
        %v5803 = vadd.f32 %v5396, %v5739
        %v5804 = vadd.f32 %v5397, %v5740
        %v5805 = vadd.f32 %v5398, %v5741
        %v5806 = vadd.f32 %v5399, %v5742
        %v5807 = vadd.f32 %v5400, %v5743
        %v5808 = vadd.f32 %v5401, %v5744
        %v5809 = vadd.f32 %v5402, %v5745
        %v5810 = vadd.f32 %v5403, %v5746
        %v5811 = vadd.f32 %v5404, %v5747
        %v5812 = vadd.f32 %v5405, %v5748
        %v5813 = vadd.f32 %v5406, %v5749
        %v5814 = vadd.f32 %v5407, %v5750
        %v5815 = vadd.f32 %v5408, %v5751
        %v5816 = vadd.f32 %v5409, %v5752
        %v5817 = vadd.f32 %v5410, %v5753
        %v5818 = vadd.f32 %v5411, %v5754
        %v5819 = vadd.f32 %v5412, %v5755
        %v5820 = vadd.f32 %v5413, %v5756
        %v5821 = vadd.f32 %v5414, %v5757
        %v5822 = vadd.f32 %v5415, %v5758
        %v5823 = vadd.f32 %v5416, %v5759
        %v5824 = vadd.f32 %v5417, %v5760
        %v5825 = vadd.f32 %v5418, %v5761
        %v5826 = vadd.f32 %v5419, %v5762
        %v5827 = vld [vmem:[%s6] sm:$0xf]
        %v5829 = vlaneseq
        %v5830 = vshrl.u32 %v5829, 7
        %v5831 = vsub.s32 0, %v5830
        %v5832 = vrot.slane %v5827, %v5831
        %v5833 = vlaneseq
        %v5834 = vshrl.u32 %v5833, 7
        %v5835 = vsub.s32 1, %v5834
        %v5836 = vrot.slane %v5827, %v5835
        %v5837 = vlaneseq
        %v5838 = vshrl.u32 %v5837, 7
        %v5839 = vsub.s32 2, %v5838
        %v5840 = vrot.slane %v5827, %v5839
        %v5841 = vlaneseq
        %v5842 = vshrl.u32 %v5841, 7
        %v5843 = vsub.s32 3, %v5842
        %v5844 = vrot.slane %v5827, %v5843
        %v5849 = vadd.f32 %v5763, %v5832
        %v5850 = vadd.f32 %v5764, %v5836
        %v5851 = vadd.f32 %v5765, %v5840
        %v5852 = vadd.f32 %v5766, %v5844
        %v5853 = vadd.f32 %v5767, %v5832
        %v5854 = vadd.f32 %v5768, %v5836
        %v5855 = vadd.f32 %v5769, %v5840
        %v5856 = vadd.f32 %v5770, %v5844
        %v5857 = vadd.f32 %v5771, %v5832
        %v5858 = vadd.f32 %v5772, %v5836
        %v5859 = vadd.f32 %v5773, %v5840
        %v5860 = vadd.f32 %v5774, %v5844
        %v5861 = vadd.f32 %v5775, %v5832
        %v5862 = vadd.f32 %v5776, %v5836
        %v5863 = vadd.f32 %v5777, %v5840
        %v5864 = vadd.f32 %v5778, %v5844
        %v5865 = vadd.f32 %v5779, %v5832
        %v5866 = vadd.f32 %v5780, %v5836
        %v5867 = vadd.f32 %v5781, %v5840
        %v5868 = vadd.f32 %v5782, %v5844
        %v5869 = vadd.f32 %v5783, %v5832
        %v5870 = vadd.f32 %v5784, %v5836
        %v5871 = vadd.f32 %v5785, %v5840
        %v5872 = vadd.f32 %v5786, %v5844
        %v5873 = vadd.f32 %v5787, %v5832
        %v5874 = vadd.f32 %v5788, %v5836
        %v5875 = vadd.f32 %v5789, %v5840
        %v5876 = vadd.f32 %v5790, %v5844
        %v5877 = vadd.f32 %v5791, %v5832
        %v5878 = vadd.f32 %v5792, %v5836
        %v5879 = vadd.f32 %v5793, %v5840
        %v5880 = vadd.f32 %v5794, %v5844
        %v5881 = vadd.f32 %v5795, %v5832
        %v5882 = vadd.f32 %v5796, %v5836
        %v5883 = vadd.f32 %v5797, %v5840
        %v5884 = vadd.f32 %v5798, %v5844
        %v5885 = vadd.f32 %v5799, %v5832
        %v5886 = vadd.f32 %v5800, %v5836
        %v5887 = vadd.f32 %v5801, %v5840
        %v5888 = vadd.f32 %v5802, %v5844
        %v5889 = vadd.f32 %v5803, %v5832
        %v5890 = vadd.f32 %v5804, %v5836
        %v5891 = vadd.f32 %v5805, %v5840
        %v5892 = vadd.f32 %v5806, %v5844
        %v5893 = vadd.f32 %v5807, %v5832
        %v5894 = vadd.f32 %v5808, %v5836
        %v5895 = vadd.f32 %v5809, %v5840
        %v5896 = vadd.f32 %v5810, %v5844
        %v5897 = vadd.f32 %v5811, %v5832
        %v5898 = vadd.f32 %v5812, %v5836
        %v5899 = vadd.f32 %v5813, %v5840
        %v5900 = vadd.f32 %v5814, %v5844
        %v5901 = vadd.f32 %v5815, %v5832
        %v5902 = vadd.f32 %v5816, %v5836
        %v5903 = vadd.f32 %v5817, %v5840
        %v5904 = vadd.f32 %v5818, %v5844
        %v5905 = vadd.f32 %v5819, %v5832
        %v5906 = vadd.f32 %v5820, %v5836
        %v5907 = vadd.f32 %v5821, %v5840
        %v5908 = vadd.f32 %v5822, %v5844
        %v5909 = vadd.f32 %v5823, %v5832
        %v5910 = vadd.f32 %v5824, %v5836
        %v5911 = vadd.f32 %v5825, %v5840
        %v5912 = vadd.f32 %v5826, %v5844
        %v5913 = vmax.f32 %v5849, 0.0
        %v5914 = vmax.f32 %v5850, 0.0
        %v5915 = vmax.f32 %v5851, 0.0
        %v5916 = vmax.f32 %v5852, 0.0
        %v5917 = vmax.f32 %v5853, 0.0
        %v5918 = vmax.f32 %v5854, 0.0
        %v5919 = vmax.f32 %v5855, 0.0
        %v5920 = vmax.f32 %v5856, 0.0
        %v5921 = vmax.f32 %v5857, 0.0
        %v5922 = vmax.f32 %v5858, 0.0
        %v5923 = vmax.f32 %v5859, 0.0
        %v5924 = vmax.f32 %v5860, 0.0
        %v5925 = vmax.f32 %v5861, 0.0
        %v5926 = vmax.f32 %v5862, 0.0
        %v5927 = vmax.f32 %v5863, 0.0
        %v5928 = vmax.f32 %v5864, 0.0
        %v5929 = vmax.f32 %v5865, 0.0
        %v5930 = vmax.f32 %v5866, 0.0
        %v5931 = vmax.f32 %v5867, 0.0
        %v5932 = vmax.f32 %v5868, 0.0
        %v5933 = vmax.f32 %v5869, 0.0
        %v5934 = vmax.f32 %v5870, 0.0
        %v5935 = vmax.f32 %v5871, 0.0
        %v5936 = vmax.f32 %v5872, 0.0
        %v5937 = vmax.f32 %v5873, 0.0
        %v5938 = vmax.f32 %v5874, 0.0
        %v5939 = vmax.f32 %v5875, 0.0
        %v5940 = vmax.f32 %v5876, 0.0
        %v5941 = vmax.f32 %v5877, 0.0
        %v5942 = vmax.f32 %v5878, 0.0
        %v5943 = vmax.f32 %v5879, 0.0
        %v5944 = vmax.f32 %v5880, 0.0
        %v5945 = vmax.f32 %v5881, 0.0
        %v5946 = vmax.f32 %v5882, 0.0
        %v5947 = vmax.f32 %v5883, 0.0
        %v5948 = vmax.f32 %v5884, 0.0
        %v5949 = vmax.f32 %v5885, 0.0
        %v5950 = vmax.f32 %v5886, 0.0
        %v5951 = vmax.f32 %v5887, 0.0
        %v5952 = vmax.f32 %v5888, 0.0
        %v5953 = vmax.f32 %v5889, 0.0
        %v5954 = vmax.f32 %v5890, 0.0
        %v5955 = vmax.f32 %v5891, 0.0
        %v5956 = vmax.f32 %v5892, 0.0
        %v5957 = vmax.f32 %v5893, 0.0
        %v5958 = vmax.f32 %v5894, 0.0
        %v5959 = vmax.f32 %v5895, 0.0
        %v5960 = vmax.f32 %v5896, 0.0
        %v5961 = vmax.f32 %v5897, 0.0
        %v5962 = vmax.f32 %v5898, 0.0
        %v5963 = vmax.f32 %v5899, 0.0
        %v5964 = vmax.f32 %v5900, 0.0
        %v5965 = vmax.f32 %v5901, 0.0
        %v5966 = vmax.f32 %v5902, 0.0
        %v5967 = vmax.f32 %v5903, 0.0
        %v5968 = vmax.f32 %v5904, 0.0
        %v5969 = vmax.f32 %v5905, 0.0
        %v5970 = vmax.f32 %v5906, 0.0
        %v5971 = vmax.f32 %v5907, 0.0
        %v5972 = vmax.f32 %v5908, 0.0
        %v5973 = vmax.f32 %v5909, 0.0
        %v5974 = vmax.f32 %v5910, 0.0
        %v5975 = vmax.f32 %v5911, 0.0
        %v5976 = vmax.f32 %v5912, 0.0
        %v5977 = vmul.f32 %v5913, 0.1
        %v5978 = vmul.f32 %v5914, 0.1
        %v5979 = vmul.f32 %v5915, 0.1
        %v5980 = vmul.f32 %v5916, 0.1
        %v5981 = vmul.f32 %v5917, 0.1
        %v5982 = vmul.f32 %v5918, 0.1
        %v5983 = vmul.f32 %v5919, 0.1
        %v5984 = vmul.f32 %v5920, 0.1
        %v5985 = vmul.f32 %v5921, 0.1
        %v5986 = vmul.f32 %v5922, 0.1
        %v5987 = vmul.f32 %v5923, 0.1
        %v5988 = vmul.f32 %v5924, 0.1
        %v5989 = vmul.f32 %v5925, 0.1
        %v5990 = vmul.f32 %v5926, 0.1
        %v5991 = vmul.f32 %v5927, 0.1
        %v5992 = vmul.f32 %v5928, 0.1
        %v5993 = vmul.f32 %v5929, 0.1
        %v5994 = vmul.f32 %v5930, 0.1
        %v5995 = vmul.f32 %v5931, 0.1
        %v5996 = vmul.f32 %v5932, 0.1
        %v5997 = vmul.f32 %v5933, 0.1
        %v5998 = vmul.f32 %v5934, 0.1
        %v5999 = vmul.f32 %v5935, 0.1
        %v6000 = vmul.f32 %v5936, 0.1
        %v6001 = vmul.f32 %v5937, 0.1
        %v6002 = vmul.f32 %v5938, 0.1
        %v6003 = vmul.f32 %v5939, 0.1
        %v6004 = vmul.f32 %v5940, 0.1
        %v6005 = vmul.f32 %v5941, 0.1
        %v6006 = vmul.f32 %v5942, 0.1
        %v6007 = vmul.f32 %v5943, 0.1
        %v6008 = vmul.f32 %v5944, 0.1
        %v6009 = vmul.f32 %v5945, 0.1
        %v6010 = vmul.f32 %v5946, 0.1
        %v6011 = vmul.f32 %v5947, 0.1
        %v6012 = vmul.f32 %v5948, 0.1
        %v6013 = vmul.f32 %v5949, 0.1
        %v6014 = vmul.f32 %v5950, 0.1
        %v6015 = vmul.f32 %v5951, 0.1
        %v6016 = vmul.f32 %v5952, 0.1
        %v6017 = vmul.f32 %v5953, 0.1
        %v6018 = vmul.f32 %v5954, 0.1
        %v6019 = vmul.f32 %v5955, 0.1
        %v6020 = vmul.f32 %v5956, 0.1
        %v6021 = vmul.f32 %v5957, 0.1
        %v6022 = vmul.f32 %v5958, 0.1
        %v6023 = vmul.f32 %v5959, 0.1
        %v6024 = vmul.f32 %v5960, 0.1
        %v6025 = vmul.f32 %v5961, 0.1
        %v6026 = vmul.f32 %v5962, 0.1
        %v6027 = vmul.f32 %v5963, 0.1
        %v6028 = vmul.f32 %v5964, 0.1
        %v6029 = vmul.f32 %v5965, 0.1
        %v6030 = vmul.f32 %v5966, 0.1
        %v6031 = vmul.f32 %v5967, 0.1
        %v6032 = vmul.f32 %v5968, 0.1
        %v6033 = vmul.f32 %v5969, 0.1
        %v6034 = vmul.f32 %v5970, 0.1
        %v6035 = vmul.f32 %v5971, 0.1
        %v6036 = vmul.f32 %v5972, 0.1
        %v6037 = vmul.f32 %v5973, 0.1
        %v6038 = vmul.f32 %v5974, 0.1
        %v6039 = vmul.f32 %v5975, 0.1
        %v6040 = vmul.f32 %v5976, 0.1
        %v6041 = vsub.f32 %v1971, %v5977
        %v6042 = vsub.f32 %v1973, %v5978
        %v6043 = vsub.f32 %v2197, %v5979
        %v6044 = vsub.f32 %v2199, %v5980
        %v6045 = vsub.f32 %v1975, %v5981
        %v6046 = vsub.f32 %v1977, %v5982
        %v6047 = vsub.f32 %v2201, %v5983
        %v6048 = vsub.f32 %v2203, %v5984
        %v6049 = vsub.f32 %v1981, %v5985
        %v6050 = vsub.f32 %v1983, %v5986
        %v6051 = vsub.f32 %v2207, %v5987
        %v6052 = vsub.f32 %v2209, %v5988
        %v6053 = vsub.f32 %v1985, %v5989
        %v6054 = vsub.f32 %v1987, %v5990
        %v6055 = vsub.f32 %v2211, %v5991
        %v6056 = vsub.f32 %v2213, %v5992
        %v6057 = vsub.f32 %v1991, %v5993
        %v6058 = vsub.f32 %v1993, %v5994
        %v6059 = vsub.f32 %v2217, %v5995
        %v6060 = vsub.f32 %v2219, %v5996
        %v6061 = vsub.f32 %v1995, %v5997
        %v6062 = vsub.f32 %v1997, %v5998
        %v6063 = vsub.f32 %v2221, %v5999
        %v6064 = vsub.f32 %v2223, %v6000
        %v6065 = vsub.f32 %v2001, %v6001
        %v6066 = vsub.f32 %v2003, %v6002
        %v6067 = vsub.f32 %v2227, %v6003
        %v6068 = vsub.f32 %v2229, %v6004
        %v6069 = vsub.f32 %v2005, %v6005
        %v6070 = vsub.f32 %v2007, %v6006
        %v6071 = vsub.f32 %v2231, %v6007
        %v6072 = vsub.f32 %v2233, %v6008
        %v6073 = vsub.f32 %v2011, %v6009
        %v6074 = vsub.f32 %v2013, %v6010
        %v6075 = vsub.f32 %v2237, %v6011
        %v6076 = vsub.f32 %v2239, %v6012
        %v6077 = vsub.f32 %v2015, %v6013
        %v6078 = vsub.f32 %v2017, %v6014
        %v6079 = vsub.f32 %v2241, %v6015
        %v6080 = vsub.f32 %v2243, %v6016
        %v6081 = vsub.f32 %v2021, %v6017
        %v6082 = vsub.f32 %v2023, %v6018
        %v6083 = vsub.f32 %v2247, %v6019
        %v6084 = vsub.f32 %v2249, %v6020
        %v6085 = vsub.f32 %v2025, %v6021
        %v6086 = vsub.f32 %v2027, %v6022
        %v6087 = vsub.f32 %v2251, %v6023
        %v6088 = vsub.f32 %v2253, %v6024
        %v6089 = vsub.f32 %v2031, %v6025
        %v6090 = vsub.f32 %v2033, %v6026
        %v6091 = vsub.f32 %v2257, %v6027
        %v6092 = vsub.f32 %v2259, %v6028
        %v6093 = vsub.f32 %v2035, %v6029
        %v6094 = vsub.f32 %v2037, %v6030
        %v6095 = vsub.f32 %v2261, %v6031
        %v6096 = vsub.f32 %v2263, %v6032
        %v6097 = vsub.f32 %v2041, %v6033
        %v6098 = vsub.f32 %v2043, %v6034
        %v6099 = vsub.f32 %v2267, %v6035
        %v6100 = vsub.f32 %v2269, %v6036
        %v6101 = vsub.f32 %v2045, %v6037
        %v6102 = vsub.f32 %v2047, %v6038
        %v6103 = vsub.f32 %v2271, %v6039
        %v6104 = vsub.f32 %v2273, %v6040
        %v6105 = vld [vmem:[%s7] sm:$0xf]
        %v6107 = vlaneseq
        %v6108 = vshrl.u32 %v6107, 7
        %v6109 = vsub.s32 0, %v6108
        %v6110 = vrot.slane %v6105, %v6109
        %v6111 = vlaneseq
        %v6112 = vshrl.u32 %v6111, 7
        %v6113 = vsub.s32 1, %v6112
        %v6114 = vrot.slane %v6105, %v6113
        %v6115 = vlaneseq
        %v6116 = vshrl.u32 %v6115, 7
        %v6117 = vsub.s32 2, %v6116
        %v6118 = vrot.slane %v6105, %v6117
        %v6119 = vlaneseq
        %v6120 = vshrl.u32 %v6119, 7
        %v6121 = vsub.s32 3, %v6120
        %v6122 = vrot.slane %v6105, %v6121
        %v6127 = vmul.f32 %v6041, %v6110
        %v6128 = vmul.f32 %v6042, %v6114
        %v6129 = vmul.f32 %v6043, %v6118
        %v6130 = vmul.f32 %v6044, %v6122
        %v6131 = vmul.f32 %v6045, %v6110
        %v6132 = vmul.f32 %v6046, %v6114
        %v6133 = vmul.f32 %v6047, %v6118
        %v6134 = vmul.f32 %v6048, %v6122
        %v6135 = vmul.f32 %v6049, %v6110
        %v6136 = vmul.f32 %v6050, %v6114
        %v6137 = vmul.f32 %v6051, %v6118
        %v6138 = vmul.f32 %v6052, %v6122
        %v6139 = vmul.f32 %v6053, %v6110
        %v6140 = vmul.f32 %v6054, %v6114
        %v6141 = vmul.f32 %v6055, %v6118
        %v6142 = vmul.f32 %v6056, %v6122
        %v6143 = vmul.f32 %v6057, %v6110
        %v6144 = vmul.f32 %v6058, %v6114
        %v6145 = vmul.f32 %v6059, %v6118
        %v6146 = vmul.f32 %v6060, %v6122
        %v6147 = vmul.f32 %v6061, %v6110
        %v6148 = vmul.f32 %v6062, %v6114
        %v6149 = vmul.f32 %v6063, %v6118
        %v6150 = vmul.f32 %v6064, %v6122
        %v6151 = vmul.f32 %v6065, %v6110
        %v6152 = vmul.f32 %v6066, %v6114
        %v6153 = vmul.f32 %v6067, %v6118
        %v6154 = vmul.f32 %v6068, %v6122
        %v6155 = vmul.f32 %v6069, %v6110
        %v6156 = vmul.f32 %v6070, %v6114
        %v6157 = vmul.f32 %v6071, %v6118
        %v6158 = vmul.f32 %v6072, %v6122
        %v6159 = vmul.f32 %v6073, %v6110
        %v6160 = vmul.f32 %v6074, %v6114
        %v6161 = vmul.f32 %v6075, %v6118
        %v6162 = vmul.f32 %v6076, %v6122
        %v6163 = vmul.f32 %v6077, %v6110
        %v6164 = vmul.f32 %v6078, %v6114
        %v6165 = vmul.f32 %v6079, %v6118
        %v6166 = vmul.f32 %v6080, %v6122
        %v6167 = vmul.f32 %v6081, %v6110
        %v6168 = vmul.f32 %v6082, %v6114
        %v6169 = vmul.f32 %v6083, %v6118
        %v6170 = vmul.f32 %v6084, %v6122
        %v6171 = vmul.f32 %v6085, %v6110
        %v6172 = vmul.f32 %v6086, %v6114
        %v6173 = vmul.f32 %v6087, %v6118
        %v6174 = vmul.f32 %v6088, %v6122
        %v6175 = vmul.f32 %v6089, %v6110
        %v6176 = vmul.f32 %v6090, %v6114
        %v6177 = vmul.f32 %v6091, %v6118
        %v6178 = vmul.f32 %v6092, %v6122
        %v6179 = vmul.f32 %v6093, %v6110
        %v6180 = vmul.f32 %v6094, %v6114
        %v6181 = vmul.f32 %v6095, %v6118
        %v6182 = vmul.f32 %v6096, %v6122
        %v6183 = vmul.f32 %v6097, %v6110
        %v6184 = vmul.f32 %v6098, %v6114
        %v6185 = vmul.f32 %v6099, %v6118
        %v6186 = vmul.f32 %v6100, %v6122
        %v6187 = vmul.f32 %v6101, %v6110
        %v6188 = vmul.f32 %v6102, %v6114
        %v6189 = vmul.f32 %v6103, %v6118
        %v6190 = vmul.f32 %v6104, %v6122
        %6191 = vrot.lane.b32.xlu0 %v6127, 96
        %v6192 = vpop.permute.xlu0 %6191
        %6193 = vrot.lane.b32.xlu0 %v6131, 96
        %v6194 = vpop.permute.xlu0 %6193
        %6195 = vrot.lane.b32.xlu0 %v6135, 96
        %v6196 = vpop.permute.xlu0 %6195
        %6197 = vrot.lane.b32.xlu0 %v6139, 96
        %v6198 = vpop.permute.xlu0 %6197
        %6199 = vrot.lane.b32.xlu0 %v6143, 96
        %v6200 = vpop.permute.xlu0 %6199
        %6201 = vrot.lane.b32.xlu0 %v6147, 96
        %v6202 = vpop.permute.xlu0 %6201
        %6203 = vrot.lane.b32.xlu0 %v6151, 96
        %v6204 = vpop.permute.xlu0 %6203
        %6205 = vrot.lane.b32.xlu0 %v6155, 96
        %v6206 = vpop.permute.xlu0 %6205
        %6207 = vrot.lane.b32.xlu0 %v6159, 96
        %v6208 = vpop.permute.xlu0 %6207
        %6209 = vrot.lane.b32.xlu0 %v6163, 96
        %v6210 = vpop.permute.xlu0 %6209
        %6211 = vrot.lane.b32.xlu0 %v6167, 96
        %v6212 = vpop.permute.xlu0 %6211
        %6213 = vrot.lane.b32.xlu0 %v6171, 96
        %v6214 = vpop.permute.xlu0 %6213
        %6215 = vrot.lane.b32.xlu0 %v6175, 96
        %v6216 = vpop.permute.xlu0 %6215
        %6217 = vrot.lane.b32.xlu0 %v6179, 96
        %v6218 = vpop.permute.xlu0 %6217
        %6219 = vrot.lane.b32.xlu0 %v6183, 96
        %v6220 = vpop.permute.xlu0 %6219
        %6221 = vrot.lane.b32.xlu0 %v6187, 96
        %v6222 = vpop.permute.xlu0 %6221
        %6223 = vrot.lane.b32.xlu0 %v6128, 96
        %v6224 = vpop.permute.xlu0 %6223
        %6225 = vrot.lane.b32.xlu0 %v6132, 96
        %v6226 = vpop.permute.xlu0 %6225
        %6227 = vrot.lane.b32.xlu0 %v6136, 96
        %v6228 = vpop.permute.xlu0 %6227
        %6229 = vrot.lane.b32.xlu0 %v6140, 96
        %v6230 = vpop.permute.xlu0 %6229
        %6231 = vrot.lane.b32.xlu0 %v6144, 96
        %v6232 = vpop.permute.xlu0 %6231
        %6233 = vrot.lane.b32.xlu0 %v6148, 96
        %v6234 = vpop.permute.xlu0 %6233
        %6235 = vrot.lane.b32.xlu0 %v6152, 96
        %v6236 = vpop.permute.xlu0 %6235
        %6237 = vrot.lane.b32.xlu0 %v6156, 96
        %v6238 = vpop.permute.xlu0 %6237
        %6239 = vrot.lane.b32.xlu0 %v6160, 96
        %v6240 = vpop.permute.xlu0 %6239
        %6241 = vrot.lane.b32.xlu0 %v6164, 96
        %v6242 = vpop.permute.xlu0 %6241
        %6243 = vrot.lane.b32.xlu0 %v6168, 96
        %v6244 = vpop.permute.xlu0 %6243
        %6245 = vrot.lane.b32.xlu0 %v6172, 96
        %v6246 = vpop.permute.xlu0 %6245
        %6247 = vrot.lane.b32.xlu0 %v6176, 96
        %v6248 = vpop.permute.xlu0 %6247
        %6249 = vrot.lane.b32.xlu0 %v6180, 96
        %v6250 = vpop.permute.xlu0 %6249
        %6251 = vrot.lane.b32.xlu0 %v6184, 96
        %v6252 = vpop.permute.xlu0 %6251
        %6253 = vrot.lane.b32.xlu0 %v6188, 96
        %v6254 = vpop.permute.xlu0 %6253
        %6255 = vrot.lane.b32.xlu0 %v6129, 96
        %v6256 = vpop.permute.xlu0 %6255
        %6257 = vrot.lane.b32.xlu0 %v6133, 96
        %v6258 = vpop.permute.xlu0 %6257
        %6259 = vrot.lane.b32.xlu0 %v6137, 96
        %v6260 = vpop.permute.xlu0 %6259
        %6261 = vrot.lane.b32.xlu0 %v6141, 96
        %v6262 = vpop.permute.xlu0 %6261
        %6263 = vrot.lane.b32.xlu0 %v6145, 96
        %v6264 = vpop.permute.xlu0 %6263
        %6265 = vrot.lane.b32.xlu0 %v6149, 96
        %v6266 = vpop.permute.xlu0 %6265
        %6267 = vrot.lane.b32.xlu0 %v6153, 96
        %v6268 = vpop.permute.xlu0 %6267
        %6269 = vrot.lane.b32.xlu0 %v6157, 96
        %v6270 = vpop.permute.xlu0 %6269
        %6271 = vrot.lane.b32.xlu0 %v6161, 96
        %v6272 = vpop.permute.xlu0 %6271
        %6273 = vrot.lane.b32.xlu0 %v6165, 96
        %v6274 = vpop.permute.xlu0 %6273
        %6275 = vrot.lane.b32.xlu0 %v6169, 96
        %v6276 = vpop.permute.xlu0 %6275
        %6277 = vrot.lane.b32.xlu0 %v6173, 96
        %v6278 = vpop.permute.xlu0 %6277
        %6279 = vrot.lane.b32.xlu0 %v6177, 96
        %v6280 = vpop.permute.xlu0 %6279
        %6281 = vrot.lane.b32.xlu0 %v6181, 96
        %v6282 = vpop.permute.xlu0 %6281
        %6283 = vrot.lane.b32.xlu0 %v6185, 96
        %v6284 = vpop.permute.xlu0 %6283
        %6285 = vrot.lane.b32.xlu0 %v6189, 96
        %v6286 = vpop.permute.xlu0 %6285
        %6287 = vrot.lane.b32.xlu0 %v6130, 96
        %v6288 = vpop.permute.xlu0 %6287
        %6289 = vrot.lane.b32.xlu0 %v6134, 96
        %v6290 = vpop.permute.xlu0 %6289
        %6291 = vrot.lane.b32.xlu0 %v6138, 96
        %v6292 = vpop.permute.xlu0 %6291
        %6293 = vrot.lane.b32.xlu0 %v6142, 96
        %v6294 = vpop.permute.xlu0 %6293
        %6295 = vrot.lane.b32.xlu0 %v6146, 96
        %v6296 = vpop.permute.xlu0 %6295
        %6297 = vrot.lane.b32.xlu0 %v6150, 96
        %v6298 = vpop.permute.xlu0 %6297
        %6299 = vrot.lane.b32.xlu0 %v6154, 96
        %v6300 = vpop.permute.xlu0 %6299
        %6301 = vrot.lane.b32.xlu0 %v6158, 96
        %v6302 = vpop.permute.xlu0 %6301
        %6303 = vrot.lane.b32.xlu0 %v6162, 96
        %v6304 = vpop.permute.xlu0 %6303
        %6305 = vrot.lane.b32.xlu0 %v6166, 96
        %v6306 = vpop.permute.xlu0 %6305
        %6307 = vrot.lane.b32.xlu0 %v6170, 96
        %v6308 = vpop.permute.xlu0 %6307
        %6309 = vrot.lane.b32.xlu0 %v6174, 96
        %v6310 = vpop.permute.xlu0 %6309
        %6311 = vrot.lane.b32.xlu0 %v6178, 96
        %v6312 = vpop.permute.xlu0 %6311
        %6313 = vrot.lane.b32.xlu0 %v6182, 96
        %v6314 = vpop.permute.xlu0 %6313
        %6315 = vrot.lane.b32.xlu0 %v6186, 96
        %v6316 = vpop.permute.xlu0 %6315
        %6317 = vrot.lane.b32.xlu0 %v6190, 96
        %v6318 = vpop.permute.xlu0 %6317
        %v6319 = vsel %vm3366, %v6256, %v6288
        %v6320 = vsel %vm3366, %v6258, %v6290
        %v6321 = vsel %vm3366, %v6260, %v6292
        %v6322 = vsel %vm3366, %v6262, %v6294
        %v6323 = vsel %vm3366, %v6264, %v6296
        %v6324 = vsel %vm3366, %v6266, %v6298
        %v6325 = vsel %vm3366, %v6268, %v6300
        %v6326 = vsel %vm3366, %v6270, %v6302
        %v6327 = vsel %vm3366, %v6272, %v6304
        %v6328 = vsel %vm3366, %v6274, %v6306
        %v6329 = vsel %vm3366, %v6276, %v6308
        %v6330 = vsel %vm3366, %v6278, %v6310
        %v6331 = vsel %vm3366, %v6280, %v6312
        %v6332 = vsel %vm3366, %v6282, %v6314
        %v6333 = vsel %vm3366, %v6284, %v6316
        %v6334 = vsel %vm3366, %v6286, %v6318
        %v6335 = vsel %vm3366, %v6224, %v6256
        %v6336 = vsel %vm3366, %v6226, %v6258
        %v6337 = vsel %vm3366, %v6228, %v6260
        %v6338 = vsel %vm3366, %v6230, %v6262
        %v6339 = vsel %vm3366, %v6232, %v6264
        %v6340 = vsel %vm3366, %v6234, %v6266
        %v6341 = vsel %vm3366, %v6236, %v6268
        %v6342 = vsel %vm3366, %v6238, %v6270
        %v6343 = vsel %vm3366, %v6240, %v6272
        %v6344 = vsel %vm3366, %v6242, %v6274
        %v6345 = vsel %vm3366, %v6244, %v6276
        %v6346 = vsel %vm3366, %v6246, %v6278
        %v6347 = vsel %vm3366, %v6248, %v6280
        %v6348 = vsel %vm3366, %v6250, %v6282
        %v6349 = vsel %vm3366, %v6252, %v6284
        %v6350 = vsel %vm3366, %v6254, %v6286
        %v6351 = vsel %vm3366, %v6192, %v6224
        %v6352 = vsel %vm3366, %v6194, %v6226
        %v6353 = vsel %vm3366, %v6196, %v6228
        %v6354 = vsel %vm3366, %v6198, %v6230
        %v6355 = vsel %vm3366, %v6200, %v6232
        %v6356 = vsel %vm3366, %v6202, %v6234
        %v6357 = vsel %vm3366, %v6204, %v6236
        %v6358 = vsel %vm3366, %v6206, %v6238
        %v6359 = vsel %vm3366, %v6208, %v6240
        %v6360 = vsel %vm3366, %v6210, %v6242
        %v6361 = vsel %vm3366, %v6212, %v6244
        %v6362 = vsel %vm3366, %v6214, %v6246
        %v6363 = vsel %vm3366, %v6216, %v6248
        %v6364 = vsel %vm3366, %v6218, %v6250
        %v6365 = vsel %vm3366, %v6220, %v6252
        %v6366 = vsel %vm3366, %v6222, %v6254
        %v6367 = vsel %vm3366, %v6288, %v6192
        %v6368 = vsel %vm3366, %v6290, %v6194
        %v6369 = vsel %vm3366, %v6292, %v6196
        %v6370 = vsel %vm3366, %v6294, %v6198
        %v6371 = vsel %vm3366, %v6296, %v6200
        %v6372 = vsel %vm3366, %v6298, %v6202
        %v6373 = vsel %vm3366, %v6300, %v6204
        %v6374 = vsel %vm3366, %v6302, %v6206
        %v6375 = vsel %vm3366, %v6304, %v6208
        %v6376 = vsel %vm3366, %v6306, %v6210
        %v6377 = vsel %vm3366, %v6308, %v6212
        %v6378 = vsel %vm3366, %v6310, %v6214
        %v6379 = vsel %vm3366, %v6312, %v6216
        %v6380 = vsel %vm3366, %v6314, %v6218
        %v6381 = vsel %vm3366, %v6316, %v6220
        %v6382 = vsel %vm3366, %v6318, %v6222
        %v6383 = vadd.f32 %v6127, %v6351
        %v6384 = vadd.f32 %v6128, %v6335
        %v6385 = vadd.f32 %v6129, %v6319
        %v6386 = vadd.f32 %v6130, %v6367
        %v6387 = vadd.f32 %v6131, %v6352
        %v6388 = vadd.f32 %v6132, %v6336
        %v6389 = vadd.f32 %v6133, %v6320
        %v6390 = vadd.f32 %v6134, %v6368
        %v6391 = vadd.f32 %v6135, %v6353
        %v6392 = vadd.f32 %v6136, %v6337
        %v6393 = vadd.f32 %v6137, %v6321
        %v6394 = vadd.f32 %v6138, %v6369
        %v6395 = vadd.f32 %v6139, %v6354
        %v6396 = vadd.f32 %v6140, %v6338
        %v6397 = vadd.f32 %v6141, %v6322
        %v6398 = vadd.f32 %v6142, %v6370
        %v6399 = vadd.f32 %v6143, %v6355
        %v6400 = vadd.f32 %v6144, %v6339
        %v6401 = vadd.f32 %v6145, %v6323
        %v6402 = vadd.f32 %v6146, %v6371
        %v6403 = vadd.f32 %v6147, %v6356
        %v6404 = vadd.f32 %v6148, %v6340
        %v6405 = vadd.f32 %v6149, %v6324
        %v6406 = vadd.f32 %v6150, %v6372
        %v6407 = vadd.f32 %v6151, %v6357
        %v6408 = vadd.f32 %v6152, %v6341
        %v6409 = vadd.f32 %v6153, %v6325
        %v6410 = vadd.f32 %v6154, %v6373
        %v6411 = vadd.f32 %v6155, %v6358
        %v6412 = vadd.f32 %v6156, %v6342
        %v6413 = vadd.f32 %v6157, %v6326
        %v6414 = vadd.f32 %v6158, %v6374
        %v6415 = vadd.f32 %v6159, %v6359
        %v6416 = vadd.f32 %v6160, %v6343
        %v6417 = vadd.f32 %v6161, %v6327
        %v6418 = vadd.f32 %v6162, %v6375
        %v6419 = vadd.f32 %v6163, %v6360
        %v6420 = vadd.f32 %v6164, %v6344
        %v6421 = vadd.f32 %v6165, %v6328
        %v6422 = vadd.f32 %v6166, %v6376
        %v6423 = vadd.f32 %v6167, %v6361
        %v6424 = vadd.f32 %v6168, %v6345
        %v6425 = vadd.f32 %v6169, %v6329
        %v6426 = vadd.f32 %v6170, %v6377
        %v6427 = vadd.f32 %v6171, %v6362
        %v6428 = vadd.f32 %v6172, %v6346
        %v6429 = vadd.f32 %v6173, %v6330
        %v6430 = vadd.f32 %v6174, %v6378
        %v6431 = vadd.f32 %v6175, %v6363
        %v6432 = vadd.f32 %v6176, %v6347
        %v6433 = vadd.f32 %v6177, %v6331
        %v6434 = vadd.f32 %v6178, %v6379
        %v6435 = vadd.f32 %v6179, %v6364
        %v6436 = vadd.f32 %v6180, %v6348
        %v6437 = vadd.f32 %v6181, %v6332
        %v6438 = vadd.f32 %v6182, %v6380
        %v6439 = vadd.f32 %v6183, %v6365
        %v6440 = vadd.f32 %v6184, %v6349
        %v6441 = vadd.f32 %v6185, %v6333
        %v6442 = vadd.f32 %v6186, %v6381
        %v6443 = vadd.f32 %v6187, %v6366
        %v6444 = vadd.f32 %v6188, %v6350
        %v6445 = vadd.f32 %v6189, %v6334
        %v6446 = vadd.f32 %v6190, %v6382
        %6447 = vrot.lane.b32.xlu0 %v6383, 96
        %v6448 = vpop.permute.xlu0 %6447
        %6449 = vrot.lane.b32.xlu0 %v6387, 96
        %v6450 = vpop.permute.xlu0 %6449
        %6451 = vrot.lane.b32.xlu0 %v6391, 96
        %v6452 = vpop.permute.xlu0 %6451
        %6453 = vrot.lane.b32.xlu0 %v6395, 96
        %v6454 = vpop.permute.xlu0 %6453
        %6455 = vrot.lane.b32.xlu0 %v6399, 96
        %v6456 = vpop.permute.xlu0 %6455
        %6457 = vrot.lane.b32.xlu0 %v6403, 96
        %v6458 = vpop.permute.xlu0 %6457
        %6459 = vrot.lane.b32.xlu0 %v6407, 96
        %v6460 = vpop.permute.xlu0 %6459
        %6461 = vrot.lane.b32.xlu0 %v6411, 96
        %v6462 = vpop.permute.xlu0 %6461
        %6463 = vrot.lane.b32.xlu0 %v6415, 96
        %v6464 = vpop.permute.xlu0 %6463
        %6465 = vrot.lane.b32.xlu0 %v6419, 96
        %v6466 = vpop.permute.xlu0 %6465
        %6467 = vrot.lane.b32.xlu0 %v6423, 96
        %v6468 = vpop.permute.xlu0 %6467
        %6469 = vrot.lane.b32.xlu0 %v6427, 96
        %v6470 = vpop.permute.xlu0 %6469
        %6471 = vrot.lane.b32.xlu0 %v6431, 96
        %v6472 = vpop.permute.xlu0 %6471
        %6473 = vrot.lane.b32.xlu0 %v6435, 96
        %v6474 = vpop.permute.xlu0 %6473
        %6475 = vrot.lane.b32.xlu0 %v6439, 96
        %v6476 = vpop.permute.xlu0 %6475
        %6477 = vrot.lane.b32.xlu0 %v6443, 96
        %v6478 = vpop.permute.xlu0 %6477
        %6479 = vrot.lane.b32.xlu0 %v6384, 96
        %v6480 = vpop.permute.xlu0 %6479
        %6481 = vrot.lane.b32.xlu0 %v6388, 96
        %v6482 = vpop.permute.xlu0 %6481
        %6483 = vrot.lane.b32.xlu0 %v6392, 96
        %v6484 = vpop.permute.xlu0 %6483
        %6485 = vrot.lane.b32.xlu0 %v6396, 96
        %v6486 = vpop.permute.xlu0 %6485
        %6487 = vrot.lane.b32.xlu0 %v6400, 96
        %v6488 = vpop.permute.xlu0 %6487
        %6489 = vrot.lane.b32.xlu0 %v6404, 96
        %v6490 = vpop.permute.xlu0 %6489
        %6491 = vrot.lane.b32.xlu0 %v6408, 96
        %v6492 = vpop.permute.xlu0 %6491
        %6493 = vrot.lane.b32.xlu0 %v6412, 96
        %v6494 = vpop.permute.xlu0 %6493
        %6495 = vrot.lane.b32.xlu0 %v6416, 96
        %v6496 = vpop.permute.xlu0 %6495
        %6497 = vrot.lane.b32.xlu0 %v6420, 96
        %v6498 = vpop.permute.xlu0 %6497
        %6499 = vrot.lane.b32.xlu0 %v6424, 96
        %v6500 = vpop.permute.xlu0 %6499
        %6501 = vrot.lane.b32.xlu0 %v6428, 96
        %v6502 = vpop.permute.xlu0 %6501
        %6503 = vrot.lane.b32.xlu0 %v6432, 96
        %v6504 = vpop.permute.xlu0 %6503
        %6505 = vrot.lane.b32.xlu0 %v6436, 96
        %v6506 = vpop.permute.xlu0 %6505
        %6507 = vrot.lane.b32.xlu0 %v6440, 96
        %v6508 = vpop.permute.xlu0 %6507
        %6509 = vrot.lane.b32.xlu0 %v6444, 96
        %v6510 = vpop.permute.xlu0 %6509
        %6511 = vrot.lane.b32.xlu0 %v6385, 96
        %v6512 = vpop.permute.xlu0 %6511
        %6513 = vrot.lane.b32.xlu0 %v6389, 96
        %v6514 = vpop.permute.xlu0 %6513
        %6515 = vrot.lane.b32.xlu0 %v6393, 96
        %v6516 = vpop.permute.xlu0 %6515
        %6517 = vrot.lane.b32.xlu0 %v6397, 96
        %v6518 = vpop.permute.xlu0 %6517
        %6519 = vrot.lane.b32.xlu0 %v6401, 96
        %v6520 = vpop.permute.xlu0 %6519
        %6521 = vrot.lane.b32.xlu0 %v6405, 96
        %v6522 = vpop.permute.xlu0 %6521
        %6523 = vrot.lane.b32.xlu0 %v6409, 96
        %v6524 = vpop.permute.xlu0 %6523
        %6525 = vrot.lane.b32.xlu0 %v6413, 96
        %v6526 = vpop.permute.xlu0 %6525
        %6527 = vrot.lane.b32.xlu0 %v6417, 96
        %v6528 = vpop.permute.xlu0 %6527
        %6529 = vrot.lane.b32.xlu0 %v6421, 96
        %v6530 = vpop.permute.xlu0 %6529
        %6531 = vrot.lane.b32.xlu0 %v6425, 96
        %v6532 = vpop.permute.xlu0 %6531
        %6533 = vrot.lane.b32.xlu0 %v6429, 96
        %v6534 = vpop.permute.xlu0 %6533
        %6535 = vrot.lane.b32.xlu0 %v6433, 96
        %v6536 = vpop.permute.xlu0 %6535
        %6537 = vrot.lane.b32.xlu0 %v6437, 96
        %v6538 = vpop.permute.xlu0 %6537
        %6539 = vrot.lane.b32.xlu0 %v6441, 96
        %v6540 = vpop.permute.xlu0 %6539
        %6541 = vrot.lane.b32.xlu0 %v6445, 96
        %v6542 = vpop.permute.xlu0 %6541
        %6543 = vrot.lane.b32.xlu0 %v6386, 96
        %v6544 = vpop.permute.xlu0 %6543
        %6545 = vrot.lane.b32.xlu0 %v6390, 96
        %v6546 = vpop.permute.xlu0 %6545
        %6547 = vrot.lane.b32.xlu0 %v6394, 96
        %v6548 = vpop.permute.xlu0 %6547
        %6549 = vrot.lane.b32.xlu0 %v6398, 96
        %v6550 = vpop.permute.xlu0 %6549
        %6551 = vrot.lane.b32.xlu0 %v6402, 96
        %v6552 = vpop.permute.xlu0 %6551
        %6553 = vrot.lane.b32.xlu0 %v6406, 96
        %v6554 = vpop.permute.xlu0 %6553
        %6555 = vrot.lane.b32.xlu0 %v6410, 96
        %v6556 = vpop.permute.xlu0 %6555
        %6557 = vrot.lane.b32.xlu0 %v6414, 96
        %v6558 = vpop.permute.xlu0 %6557
        %6559 = vrot.lane.b32.xlu0 %v6418, 96
        %v6560 = vpop.permute.xlu0 %6559
        %6561 = vrot.lane.b32.xlu0 %v6422, 96
        %v6562 = vpop.permute.xlu0 %6561
        %6563 = vrot.lane.b32.xlu0 %v6426, 96
        %v6564 = vpop.permute.xlu0 %6563
        %6565 = vrot.lane.b32.xlu0 %v6430, 96
        %v6566 = vpop.permute.xlu0 %6565
        %6567 = vrot.lane.b32.xlu0 %v6434, 96
        %v6568 = vpop.permute.xlu0 %6567
        %6569 = vrot.lane.b32.xlu0 %v6438, 96
        %v6570 = vpop.permute.xlu0 %6569
        %6571 = vrot.lane.b32.xlu0 %v6442, 96
        %v6572 = vpop.permute.xlu0 %6571
        %6573 = vrot.lane.b32.xlu0 %v6446, 96
        %v6574 = vpop.permute.xlu0 %6573
        %v6575 = vsel %vm3366, %v6512, %v6544
        %v6576 = vsel %vm3366, %v6514, %v6546
        %v6577 = vsel %vm3366, %v6516, %v6548
        %v6578 = vsel %vm3366, %v6518, %v6550
        %v6579 = vsel %vm3366, %v6520, %v6552
        %v6580 = vsel %vm3366, %v6522, %v6554
        %v6581 = vsel %vm3366, %v6524, %v6556
        %v6582 = vsel %vm3366, %v6526, %v6558
        %v6583 = vsel %vm3366, %v6528, %v6560
        %v6584 = vsel %vm3366, %v6530, %v6562
        %v6585 = vsel %vm3366, %v6532, %v6564
        %v6586 = vsel %vm3366, %v6534, %v6566
        %v6587 = vsel %vm3366, %v6536, %v6568
        %v6588 = vsel %vm3366, %v6538, %v6570
        %v6589 = vsel %vm3366, %v6540, %v6572
        %v6590 = vsel %vm3366, %v6542, %v6574
        %v6591 = vsel %vm3366, %v6480, %v6512
        %v6592 = vsel %vm3366, %v6482, %v6514
        %v6593 = vsel %vm3366, %v6484, %v6516
        %v6594 = vsel %vm3366, %v6486, %v6518
        %v6595 = vsel %vm3366, %v6488, %v6520
        %v6596 = vsel %vm3366, %v6490, %v6522
        %v6597 = vsel %vm3366, %v6492, %v6524
        %v6598 = vsel %vm3366, %v6494, %v6526
        %v6599 = vsel %vm3366, %v6496, %v6528
        %v6600 = vsel %vm3366, %v6498, %v6530
        %v6601 = vsel %vm3366, %v6500, %v6532
        %v6602 = vsel %vm3366, %v6502, %v6534
        %v6603 = vsel %vm3366, %v6504, %v6536
        %v6604 = vsel %vm3366, %v6506, %v6538
        %v6605 = vsel %vm3366, %v6508, %v6540
        %v6606 = vsel %vm3366, %v6510, %v6542
        %v6607 = vsel %vm3366, %v6448, %v6480
        %v6608 = vsel %vm3366, %v6450, %v6482
        %v6609 = vsel %vm3366, %v6452, %v6484
        %v6610 = vsel %vm3366, %v6454, %v6486
        %v6611 = vsel %vm3366, %v6456, %v6488
        %v6612 = vsel %vm3366, %v6458, %v6490
        %v6613 = vsel %vm3366, %v6460, %v6492
        %v6614 = vsel %vm3366, %v6462, %v6494
        %v6615 = vsel %vm3366, %v6464, %v6496
        %v6616 = vsel %vm3366, %v6466, %v6498
        %v6617 = vsel %vm3366, %v6468, %v6500
        %v6618 = vsel %vm3366, %v6470, %v6502
        %v6619 = vsel %vm3366, %v6472, %v6504
        %v6620 = vsel %vm3366, %v6474, %v6506
        %v6621 = vsel %vm3366, %v6476, %v6508
        %v6622 = vsel %vm3366, %v6478, %v6510
        %v6623 = vsel %vm3366, %v6544, %v6448
        %v6624 = vsel %vm3366, %v6546, %v6450
        %v6625 = vsel %vm3366, %v6548, %v6452
        %v6626 = vsel %vm3366, %v6550, %v6454
        %v6627 = vsel %vm3366, %v6552, %v6456
        %v6628 = vsel %vm3366, %v6554, %v6458
        %v6629 = vsel %vm3366, %v6556, %v6460
        %v6630 = vsel %vm3366, %v6558, %v6462
        %v6631 = vsel %vm3366, %v6560, %v6464
        %v6632 = vsel %vm3366, %v6562, %v6466
        %v6633 = vsel %vm3366, %v6564, %v6468
        %v6634 = vsel %vm3366, %v6566, %v6470
        %v6635 = vsel %vm3366, %v6568, %v6472
        %v6636 = vsel %vm3366, %v6570, %v6474
        %v6637 = vsel %vm3366, %v6572, %v6476
        %v6638 = vsel %vm3366, %v6574, %v6478
        %vm6639 = vcmp.lt.s32.totalorder %v2276, 224
        %vm6640 = vcmp.lt.s32.totalorder %v2277, 224
        %vm6641 = vcmp.lt.s32.totalorder %v2278, 224
        %vm6642 = vcmp.lt.s32.totalorder %v2279, 224
        %vm6643 = vcmp.lt.s32.totalorder %v2276, 448
        %vm6644 = vcmp.lt.s32.totalorder %v2277, 448
        %vm6645 = vcmp.lt.s32.totalorder %v2278, 448
        %vm6646 = vcmp.lt.s32.totalorder %v2279, 448
        %v6647 = vsel %vm6643, 1, 0
        %v6648 = vsel %vm6644, 1, 0
        %v6649 = vsel %vm6645, 1, 0
        %v6650 = vsel %vm6646, 1, 0
        %vm6651 = vcmp.eq.s32.totalorder %v6647, 1
        %vm6652 = vcmp.eq.s32.totalorder %v6648, 1
        %vm6653 = vcmp.eq.s32.totalorder %v6649, 1
        %vm6654 = vcmp.eq.s32.totalorder %v6650, 1
        %v6655 = vsel %vm6651, %v6607, 0.0
        %v6656 = vsel %vm6652, %v6591, 0.0
        %v6657 = vsel %vm6653, %v6575, 0.0
        %v6658 = vsel %vm6654, %v6623, 0.0
        %v6659 = vsel %vm6651, %v6608, 0.0
        %v6660 = vsel %vm6652, %v6592, 0.0
        %v6661 = vsel %vm6653, %v6576, 0.0
        %v6662 = vsel %vm6654, %v6624, 0.0
        %v6663 = vsel %vm6651, %v6609, 0.0
        %v6664 = vsel %vm6652, %v6593, 0.0
        %v6665 = vsel %vm6653, %v6577, 0.0
        %v6666 = vsel %vm6654, %v6625, 0.0
        %v6667 = vsel %vm6651, %v6610, 0.0
        %v6668 = vsel %vm6652, %v6594, 0.0
        %v6669 = vsel %vm6653, %v6578, 0.0
        %v6670 = vsel %vm6654, %v6626, 0.0
        %v6671 = vsel %vm6651, %v6611, 0.0
        %v6672 = vsel %vm6652, %v6595, 0.0
        %v6673 = vsel %vm6653, %v6579, 0.0
        %v6674 = vsel %vm6654, %v6627, 0.0
        %v6675 = vsel %vm6651, %v6612, 0.0
        %v6676 = vsel %vm6652, %v6596, 0.0
        %v6677 = vsel %vm6653, %v6580, 0.0
        %v6678 = vsel %vm6654, %v6628, 0.0
        %v6679 = vsel %vm6651, %v6613, 0.0
        %v6680 = vsel %vm6652, %v6597, 0.0
        %v6681 = vsel %vm6653, %v6581, 0.0
        %v6682 = vsel %vm6654, %v6629, 0.0
        %v6683 = vsel %vm6651, %v6614, 0.0
        %v6684 = vsel %vm6652, %v6598, 0.0
        %v6685 = vsel %vm6653, %v6582, 0.0
        %v6686 = vsel %vm6654, %v6630, 0.0
        %v6687 = vsel %vm6651, %v6615, 0.0
        %v6688 = vsel %vm6652, %v6599, 0.0
        %v6689 = vsel %vm6653, %v6583, 0.0
        %v6690 = vsel %vm6654, %v6631, 0.0
        %v6691 = vsel %vm6651, %v6616, 0.0
        %v6692 = vsel %vm6652, %v6600, 0.0
        %v6693 = vsel %vm6653, %v6584, 0.0
        %v6694 = vsel %vm6654, %v6632, 0.0
        %v6695 = vsel %vm6651, %v6617, 0.0
        %v6696 = vsel %vm6652, %v6601, 0.0
        %v6697 = vsel %vm6653, %v6585, 0.0
        %v6698 = vsel %vm6654, %v6633, 0.0
        %v6699 = vsel %vm6651, %v6618, 0.0
        %v6700 = vsel %vm6652, %v6602, 0.0
        %v6701 = vsel %vm6653, %v6586, 0.0
        %v6702 = vsel %vm6654, %v6634, 0.0
        %v6703 = vsel %vm6651, %v6619, 0.0
        %v6704 = vsel %vm6652, %v6603, 0.0
        %v6705 = vsel %vm6653, %v6587, 0.0
        %v6706 = vsel %vm6654, %v6635, 0.0
        %v6707 = vsel %vm6651, %v6620, 0.0
        %v6708 = vsel %vm6652, %v6604, 0.0
        %v6709 = vsel %vm6653, %v6588, 0.0
        %v6710 = vsel %vm6654, %v6636, 0.0
        %v6711 = vsel %vm6651, %v6621, 0.0
        %v6712 = vsel %vm6652, %v6605, 0.0
        %v6713 = vsel %vm6653, %v6589, 0.0
        %v6714 = vsel %vm6654, %v6637, 0.0
        %v6715 = vsel %vm6651, %v6622, 0.0
        %v6716 = vsel %vm6652, %v6606, 0.0
        %v6717 = vsel %vm6653, %v6590, 0.0
        %v6718 = vsel %vm6654, %v6638, 0.0
        %v6719 = vsel %vm6639, 1, 0
        %v6720 = vsel %vm6640, 1, 0
        %v6721 = vsel %vm6641, 1, 0
        %v6722 = vsel %vm6642, 1, 0
        %vm6723 = vcmp.eq.s32.totalorder %v6719, 1
        %vm6724 = vcmp.eq.s32.totalorder %v6720, 1
        %vm6725 = vcmp.eq.s32.totalorder %v6721, 1
        %vm6726 = vcmp.eq.s32.totalorder %v6722, 1
        %v6727 = vsel %vm6723, %v6383, %v6655
        %v6728 = vsel %vm6724, %v6384, %v6656
        %v6729 = vsel %vm6725, %v6385, %v6657
        %v6730 = vsel %vm6726, %v6386, %v6658
        %v6731 = vsel %vm6723, %v6387, %v6659
        %v6732 = vsel %vm6724, %v6388, %v6660
        %v6733 = vsel %vm6725, %v6389, %v6661
        %v6734 = vsel %vm6726, %v6390, %v6662
        %v6735 = vsel %vm6723, %v6391, %v6663
        %v6736 = vsel %vm6724, %v6392, %v6664
        %v6737 = vsel %vm6725, %v6393, %v6665
        %v6738 = vsel %vm6726, %v6394, %v6666
        %v6739 = vsel %vm6723, %v6395, %v6667
        %v6740 = vsel %vm6724, %v6396, %v6668
        %v6741 = vsel %vm6725, %v6397, %v6669
        %v6742 = vsel %vm6726, %v6398, %v6670
        %v6743 = vsel %vm6723, %v6399, %v6671
        %v6744 = vsel %vm6724, %v6400, %v6672
        %v6745 = vsel %vm6725, %v6401, %v6673
        %v6746 = vsel %vm6726, %v6402, %v6674
        %v6747 = vsel %vm6723, %v6403, %v6675
        %v6748 = vsel %vm6724, %v6404, %v6676
        %v6749 = vsel %vm6725, %v6405, %v6677
        %v6750 = vsel %vm6726, %v6406, %v6678
        %v6751 = vsel %vm6723, %v6407, %v6679
        %v6752 = vsel %vm6724, %v6408, %v6680
        %v6753 = vsel %vm6725, %v6409, %v6681
        %v6754 = vsel %vm6726, %v6410, %v6682
        %v6755 = vsel %vm6723, %v6411, %v6683
        %v6756 = vsel %vm6724, %v6412, %v6684
        %v6757 = vsel %vm6725, %v6413, %v6685
        %v6758 = vsel %vm6726, %v6414, %v6686
        %v6759 = vsel %vm6723, %v6415, %v6687
        %v6760 = vsel %vm6724, %v6416, %v6688
        %v6761 = vsel %vm6725, %v6417, %v6689
        %v6762 = vsel %vm6726, %v6418, %v6690
        %v6763 = vsel %vm6723, %v6419, %v6691
        %v6764 = vsel %vm6724, %v6420, %v6692
        %v6765 = vsel %vm6725, %v6421, %v6693
        %v6766 = vsel %vm6726, %v6422, %v6694
        %v6767 = vsel %vm6723, %v6423, %v6695
        %v6768 = vsel %vm6724, %v6424, %v6696
        %v6769 = vsel %vm6725, %v6425, %v6697
        %v6770 = vsel %vm6726, %v6426, %v6698
        %v6771 = vsel %vm6723, %v6427, %v6699
        %v6772 = vsel %vm6724, %v6428, %v6700
        %v6773 = vsel %vm6725, %v6429, %v6701
        %v6774 = vsel %vm6726, %v6430, %v6702
        %v6775 = vsel %vm6723, %v6431, %v6703
        %v6776 = vsel %vm6724, %v6432, %v6704
        %v6777 = vsel %vm6725, %v6433, %v6705
        %v6778 = vsel %vm6726, %v6434, %v6706
        %v6779 = vsel %vm6723, %v6435, %v6707
        %v6780 = vsel %vm6724, %v6436, %v6708
        %v6781 = vsel %vm6725, %v6437, %v6709
        %v6782 = vsel %vm6726, %v6438, %v6710
        %v6783 = vsel %vm6723, %v6439, %v6711
        %v6784 = vsel %vm6724, %v6440, %v6712
        %v6785 = vsel %vm6725, %v6441, %v6713
        %v6786 = vsel %vm6726, %v6442, %v6714
        %v6787 = vsel %vm6723, %v6443, %v6715
        %v6788 = vsel %vm6724, %v6444, %v6716
        %v6789 = vsel %vm6725, %v6445, %v6717
        %v6790 = vsel %vm6726, %v6446, %v6718
        %v6791 = vmul.f32 %v6727, 0.5
        %v6792 = vmul.f32 %v6728, 0.5
        %v6793 = vmul.f32 %v6729, 0.5
        %v6794 = vmul.f32 %v6730, 0.5
        %v6795 = vmul.f32 %v6731, 0.5
        %v6796 = vmul.f32 %v6732, 0.5
        %v6797 = vmul.f32 %v6733, 0.5
        %v6798 = vmul.f32 %v6734, 0.5
        %v6799 = vmul.f32 %v6735, 0.5
        %v6800 = vmul.f32 %v6736, 0.5
        %v6801 = vmul.f32 %v6737, 0.5
        %v6802 = vmul.f32 %v6738, 0.5
        %v6803 = vmul.f32 %v6739, 0.5
        %v6804 = vmul.f32 %v6740, 0.5
        %v6805 = vmul.f32 %v6741, 0.5
        %v6806 = vmul.f32 %v6742, 0.5
        %v6807 = vmul.f32 %v6743, 0.5
        %v6808 = vmul.f32 %v6744, 0.5
        %v6809 = vmul.f32 %v6745, 0.5
        %v6810 = vmul.f32 %v6746, 0.5
        %v6811 = vmul.f32 %v6747, 0.5
        %v6812 = vmul.f32 %v6748, 0.5
        %v6813 = vmul.f32 %v6749, 0.5
        %v6814 = vmul.f32 %v6750, 0.5
        %v6815 = vmul.f32 %v6751, 0.5
        %v6816 = vmul.f32 %v6752, 0.5
        %v6817 = vmul.f32 %v6753, 0.5
        %v6818 = vmul.f32 %v6754, 0.5
        %v6819 = vmul.f32 %v6755, 0.5
        %v6820 = vmul.f32 %v6756, 0.5
        %v6821 = vmul.f32 %v6757, 0.5
        %v6822 = vmul.f32 %v6758, 0.5
        %v6823 = vmul.f32 %v6759, 0.5
        %v6824 = vmul.f32 %v6760, 0.5
        %v6825 = vmul.f32 %v6761, 0.5
        %v6826 = vmul.f32 %v6762, 0.5
        %v6827 = vmul.f32 %v6763, 0.5
        %v6828 = vmul.f32 %v6764, 0.5
        %v6829 = vmul.f32 %v6765, 0.5
        %v6830 = vmul.f32 %v6766, 0.5
        %v6831 = vmul.f32 %v6767, 0.5
        %v6832 = vmul.f32 %v6768, 0.5
        %v6833 = vmul.f32 %v6769, 0.5
        %v6834 = vmul.f32 %v6770, 0.5
        %v6835 = vmul.f32 %v6771, 0.5
        %v6836 = vmul.f32 %v6772, 0.5
        %v6837 = vmul.f32 %v6773, 0.5
        %v6838 = vmul.f32 %v6774, 0.5
        %v6839 = vmul.f32 %v6775, 0.5
        %v6840 = vmul.f32 %v6776, 0.5
        %v6841 = vmul.f32 %v6777, 0.5
        %v6842 = vmul.f32 %v6778, 0.5
        %v6843 = vmul.f32 %v6779, 0.5
        %v6844 = vmul.f32 %v6780, 0.5
        %v6845 = vmul.f32 %v6781, 0.5
        %v6846 = vmul.f32 %v6782, 0.5
        %v6847 = vmul.f32 %v6783, 0.5
        %v6848 = vmul.f32 %v6784, 0.5
        %v6849 = vmul.f32 %v6785, 0.5
        %v6850 = vmul.f32 %v6786, 0.5
        %v6851 = vmul.f32 %v6787, 0.5
        %v6852 = vmul.f32 %v6788, 0.5
        %v6853 = vmul.f32 %v6789, 0.5
        %v6854 = vmul.f32 %v6790, 0.5
        %v6887 = vrot.slane %v6791, 1
        %v6888 = vrot.slane %v6792, 1
        %v6889 = vrot.slane %v6793, 1
        %v6890 = vrot.slane %v6794, 1
        %v6891 = vrot.slane %v6799, 1
        %v6892 = vrot.slane %v6800, 1
        %v6893 = vrot.slane %v6801, 1
        %v6894 = vrot.slane %v6802, 1
        %v6895 = vrot.slane %v6807, 1
        %v6896 = vrot.slane %v6808, 1
        %v6897 = vrot.slane %v6809, 1
        %v6898 = vrot.slane %v6810, 1
        %v6899 = vrot.slane %v6815, 1
        %v6900 = vrot.slane %v6816, 1
        %v6901 = vrot.slane %v6817, 1
        %v6902 = vrot.slane %v6818, 1
        %v6903 = vrot.slane %v6823, 1
        %v6904 = vrot.slane %v6824, 1
        %v6905 = vrot.slane %v6825, 1
        %v6906 = vrot.slane %v6826, 1
        %v6907 = vrot.slane %v6831, 1
        %v6908 = vrot.slane %v6832, 1
        %v6909 = vrot.slane %v6833, 1
        %v6910 = vrot.slane %v6834, 1
        %v6911 = vrot.slane %v6839, 1
        %v6912 = vrot.slane %v6840, 1
        %v6913 = vrot.slane %v6841, 1
        %v6914 = vrot.slane %v6842, 1
        %v6915 = vrot.slane %v6847, 1
        %v6916 = vrot.slane %v6848, 1
        %v6917 = vrot.slane %v6849, 1
        %v6918 = vrot.slane %v6850, 1
        %v6951 = vadd.f32 %v6791, %v6887
        %v6952 = vadd.f32 %v6792, %v6888
        %v6953 = vadd.f32 %v6793, %v6889
        %v6954 = vadd.f32 %v6794, %v6890
        %v6955 = vadd.f32 %v6799, %v6891
        %v6956 = vadd.f32 %v6800, %v6892
        %v6957 = vadd.f32 %v6801, %v6893
        %v6958 = vadd.f32 %v6802, %v6894
        %v6959 = vadd.f32 %v6807, %v6895
        %v6960 = vadd.f32 %v6808, %v6896
        %v6961 = vadd.f32 %v6809, %v6897
        %v6962 = vadd.f32 %v6810, %v6898
        %v6963 = vadd.f32 %v6815, %v6899
        %v6964 = vadd.f32 %v6816, %v6900
        %v6965 = vadd.f32 %v6817, %v6901
        %v6966 = vadd.f32 %v6818, %v6902
        %v6967 = vadd.f32 %v6823, %v6903
        %v6968 = vadd.f32 %v6824, %v6904
        %v6969 = vadd.f32 %v6825, %v6905
        %v6970 = vadd.f32 %v6826, %v6906
        %v6971 = vadd.f32 %v6831, %v6907
        %v6972 = vadd.f32 %v6832, %v6908
        %v6973 = vadd.f32 %v6833, %v6909
        %v6974 = vadd.f32 %v6834, %v6910
        %v6975 = vadd.f32 %v6839, %v6911
        %v6976 = vadd.f32 %v6840, %v6912
        %v6977 = vadd.f32 %v6841, %v6913
        %v6978 = vadd.f32 %v6842, %v6914
        %v6979 = vadd.f32 %v6847, %v6915
        %v6980 = vadd.f32 %v6848, %v6916
        %v6981 = vadd.f32 %v6849, %v6917
        %v6982 = vadd.f32 %v6850, %v6918
        %v6983 = vmul.f32 %v6951, 0.5
        %v6984 = vmul.f32 %v6952, 0.5
        %v6985 = vmul.f32 %v6953, 0.5
        %v6986 = vmul.f32 %v6954, 0.5
        %v6987 = vmul.f32 %v6955, 0.5
        %v6988 = vmul.f32 %v6956, 0.5
        %v6989 = vmul.f32 %v6957, 0.5
        %v6990 = vmul.f32 %v6958, 0.5
        %v6991 = vmul.f32 %v6959, 0.5
        %v6992 = vmul.f32 %v6960, 0.5
        %v6993 = vmul.f32 %v6961, 0.5
        %v6994 = vmul.f32 %v6962, 0.5
        %v6995 = vmul.f32 %v6963, 0.5
        %v6996 = vmul.f32 %v6964, 0.5
        %v6997 = vmul.f32 %v6965, 0.5
        %v6998 = vmul.f32 %v6966, 0.5
        %v6999 = vmul.f32 %v6967, 0.5
        %v7000 = vmul.f32 %v6968, 0.5
        %v7001 = vmul.f32 %v6969, 0.5
        %v7002 = vmul.f32 %v6970, 0.5
        %v7003 = vmul.f32 %v6971, 0.5
        %v7004 = vmul.f32 %v6972, 0.5
        %v7005 = vmul.f32 %v6973, 0.5
        %v7006 = vmul.f32 %v6974, 0.5
        %v7007 = vmul.f32 %v6975, 0.5
        %v7008 = vmul.f32 %v6976, 0.5
        %v7009 = vmul.f32 %v6977, 0.5
        %v7010 = vmul.f32 %v6978, 0.5
        %v7011 = vmul.f32 %v6979, 0.5
        %v7012 = vmul.f32 %v6980, 0.5
        %v7013 = vmul.f32 %v6981, 0.5
        %v7014 = vmul.f32 %v6982, 0.5
        %v7047 = vcombine.low %v6983, %v6984
        %v7048 = vcombine.low %v6985, %v6986
        %v7050 = vunpack.c.l.s4 1966171168
        %v7051 = vunpack.c.0.s8 %v7050
        %v7052 = vlaneseq
        %v7053 = vshrl.u32 %v7052, 7
        %v7054 = vsub.s32 %v7051, %v7053
        %v7055 = vrot.slane %v7047, %v7054
        %v7057 = vunpack.c.l.s4 1966171168
        %v7058 = vunpack.c.0.s8 %v7057
        %v7059 = vlaneseq
        %v7060 = vshrl.u32 %v7059, 7
        %v7061 = vsub.s32 %v7058, %v7060
        %v7062 = vrot.slane %v7048, %v7061
        %v7063 = vcombine.low %v7055, %v7062
        %v7065 = vunpack.c.l.s4 1966171168
        %v7066 = vunpack.c.0.s8 %v7065
        %v7067 = vlaneseq
        %v7068 = vshrl.u32 %v7067, 7
        %v7069 = vsub.s32 %v7066, %v7068
        %v7070 = vrot.slane %v7063, %v7069
        %v7071 = vcombine.low %v6987, %v6988
        %v7072 = vcombine.low %v6989, %v6990
        %v7074 = vunpack.c.l.s4 1966171168
        %v7075 = vunpack.c.0.s8 %v7074
        %v7076 = vlaneseq
        %v7077 = vshrl.u32 %v7076, 7
        %v7078 = vsub.s32 %v7075, %v7077
        %v7079 = vrot.slane %v7071, %v7078
        %v7081 = vunpack.c.l.s4 1966171168
        %v7082 = vunpack.c.0.s8 %v7081
        %v7083 = vlaneseq
        %v7084 = vshrl.u32 %v7083, 7
        %v7085 = vsub.s32 %v7082, %v7084
        %v7086 = vrot.slane %v7072, %v7085
        %v7087 = vcombine.low %v7079, %v7086
        %v7089 = vunpack.c.l.s4 1966171168
        %v7090 = vunpack.c.0.s8 %v7089
        %v7091 = vlaneseq
        %v7092 = vshrl.u32 %v7091, 7
        %v7093 = vsub.s32 %v7090, %v7092
        %v7094 = vrot.slane %v7087, %v7093
        %v7095 = vcombine.low %v6991, %v6992
        %v7096 = vcombine.low %v6993, %v6994
        %v7098 = vunpack.c.l.s4 1966171168
        %v7099 = vunpack.c.0.s8 %v7098
        %v7100 = vlaneseq
        %v7101 = vshrl.u32 %v7100, 7
        %v7102 = vsub.s32 %v7099, %v7101
        %v7103 = vrot.slane %v7095, %v7102
        %v7105 = vunpack.c.l.s4 1966171168
        %v7106 = vunpack.c.0.s8 %v7105
        %v7107 = vlaneseq
        %v7108 = vshrl.u32 %v7107, 7
        %v7109 = vsub.s32 %v7106, %v7108
        %v7110 = vrot.slane %v7096, %v7109
        %v7111 = vcombine.low %v7103, %v7110
        %v7113 = vunpack.c.l.s4 1966171168
        %v7114 = vunpack.c.0.s8 %v7113
        %v7115 = vlaneseq
        %v7116 = vshrl.u32 %v7115, 7
        %v7117 = vsub.s32 %v7114, %v7116
        %v7118 = vrot.slane %v7111, %v7117
        %v7119 = vcombine.low %v6995, %v6996
        %v7120 = vcombine.low %v6997, %v6998
        %v7122 = vunpack.c.l.s4 1966171168
        %v7123 = vunpack.c.0.s8 %v7122
        %v7124 = vlaneseq
        %v7125 = vshrl.u32 %v7124, 7
        %v7126 = vsub.s32 %v7123, %v7125
        %v7127 = vrot.slane %v7119, %v7126
        %v7129 = vunpack.c.l.s4 1966171168
        %v7130 = vunpack.c.0.s8 %v7129
        %v7131 = vlaneseq
        %v7132 = vshrl.u32 %v7131, 7
        %v7133 = vsub.s32 %v7130, %v7132
        %v7134 = vrot.slane %v7120, %v7133
        %v7135 = vcombine.low %v7127, %v7134
        %v7137 = vunpack.c.l.s4 1966171168
        %v7138 = vunpack.c.0.s8 %v7137
        %v7139 = vlaneseq
        %v7140 = vshrl.u32 %v7139, 7
        %v7141 = vsub.s32 %v7138, %v7140
        %v7142 = vrot.slane %v7135, %v7141
        %v7143 = vcombine.low %v6999, %v7000
        %v7144 = vcombine.low %v7001, %v7002
        %v7146 = vunpack.c.l.s4 1966171168
        %v7147 = vunpack.c.0.s8 %v7146
        %v7148 = vlaneseq
        %v7149 = vshrl.u32 %v7148, 7
        %v7150 = vsub.s32 %v7147, %v7149
        %v7151 = vrot.slane %v7143, %v7150
        %v7153 = vunpack.c.l.s4 1966171168
        %v7154 = vunpack.c.0.s8 %v7153
        %v7155 = vlaneseq
        %v7156 = vshrl.u32 %v7155, 7
        %v7157 = vsub.s32 %v7154, %v7156
        %v7158 = vrot.slane %v7144, %v7157
        %v7159 = vcombine.low %v7151, %v7158
        %v7161 = vunpack.c.l.s4 1966171168
        %v7162 = vunpack.c.0.s8 %v7161
        %v7163 = vlaneseq
        %v7164 = vshrl.u32 %v7163, 7
        %v7165 = vsub.s32 %v7162, %v7164
        %v7166 = vrot.slane %v7159, %v7165
        %v7167 = vcombine.low %v7003, %v7004
        %v7168 = vcombine.low %v7005, %v7006
        %v7170 = vunpack.c.l.s4 1966171168
        %v7171 = vunpack.c.0.s8 %v7170
        %v7172 = vlaneseq
        %v7173 = vshrl.u32 %v7172, 7
        %v7174 = vsub.s32 %v7171, %v7173
        %v7175 = vrot.slane %v7167, %v7174
        %v7177 = vunpack.c.l.s4 1966171168
        %v7178 = vunpack.c.0.s8 %v7177
        %v7179 = vlaneseq
        %v7180 = vshrl.u32 %v7179, 7
        %v7181 = vsub.s32 %v7178, %v7180
        %v7182 = vrot.slane %v7168, %v7181
        %v7183 = vcombine.low %v7175, %v7182
        %v7185 = vunpack.c.l.s4 1966171168
        %v7186 = vunpack.c.0.s8 %v7185
        %v7187 = vlaneseq
        %v7188 = vshrl.u32 %v7187, 7
        %v7189 = vsub.s32 %v7186, %v7188
        %v7190 = vrot.slane %v7183, %v7189
        %v7191 = vcombine.low %v7007, %v7008
        %v7192 = vcombine.low %v7009, %v7010
        %v7194 = vunpack.c.l.s4 1966171168
        %v7195 = vunpack.c.0.s8 %v7194
        %v7196 = vlaneseq
        %v7197 = vshrl.u32 %v7196, 7
        %v7198 = vsub.s32 %v7195, %v7197
        %v7199 = vrot.slane %v7191, %v7198
        %v7201 = vunpack.c.l.s4 1966171168
        %v7202 = vunpack.c.0.s8 %v7201
        %v7203 = vlaneseq
        %v7204 = vshrl.u32 %v7203, 7
        %v7205 = vsub.s32 %v7202, %v7204
        %v7206 = vrot.slane %v7192, %v7205
        %v7207 = vcombine.low %v7199, %v7206
        %v7209 = vunpack.c.l.s4 1966171168
        %v7210 = vunpack.c.0.s8 %v7209
        %v7211 = vlaneseq
        %v7212 = vshrl.u32 %v7211, 7
        %v7213 = vsub.s32 %v7210, %v7212
        %v7214 = vrot.slane %v7207, %v7213
        %v7215 = vcombine.low %v7011, %v7012
        %v7216 = vcombine.low %v7013, %v7014
        %v7218 = vunpack.c.l.s4 1966171168
        %v7219 = vunpack.c.0.s8 %v7218
        %v7220 = vlaneseq
        %v7221 = vshrl.u32 %v7220, 7
        %v7222 = vsub.s32 %v7219, %v7221
        %v7223 = vrot.slane %v7215, %v7222
        %v7225 = vunpack.c.l.s4 1966171168
        %v7226 = vunpack.c.0.s8 %v7225
        %v7227 = vlaneseq
        %v7228 = vshrl.u32 %v7227, 7
        %v7229 = vsub.s32 %v7226, %v7228
        %v7230 = vrot.slane %v7216, %v7229
        %v7231 = vcombine.low %v7223, %v7230
        %v7233 = vunpack.c.l.s4 1966171168
        %v7234 = vunpack.c.0.s8 %v7233
        %v7235 = vlaneseq
        %v7236 = vshrl.u32 %v7235, 7
        %v7237 = vsub.s32 %v7234, %v7236
        %v7238 = vrot.slane %v7231, %v7237
        %v7247 = vlaneseq
        %vm7248 = vcmp.ge.s32.totalorder %v7247, 0
        %vm7249 = vcmp.lt.s32.totalorder %v7247, 512
        %vm7250 = vmand %vm7248, %vm7249
        %7251 = vst.msk [vmem:[%s373] ss:$8 sm:$0xf] %vm7250, %v7070
        %7252 = vst.msk [vmem:[%s373] ss:$8 sm:$0x0] %vm7250, %v7070
        %s7253 = scalar_lea.vmem %s373, 64
        %7254 = vst.msk [vmem:[%s7253] ss:$8 sm:$0xf] %vm7250, %v7094
        %7255 = vst.msk [vmem:[%s7253] ss:$8 sm:$0x0] %vm7250, %v7094
        %s7256 = scalar_lea.vmem %s373, 128
        %7257 = vst.msk [vmem:[%s7256] ss:$8 sm:$0xf] %vm7250, %v7118
        %7258 = vst.msk [vmem:[%s7256] ss:$8 sm:$0x0] %vm7250, %v7118
        %s7259 = scalar_lea.vmem %s373, 192
        %7260 = vst.msk [vmem:[%s7259] ss:$8 sm:$0xf] %vm7250, %v7142
        %7261 = vst.msk [vmem:[%s7259] ss:$8 sm:$0x0] %vm7250, %v7142
        %s7262 = scalar_lea.vmem %s373, 256
        %7263 = vst.msk [vmem:[%s7262] ss:$8 sm:$0xf] %vm7250, %v7166
        %7264 = vst.msk [vmem:[%s7262] ss:$8 sm:$0x0] %vm7250, %v7166
        %s7265 = scalar_lea.vmem %s373, 320
        %7266 = vst.msk [vmem:[%s7265] ss:$8 sm:$0xf] %vm7250, %v7190
        %7267 = vst.msk [vmem:[%s7265] ss:$8 sm:$0x0] %vm7250, %v7190
        %s7268 = scalar_lea.vmem %s373, 384
        %7269 = vst.msk [vmem:[%s7268] ss:$8 sm:$0xf] %vm7250, %v7214
        %7270 = vst.msk [vmem:[%s7268] ss:$8 sm:$0x0] %vm7250, %v7214
        %s7271 = scalar_lea.vmem %s373, 448
        %7272 = vst.msk [vmem:[%s7271] ss:$8 sm:$0xf] %vm7250, %v7238
        %7273 = vst.msk [vmem:[%s7271] ss:$8 sm:$0x0] %vm7250, %v7238
        %v7274 = vcombine.high %v7055, %v7062
        %v7276 = vunpack.c.l.s4 1966171168
        %v7277 = vunpack.c.0.s8 %v7276
        %v7278 = vlaneseq
        %v7279 = vshrl.u32 %v7278, 7
        %v7280 = vsub.s32 %v7277, %v7279
        %v7281 = vrot.slane %v7274, %v7280
        %v7282 = vcombine.high %v7079, %v7086
        %v7284 = vunpack.c.l.s4 1966171168
        %v7285 = vunpack.c.0.s8 %v7284
        %v7286 = vlaneseq
        %v7287 = vshrl.u32 %v7286, 7
        %v7288 = vsub.s32 %v7285, %v7287
        %v7289 = vrot.slane %v7282, %v7288
        %v7290 = vcombine.high %v7103, %v7110
        %v7292 = vunpack.c.l.s4 1966171168
        %v7293 = vunpack.c.0.s8 %v7292
        %v7294 = vlaneseq
        %v7295 = vshrl.u32 %v7294, 7
        %v7296 = vsub.s32 %v7293, %v7295
        %v7297 = vrot.slane %v7290, %v7296
        %v7298 = vcombine.high %v7127, %v7134
        %v7300 = vunpack.c.l.s4 1966171168
        %v7301 = vunpack.c.0.s8 %v7300
        %v7302 = vlaneseq
        %v7303 = vshrl.u32 %v7302, 7
        %v7304 = vsub.s32 %v7301, %v7303
        %v7305 = vrot.slane %v7298, %v7304
        %v7306 = vcombine.high %v7151, %v7158
        %v7308 = vunpack.c.l.s4 1966171168
        %v7309 = vunpack.c.0.s8 %v7308
        %v7310 = vlaneseq
        %v7311 = vshrl.u32 %v7310, 7
        %v7312 = vsub.s32 %v7309, %v7311
        %v7313 = vrot.slane %v7306, %v7312
        %v7314 = vcombine.high %v7175, %v7182
        %v7316 = vunpack.c.l.s4 1966171168
        %v7317 = vunpack.c.0.s8 %v7316
        %v7318 = vlaneseq
        %v7319 = vshrl.u32 %v7318, 7
        %v7320 = vsub.s32 %v7317, %v7319
        %v7321 = vrot.slane %v7314, %v7320
        %v7322 = vcombine.high %v7199, %v7206
        %v7324 = vunpack.c.l.s4 1966171168
        %v7325 = vunpack.c.0.s8 %v7324
        %v7326 = vlaneseq
        %v7327 = vshrl.u32 %v7326, 7
        %v7328 = vsub.s32 %v7325, %v7327
        %v7329 = vrot.slane %v7322, %v7328
        %v7330 = vcombine.high %v7223, %v7230
        %v7332 = vunpack.c.l.s4 1966171168
        %v7333 = vunpack.c.0.s8 %v7332
        %v7334 = vlaneseq
        %v7335 = vshrl.u32 %v7334, 7
        %v7336 = vsub.s32 %v7333, %v7335
        %v7337 = vrot.slane %v7330, %v7336
        %s7346 = scalar_lea.vmem %s373, 1
        %7347 = vst.msk [vmem:[%s7346] ss:$8 sm:$0xf] %vm7250, %v7281
        %7348 = vst.msk [vmem:[%s7346] ss:$8 sm:$0x0] %vm7250, %v7281
        %s7349 = scalar_lea.vmem %s373, 65
        %7350 = vst.msk [vmem:[%s7349] ss:$8 sm:$0xf] %vm7250, %v7289
        %7351 = vst.msk [vmem:[%s7349] ss:$8 sm:$0x0] %vm7250, %v7289
        %s7352 = scalar_lea.vmem %s373, 129
        %7353 = vst.msk [vmem:[%s7352] ss:$8 sm:$0xf] %vm7250, %v7297
        %7354 = vst.msk [vmem:[%s7352] ss:$8 sm:$0x0] %vm7250, %v7297
        %s7355 = scalar_lea.vmem %s373, 193
        %7356 = vst.msk [vmem:[%s7355] ss:$8 sm:$0xf] %vm7250, %v7305
        %7357 = vst.msk [vmem:[%s7355] ss:$8 sm:$0x0] %vm7250, %v7305
        %s7358 = scalar_lea.vmem %s373, 257
        %7359 = vst.msk [vmem:[%s7358] ss:$8 sm:$0xf] %vm7250, %v7313
        %7360 = vst.msk [vmem:[%s7358] ss:$8 sm:$0x0] %vm7250, %v7313
        %s7361 = scalar_lea.vmem %s373, 321
        %7362 = vst.msk [vmem:[%s7361] ss:$8 sm:$0xf] %vm7250, %v7321
        %7363 = vst.msk [vmem:[%s7361] ss:$8 sm:$0x0] %vm7250, %v7321
        %s7364 = scalar_lea.vmem %s373, 385
        %7365 = vst.msk [vmem:[%s7364] ss:$8 sm:$0xf] %vm7250, %v7329
        %7366 = vst.msk [vmem:[%s7364] ss:$8 sm:$0x0] %vm7250, %v7329
        %s7367 = scalar_lea.vmem %s373, 449
        %7368 = vst.msk [vmem:[%s7367] ss:$8 sm:$0xf] %vm7250, %v7337
        %7369 = vst.msk [vmem:[%s7367] ss:$8 sm:$0x0] %vm7250, %v7337
        %v7370 = vcombine.high %v7070, %v7070
        %v7371 = vcombine.high %v7094, %v7094
        %v7372 = vcombine.high %v7118, %v7118
        %v7373 = vcombine.high %v7142, %v7142
        %v7374 = vcombine.high %v7166, %v7166
        %v7375 = vcombine.high %v7190, %v7190
        %v7376 = vcombine.high %v7214, %v7214
        %v7377 = vcombine.high %v7238, %v7238
        %s7386 = scalar_lea.vmem %s373, 2
        %7387 = vst.msk [vmem:[%s7386] ss:$8 sm:$0xf] %vm7250, %v7370
        %7388 = vst.msk [vmem:[%s7386] ss:$8 sm:$0x0] %vm7250, %v7370
        %s7389 = scalar_lea.vmem %s373, 66
        %7390 = vst.msk [vmem:[%s7389] ss:$8 sm:$0xf] %vm7250, %v7371
        %7391 = vst.msk [vmem:[%s7389] ss:$8 sm:$0x0] %vm7250, %v7371
        %s7392 = scalar_lea.vmem %s373, 130
        %7393 = vst.msk [vmem:[%s7392] ss:$8 sm:$0xf] %vm7250, %v7372
        %7394 = vst.msk [vmem:[%s7392] ss:$8 sm:$0x0] %vm7250, %v7372
        %s7395 = scalar_lea.vmem %s373, 194
        %7396 = vst.msk [vmem:[%s7395] ss:$8 sm:$0xf] %vm7250, %v7373
        %7397 = vst.msk [vmem:[%s7395] ss:$8 sm:$0x0] %vm7250, %v7373
        %s7398 = scalar_lea.vmem %s373, 258
        %7399 = vst.msk [vmem:[%s7398] ss:$8 sm:$0xf] %vm7250, %v7374
        %7400 = vst.msk [vmem:[%s7398] ss:$8 sm:$0x0] %vm7250, %v7374
        %s7401 = scalar_lea.vmem %s373, 322
        %7402 = vst.msk [vmem:[%s7401] ss:$8 sm:$0xf] %vm7250, %v7375
        %7403 = vst.msk [vmem:[%s7401] ss:$8 sm:$0x0] %vm7250, %v7375
        %s7404 = scalar_lea.vmem %s373, 386
        %7405 = vst.msk [vmem:[%s7404] ss:$8 sm:$0xf] %vm7250, %v7376
        %7406 = vst.msk [vmem:[%s7404] ss:$8 sm:$0x0] %vm7250, %v7376
        %s7407 = scalar_lea.vmem %s373, 450
        %7408 = vst.msk [vmem:[%s7407] ss:$8 sm:$0xf] %vm7250, %v7377
        %7409 = vst.msk [vmem:[%s7407] ss:$8 sm:$0x0] %vm7250, %v7377
        %v7410 = vcombine.high %v7281, %v7281
        %v7411 = vcombine.high %v7289, %v7289
        %v7412 = vcombine.high %v7297, %v7297
        %v7413 = vcombine.high %v7305, %v7305
        %v7414 = vcombine.high %v7313, %v7313
        %v7415 = vcombine.high %v7321, %v7321
        %v7416 = vcombine.high %v7329, %v7329
        %v7417 = vcombine.high %v7337, %v7337
        %s7426 = scalar_lea.vmem %s373, 3
        %7427 = vst.msk [vmem:[%s7426] ss:$8 sm:$0xf] %vm7250, %v7410
        %7428 = vst.msk [vmem:[%s7426] ss:$8 sm:$0x0] %vm7250, %v7410
        %s7429 = scalar_lea.vmem %s373, 67
        %7430 = vst.msk [vmem:[%s7429] ss:$8 sm:$0xf] %vm7250, %v7411
        %7431 = vst.msk [vmem:[%s7429] ss:$8 sm:$0x0] %vm7250, %v7411
        %s7432 = scalar_lea.vmem %s373, 131
        %7433 = vst.msk [vmem:[%s7432] ss:$8 sm:$0xf] %vm7250, %v7412
        %7434 = vst.msk [vmem:[%s7432] ss:$8 sm:$0x0] %vm7250, %v7412
        %s7435 = scalar_lea.vmem %s373, 195
        %7436 = vst.msk [vmem:[%s7435] ss:$8 sm:$0xf] %vm7250, %v7413
        %7437 = vst.msk [vmem:[%s7435] ss:$8 sm:$0x0] %vm7250, %v7413
        %s7438 = scalar_lea.vmem %s373, 259
        %7439 = vst.msk [vmem:[%s7438] ss:$8 sm:$0xf] %vm7250, %v7414
        %7440 = vst.msk [vmem:[%s7438] ss:$8 sm:$0x0] %vm7250, %v7414
        %s7441 = scalar_lea.vmem %s373, 323
        %7442 = vst.msk [vmem:[%s7441] ss:$8 sm:$0xf] %vm7250, %v7415
        %7443 = vst.msk [vmem:[%s7441] ss:$8 sm:$0x0] %vm7250, %v7415
        %s7444 = scalar_lea.vmem %s373, 387
        %7445 = vst.msk [vmem:[%s7444] ss:$8 sm:$0xf] %vm7250, %v7416
        %7446 = vst.msk [vmem:[%s7444] ss:$8 sm:$0x0] %vm7250, %v7416
        %s7447 = scalar_lea.vmem %s373, 451
        %7448 = vst.msk [vmem:[%s7447] ss:$8 sm:$0xf] %vm7250, %v7417
        %7449 = vst.msk [vmem:[%s7447] ss:$8 sm:$0x0] %vm7250, %v7417
        %v7450 = vcombine.high %v6983, %v6984
        %v7451 = vcombine.high %v6985, %v6986
        %v7453 = vunpack.c.l.s4 1966171168
        %v7454 = vunpack.c.0.s8 %v7453
        %v7455 = vlaneseq
        %v7456 = vshrl.u32 %v7455, 7
        %v7457 = vsub.s32 %v7454, %v7456
        %v7458 = vrot.slane %v7450, %v7457
        %v7460 = vunpack.c.l.s4 1966171168
        %v7461 = vunpack.c.0.s8 %v7460
        %v7462 = vlaneseq
        %v7463 = vshrl.u32 %v7462, 7
        %v7464 = vsub.s32 %v7461, %v7463
        %v7465 = vrot.slane %v7451, %v7464
        %v7466 = vcombine.low %v7458, %v7465
        %v7468 = vunpack.c.l.s4 1966171168
        %v7469 = vunpack.c.0.s8 %v7468
        %v7470 = vlaneseq
        %v7471 = vshrl.u32 %v7470, 7
        %v7472 = vsub.s32 %v7469, %v7471
        %v7473 = vrot.slane %v7466, %v7472
        %v7474 = vcombine.high %v6987, %v6988
        %v7475 = vcombine.high %v6989, %v6990
        %v7477 = vunpack.c.l.s4 1966171168
        %v7478 = vunpack.c.0.s8 %v7477
        %v7479 = vlaneseq
        %v7480 = vshrl.u32 %v7479, 7
        %v7481 = vsub.s32 %v7478, %v7480
        %v7482 = vrot.slane %v7474, %v7481
        %v7484 = vunpack.c.l.s4 1966171168
        %v7485 = vunpack.c.0.s8 %v7484
        %v7486 = vlaneseq
        %v7487 = vshrl.u32 %v7486, 7
        %v7488 = vsub.s32 %v7485, %v7487
        %v7489 = vrot.slane %v7475, %v7488
        %v7490 = vcombine.low %v7482, %v7489
        %v7492 = vunpack.c.l.s4 1966171168
        %v7493 = vunpack.c.0.s8 %v7492
        %v7494 = vlaneseq
        %v7495 = vshrl.u32 %v7494, 7
        %v7496 = vsub.s32 %v7493, %v7495
        %v7497 = vrot.slane %v7490, %v7496
        %v7498 = vcombine.high %v6991, %v6992
        %v7499 = vcombine.high %v6993, %v6994
        %v7501 = vunpack.c.l.s4 1966171168
        %v7502 = vunpack.c.0.s8 %v7501
        %v7503 = vlaneseq
        %v7504 = vshrl.u32 %v7503, 7
        %v7505 = vsub.s32 %v7502, %v7504
        %v7506 = vrot.slane %v7498, %v7505
        %v7508 = vunpack.c.l.s4 1966171168
        %v7509 = vunpack.c.0.s8 %v7508
        %v7510 = vlaneseq
        %v7511 = vshrl.u32 %v7510, 7
        %v7512 = vsub.s32 %v7509, %v7511
        %v7513 = vrot.slane %v7499, %v7512
        %v7514 = vcombine.low %v7506, %v7513
        %v7516 = vunpack.c.l.s4 1966171168
        %v7517 = vunpack.c.0.s8 %v7516
        %v7518 = vlaneseq
        %v7519 = vshrl.u32 %v7518, 7
        %v7520 = vsub.s32 %v7517, %v7519
        %v7521 = vrot.slane %v7514, %v7520
        %v7522 = vcombine.high %v6995, %v6996
        %v7523 = vcombine.high %v6997, %v6998
        %v7525 = vunpack.c.l.s4 1966171168
        %v7526 = vunpack.c.0.s8 %v7525
        %v7527 = vlaneseq
        %v7528 = vshrl.u32 %v7527, 7
        %v7529 = vsub.s32 %v7526, %v7528
        %v7530 = vrot.slane %v7522, %v7529
        %v7532 = vunpack.c.l.s4 1966171168
        %v7533 = vunpack.c.0.s8 %v7532
        %v7534 = vlaneseq
        %v7535 = vshrl.u32 %v7534, 7
        %v7536 = vsub.s32 %v7533, %v7535
        %v7537 = vrot.slane %v7523, %v7536
        %v7538 = vcombine.low %v7530, %v7537
        %v7540 = vunpack.c.l.s4 1966171168
        %v7541 = vunpack.c.0.s8 %v7540
        %v7542 = vlaneseq
        %v7543 = vshrl.u32 %v7542, 7
        %v7544 = vsub.s32 %v7541, %v7543
        %v7545 = vrot.slane %v7538, %v7544
        %v7546 = vcombine.high %v6999, %v7000
        %v7547 = vcombine.high %v7001, %v7002
        %v7549 = vunpack.c.l.s4 1966171168
        %v7550 = vunpack.c.0.s8 %v7549
        %v7551 = vlaneseq
        %v7552 = vshrl.u32 %v7551, 7
        %v7553 = vsub.s32 %v7550, %v7552
        %v7554 = vrot.slane %v7546, %v7553
        %v7556 = vunpack.c.l.s4 1966171168
        %v7557 = vunpack.c.0.s8 %v7556
        %v7558 = vlaneseq
        %v7559 = vshrl.u32 %v7558, 7
        %v7560 = vsub.s32 %v7557, %v7559
        %v7561 = vrot.slane %v7547, %v7560
        %v7562 = vcombine.low %v7554, %v7561
        %v7564 = vunpack.c.l.s4 1966171168
        %v7565 = vunpack.c.0.s8 %v7564
        %v7566 = vlaneseq
        %v7567 = vshrl.u32 %v7566, 7
        %v7568 = vsub.s32 %v7565, %v7567
        %v7569 = vrot.slane %v7562, %v7568
        %v7570 = vcombine.high %v7003, %v7004
        %v7571 = vcombine.high %v7005, %v7006
        %v7573 = vunpack.c.l.s4 1966171168
        %v7574 = vunpack.c.0.s8 %v7573
        %v7575 = vlaneseq
        %v7576 = vshrl.u32 %v7575, 7
        %v7577 = vsub.s32 %v7574, %v7576
        %v7578 = vrot.slane %v7570, %v7577
        %v7580 = vunpack.c.l.s4 1966171168
        %v7581 = vunpack.c.0.s8 %v7580
        %v7582 = vlaneseq
        %v7583 = vshrl.u32 %v7582, 7
        %v7584 = vsub.s32 %v7581, %v7583
        %v7585 = vrot.slane %v7571, %v7584
        %v7586 = vcombine.low %v7578, %v7585
        %v7588 = vunpack.c.l.s4 1966171168
        %v7589 = vunpack.c.0.s8 %v7588
        %v7590 = vlaneseq
        %v7591 = vshrl.u32 %v7590, 7
        %v7592 = vsub.s32 %v7589, %v7591
        %v7593 = vrot.slane %v7586, %v7592
        %v7594 = vcombine.high %v7007, %v7008
        %v7595 = vcombine.high %v7009, %v7010
        %v7597 = vunpack.c.l.s4 1966171168
        %v7598 = vunpack.c.0.s8 %v7597
        %v7599 = vlaneseq
        %v7600 = vshrl.u32 %v7599, 7
        %v7601 = vsub.s32 %v7598, %v7600
        %v7602 = vrot.slane %v7594, %v7601
        %v7604 = vunpack.c.l.s4 1966171168
        %v7605 = vunpack.c.0.s8 %v7604
        %v7606 = vlaneseq
        %v7607 = vshrl.u32 %v7606, 7
        %v7608 = vsub.s32 %v7605, %v7607
        %v7609 = vrot.slane %v7595, %v7608
        %v7610 = vcombine.low %v7602, %v7609
        %v7612 = vunpack.c.l.s4 1966171168
        %v7613 = vunpack.c.0.s8 %v7612
        %v7614 = vlaneseq
        %v7615 = vshrl.u32 %v7614, 7
        %v7616 = vsub.s32 %v7613, %v7615
        %v7617 = vrot.slane %v7610, %v7616
        %v7618 = vcombine.high %v7011, %v7012
        %v7619 = vcombine.high %v7013, %v7014
        %v7621 = vunpack.c.l.s4 1966171168
        %v7622 = vunpack.c.0.s8 %v7621
        %v7623 = vlaneseq
        %v7624 = vshrl.u32 %v7623, 7
        %v7625 = vsub.s32 %v7622, %v7624
        %v7626 = vrot.slane %v7618, %v7625
        %v7628 = vunpack.c.l.s4 1966171168
        %v7629 = vunpack.c.0.s8 %v7628
        %v7630 = vlaneseq
        %v7631 = vshrl.u32 %v7630, 7
        %v7632 = vsub.s32 %v7629, %v7631
        %v7633 = vrot.slane %v7619, %v7632
        %v7634 = vcombine.low %v7626, %v7633
        %v7636 = vunpack.c.l.s4 1966171168
        %v7637 = vunpack.c.0.s8 %v7636
        %v7638 = vlaneseq
        %v7639 = vshrl.u32 %v7638, 7
        %v7640 = vsub.s32 %v7637, %v7639
        %v7641 = vrot.slane %v7634, %v7640
        %s7650 = scalar_lea.vmem %s373, 4
        %7651 = vst.msk [vmem:[%s7650] ss:$8 sm:$0xf] %vm7250, %v7473
        %7652 = vst.msk [vmem:[%s7650] ss:$8 sm:$0x0] %vm7250, %v7473
        %s7653 = scalar_lea.vmem %s373, 68
        %7654 = vst.msk [vmem:[%s7653] ss:$8 sm:$0xf] %vm7250, %v7497
        %7655 = vst.msk [vmem:[%s7653] ss:$8 sm:$0x0] %vm7250, %v7497
        %s7656 = scalar_lea.vmem %s373, 132
        %7657 = vst.msk [vmem:[%s7656] ss:$8 sm:$0xf] %vm7250, %v7521
        %7658 = vst.msk [vmem:[%s7656] ss:$8 sm:$0x0] %vm7250, %v7521
        %s7659 = scalar_lea.vmem %s373, 196
        %7660 = vst.msk [vmem:[%s7659] ss:$8 sm:$0xf] %vm7250, %v7545
        %7661 = vst.msk [vmem:[%s7659] ss:$8 sm:$0x0] %vm7250, %v7545
        %s7662 = scalar_lea.vmem %s373, 260
        %7663 = vst.msk [vmem:[%s7662] ss:$8 sm:$0xf] %vm7250, %v7569
        %7664 = vst.msk [vmem:[%s7662] ss:$8 sm:$0x0] %vm7250, %v7569
        %s7665 = scalar_lea.vmem %s373, 324
        %7666 = vst.msk [vmem:[%s7665] ss:$8 sm:$0xf] %vm7250, %v7593
        %7667 = vst.msk [vmem:[%s7665] ss:$8 sm:$0x0] %vm7250, %v7593
        %s7668 = scalar_lea.vmem %s373, 388
        %7669 = vst.msk [vmem:[%s7668] ss:$8 sm:$0xf] %vm7250, %v7617
        %7670 = vst.msk [vmem:[%s7668] ss:$8 sm:$0x0] %vm7250, %v7617
        %s7671 = scalar_lea.vmem %s373, 452
        %7672 = vst.msk [vmem:[%s7671] ss:$8 sm:$0xf] %vm7250, %v7641
        %7673 = vst.msk [vmem:[%s7671] ss:$8 sm:$0x0] %vm7250, %v7641
        %v7674 = vcombine.high %v7458, %v7465
        %v7676 = vunpack.c.l.s4 1966171168
        %v7677 = vunpack.c.0.s8 %v7676
        %v7678 = vlaneseq
        %v7679 = vshrl.u32 %v7678, 7
        %v7680 = vsub.s32 %v7677, %v7679
        %v7681 = vrot.slane %v7674, %v7680
        %v7682 = vcombine.high %v7482, %v7489
        %v7684 = vunpack.c.l.s4 1966171168
        %v7685 = vunpack.c.0.s8 %v7684
        %v7686 = vlaneseq
        %v7687 = vshrl.u32 %v7686, 7
        %v7688 = vsub.s32 %v7685, %v7687
        %v7689 = vrot.slane %v7682, %v7688
        %v7690 = vcombine.high %v7506, %v7513
        %v7692 = vunpack.c.l.s4 1966171168
        %v7693 = vunpack.c.0.s8 %v7692
        %v7694 = vlaneseq
        %v7695 = vshrl.u32 %v7694, 7
        %v7696 = vsub.s32 %v7693, %v7695
        %v7697 = vrot.slane %v7690, %v7696
        %v7698 = vcombine.high %v7530, %v7537
        %v7700 = vunpack.c.l.s4 1966171168
        %v7701 = vunpack.c.0.s8 %v7700
        %v7702 = vlaneseq
        %v7703 = vshrl.u32 %v7702, 7
        %v7704 = vsub.s32 %v7701, %v7703
        %v7705 = vrot.slane %v7698, %v7704
        %v7706 = vcombine.high %v7554, %v7561
        %v7708 = vunpack.c.l.s4 1966171168
        %v7709 = vunpack.c.0.s8 %v7708
        %v7710 = vlaneseq
        %v7711 = vshrl.u32 %v7710, 7
        %v7712 = vsub.s32 %v7709, %v7711
        %v7713 = vrot.slane %v7706, %v7712
        %v7714 = vcombine.high %v7578, %v7585
        %v7716 = vunpack.c.l.s4 1966171168
        %v7717 = vunpack.c.0.s8 %v7716
        %v7718 = vlaneseq
        %v7719 = vshrl.u32 %v7718, 7
        %v7720 = vsub.s32 %v7717, %v7719
        %v7721 = vrot.slane %v7714, %v7720
        %v7722 = vcombine.high %v7602, %v7609
        %v7724 = vunpack.c.l.s4 1966171168
        %v7725 = vunpack.c.0.s8 %v7724
        %v7726 = vlaneseq
        %v7727 = vshrl.u32 %v7726, 7
        %v7728 = vsub.s32 %v7725, %v7727
        %v7729 = vrot.slane %v7722, %v7728
        %v7730 = vcombine.high %v7626, %v7633
        %v7732 = vunpack.c.l.s4 1966171168
        %v7733 = vunpack.c.0.s8 %v7732
        %v7734 = vlaneseq
        %v7735 = vshrl.u32 %v7734, 7
        %v7736 = vsub.s32 %v7733, %v7735
        %v7737 = vrot.slane %v7730, %v7736
        %s7746 = scalar_lea.vmem %s373, 5
        %7747 = vst.msk [vmem:[%s7746] ss:$8 sm:$0xf] %vm7250, %v7681
        %7748 = vst.msk [vmem:[%s7746] ss:$8 sm:$0x0] %vm7250, %v7681
        %s7749 = scalar_lea.vmem %s373, 69
        %7750 = vst.msk [vmem:[%s7749] ss:$8 sm:$0xf] %vm7250, %v7689
        %7751 = vst.msk [vmem:[%s7749] ss:$8 sm:$0x0] %vm7250, %v7689
        %s7752 = scalar_lea.vmem %s373, 133
        %7753 = vst.msk [vmem:[%s7752] ss:$8 sm:$0xf] %vm7250, %v7697
        %7754 = vst.msk [vmem:[%s7752] ss:$8 sm:$0x0] %vm7250, %v7697
        %s7755 = scalar_lea.vmem %s373, 197
        %7756 = vst.msk [vmem:[%s7755] ss:$8 sm:$0xf] %vm7250, %v7705
        %7757 = vst.msk [vmem:[%s7755] ss:$8 sm:$0x0] %vm7250, %v7705
        %s7758 = scalar_lea.vmem %s373, 261
        %7759 = vst.msk [vmem:[%s7758] ss:$8 sm:$0xf] %vm7250, %v7713
        %7760 = vst.msk [vmem:[%s7758] ss:$8 sm:$0x0] %vm7250, %v7713
        %s7761 = scalar_lea.vmem %s373, 325
        %7762 = vst.msk [vmem:[%s7761] ss:$8 sm:$0xf] %vm7250, %v7721
        %7763 = vst.msk [vmem:[%s7761] ss:$8 sm:$0x0] %vm7250, %v7721
        %s7764 = scalar_lea.vmem %s373, 389
        %7765 = vst.msk [vmem:[%s7764] ss:$8 sm:$0xf] %vm7250, %v7729
        %7766 = vst.msk [vmem:[%s7764] ss:$8 sm:$0x0] %vm7250, %v7729
        %s7767 = scalar_lea.vmem %s373, 453
        %7768 = vst.msk [vmem:[%s7767] ss:$8 sm:$0xf] %vm7250, %v7737
        %7769 = vst.msk [vmem:[%s7767] ss:$8 sm:$0x0] %vm7250, %v7737
        %v7770 = vcombine.high %v7473, %v7473
        %v7771 = vcombine.high %v7497, %v7497
        %v7772 = vcombine.high %v7521, %v7521
        %v7773 = vcombine.high %v7545, %v7545
        %v7774 = vcombine.high %v7569, %v7569
        %v7775 = vcombine.high %v7593, %v7593
        %v7776 = vcombine.high %v7617, %v7617
        %v7777 = vcombine.high %v7641, %v7641
        %s7786 = scalar_lea.vmem %s373, 6
        %7787 = vst.msk [vmem:[%s7786] ss:$8 sm:$0xf] %vm7250, %v7770
        %7788 = vst.msk [vmem:[%s7786] ss:$8 sm:$0x0] %vm7250, %v7770
        %s7789 = scalar_lea.vmem %s373, 70
        %7790 = vst.msk [vmem:[%s7789] ss:$8 sm:$0xf] %vm7250, %v7771
        %7791 = vst.msk [vmem:[%s7789] ss:$8 sm:$0x0] %vm7250, %v7771
        %s7792 = scalar_lea.vmem %s373, 134
        %7793 = vst.msk [vmem:[%s7792] ss:$8 sm:$0xf] %vm7250, %v7772
        %7794 = vst.msk [vmem:[%s7792] ss:$8 sm:$0x0] %vm7250, %v7772
        %s7795 = scalar_lea.vmem %s373, 198
        %7796 = vst.msk [vmem:[%s7795] ss:$8 sm:$0xf] %vm7250, %v7773
        %7797 = vst.msk [vmem:[%s7795] ss:$8 sm:$0x0] %vm7250, %v7773
        %s7798 = scalar_lea.vmem %s373, 262
        %7799 = vst.msk [vmem:[%s7798] ss:$8 sm:$0xf] %vm7250, %v7774
        %7800 = vst.msk [vmem:[%s7798] ss:$8 sm:$0x0] %vm7250, %v7774
        %s7801 = scalar_lea.vmem %s373, 326
        %7802 = vst.msk [vmem:[%s7801] ss:$8 sm:$0xf] %vm7250, %v7775
        %7803 = vst.msk [vmem:[%s7801] ss:$8 sm:$0x0] %vm7250, %v7775
        %s7804 = scalar_lea.vmem %s373, 390
        %7805 = vst.msk [vmem:[%s7804] ss:$8 sm:$0xf] %vm7250, %v7776
        %7806 = vst.msk [vmem:[%s7804] ss:$8 sm:$0x0] %vm7250, %v7776
        %s7807 = scalar_lea.vmem %s373, 454
        %7808 = vst.msk [vmem:[%s7807] ss:$8 sm:$0xf] %vm7250, %v7777
        %7809 = vst.msk [vmem:[%s7807] ss:$8 sm:$0x0] %vm7250, %v7777
        %v7842 = vrot.slane %v6795, 1
        %v7843 = vrot.slane %v6796, 1
        %v7844 = vrot.slane %v6797, 1
        %v7845 = vrot.slane %v6798, 1
        %v7846 = vrot.slane %v6803, 1
        %v7847 = vrot.slane %v6804, 1
        %v7848 = vrot.slane %v6805, 1
        %v7849 = vrot.slane %v6806, 1
        %v7850 = vrot.slane %v6811, 1
        %v7851 = vrot.slane %v6812, 1
        %v7852 = vrot.slane %v6813, 1
        %v7853 = vrot.slane %v6814, 1
        %v7854 = vrot.slane %v6819, 1
        %v7855 = vrot.slane %v6820, 1
        %v7856 = vrot.slane %v6821, 1
        %v7857 = vrot.slane %v6822, 1
        %v7858 = vrot.slane %v6827, 1
        %v7859 = vrot.slane %v6828, 1
        %v7860 = vrot.slane %v6829, 1
        %v7861 = vrot.slane %v6830, 1
        %v7862 = vrot.slane %v6835, 1
        %v7863 = vrot.slane %v6836, 1
        %v7864 = vrot.slane %v6837, 1
        %v7865 = vrot.slane %v6838, 1
        %v7866 = vrot.slane %v6843, 1
        %v7867 = vrot.slane %v6844, 1
        %v7868 = vrot.slane %v6845, 1
        %v7869 = vrot.slane %v6846, 1
        %v7870 = vrot.slane %v6851, 1
        %v7871 = vrot.slane %v6852, 1
        %v7872 = vrot.slane %v6853, 1
        %v7873 = vrot.slane %v6854, 1
        %v7906 = vadd.f32 %v6795, %v7842
        %v7907 = vadd.f32 %v6796, %v7843
        %v7908 = vadd.f32 %v6797, %v7844
        %v7909 = vadd.f32 %v6798, %v7845
        %v7910 = vadd.f32 %v6803, %v7846
        %v7911 = vadd.f32 %v6804, %v7847
        %v7912 = vadd.f32 %v6805, %v7848
        %v7913 = vadd.f32 %v6806, %v7849
        %v7914 = vadd.f32 %v6811, %v7850
        %v7915 = vadd.f32 %v6812, %v7851
        %v7916 = vadd.f32 %v6813, %v7852
        %v7917 = vadd.f32 %v6814, %v7853
        %v7918 = vadd.f32 %v6819, %v7854
        %v7919 = vadd.f32 %v6820, %v7855
        %v7920 = vadd.f32 %v6821, %v7856
        %v7921 = vadd.f32 %v6822, %v7857
        %v7922 = vadd.f32 %v6827, %v7858
        %v7923 = vadd.f32 %v6828, %v7859
        %v7924 = vadd.f32 %v6829, %v7860
        %v7925 = vadd.f32 %v6830, %v7861
        %v7926 = vadd.f32 %v6835, %v7862
        %v7927 = vadd.f32 %v6836, %v7863
        %v7928 = vadd.f32 %v6837, %v7864
        %v7929 = vadd.f32 %v6838, %v7865
        %v7930 = vadd.f32 %v6843, %v7866
        %v7931 = vadd.f32 %v6844, %v7867
        %v7932 = vadd.f32 %v6845, %v7868
        %v7933 = vadd.f32 %v6846, %v7869
        %v7934 = vadd.f32 %v6851, %v7870
        %v7935 = vadd.f32 %v6852, %v7871
        %v7936 = vadd.f32 %v6853, %v7872
        %v7937 = vadd.f32 %v6854, %v7873
        %v7938 = vmul.f32 %v7906, 0.5
        %v7939 = vmul.f32 %v7907, 0.5
        %v7940 = vmul.f32 %v7908, 0.5
        %v7941 = vmul.f32 %v7909, 0.5
        %v7942 = vmul.f32 %v7910, 0.5
        %v7943 = vmul.f32 %v7911, 0.5
        %v7944 = vmul.f32 %v7912, 0.5
        %v7945 = vmul.f32 %v7913, 0.5
        %v7946 = vmul.f32 %v7914, 0.5
        %v7947 = vmul.f32 %v7915, 0.5
        %v7948 = vmul.f32 %v7916, 0.5
        %v7949 = vmul.f32 %v7917, 0.5
        %v7950 = vmul.f32 %v7918, 0.5
        %v7951 = vmul.f32 %v7919, 0.5
        %v7952 = vmul.f32 %v7920, 0.5
        %v7953 = vmul.f32 %v7921, 0.5
        %v7954 = vmul.f32 %v7922, 0.5
        %v7955 = vmul.f32 %v7923, 0.5
        %v7956 = vmul.f32 %v7924, 0.5
        %v7957 = vmul.f32 %v7925, 0.5
        %v7958 = vmul.f32 %v7926, 0.5
        %v7959 = vmul.f32 %v7927, 0.5
        %v7960 = vmul.f32 %v7928, 0.5
        %v7961 = vmul.f32 %v7929, 0.5
        %v7962 = vmul.f32 %v7930, 0.5
        %v7963 = vmul.f32 %v7931, 0.5
        %v7964 = vmul.f32 %v7932, 0.5
        %v7965 = vmul.f32 %v7933, 0.5
        %v7966 = vmul.f32 %v7934, 0.5
        %v7967 = vmul.f32 %v7935, 0.5
        %v7968 = vmul.f32 %v7936, 0.5
        %v7969 = vmul.f32 %v7937, 0.5
        %v8002 = vcombine.low %v7938, %v7939
        %v8003 = vcombine.low %v7940, %v7941
        %v8005 = vunpack.c.l.s4 1966171168
        %v8006 = vunpack.c.0.s8 %v8005
        %v8007 = vlaneseq
        %v8008 = vshrl.u32 %v8007, 7
        %v8009 = vsub.s32 %v8006, %v8008
        %v8010 = vrot.slane %v8002, %v8009
        %v8012 = vunpack.c.l.s4 1966171168
        %v8013 = vunpack.c.0.s8 %v8012
        %v8014 = vlaneseq
        %v8015 = vshrl.u32 %v8014, 7
        %v8016 = vsub.s32 %v8013, %v8015
        %v8017 = vrot.slane %v8003, %v8016
        %v8018 = vcombine.low %v8010, %v8017
        %v8020 = vunpack.c.l.s4 1966171168
        %v8021 = vunpack.c.0.s8 %v8020
        %v8022 = vlaneseq
        %v8023 = vshrl.u32 %v8022, 7
        %v8024 = vsub.s32 %v8021, %v8023
        %v8025 = vrot.slane %v8018, %v8024
        %v8026 = vcombine.low %v7942, %v7943
        %v8027 = vcombine.low %v7944, %v7945
        %v8029 = vunpack.c.l.s4 1966171168
        %v8030 = vunpack.c.0.s8 %v8029
        %v8031 = vlaneseq
        %v8032 = vshrl.u32 %v8031, 7
        %v8033 = vsub.s32 %v8030, %v8032
        %v8034 = vrot.slane %v8026, %v8033
        %v8036 = vunpack.c.l.s4 1966171168
        %v8037 = vunpack.c.0.s8 %v8036
        %v8038 = vlaneseq
        %v8039 = vshrl.u32 %v8038, 7
        %v8040 = vsub.s32 %v8037, %v8039
        %v8041 = vrot.slane %v8027, %v8040
        %v8042 = vcombine.low %v8034, %v8041
        %v8044 = vunpack.c.l.s4 1966171168
        %v8045 = vunpack.c.0.s8 %v8044
        %v8046 = vlaneseq
        %v8047 = vshrl.u32 %v8046, 7
        %v8048 = vsub.s32 %v8045, %v8047
        %v8049 = vrot.slane %v8042, %v8048
        %v8050 = vcombine.low %v7946, %v7947
        %v8051 = vcombine.low %v7948, %v7949
        %v8053 = vunpack.c.l.s4 1966171168
        %v8054 = vunpack.c.0.s8 %v8053
        %v8055 = vlaneseq
        %v8056 = vshrl.u32 %v8055, 7
        %v8057 = vsub.s32 %v8054, %v8056
        %v8058 = vrot.slane %v8050, %v8057
        %v8060 = vunpack.c.l.s4 1966171168
        %v8061 = vunpack.c.0.s8 %v8060
        %v8062 = vlaneseq
        %v8063 = vshrl.u32 %v8062, 7
        %v8064 = vsub.s32 %v8061, %v8063
        %v8065 = vrot.slane %v8051, %v8064
        %v8066 = vcombine.low %v8058, %v8065
        %v8068 = vunpack.c.l.s4 1966171168
        %v8069 = vunpack.c.0.s8 %v8068
        %v8070 = vlaneseq
        %v8071 = vshrl.u32 %v8070, 7
        %v8072 = vsub.s32 %v8069, %v8071
        %v8073 = vrot.slane %v8066, %v8072
        %v8074 = vcombine.low %v7950, %v7951
        %v8075 = vcombine.low %v7952, %v7953
        %v8077 = vunpack.c.l.s4 1966171168
        %v8078 = vunpack.c.0.s8 %v8077
        %v8079 = vlaneseq
        %v8080 = vshrl.u32 %v8079, 7
        %v8081 = vsub.s32 %v8078, %v8080
        %v8082 = vrot.slane %v8074, %v8081
        %v8084 = vunpack.c.l.s4 1966171168
        %v8085 = vunpack.c.0.s8 %v8084
        %v8086 = vlaneseq
        %v8087 = vshrl.u32 %v8086, 7
        %v8088 = vsub.s32 %v8085, %v8087
        %v8089 = vrot.slane %v8075, %v8088
        %v8090 = vcombine.low %v8082, %v8089
        %v8092 = vunpack.c.l.s4 1966171168
        %v8093 = vunpack.c.0.s8 %v8092
        %v8094 = vlaneseq
        %v8095 = vshrl.u32 %v8094, 7
        %v8096 = vsub.s32 %v8093, %v8095
        %v8097 = vrot.slane %v8090, %v8096
        %v8098 = vcombine.low %v7954, %v7955
        %v8099 = vcombine.low %v7956, %v7957
        %v8101 = vunpack.c.l.s4 1966171168
        %v8102 = vunpack.c.0.s8 %v8101
        %v8103 = vlaneseq
        %v8104 = vshrl.u32 %v8103, 7
        %v8105 = vsub.s32 %v8102, %v8104
        %v8106 = vrot.slane %v8098, %v8105
        %v8108 = vunpack.c.l.s4 1966171168
        %v8109 = vunpack.c.0.s8 %v8108
        %v8110 = vlaneseq
        %v8111 = vshrl.u32 %v8110, 7
        %v8112 = vsub.s32 %v8109, %v8111
        %v8113 = vrot.slane %v8099, %v8112
        %v8114 = vcombine.low %v8106, %v8113
        %v8116 = vunpack.c.l.s4 1966171168
        %v8117 = vunpack.c.0.s8 %v8116
        %v8118 = vlaneseq
        %v8119 = vshrl.u32 %v8118, 7
        %v8120 = vsub.s32 %v8117, %v8119
        %v8121 = vrot.slane %v8114, %v8120
        %v8122 = vcombine.low %v7958, %v7959
        %v8123 = vcombine.low %v7960, %v7961
        %v8125 = vunpack.c.l.s4 1966171168
        %v8126 = vunpack.c.0.s8 %v8125
        %v8127 = vlaneseq
        %v8128 = vshrl.u32 %v8127, 7
        %v8129 = vsub.s32 %v8126, %v8128
        %v8130 = vrot.slane %v8122, %v8129
        %v8132 = vunpack.c.l.s4 1966171168
        %v8133 = vunpack.c.0.s8 %v8132
        %v8134 = vlaneseq
        %v8135 = vshrl.u32 %v8134, 7
        %v8136 = vsub.s32 %v8133, %v8135
        %v8137 = vrot.slane %v8123, %v8136
        %v8138 = vcombine.low %v8130, %v8137
        %v8140 = vunpack.c.l.s4 1966171168
        %v8141 = vunpack.c.0.s8 %v8140
        %v8142 = vlaneseq
        %v8143 = vshrl.u32 %v8142, 7
        %v8144 = vsub.s32 %v8141, %v8143
        %v8145 = vrot.slane %v8138, %v8144
        %v8146 = vcombine.low %v7962, %v7963
        %v8147 = vcombine.low %v7964, %v7965
        %v8149 = vunpack.c.l.s4 1966171168
        %v8150 = vunpack.c.0.s8 %v8149
        %v8151 = vlaneseq
        %v8152 = vshrl.u32 %v8151, 7
        %v8153 = vsub.s32 %v8150, %v8152
        %v8154 = vrot.slane %v8146, %v8153
        %v8156 = vunpack.c.l.s4 1966171168
        %v8157 = vunpack.c.0.s8 %v8156
        %v8158 = vlaneseq
        %v8159 = vshrl.u32 %v8158, 7
        %v8160 = vsub.s32 %v8157, %v8159
        %v8161 = vrot.slane %v8147, %v8160
        %v8162 = vcombine.low %v8154, %v8161
        %v8164 = vunpack.c.l.s4 1966171168
        %v8165 = vunpack.c.0.s8 %v8164
        %v8166 = vlaneseq
        %v8167 = vshrl.u32 %v8166, 7
        %v8168 = vsub.s32 %v8165, %v8167
        %v8169 = vrot.slane %v8162, %v8168
        %v8170 = vcombine.low %v7966, %v7967
        %v8171 = vcombine.low %v7968, %v7969
        %v8173 = vunpack.c.l.s4 1966171168
        %v8174 = vunpack.c.0.s8 %v8173
        %v8175 = vlaneseq
        %v8176 = vshrl.u32 %v8175, 7
        %v8177 = vsub.s32 %v8174, %v8176
        %v8178 = vrot.slane %v8170, %v8177
        %v8180 = vunpack.c.l.s4 1966171168
        %v8181 = vunpack.c.0.s8 %v8180
        %v8182 = vlaneseq
        %v8183 = vshrl.u32 %v8182, 7
        %v8184 = vsub.s32 %v8181, %v8183
        %v8185 = vrot.slane %v8171, %v8184
        %v8186 = vcombine.low %v8178, %v8185
        %v8188 = vunpack.c.l.s4 1966171168
        %v8189 = vunpack.c.0.s8 %v8188
        %v8190 = vlaneseq
        %v8191 = vshrl.u32 %v8190, 7
        %v8192 = vsub.s32 %v8189, %v8191
        %v8193 = vrot.slane %v8186, %v8192
        %s8202 = scalar_lea.vmem %s373, 7
        %8203 = vst.msk [vmem:[%s8202] ss:$8 sm:$0xf] %vm7250, %v8025
        %8204 = vst.msk [vmem:[%s8202] ss:$8 sm:$0x0] %vm7250, %v8025
        %s8205 = scalar_lea.vmem %s373, 71
        %8206 = vst.msk [vmem:[%s8205] ss:$8 sm:$0xf] %vm7250, %v8049
        %8207 = vst.msk [vmem:[%s8205] ss:$8 sm:$0x0] %vm7250, %v8049
        %s8208 = scalar_lea.vmem %s373, 135
        %8209 = vst.msk [vmem:[%s8208] ss:$8 sm:$0xf] %vm7250, %v8073
        %8210 = vst.msk [vmem:[%s8208] ss:$8 sm:$0x0] %vm7250, %v8073
        %s8211 = scalar_lea.vmem %s373, 199
        %8212 = vst.msk [vmem:[%s8211] ss:$8 sm:$0xf] %vm7250, %v8097
        %8213 = vst.msk [vmem:[%s8211] ss:$8 sm:$0x0] %vm7250, %v8097
        %s8214 = scalar_lea.vmem %s373, 263
        %8215 = vst.msk [vmem:[%s8214] ss:$8 sm:$0xf] %vm7250, %v8121
        %8216 = vst.msk [vmem:[%s8214] ss:$8 sm:$0x0] %vm7250, %v8121
        %s8217 = scalar_lea.vmem %s373, 327
        %8218 = vst.msk [vmem:[%s8217] ss:$8 sm:$0xf] %vm7250, %v8145
        %8219 = vst.msk [vmem:[%s8217] ss:$8 sm:$0x0] %vm7250, %v8145
        %s8220 = scalar_lea.vmem %s373, 391
        %8221 = vst.msk [vmem:[%s8220] ss:$8 sm:$0xf] %vm7250, %v8169
        %8222 = vst.msk [vmem:[%s8220] ss:$8 sm:$0x0] %vm7250, %v8169
        %s8223 = scalar_lea.vmem %s373, 455
        %8224 = vst.msk [vmem:[%s8223] ss:$8 sm:$0xf] %vm7250, %v8193
        %8225 = vst.msk [vmem:[%s8223] ss:$8 sm:$0x0] %vm7250, %v8193
        %v8226 = vcombine.high %v8010, %v8017
        %v8228 = vunpack.c.l.s4 1966171168
        %v8229 = vunpack.c.0.s8 %v8228
        %v8230 = vlaneseq
        %v8231 = vshrl.u32 %v8230, 7
        %v8232 = vsub.s32 %v8229, %v8231
        %v8233 = vrot.slane %v8226, %v8232
        %v8234 = vcombine.high %v8034, %v8041
        %v8236 = vunpack.c.l.s4 1966171168
        %v8237 = vunpack.c.0.s8 %v8236
        %v8238 = vlaneseq
        %v8239 = vshrl.u32 %v8238, 7
        %v8240 = vsub.s32 %v8237, %v8239
        %v8241 = vrot.slane %v8234, %v8240
        %v8242 = vcombine.high %v8058, %v8065
        %v8244 = vunpack.c.l.s4 1966171168
        %v8245 = vunpack.c.0.s8 %v8244
        %v8246 = vlaneseq
        %v8247 = vshrl.u32 %v8246, 7
        %v8248 = vsub.s32 %v8245, %v8247
        %v8249 = vrot.slane %v8242, %v8248
        %v8250 = vcombine.high %v8082, %v8089
        %v8252 = vunpack.c.l.s4 1966171168
        %v8253 = vunpack.c.0.s8 %v8252
        %v8254 = vlaneseq
        %v8255 = vshrl.u32 %v8254, 7
        %v8256 = vsub.s32 %v8253, %v8255
        %v8257 = vrot.slane %v8250, %v8256
        %v8258 = vcombine.high %v8106, %v8113
        %v8260 = vunpack.c.l.s4 1966171168
        %v8261 = vunpack.c.0.s8 %v8260
        %v8262 = vlaneseq
        %v8263 = vshrl.u32 %v8262, 7
        %v8264 = vsub.s32 %v8261, %v8263
        %v8265 = vrot.slane %v8258, %v8264
        %v8266 = vcombine.high %v8130, %v8137
        %v8268 = vunpack.c.l.s4 1966171168
        %v8269 = vunpack.c.0.s8 %v8268
        %v8270 = vlaneseq
        %v8271 = vshrl.u32 %v8270, 7
        %v8272 = vsub.s32 %v8269, %v8271
        %v8273 = vrot.slane %v8266, %v8272
        %v8274 = vcombine.high %v8154, %v8161
        %v8276 = vunpack.c.l.s4 1966171168
        %v8277 = vunpack.c.0.s8 %v8276
        %v8278 = vlaneseq
        %v8279 = vshrl.u32 %v8278, 7
        %v8280 = vsub.s32 %v8277, %v8279
        %v8281 = vrot.slane %v8274, %v8280
        %v8282 = vcombine.high %v8178, %v8185
        %v8284 = vunpack.c.l.s4 1966171168
        %v8285 = vunpack.c.0.s8 %v8284
        %v8286 = vlaneseq
        %v8287 = vshrl.u32 %v8286, 7
        %v8288 = vsub.s32 %v8285, %v8287
        %v8289 = vrot.slane %v8282, %v8288
        %s8298 = scalar_lea.vmem %s373, 32
        %8299 = vst.msk [vmem:[%s8298] ss:$8 sm:$0xf] %vm7250, %v8233
        %8300 = vst.msk [vmem:[%s8298] ss:$8 sm:$0x0] %vm7250, %v8233
        %s8301 = scalar_lea.vmem %s373, 96
        %8302 = vst.msk [vmem:[%s8301] ss:$8 sm:$0xf] %vm7250, %v8241
        %8303 = vst.msk [vmem:[%s8301] ss:$8 sm:$0x0] %vm7250, %v8241
        %s8304 = scalar_lea.vmem %s373, 160
        %8305 = vst.msk [vmem:[%s8304] ss:$8 sm:$0xf] %vm7250, %v8249
        %8306 = vst.msk [vmem:[%s8304] ss:$8 sm:$0x0] %vm7250, %v8249
        %s8307 = scalar_lea.vmem %s373, 224
        %8308 = vst.msk [vmem:[%s8307] ss:$8 sm:$0xf] %vm7250, %v8257
        %8309 = vst.msk [vmem:[%s8307] ss:$8 sm:$0x0] %vm7250, %v8257
        %s8310 = scalar_lea.vmem %s373, 288
        %8311 = vst.msk [vmem:[%s8310] ss:$8 sm:$0xf] %vm7250, %v8265
        %8312 = vst.msk [vmem:[%s8310] ss:$8 sm:$0x0] %vm7250, %v8265
        %s8313 = scalar_lea.vmem %s373, 352
        %8314 = vst.msk [vmem:[%s8313] ss:$8 sm:$0xf] %vm7250, %v8273
        %8315 = vst.msk [vmem:[%s8313] ss:$8 sm:$0x0] %vm7250, %v8273
        %s8316 = scalar_lea.vmem %s373, 416
        %8317 = vst.msk [vmem:[%s8316] ss:$8 sm:$0xf] %vm7250, %v8281
        %8318 = vst.msk [vmem:[%s8316] ss:$8 sm:$0x0] %vm7250, %v8281
        %s8319 = scalar_lea.vmem %s373, 480
        %8320 = vst.msk [vmem:[%s8319] ss:$8 sm:$0xf] %vm7250, %v8289
        %8321 = vst.msk [vmem:[%s8319] ss:$8 sm:$0x0] %vm7250, %v8289
        %v8322 = vcombine.high %v8025, %v8025
        %v8323 = vcombine.high %v8049, %v8049
        %v8324 = vcombine.high %v8073, %v8073
        %v8325 = vcombine.high %v8097, %v8097
        %v8326 = vcombine.high %v8121, %v8121
        %v8327 = vcombine.high %v8145, %v8145
        %v8328 = vcombine.high %v8169, %v8169
        %v8329 = vcombine.high %v8193, %v8193
        %s8338 = scalar_lea.vmem %s373, 33
        %8339 = vst.msk [vmem:[%s8338] ss:$8 sm:$0xf] %vm7250, %v8322
        %8340 = vst.msk [vmem:[%s8338] ss:$8 sm:$0x0] %vm7250, %v8322
        %s8341 = scalar_lea.vmem %s373, 97
        %8342 = vst.msk [vmem:[%s8341] ss:$8 sm:$0xf] %vm7250, %v8323
        %8343 = vst.msk [vmem:[%s8341] ss:$8 sm:$0x0] %vm7250, %v8323
        %s8344 = scalar_lea.vmem %s373, 161
        %8345 = vst.msk [vmem:[%s8344] ss:$8 sm:$0xf] %vm7250, %v8324
        %8346 = vst.msk [vmem:[%s8344] ss:$8 sm:$0x0] %vm7250, %v8324
        %s8347 = scalar_lea.vmem %s373, 225
        %8348 = vst.msk [vmem:[%s8347] ss:$8 sm:$0xf] %vm7250, %v8325
        %8349 = vst.msk [vmem:[%s8347] ss:$8 sm:$0x0] %vm7250, %v8325
        %s8350 = scalar_lea.vmem %s373, 289
        %8351 = vst.msk [vmem:[%s8350] ss:$8 sm:$0xf] %vm7250, %v8326
        %8352 = vst.msk [vmem:[%s8350] ss:$8 sm:$0x0] %vm7250, %v8326
        %s8353 = scalar_lea.vmem %s373, 353
        %8354 = vst.msk [vmem:[%s8353] ss:$8 sm:$0xf] %vm7250, %v8327
        %8355 = vst.msk [vmem:[%s8353] ss:$8 sm:$0x0] %vm7250, %v8327
        %s8356 = scalar_lea.vmem %s373, 417
        %8357 = vst.msk [vmem:[%s8356] ss:$8 sm:$0xf] %vm7250, %v8328
        %8358 = vst.msk [vmem:[%s8356] ss:$8 sm:$0x0] %vm7250, %v8328
        %s8359 = scalar_lea.vmem %s373, 481
        %8360 = vst.msk [vmem:[%s8359] ss:$8 sm:$0xf] %vm7250, %v8329
        %8361 = vst.msk [vmem:[%s8359] ss:$8 sm:$0x0] %vm7250, %v8329
        %v8362 = vcombine.high %v8233, %v8233
        %v8363 = vcombine.high %v8241, %v8241
        %v8364 = vcombine.high %v8249, %v8249
        %v8365 = vcombine.high %v8257, %v8257
        %v8366 = vcombine.high %v8265, %v8265
        %v8367 = vcombine.high %v8273, %v8273
        %v8368 = vcombine.high %v8281, %v8281
        %v8369 = vcombine.high %v8289, %v8289
        %s8378 = scalar_lea.vmem %s373, 34
        %8379 = vst.msk [vmem:[%s8378] ss:$8 sm:$0xf] %vm7250, %v8362
        %8380 = vst.msk [vmem:[%s8378] ss:$8 sm:$0x0] %vm7250, %v8362
        %s8381 = scalar_lea.vmem %s373, 98
        %8382 = vst.msk [vmem:[%s8381] ss:$8 sm:$0xf] %vm7250, %v8363
        %8383 = vst.msk [vmem:[%s8381] ss:$8 sm:$0x0] %vm7250, %v8363
        %s8384 = scalar_lea.vmem %s373, 162
        %8385 = vst.msk [vmem:[%s8384] ss:$8 sm:$0xf] %vm7250, %v8364
        %8386 = vst.msk [vmem:[%s8384] ss:$8 sm:$0x0] %vm7250, %v8364
        %s8387 = scalar_lea.vmem %s373, 226
        %8388 = vst.msk [vmem:[%s8387] ss:$8 sm:$0xf] %vm7250, %v8365
        %8389 = vst.msk [vmem:[%s8387] ss:$8 sm:$0x0] %vm7250, %v8365
        %s8390 = scalar_lea.vmem %s373, 290
        %8391 = vst.msk [vmem:[%s8390] ss:$8 sm:$0xf] %vm7250, %v8366
        %8392 = vst.msk [vmem:[%s8390] ss:$8 sm:$0x0] %vm7250, %v8366
        %s8393 = scalar_lea.vmem %s373, 354
        %8394 = vst.msk [vmem:[%s8393] ss:$8 sm:$0xf] %vm7250, %v8367
        %8395 = vst.msk [vmem:[%s8393] ss:$8 sm:$0x0] %vm7250, %v8367
        %s8396 = scalar_lea.vmem %s373, 418
        %8397 = vst.msk [vmem:[%s8396] ss:$8 sm:$0xf] %vm7250, %v8368
        %8398 = vst.msk [vmem:[%s8396] ss:$8 sm:$0x0] %vm7250, %v8368
        %s8399 = scalar_lea.vmem %s373, 482
        %8400 = vst.msk [vmem:[%s8399] ss:$8 sm:$0xf] %vm7250, %v8369
        %8401 = vst.msk [vmem:[%s8399] ss:$8 sm:$0x0] %vm7250, %v8369
        %v8402 = vcombine.high %v7938, %v7939
        %v8403 = vcombine.high %v7940, %v7941
        %v8405 = vunpack.c.l.s4 1966171168
        %v8406 = vunpack.c.0.s8 %v8405
        %v8407 = vlaneseq
        %v8408 = vshrl.u32 %v8407, 7
        %v8409 = vsub.s32 %v8406, %v8408
        %v8410 = vrot.slane %v8402, %v8409
        %v8412 = vunpack.c.l.s4 1966171168
        %v8413 = vunpack.c.0.s8 %v8412
        %v8414 = vlaneseq
        %v8415 = vshrl.u32 %v8414, 7
        %v8416 = vsub.s32 %v8413, %v8415
        %v8417 = vrot.slane %v8403, %v8416
        %v8418 = vcombine.low %v8410, %v8417
        %v8420 = vunpack.c.l.s4 1966171168
        %v8421 = vunpack.c.0.s8 %v8420
        %v8422 = vlaneseq
        %v8423 = vshrl.u32 %v8422, 7
        %v8424 = vsub.s32 %v8421, %v8423
        %v8425 = vrot.slane %v8418, %v8424
        %v8426 = vcombine.high %v7942, %v7943
        %v8427 = vcombine.high %v7944, %v7945
        %v8429 = vunpack.c.l.s4 1966171168
        %v8430 = vunpack.c.0.s8 %v8429
        %v8431 = vlaneseq
        %v8432 = vshrl.u32 %v8431, 7
        %v8433 = vsub.s32 %v8430, %v8432
        %v8434 = vrot.slane %v8426, %v8433
        %v8436 = vunpack.c.l.s4 1966171168
        %v8437 = vunpack.c.0.s8 %v8436
        %v8438 = vlaneseq
        %v8439 = vshrl.u32 %v8438, 7
        %v8440 = vsub.s32 %v8437, %v8439
        %v8441 = vrot.slane %v8427, %v8440
        %v8442 = vcombine.low %v8434, %v8441
        %v8444 = vunpack.c.l.s4 1966171168
        %v8445 = vunpack.c.0.s8 %v8444
        %v8446 = vlaneseq
        %v8447 = vshrl.u32 %v8446, 7
        %v8448 = vsub.s32 %v8445, %v8447
        %v8449 = vrot.slane %v8442, %v8448
        %v8450 = vcombine.high %v7946, %v7947
        %v8451 = vcombine.high %v7948, %v7949
        %v8453 = vunpack.c.l.s4 1966171168
        %v8454 = vunpack.c.0.s8 %v8453
        %v8455 = vlaneseq
        %v8456 = vshrl.u32 %v8455, 7
        %v8457 = vsub.s32 %v8454, %v8456
        %v8458 = vrot.slane %v8450, %v8457
        %v8460 = vunpack.c.l.s4 1966171168
        %v8461 = vunpack.c.0.s8 %v8460
        %v8462 = vlaneseq
        %v8463 = vshrl.u32 %v8462, 7
        %v8464 = vsub.s32 %v8461, %v8463
        %v8465 = vrot.slane %v8451, %v8464
        %v8466 = vcombine.low %v8458, %v8465
        %v8468 = vunpack.c.l.s4 1966171168
        %v8469 = vunpack.c.0.s8 %v8468
        %v8470 = vlaneseq
        %v8471 = vshrl.u32 %v8470, 7
        %v8472 = vsub.s32 %v8469, %v8471
        %v8473 = vrot.slane %v8466, %v8472
        %v8474 = vcombine.high %v7950, %v7951
        %v8475 = vcombine.high %v7952, %v7953
        %v8477 = vunpack.c.l.s4 1966171168
        %v8478 = vunpack.c.0.s8 %v8477
        %v8479 = vlaneseq
        %v8480 = vshrl.u32 %v8479, 7
        %v8481 = vsub.s32 %v8478, %v8480
        %v8482 = vrot.slane %v8474, %v8481
        %v8484 = vunpack.c.l.s4 1966171168
        %v8485 = vunpack.c.0.s8 %v8484
        %v8486 = vlaneseq
        %v8487 = vshrl.u32 %v8486, 7
        %v8488 = vsub.s32 %v8485, %v8487
        %v8489 = vrot.slane %v8475, %v8488
        %v8490 = vcombine.low %v8482, %v8489
        %v8492 = vunpack.c.l.s4 1966171168
        %v8493 = vunpack.c.0.s8 %v8492
        %v8494 = vlaneseq
        %v8495 = vshrl.u32 %v8494, 7
        %v8496 = vsub.s32 %v8493, %v8495
        %v8497 = vrot.slane %v8490, %v8496
        %v8498 = vcombine.high %v7954, %v7955
        %v8499 = vcombine.high %v7956, %v7957
        %v8501 = vunpack.c.l.s4 1966171168
        %v8502 = vunpack.c.0.s8 %v8501
        %v8503 = vlaneseq
        %v8504 = vshrl.u32 %v8503, 7
        %v8505 = vsub.s32 %v8502, %v8504
        %v8506 = vrot.slane %v8498, %v8505
        %v8508 = vunpack.c.l.s4 1966171168
        %v8509 = vunpack.c.0.s8 %v8508
        %v8510 = vlaneseq
        %v8511 = vshrl.u32 %v8510, 7
        %v8512 = vsub.s32 %v8509, %v8511
        %v8513 = vrot.slane %v8499, %v8512
        %v8514 = vcombine.low %v8506, %v8513
        %v8516 = vunpack.c.l.s4 1966171168
        %v8517 = vunpack.c.0.s8 %v8516
        %v8518 = vlaneseq
        %v8519 = vshrl.u32 %v8518, 7
        %v8520 = vsub.s32 %v8517, %v8519
        %v8521 = vrot.slane %v8514, %v8520
        %v8522 = vcombine.high %v7958, %v7959
        %v8523 = vcombine.high %v7960, %v7961
        %v8525 = vunpack.c.l.s4 1966171168
        %v8526 = vunpack.c.0.s8 %v8525
        %v8527 = vlaneseq
        %v8528 = vshrl.u32 %v8527, 7
        %v8529 = vsub.s32 %v8526, %v8528
        %v8530 = vrot.slane %v8522, %v8529
        %v8532 = vunpack.c.l.s4 1966171168
        %v8533 = vunpack.c.0.s8 %v8532
        %v8534 = vlaneseq
        %v8535 = vshrl.u32 %v8534, 7
        %v8536 = vsub.s32 %v8533, %v8535
        %v8537 = vrot.slane %v8523, %v8536
        %v8538 = vcombine.low %v8530, %v8537
        %v8540 = vunpack.c.l.s4 1966171168
        %v8541 = vunpack.c.0.s8 %v8540
        %v8542 = vlaneseq
        %v8543 = vshrl.u32 %v8542, 7
        %v8544 = vsub.s32 %v8541, %v8543
        %v8545 = vrot.slane %v8538, %v8544
        %v8546 = vcombine.high %v7962, %v7963
        %v8547 = vcombine.high %v7964, %v7965
        %v8549 = vunpack.c.l.s4 1966171168
        %v8550 = vunpack.c.0.s8 %v8549
        %v8551 = vlaneseq
        %v8552 = vshrl.u32 %v8551, 7
        %v8553 = vsub.s32 %v8550, %v8552
        %v8554 = vrot.slane %v8546, %v8553
        %v8556 = vunpack.c.l.s4 1966171168
        %v8557 = vunpack.c.0.s8 %v8556
        %v8558 = vlaneseq
        %v8559 = vshrl.u32 %v8558, 7
        %v8560 = vsub.s32 %v8557, %v8559
        %v8561 = vrot.slane %v8547, %v8560
        %v8562 = vcombine.low %v8554, %v8561
        %v8564 = vunpack.c.l.s4 1966171168
        %v8565 = vunpack.c.0.s8 %v8564
        %v8566 = vlaneseq
        %v8567 = vshrl.u32 %v8566, 7
        %v8568 = vsub.s32 %v8565, %v8567
        %v8569 = vrot.slane %v8562, %v8568
        %v8570 = vcombine.high %v7966, %v7967
        %v8571 = vcombine.high %v7968, %v7969
        %v8573 = vunpack.c.l.s4 1966171168
        %v8574 = vunpack.c.0.s8 %v8573
        %v8575 = vlaneseq
        %v8576 = vshrl.u32 %v8575, 7
        %v8577 = vsub.s32 %v8574, %v8576
        %v8578 = vrot.slane %v8570, %v8577
        %v8580 = vunpack.c.l.s4 1966171168
        %v8581 = vunpack.c.0.s8 %v8580
        %v8582 = vlaneseq
        %v8583 = vshrl.u32 %v8582, 7
        %v8584 = vsub.s32 %v8581, %v8583
        %v8585 = vrot.slane %v8571, %v8584
        %v8586 = vcombine.low %v8578, %v8585
        %v8588 = vunpack.c.l.s4 1966171168
        %v8589 = vunpack.c.0.s8 %v8588
        %v8590 = vlaneseq
        %v8591 = vshrl.u32 %v8590, 7
        %v8592 = vsub.s32 %v8589, %v8591
        %v8593 = vrot.slane %v8586, %v8592
        %s8602 = scalar_lea.vmem %s373, 35
        %8603 = vst.msk [vmem:[%s8602] ss:$8 sm:$0xf] %vm7250, %v8425
        %8604 = vst.msk [vmem:[%s8602] ss:$8 sm:$0x0] %vm7250, %v8425
        %s8605 = scalar_lea.vmem %s373, 99
        %8606 = vst.msk [vmem:[%s8605] ss:$8 sm:$0xf] %vm7250, %v8449
        %8607 = vst.msk [vmem:[%s8605] ss:$8 sm:$0x0] %vm7250, %v8449
        %s8608 = scalar_lea.vmem %s373, 163
        %8609 = vst.msk [vmem:[%s8608] ss:$8 sm:$0xf] %vm7250, %v8473
        %8610 = vst.msk [vmem:[%s8608] ss:$8 sm:$0x0] %vm7250, %v8473
        %s8611 = scalar_lea.vmem %s373, 227
        %8612 = vst.msk [vmem:[%s8611] ss:$8 sm:$0xf] %vm7250, %v8497
        %8613 = vst.msk [vmem:[%s8611] ss:$8 sm:$0x0] %vm7250, %v8497
        %s8614 = scalar_lea.vmem %s373, 291
        %8615 = vst.msk [vmem:[%s8614] ss:$8 sm:$0xf] %vm7250, %v8521
        %8616 = vst.msk [vmem:[%s8614] ss:$8 sm:$0x0] %vm7250, %v8521
        %s8617 = scalar_lea.vmem %s373, 355
        %8618 = vst.msk [vmem:[%s8617] ss:$8 sm:$0xf] %vm7250, %v8545
        %8619 = vst.msk [vmem:[%s8617] ss:$8 sm:$0x0] %vm7250, %v8545
        %s8620 = scalar_lea.vmem %s373, 419
        %8621 = vst.msk [vmem:[%s8620] ss:$8 sm:$0xf] %vm7250, %v8569
        %8622 = vst.msk [vmem:[%s8620] ss:$8 sm:$0x0] %vm7250, %v8569
        %s8623 = scalar_lea.vmem %s373, 483
        %8624 = vst.msk [vmem:[%s8623] ss:$8 sm:$0xf] %vm7250, %v8593
        %8625 = vst.msk [vmem:[%s8623] ss:$8 sm:$0x0] %vm7250, %v8593
        %v8626 = vcombine.high %v8410, %v8417
        %v8628 = vunpack.c.l.s4 1966171168
        %v8629 = vunpack.c.0.s8 %v8628
        %v8630 = vlaneseq
        %v8631 = vshrl.u32 %v8630, 7
        %v8632 = vsub.s32 %v8629, %v8631
        %v8633 = vrot.slane %v8626, %v8632
        %v8634 = vcombine.high %v8434, %v8441
        %v8636 = vunpack.c.l.s4 1966171168
        %v8637 = vunpack.c.0.s8 %v8636
        %v8638 = vlaneseq
        %v8639 = vshrl.u32 %v8638, 7
        %v8640 = vsub.s32 %v8637, %v8639
        %v8641 = vrot.slane %v8634, %v8640
        %v8642 = vcombine.high %v8458, %v8465
        %v8644 = vunpack.c.l.s4 1966171168
        %v8645 = vunpack.c.0.s8 %v8644
        %v8646 = vlaneseq
        %v8647 = vshrl.u32 %v8646, 7
        %v8648 = vsub.s32 %v8645, %v8647
        %v8649 = vrot.slane %v8642, %v8648
        %v8650 = vcombine.high %v8482, %v8489
        %v8652 = vunpack.c.l.s4 1966171168
        %v8653 = vunpack.c.0.s8 %v8652
        %v8654 = vlaneseq
        %v8655 = vshrl.u32 %v8654, 7
        %v8656 = vsub.s32 %v8653, %v8655
        %v8657 = vrot.slane %v8650, %v8656
        %v8658 = vcombine.high %v8506, %v8513
        %v8660 = vunpack.c.l.s4 1966171168
        %v8661 = vunpack.c.0.s8 %v8660
        %v8662 = vlaneseq
        %v8663 = vshrl.u32 %v8662, 7
        %v8664 = vsub.s32 %v8661, %v8663
        %v8665 = vrot.slane %v8658, %v8664
        %v8666 = vcombine.high %v8530, %v8537
        %v8668 = vunpack.c.l.s4 1966171168
        %v8669 = vunpack.c.0.s8 %v8668
        %v8670 = vlaneseq
        %v8671 = vshrl.u32 %v8670, 7
        %v8672 = vsub.s32 %v8669, %v8671
        %v8673 = vrot.slane %v8666, %v8672
        %v8674 = vcombine.high %v8554, %v8561
        %v8676 = vunpack.c.l.s4 1966171168
        %v8677 = vunpack.c.0.s8 %v8676
        %v8678 = vlaneseq
        %v8679 = vshrl.u32 %v8678, 7
        %v8680 = vsub.s32 %v8677, %v8679
        %v8681 = vrot.slane %v8674, %v8680
        %v8682 = vcombine.high %v8578, %v8585
        %v8684 = vunpack.c.l.s4 1966171168
        %v8685 = vunpack.c.0.s8 %v8684
        %v8686 = vlaneseq
        %v8687 = vshrl.u32 %v8686, 7
        %v8688 = vsub.s32 %v8685, %v8687
        %v8689 = vrot.slane %v8682, %v8688
        %s8698 = scalar_lea.vmem %s373, 36
        %8699 = vst.msk [vmem:[%s8698] ss:$8 sm:$0xf] %vm7250, %v8633
        %8700 = vst.msk [vmem:[%s8698] ss:$8 sm:$0x0] %vm7250, %v8633
        %s8701 = scalar_lea.vmem %s373, 100
        %8702 = vst.msk [vmem:[%s8701] ss:$8 sm:$0xf] %vm7250, %v8641
        %8703 = vst.msk [vmem:[%s8701] ss:$8 sm:$0x0] %vm7250, %v8641
        %s8704 = scalar_lea.vmem %s373, 164
        %8705 = vst.msk [vmem:[%s8704] ss:$8 sm:$0xf] %vm7250, %v8649
        %8706 = vst.msk [vmem:[%s8704] ss:$8 sm:$0x0] %vm7250, %v8649
        %s8707 = scalar_lea.vmem %s373, 228
        %8708 = vst.msk [vmem:[%s8707] ss:$8 sm:$0xf] %vm7250, %v8657
        %8709 = vst.msk [vmem:[%s8707] ss:$8 sm:$0x0] %vm7250, %v8657
        %s8710 = scalar_lea.vmem %s373, 292
        %8711 = vst.msk [vmem:[%s8710] ss:$8 sm:$0xf] %vm7250, %v8665
        %8712 = vst.msk [vmem:[%s8710] ss:$8 sm:$0x0] %vm7250, %v8665
        %s8713 = scalar_lea.vmem %s373, 356
        %8714 = vst.msk [vmem:[%s8713] ss:$8 sm:$0xf] %vm7250, %v8673
        %8715 = vst.msk [vmem:[%s8713] ss:$8 sm:$0x0] %vm7250, %v8673
        %s8716 = scalar_lea.vmem %s373, 420
        %8717 = vst.msk [vmem:[%s8716] ss:$8 sm:$0xf] %vm7250, %v8681
        %8718 = vst.msk [vmem:[%s8716] ss:$8 sm:$0x0] %vm7250, %v8681
        %s8719 = scalar_lea.vmem %s373, 484
        %8720 = vst.msk [vmem:[%s8719] ss:$8 sm:$0xf] %vm7250, %v8689
        %8721 = vst.msk [vmem:[%s8719] ss:$8 sm:$0x0] %vm7250, %v8689
        %v8722 = vcombine.high %v8425, %v8425
        %v8723 = vcombine.high %v8449, %v8449
        %v8724 = vcombine.high %v8473, %v8473
        %v8725 = vcombine.high %v8497, %v8497
        %v8726 = vcombine.high %v8521, %v8521
        %v8727 = vcombine.high %v8545, %v8545
        %v8728 = vcombine.high %v8569, %v8569
        %v8729 = vcombine.high %v8593, %v8593
        %s8738 = scalar_lea.vmem %s373, 37
        %8739 = vst.msk [vmem:[%s8738] ss:$8 sm:$0xf] %vm7250, %v8722
        %8740 = vst.msk [vmem:[%s8738] ss:$8 sm:$0x0] %vm7250, %v8722
        %s8741 = scalar_lea.vmem %s373, 101
        %8742 = vst.msk [vmem:[%s8741] ss:$8 sm:$0xf] %vm7250, %v8723
        %8743 = vst.msk [vmem:[%s8741] ss:$8 sm:$0x0] %vm7250, %v8723
        %s8744 = scalar_lea.vmem %s373, 165
        %8745 = vst.msk [vmem:[%s8744] ss:$8 sm:$0xf] %vm7250, %v8724
        %8746 = vst.msk [vmem:[%s8744] ss:$8 sm:$0x0] %vm7250, %v8724
        %s8747 = scalar_lea.vmem %s373, 229
        %8748 = vst.msk [vmem:[%s8747] ss:$8 sm:$0xf] %vm7250, %v8725
        %8749 = vst.msk [vmem:[%s8747] ss:$8 sm:$0x0] %vm7250, %v8725
        %s8750 = scalar_lea.vmem %s373, 293
        %8751 = vst.msk [vmem:[%s8750] ss:$8 sm:$0xf] %vm7250, %v8726
        %8752 = vst.msk [vmem:[%s8750] ss:$8 sm:$0x0] %vm7250, %v8726
        %s8753 = scalar_lea.vmem %s373, 357
        %8754 = vst.msk [vmem:[%s8753] ss:$8 sm:$0xf] %vm7250, %v8727
        %8755 = vst.msk [vmem:[%s8753] ss:$8 sm:$0x0] %vm7250, %v8727
        %s8756 = scalar_lea.vmem %s373, 421
        %8757 = vst.msk [vmem:[%s8756] ss:$8 sm:$0xf] %vm7250, %v8728
        %8758 = vst.msk [vmem:[%s8756] ss:$8 sm:$0x0] %vm7250, %v8728
        %s8759 = scalar_lea.vmem %s373, 485
        %8760 = vst.msk [vmem:[%s8759] ss:$8 sm:$0xf] %vm7250, %v8729
        %8761 = vst.msk [vmem:[%s8759] ss:$8 sm:$0x0] %vm7250, %v8729
        %s8762 = smul.u32 8, %s24
        %p8763 = scmp.lt.s32.totalorder %s8762, 15
        %s8764 = scalar_select %p8763, %s8762, 15
        %s8765 = smul.addr %s8764, 8
        %s8766 = smul.addr %s8765, 8
        %s8767 = scalar_lea.vmem %s8, %s8766
        // Predicated region
        $region69: #{tpu_custom_call.1} parent=51 // pred_check
          %p8768 = pneg %p215
        $region70: #{tpu_custom_call.1} parent=51 // pred_check_branch
          %8770 = sbr.rel (%p8768) target = $region72
        $region71: #{tpu_custom_call.1} parent=51 // pred_region
          %s8771 = smul.u32 8, %s24
        $region72: #{tpu_custom_call.1} parent=51 // pred_fallthru
          _
      $region52: #{tpu_custom_call.1} parent=5 // pred_fallthru
        _
      %p8772 = scmp.le.s32.totalorder 2, %s19
      // Predicated region
      $region73: #{tpu_custom_call.1} parent=5 // pred_check
        %p8773 = pneg %p8772
      $region74: #{tpu_custom_call.1} parent=5 // pred_check_branch
        %8775 = sbr.rel (%p8773) target = $region76
      $region75: #{tpu_custom_call.1} parent=5 // pred_region
        %s8776 = ssub.s32 %s19, 2
        // Predicated region
        $region77: #{tpu_custom_call.1} parent=75 // pred_check
          %p8777 = pneg %p221
        $region78: #{tpu_custom_call.1} parent=75 // pred_check_branch
          %8779 = sbr.rel (%p8777) target = $region80
        $region79: #{tpu_custom_call.1} parent=75 // pred_region
          %s8780 = smul.u32 8, %s25
          %p8781 = scmp.lt.s32.totalorder %s8780, 15
          %s8782 = scalar_select %p8781, %s8780, 15
          %s8783 = smul.addr %s8782, 8
          %s8784 = smul.addr %s8783, 8
          %s8785 = scalar_lea.vmem %s8, %s8784
        $region80: #{tpu_custom_call.1} parent=75 // pred_fallthru
          _
      $region76: #{tpu_custom_call.1} parent=5 // pred_fallthru
        _
    $region6: #{tpu_custom_call.1} parent=1 // loop_footer
      %s23 = sadd.s32 1, %s19
    $region7: #{tpu_custom_call.1} parent=1 // loop_footer_branch
      %18 = sbr.rel target = $region3
    $region8: #{tpu_custom_call.1} parent=1 // loop_exit
      _
    %8786 = vsyncpa [#allocation3], 1
    %s8787 = scalar_lea.sflag [#allocation3], 1
    %8788 = vsyncpa %s8787, 1
    %8789 = vsyncpa [#allocation5], 1
    %8790 = vsyncpa [#allocation8], 1

</llo_original>
